<compile_context>
chip_gen: v7x
topology: tpu7x:2x2x1
jax: 0.10.0
libtpu: 0.0.40
codegen_flags: <defaults>
</compile_context>

<pallas_src>
import functools

import jax
import jax.numpy as jnp
from jax.experimental import pallas as pl
from jax.experimental.pallas import tpu as pltpu


def _default_compute_dtype():
    """bf16 intermediates on v6e/v7x; f32 on v5e and older (no bf16 VPU/EUP)."""
    try:
        kind = jax.devices()[0].device_kind.lower()
    except Exception:  # pragma: no cover - defensive
        return jnp.float32
    if any(tag in kind for tag in ("v2", "v3", "v4", "v5")):
        return jnp.float32
    return jnp.bfloat16


def _pick_block_b(B, max_block=64, target_steps=8):
    """Largest multiple-of-8 batch tile <= max_block that still leaves a
    reasonably long grid (so the values DMA stays hidden behind compute)."""
    if B % 8 != 0:
        return B  # tiny / odd batch: single full-batch block
    candidates = [bb for bb in range(8, min(B, max_block) + 1, 8) if B % bb == 0]
    if not candidates:
        return B
    for steps in (target_steps, 4, 2, 1):
        ok = [bb for bb in candidates if B // bb >= steps]
        if ok:
            return max(ok)
    return min(candidates)


def _attn_kernel(q_ref, v_ref, wq_ref, wv_ref, bias_ref, vw_ref,
                 ctx_ref, attn_ref, *, compute_dtype, chunk_b):
    Bt, T, V = v_ref.shape
    A = wq_ref.shape[1]

    # Resident parameters: cast once per grid step (hoisted out of the chunk loop).
    wq = wq_ref[...].astype(jnp.bfloat16)                 # [Q, A]
    wv = wv_ref[...].astype(jnp.bfloat16)                 # [V, A]
    vw = vw_ref[...].astype(compute_dtype).reshape(1, 1, A)
    bias = bias_ref[...]                                  # [1, A] f32 (= bq + bv)

    # Query projection for the whole batch tile: one small bf16 MXU matmul with
    # f32 accumulation (explicit cast -> never the multi-pass f32 path).
    qa = jnp.dot(q_ref[...].astype(jnp.bfloat16), wq,
                 preferred_element_type=jnp.float32) + bias          # [Bt, A] f32

    # Fused per-chunk pipeline over the batch tile: keys/h stay chunk-local
    # (register-resident) instead of being materialized to VMEM.
    for off in range(0, Bt, chunk_b):
        vals_c = v_ref[pl.ds(off, chunk_b)]                          # [cb, T, V] f32
        vals_cb = vals_c.astype(jnp.bfloat16)

        # keys = values @ Wv^T  — one MXU matmul over cb*T rows.
        keys_c = jnp.dot(vals_cb.reshape(chunk_b * T, V), wv,
                         preferred_element_type=jnp.float32
                         ).reshape(chunk_b, T, A)                    # f32

        # tanh(query + keys) in the generation-appropriate dtype.
        h_c = jnp.tanh(
            (keys_c + qa[off:off + chunk_b][:, None, :]).astype(compute_dtype))

        # scores e = <h, v_w>: multiply + lane-reduce over A, f32 accumulation.
        # (vb omitted: constant shift of e is a no-op under softmax.)
        e_c = jnp.sum(h_c * vw, axis=-1, dtype=jnp.float32)          # [cb, T]

        # Numerically stable softmax over T (lane axis).
        m_c = jnp.max(e_c, axis=-1, keepdims=True)
        p_c = jnp.exp(e_c - m_c)
        denom = jnp.sum(p_c, axis=-1, keepdims=True)
        a_c = p_c * pl.reciprocal(denom, approx=True)                # [cb, T] f32

        # context c = a @ values as a batched MXU contraction (q-dim = 1),
        # avoiding the lane->sublane relayout of a broadcast-multiply reduce.
        ctx_c = jnp.einsum(
            'bqt,btv->bqv',
            a_c.astype(jnp.bfloat16).reshape(chunk_b, 1, T),
            vals_cb,
            preferred_element_type=jnp.float32,
        ).reshape(chunk_b, V)                                        # [cb, V]

        ctx_ref[pl.ds(off, chunk_b), :] = ctx_c.astype(ctx_ref.dtype)
        attn_ref[pl.ds(off, chunk_b), :] = a_c.astype(attn_ref.dtype)


def bahdanau_attention(query, values, params, *, block_b=None, compute_dtype=None):
    """query: [B, Q] f32, values: [B, T, V] f32 -> (context [B, V], attn [B, T])."""
    B, Q = query.shape
    _, T, V = values.shape
    wqT, bq, wvT, bv, vwT, vb = params
    A = wqT.shape[1]

    if compute_dtype is None:
        compute_dtype = _default_compute_dtype()
    if block_b is None:
        block_b = _pick_block_b(B)
    assert B % block_b == 0, "batch must be divisible by the batch block"

    # Fold the two projection biases into one row; drop vb entirely
    # (constant score shift -> no effect on softmax / context / attention).
    bias = (bq + bv).reshape(1, A).astype(jnp.float32)
    vw_row = vwT.reshape(1, A).astype(jnp.float32)   # lane-dense v weight row

    # ~256-row fused compute chunks (chunk_b batch rows of T each).
    chunk_b = max(1, min(block_b, 256 // max(T, 1)))
    while block_b % chunk_b:
        chunk_b -= 1

    kernel = functools.partial(_attn_kernel,
                               compute_dtype=compute_dtype,
                               chunk_b=chunk_b)

    grid_spec = pltpu.PrefetchScalarGridSpec(
        num_scalar_prefetch=0,
        grid=(B // block_b,),
        in_specs=[
            pl.BlockSpec((block_b, Q), lambda b: (b, 0)),        # query
            pl.BlockSpec((block_b, T, V), lambda b: (b, 0, 0)),  # values
            pl.BlockSpec((Q, A), lambda b: (0, 0)),              # Wq^T (resident)
            pl.BlockSpec((V, A), lambda b: (0, 0)),              # Wv^T (resident)
            pl.BlockSpec((1, A), lambda b: (0, 0)),              # bq + bv
            pl.BlockSpec((1, A), lambda b: (0, 0)),              # v weight row
        ],
        out_specs=[
            pl.BlockSpec((block_b, V), lambda b: (b, 0)),        # context
            pl.BlockSpec((block_b, T), lambda b: (b, 0)),        # attention
        ],
    )

    return pl.pallas_call(
        kernel,
        out_shape=(
            jax.ShapeDtypeStruct((B, V), jnp.float32),
            jax.ShapeDtypeStruct((B, T), jnp.float32),
        ),
        grid_spec=grid_spec,
        compiler_params=pltpu.CompilerParams(
            # independent batch axis -> shards across v7x's 2 TensorCores
            dimension_semantics=("parallel",)),
    )(query, values, wqT, wvT, bias, vw_row)


def reference(query, values, params):
    """Faithful JAX port of the PyTorch module's forward() (full f32 precision)."""
    wqT, bq, wvT, bv, vwT, vb = params
    hp = jax.lax.Precision.HIGHEST
    keys = jnp.matmul(values, wvT, precision=hp) + bv     # [B, T, A]
    qa = jnp.matmul(query, wqT, precision=hp) + bq        # [B, A]
    h = jnp.tanh(qa[:, None, :] + keys)                   # [B, T, A]
    e = jnp.matmul(h, vwT, precision=hp)[..., 0] + vb[0, 0]   # [B, T]
    a = jax.nn.softmax(e, axis=-1)                        # [B, T]
    c = jnp.einsum("bt,btv->bv", a, values, precision=hp)     # [B, V]
    return c, a


def make_params(key, query_dim, values_dim, attention_dim):
    ks = jax.random.split(key, 6)
    scale = 0.1
    wqT = scale * jax.random.normal(ks[0], (query_dim, attention_dim), jnp.float32)
    bq = scale * jax.random.normal(ks[1], (1, attention_dim), jnp.float32)
    wvT = scale * jax.random.normal(ks[2], (values_dim, attention_dim), jnp.float32)
    bv = scale * jax.random.normal(ks[3], (1, attention_dim), jnp.float32)
    vwT = scale * jax.random.normal(ks[4], (attention_dim, 1), jnp.float32)
    vb = scale * jax.random.normal(ks[5], (1, 1), jnp.float32)
    return (wqT, bq, wvT, bv, vwT, vb)


if __name__ == "__main__":
    # Small, lane-dense shapes; B=64 gives 8 grid steps of 8 batch rows
    # (>= 4 steps per TensorCore on v7x) so the values DMA pipeline overlaps.
    B, T = 64, 128
    query_dim, values_dim, attention_dim = 128, 128, 128

    key = jax.random.PRNGKey(0)
    k_q, k_v, k_p = jax.random.split(key, 3)
    query = jax.random.normal(k_q, (B, query_dim), jnp.float32)
    values = jax.random.normal(k_v, (B, T, values_dim), jnp.float32)
    params = make_params(k_p, query_dim, values_dim, attention_dim)

    ctx, attn = bahdanau_attention(query, values, params)
    jax.block_until_ready((ctx, attn))

    ctx_ref, attn_ref = reference(query, values, params)
    # Tolerance covers the bf16 MXU path, bf16 tanh/score intermediates on
    # v6e/v7x and the EUP approximate-reciprocal normalisation; any structural
    # error would be orders of magnitude larger.
    assert jnp.allclose(attn, attn_ref, atol=1e-2, rtol=1e-2)
    assert jnp.allclose(ctx, ctx_ref, atol=1e-2, rtol=1e-2)

    print("KERNEL_OK")
</pallas_src>

<mosaic_0001>
module attributes {stable_mosaic.version = 11 : i64} {
  func.func @_attn_kernel(%arg0: i32, %arg1: memref<8x128xf32, #tpu.memory_space<vmem>>, %arg2: memref<8x128x128xf32, #tpu.memory_space<vmem>>, %arg3: memref<128x128xf32, #tpu.memory_space<vmem>>, %arg4: memref<128x128xf32, #tpu.memory_space<vmem>>, %arg5: memref<1x128xf32, #tpu.memory_space<vmem>>, %arg6: memref<1x128xf32, #tpu.memory_space<vmem>>, %arg7: memref<8x128xf32, #tpu.memory_space<vmem>>, %arg8: memref<8x128xf32, #tpu.memory_space<vmem>>) attributes {dimension_semantics = [#tpu.dimension_semantics<parallel>], iteration_bounds = array<i64: 8>, scalar_prefetch = 0 : i64, scratch_operands = 0 : i64, tpu.core_type = #tpu.core_type<tc>, window_params = [{transform_indices = @transform_0, window_bounds = array<i64: 8, 128>}, {transform_indices = @transform_1, window_bounds = array<i64: 8, 128, 128>}, {pipeline_mode = #tpu.pipeline_mode<synchronous>, transform_indices = @transform_2, window_bounds = array<i64: 128, 128>}, {pipeline_mode = #tpu.pipeline_mode<synchronous>, transform_indices = @transform_3, window_bounds = array<i64: 128, 128>}, {pipeline_mode = #tpu.pipeline_mode<synchronous>, transform_indices = @transform_4, window_bounds = array<i64: 1, 128>}, {pipeline_mode = #tpu.pipeline_mode<synchronous>, transform_indices = @transform_5, window_bounds = array<i64: 1, 128>}, {transform_indices = @transform_6, window_bounds = array<i64: 8, 128>}, {transform_indices = @transform_7, window_bounds = array<i64: 8, 128>}]} {
    %c0 = arith.constant 0 : index
    %c0_0 = arith.constant 0 : index
    %0 = vector.load %arg3[%c0, %c0_0] : memref<128x128xf32, #tpu.memory_space<vmem>>, vector<128x128xf32>
    %1 = arith.truncf %0 : vector<128x128xf32> to vector<128x128xbf16>
    %c0_1 = arith.constant 0 : index
    %c0_2 = arith.constant 0 : index
    %2 = vector.load %arg4[%c0_1, %c0_2] : memref<128x128xf32, #tpu.memory_space<vmem>>, vector<128x128xf32>
    %3 = arith.truncf %2 : vector<128x128xf32> to vector<128x128xbf16>
    %c0_3 = arith.constant 0 : index
    %c0_4 = arith.constant 0 : index
    %4 = vector.load %arg6[%c0_3, %c0_4] : memref<1x128xf32, #tpu.memory_space<vmem>>, vector<1x128xf32>
    %5 = arith.truncf %4 : vector<1x128xf32> to vector<1x128xbf16>
    %6 = vector.shape_cast %5 : vector<1x128xbf16> to vector<1x1x128xbf16>
    %c0_5 = arith.constant 0 : index
    %c0_6 = arith.constant 0 : index
    %7 = vector.load %arg5[%c0_5, %c0_6] : memref<1x128xf32, #tpu.memory_space<vmem>>, vector<1x128xf32>
    %c0_7 = arith.constant 0 : index
    %c0_8 = arith.constant 0 : index
    %8 = vector.load %arg1[%c0_7, %c0_8] : memref<8x128xf32, #tpu.memory_space<vmem>>, vector<8x128xf32>
    %9 = arith.truncf %8 : vector<8x128xf32> to vector<8x128xbf16>
    %cst = arith.constant dense<0.000000e+00> : vector<8x128xf32>
    %10 = tpu.matmul %9, %1, %cst {dimension_numbers = #tpu.dot_dimension_numbers<[1], [0], [0], [1], [0, 0, 1, 1], [], []>} : vector<8x128xbf16>, vector<128x128xbf16>, vector<8x128xf32> -> vector<8x128xf32>
    %11 = vector.broadcast %7 : vector<1x128xf32> to vector<8x128xf32>
    %12 = arith.addf %10, %11 : vector<8x128xf32>
    %c0_9 = arith.constant 0 : index
    %c0_10 = arith.constant 0 : index
    %c0_11 = arith.constant 0 : index
    %13 = vector.load %arg2[%c0_9, %c0_10, %c0_11] : memref<8x128x128xf32, #tpu.memory_space<vmem>>, vector<2x128x128xf32>
    %14 = arith.truncf %13 : vector<2x128x128xf32> to vector<2x128x128xbf16>
    %15 = vector.shape_cast %14 : vector<2x128x128xbf16> to vector<256x128xbf16>
    %cst_12 = arith.constant dense<0.000000e+00> : vector<256x128xf32>
    %16 = tpu.matmul %15, %3, %cst_12 {dimension_numbers = #tpu.dot_dimension_numbers<[1], [0], [0], [1], [0, 0, 1, 1], [], []>} : vector<256x128xbf16>, vector<128x128xbf16>, vector<256x128xf32> -> vector<256x128xf32>
    %17 = vector.shape_cast %16 : vector<256x128xf32> to vector<2x128x128xf32>
    %18 = vector.extract_strided_slice %12 {offsets = [0, 0], sizes = [2, 128], strides = [1, 1]} : vector<8x128xf32> to vector<2x128xf32>
    %19 = vector.shape_cast %18 : vector<2x128xf32> to vector<2x1x128xf32>
    %20 = vector.broadcast %19 : vector<2x1x128xf32> to vector<2x128x128xf32>
    %21 = arith.addf %17, %20 : vector<2x128x128xf32>
    %22 = arith.truncf %21 : vector<2x128x128xf32> to vector<2x128x128xbf16>
    %23 = math.tanh %22 : vector<2x128x128xbf16>
    %24 = vector.broadcast %6 : vector<1x1x128xbf16> to vector<2x128x128xbf16>
    %25 = arith.mulf %23, %24 : vector<2x128x128xbf16>
    %26 = arith.extf %25 : vector<2x128x128xbf16> to vector<2x128x128xf32>
    %cst_13 = arith.constant dense<0.000000e+00> : vector<2x128xf32>
    %27 = vector.multi_reduction <add>, %26, %cst_13 [2] : vector<2x128x128xf32> to vector<2x128xf32>
    %cst_14 = arith.constant dense<0xFF800000> : vector<2xf32>
    %28 = vector.multi_reduction <maximumf>, %27, %cst_14 [1] : vector<2x128xf32> to vector<2xf32>
    %29 = vector.shape_cast %28 : vector<2xf32> to vector<2x1xf32>
    %30 = vector.broadcast %29 : vector<2x1xf32> to vector<2x128xf32>
    %31 = arith.subf %27, %30 : vector<2x128xf32>
    %32 = math.exp %31 : vector<2x128xf32>
    %cst_15 = arith.constant dense<0.000000e+00> : vector<2xf32>
    %33 = vector.multi_reduction <add>, %32, %cst_15 [1] : vector<2x128xf32> to vector<2xf32>
    %34 = vector.shape_cast %33 : vector<2xf32> to vector<2x1xf32>
    %35 = tpu.reciprocal %34 {approx = true} : vector<2x1xf32> -> vector<2x1xf32>
    %36 = vector.broadcast %35 : vector<2x1xf32> to vector<2x128xf32>
    %37 = arith.mulf %32, %36 : vector<2x128xf32>
    %38 = arith.truncf %37 : vector<2x128xf32> to vector<2x128xbf16>
    %39 = vector.shape_cast %38 : vector<2x128xbf16> to vector<2x1x128xbf16>
    "tpu.trace_start"() <{level = 10 : i32, message = "bqt,btv->bqv"}> : () -> ()
    %cst_16 = arith.constant dense<0.000000e+00> : vector<2x1x128xf32>
    %40 = tpu.matmul %39, %14, %cst_16 {dimension_numbers = #tpu.dot_dimension_numbers<[2], [1], [1], [2], [0, 0, 0, 1, 1, 2], [0], [0]>} : vector<2x1x128xbf16>, vector<2x128x128xbf16>, vector<2x1x128xf32> -> vector<2x1x128xf32>
    "tpu.trace_stop"() : () -> ()
    %41 = vector.shape_cast %40 : vector<2x1x128xf32> to vector<2x128xf32>
    %c0_17 = arith.constant 0 : index
    %c0_18 = arith.constant 0 : index
    %42 = vector.load %arg7[%c0_17, %c0_18] : memref<8x128xf32, #tpu.memory_space<vmem>>, vector<2x128xf32>
    tpu.vector_store %arg7[%c0_17, %c0_18], %41 {strides = array<i32>} : memref<8x128xf32, #tpu.memory_space<vmem>>, vector<2x128xf32>,
    %c0_19 = arith.constant 0 : index
    %c0_20 = arith.constant 0 : index
    %43 = vector.load %arg8[%c0_19, %c0_20] : memref<8x128xf32, #tpu.memory_space<vmem>>, vector<2x128xf32>
    tpu.vector_store %arg8[%c0_19, %c0_20], %37 {strides = array<i32>} : memref<8x128xf32, #tpu.memory_space<vmem>>, vector<2x128xf32>,
    %c2 = arith.constant 2 : index
    %c0_21 = arith.constant 0 : index
    %c0_22 = arith.constant 0 : index
    %44 = vector.load %arg2[%c2, %c0_21, %c0_22] : memref<8x128x128xf32, #tpu.memory_space<vmem>>, vector<2x128x128xf32>
    %45 = arith.truncf %44 : vector<2x128x128xf32> to vector<2x128x128xbf16>
    %46 = vector.shape_cast %45 : vector<2x128x128xbf16> to vector<256x128xbf16>
    %cst_23 = arith.constant dense<0.000000e+00> : vector<256x128xf32>
    %47 = tpu.matmul %46, %3, %cst_23 {dimension_numbers = #tpu.dot_dimension_numbers<[1], [0], [0], [1], [0, 0, 1, 1], [], []>} : vector<256x128xbf16>, vector<128x128xbf16>, vector<256x128xf32> -> vector<256x128xf32>
    %48 = vector.shape_cast %47 : vector<256x128xf32> to vector<2x128x128xf32>
    %49 = vector.extract_strided_slice %12 {offsets = [2, 0], sizes = [2, 128], strides = [1, 1]} : vector<8x128xf32> to vector<2x128xf32>
    %50 = vector.shape_cast %49 : vector<2x128xf32> to vector<2x1x128xf32>
    %51 = vector.broadcast %50 : vector<2x1x128xf32> to vector<2x128x128xf32>
    %52 = arith.addf %48, %51 : vector<2x128x128xf32>
    %53 = arith.truncf %52 : vector<2x128x128xf32> to vector<2x128x128xbf16>
    %54 = math.tanh %53 : vector<2x128x128xbf16>
    %55 = vector.broadcast %6 : vector<1x1x128xbf16> to vector<2x128x128xbf16>
    %56 = arith.mulf %54, %55 : vector<2x128x128xbf16>
    %57 = arith.extf %56 : vector<2x128x128xbf16> to vector<2x128x128xf32>
    %cst_24 = arith.constant dense<0.000000e+00> : vector<2x128xf32>
    %58 = vector.multi_reduction <add>, %57, %cst_24 [2] : vector<2x128x128xf32> to vector<2x128xf32>
    %cst_25 = arith.constant dense<0xFF800000> : vector<2xf32>
    %59 = vector.multi_reduction <maximumf>, %58, %cst_25 [1] : vector<2x128xf32> to vector<2xf32>
    %60 = vector.shape_cast %59 : vector<2xf32> to vector<2x1xf32>
    %61 = vector.broadcast %60 : vector<2x1xf32> to vector<2x128xf32>
    %62 = arith.subf %58, %61 : vector<2x128xf32>
    %63 = math.exp %62 : vector<2x128xf32>
    %cst_26 = arith.constant dense<0.000000e+00> : vector<2xf32>
    %64 = vector.multi_reduction <add>, %63, %cst_26 [1] : vector<2x128xf32> to vector<2xf32>
    %65 = vector.shape_cast %64 : vector<2xf32> to vector<2x1xf32>
    %66 = tpu.reciprocal %65 {approx = true} : vector<2x1xf32> -> vector<2x1xf32>
    %67 = vector.broadcast %66 : vector<2x1xf32> to vector<2x128xf32>
    %68 = arith.mulf %63, %67 : vector<2x128xf32>
    %69 = arith.truncf %68 : vector<2x128xf32> to vector<2x128xbf16>
    %70 = vector.shape_cast %69 : vector<2x128xbf16> to vector<2x1x128xbf16>
    "tpu.trace_start"() <{level = 10 : i32, message = "bqt,btv->bqv"}> : () -> ()
    %cst_27 = arith.constant dense<0.000000e+00> : vector<2x1x128xf32>
    %71 = tpu.matmul %70, %45, %cst_27 {dimension_numbers = #tpu.dot_dimension_numbers<[2], [1], [1], [2], [0, 0, 0, 1, 1, 2], [0], [0]>} : vector<2x1x128xbf16>, vector<2x128x128xbf16>, vector<2x1x128xf32> -> vector<2x1x128xf32>
    "tpu.trace_stop"() : () -> ()
    %72 = vector.shape_cast %71 : vector<2x1x128xf32> to vector<2x128xf32>
    %c2_28 = arith.constant 2 : index
    %c0_29 = arith.constant 0 : index
    %73 = vector.load %arg7[%c2_28, %c0_29] : memref<8x128xf32, #tpu.memory_space<vmem>>, vector<2x128xf32>
    tpu.vector_store %arg7[%c2_28, %c0_29], %72 {strides = array<i32>} : memref<8x128xf32, #tpu.memory_space<vmem>>, vector<2x128xf32>,
    %c2_30 = arith.constant 2 : index
    %c0_31 = arith.constant 0 : index
    %74 = vector.load %arg8[%c2_30, %c0_31] : memref<8x128xf32, #tpu.memory_space<vmem>>, vector<2x128xf32>
    tpu.vector_store %arg8[%c2_30, %c0_31], %68 {strides = array<i32>} : memref<8x128xf32, #tpu.memory_space<vmem>>, vector<2x128xf32>,
    %c4 = arith.constant 4 : index
    %c0_32 = arith.constant 0 : index
    %c0_33 = arith.constant 0 : index
    %75 = vector.load %arg2[%c4, %c0_32, %c0_33] : memref<8x128x128xf32, #tpu.memory_space<vmem>>, vector<2x128x128xf32>
    %76 = arith.truncf %75 : vector<2x128x128xf32> to vector<2x128x128xbf16>
    %77 = vector.shape_cast %76 : vector<2x128x128xbf16> to vector<256x128xbf16>
    %cst_34 = arith.constant dense<0.000000e+00> : vector<256x128xf32>
    %78 = tpu.matmul %77, %3, %cst_34 {dimension_numbers = #tpu.dot_dimension_numbers<[1], [0], [0], [1], [0, 0, 1, 1], [], []>} : vector<256x128xbf16>, vector<128x128xbf16>, vector<256x128xf32> -> vector<256x128xf32>
    %79 = vector.shape_cast %78 : vector<256x128xf32> to vector<2x128x128xf32>
    %80 = vector.extract_strided_slice %12 {offsets = [4, 0], sizes = [2, 128], strides = [1, 1]} : vector<8x128xf32> to vector<2x128xf32>
    %81 = vector.shape_cast %80 : vector<2x128xf32> to vector<2x1x128xf32>
    %82 = vector.broadcast %81 : vector<2x1x128xf32> to vector<2x128x128xf32>
    %83 = arith.addf %79, %82 : vector<2x128x128xf32>
    %84 = arith.truncf %83 : vector<2x128x128xf32> to vector<2x128x128xbf16>
    %85 = math.tanh %84 : vector<2x128x128xbf16>
    %86 = vector.broadcast %6 : vector<1x1x128xbf16> to vector<2x128x128xbf16>
    %87 = arith.mulf %85, %86 : vector<2x128x128xbf16>
    %88 = arith.extf %87 : vector<2x128x128xbf16> to vector<2x128x128xf32>
    %cst_35 = arith.constant dense<0.000000e+00> : vector<2x128xf32>
    %89 = vector.multi_reduction <add>, %88, %cst_35 [2] : vector<2x128x128xf32> to vector<2x128xf32>
    %cst_36 = arith.constant dense<0xFF800000> : vector<2xf32>
    %90 = vector.multi_reduction <maximumf>, %89, %cst_36 [1] : vector<2x128xf32> to vector<2xf32>
    %91 = vector.shape_cast %90 : vector<2xf32> to vector<2x1xf32>
    %92 = vector.broadcast %91 : vector<2x1xf32> to vector<2x128xf32>
    %93 = arith.subf %89, %92 : vector<2x128xf32>
    %94 = math.exp %93 : vector<2x128xf32>
    %cst_37 = arith.constant dense<0.000000e+00> : vector<2xf32>
    %95 = vector.multi_reduction <add>, %94, %cst_37 [1] : vector<2x128xf32> to vector<2xf32>
    %96 = vector.shape_cast %95 : vector<2xf32> to vector<2x1xf32>
    %97 = tpu.reciprocal %96 {approx = true} : vector<2x1xf32> -> vector<2x1xf32>
    %98 = vector.broadcast %97 : vector<2x1xf32> to vector<2x128xf32>
    %99 = arith.mulf %94, %98 : vector<2x128xf32>
    %100 = arith.truncf %99 : vector<2x128xf32> to vector<2x128xbf16>
    %101 = vector.shape_cast %100 : vector<2x128xbf16> to vector<2x1x128xbf16>
    "tpu.trace_start"() <{level = 10 : i32, message = "bqt,btv->bqv"}> : () -> ()
    %cst_38 = arith.constant dense<0.000000e+00> : vector<2x1x128xf32>
    %102 = tpu.matmul %101, %76, %cst_38 {dimension_numbers = #tpu.dot_dimension_numbers<[2], [1], [1], [2], [0, 0, 0, 1, 1, 2], [0], [0]>} : vector<2x1x128xbf16>, vector<2x128x128xbf16>, vector<2x1x128xf32> -> vector<2x1x128xf32>
    "tpu.trace_stop"() : () -> ()
    %103 = vector.shape_cast %102 : vector<2x1x128xf32> to vector<2x128xf32>
    %c4_39 = arith.constant 4 : index
    %c0_40 = arith.constant 0 : index
    %104 = vector.load %arg7[%c4_39, %c0_40] : memref<8x128xf32, #tpu.memory_space<vmem>>, vector<2x128xf32>
    tpu.vector_store %arg7[%c4_39, %c0_40], %103 {strides = array<i32>} : memref<8x128xf32, #tpu.memory_space<vmem>>, vector<2x128xf32>,
    %c4_41 = arith.constant 4 : index
    %c0_42 = arith.constant 0 : index
    %105 = vector.load %arg8[%c4_41, %c0_42] : memref<8x128xf32, #tpu.memory_space<vmem>>, vector<2x128xf32>
    tpu.vector_store %arg8[%c4_41, %c0_42], %99 {strides = array<i32>} : memref<8x128xf32, #tpu.memory_space<vmem>>, vector<2x128xf32>,
    %c6 = arith.constant 6 : index
    %c0_43 = arith.constant 0 : index
    %c0_44 = arith.constant 0 : index
    %106 = vector.load %arg2[%c6, %c0_43, %c0_44] : memref<8x128x128xf32, #tpu.memory_space<vmem>>, vector<2x128x128xf32>
    %107 = arith.truncf %106 : vector<2x128x128xf32> to vector<2x128x128xbf16>
    %108 = vector.shape_cast %107 : vector<2x128x128xbf16> to vector<256x128xbf16>
    %cst_45 = arith.constant dense<0.000000e+00> : vector<256x128xf32>
    %109 = tpu.matmul %108, %3, %cst_45 {dimension_numbers = #tpu.dot_dimension_numbers<[1], [0], [0], [1], [0, 0, 1, 1], [], []>} : vector<256x128xbf16>, vector<128x128xbf16>, vector<256x128xf32> -> vector<256x128xf32>
    %110 = vector.shape_cast %109 : vector<256x128xf32> to vector<2x128x128xf32>
    %111 = vector.extract_strided_slice %12 {offsets = [6, 0], sizes = [2, 128], strides = [1, 1]} : vector<8x128xf32> to vector<2x128xf32>
    %112 = vector.shape_cast %111 : vector<2x128xf32> to vector<2x1x128xf32>
    %113 = vector.broadcast %112 : vector<2x1x128xf32> to vector<2x128x128xf32>
    %114 = arith.addf %110, %113 : vector<2x128x128xf32>
    %115 = arith.truncf %114 : vector<2x128x128xf32> to vector<2x128x128xbf16>
    %116 = math.tanh %115 : vector<2x128x128xbf16>
    %117 = vector.broadcast %6 : vector<1x1x128xbf16> to vector<2x128x128xbf16>
    %118 = arith.mulf %116, %117 : vector<2x128x128xbf16>
    %119 = arith.extf %118 : vector<2x128x128xbf16> to vector<2x128x128xf32>
    %cst_46 = arith.constant dense<0.000000e+00> : vector<2x128xf32>
    %120 = vector.multi_reduction <add>, %119, %cst_46 [2] : vector<2x128x128xf32> to vector<2x128xf32>
    %cst_47 = arith.constant dense<0xFF800000> : vector<2xf32>
    %121 = vector.multi_reduction <maximumf>, %120, %cst_47 [1] : vector<2x128xf32> to vector<2xf32>
    %122 = vector.shape_cast %121 : vector<2xf32> to vector<2x1xf32>
    %123 = vector.broadcast %122 : vector<2x1xf32> to vector<2x128xf32>
    %124 = arith.subf %120, %123 : vector<2x128xf32>
    %125 = math.exp %124 : vector<2x128xf32>
    %cst_48 = arith.constant dense<0.000000e+00> : vector<2xf32>
    %126 = vector.multi_reduction <add>, %125, %cst_48 [1] : vector<2x128xf32> to vector<2xf32>
    %127 = vector.shape_cast %126 : vector<2xf32> to vector<2x1xf32>
    %128 = tpu.reciprocal %127 {approx = true} : vector<2x1xf32> -> vector<2x1xf32>
    %129 = vector.broadcast %128 : vector<2x1xf32> to vector<2x128xf32>
    %130 = arith.mulf %125, %129 : vector<2x128xf32>
    %131 = arith.truncf %130 : vector<2x128xf32> to vector<2x128xbf16>
    %132 = vector.shape_cast %131 : vector<2x128xbf16> to vector<2x1x128xbf16>
    "tpu.trace_start"() <{level = 10 : i32, message = "bqt,btv->bqv"}> : () -> ()
    %cst_49 = arith.constant dense<0.000000e+00> : vector<2x1x128xf32>
    %133 = tpu.matmul %132, %107, %cst_49 {dimension_numbers = #tpu.dot_dimension_numbers<[2], [1], [1], [2], [0, 0, 0, 1, 1, 2], [0], [0]>} : vector<2x1x128xbf16>, vector<2x128x128xbf16>, vector<2x1x128xf32> -> vector<2x1x128xf32>
    "tpu.trace_stop"() : () -> ()
    %134 = vector.shape_cast %133 : vector<2x1x128xf32> to vector<2x128xf32>
    %c6_50 = arith.constant 6 : index
    %c0_51 = arith.constant 0 : index
    %135 = vector.load %arg7[%c6_50, %c0_51] : memref<8x128xf32, #tpu.memory_space<vmem>>, vector<2x128xf32>
    tpu.vector_store %arg7[%c6_50, %c0_51], %134 {strides = array<i32>} : memref<8x128xf32, #tpu.memory_space<vmem>>, vector<2x128xf32>,
    %c6_52 = arith.constant 6 : index
    %c0_53 = arith.constant 0 : index
    %136 = vector.load %arg8[%c6_52, %c0_53] : memref<8x128xf32, #tpu.memory_space<vmem>>, vector<2x128xf32>
    tpu.vector_store %arg8[%c6_52, %c0_53], %130 {strides = array<i32>} : memref<8x128xf32, #tpu.memory_space<vmem>>, vector<2x128xf32>,
    return
  }
  func.func @transform_0(%arg0: i32) -> (i32, i32) {
    %c0_i32 = arith.constant 0 : i32
    %c0_i32_0 = arith.constant 0 : i32
    return %arg0, %c0_i32 : i32, i32
  }
  func.func @transform_1(%arg0: i32) -> (i32, i32, i32) {
    %c0_i32 = arith.constant 0 : i32
    %c0_i32_0 = arith.constant 0 : i32
    %c0_i32_1 = arith.constant 0 : i32
    return %arg0, %c0_i32, %c0_i32_0 : i32, i32, i32
  }
  func.func @transform_2(%arg0: i32) -> (i32, i32) {
    %c0_i32 = arith.constant 0 : i32
    %c0_i32_0 = arith.constant 0 : i32
    %c0_i32_1 = arith.constant 0 : i32
    return %c0_i32, %c0_i32_0 : i32, i32
  }
  func.func @transform_3(%arg0: i32) -> (i32, i32) {
    %c0_i32 = arith.constant 0 : i32
    %c0_i32_0 = arith.constant 0 : i32
    %c0_i32_1 = arith.constant 0 : i32
    return %c0_i32, %c0_i32_0 : i32, i32
  }
  func.func @transform_4(%arg0: i32) -> (i32, i32) {
    %c0_i32 = arith.constant 0 : i32
    %c0_i32_0 = arith.constant 0 : i32
    %c0_i32_1 = arith.constant 0 : i32
    return %c0_i32, %c0_i32_0 : i32, i32
  }
  func.func @transform_5(%arg0: i32) -> (i32, i32) {
    %c0_i32 = arith.constant 0 : i32
    %c0_i32_0 = arith.constant 0 : i32
    %c0_i32_1 = arith.constant 0 : i32
    return %c0_i32, %c0_i32_0 : i32, i32
  }
  func.func @transform_6(%arg0: i32) -> (i32, i32) {
    %c0_i32 = arith.constant 0 : i32
    %c0_i32_0 = arith.constant 0 : i32
    return %arg0, %c0_i32 : i32, i32
  }
  func.func @transform_7(%arg0: i32) -> (i32, i32) {
    %c0_i32 = arith.constant 0 : i32
    %c0_i32_0 = arith.constant 0 : i32
    return %arg0, %c0_i32 : i32, i32
  }
}

</mosaic_0001>

<llo_original>
// kernel: tpu_custom_call.1
$region0: #{tpu_custom_call.1}
  #allocation0 [shape = 'u32[]', space=smem, size = 0x4, offset = 0x4, fixed_abs, tag = 'smem constant byte address 0x4 - core index']
  #allocation1 [shape = 'u32[144,128]{1,0:T(1,128)}', space=vmem, size = 0x12000, scoped, tag = 'internal scratch']
  %s0 = inlined_call_operand.hbm [shape: f32[64,128], index: 0, kind: input, shape index: {}]
  %s1 = inlined_call_operand.hbm [shape: f32[64,128,128], index: 1, kind: input, shape index: {}]
  %s2 = inlined_call_operand.hbm [shape: f32[128,128], index: 2, kind: input, shape index: {}]
  %s3 = inlined_call_operand.hbm [shape: f32[128,128], index: 3, kind: input, shape index: {}]
  %s4 = inlined_call_operand.hbm [shape: f32[1,128], index: 4, kind: input, shape index: {}]
  %s5 = inlined_call_operand.hbm [shape: f32[1,128], index: 5, kind: input, shape index: {}]
  %s6 = inlined_call_operand.hbm [shape: f32[64,128], index: 6, kind: output, shape index: {0}]
  %s7 = inlined_call_operand.hbm [shape: f32[64,128], index: 7, kind: output, shape index: {1}]
  %8 = xla_tuple %s6, %s7
  %s9 = sld [smem:[#allocation0]]
  $region89: #{tpu_custom_call.1} parent=0
    _
  %s11 = ssub.s32 1, %s9
  %s12 = scalar_select 0, %s11, %s9
  $region1: #{tpu_custom_call.1} parent=0
    #allocation2 [shape = 'u8[8192]{0}', space=vmem, size = 0x2000, scoped, tag = 'input window, operand 0']
    #allocation3 [shape = 's32[2]{0}', space=sflag, size = 0x8, scoped, tag = 'scoped memory for tpu_custom_call.1']
    #allocation4 [shape = 's32[2]{0}', space=sflag, size = 0x8, scoped, tag = 'scoped memory for tpu_custom_call.1']
    #allocation5 [shape = 'u8[1048576]{0}', space=vmem, size = 0x100000, scoped, tag = 'input window, operand 1']
    #allocation6 [shape = 's32[2]{0}', space=sflag, size = 0x8, scoped, tag = 'scoped memory for tpu_custom_call.1']
    #allocation7 [shape = 'u8[65536]{0}', space=vmem, size = 0x10000, scoped, tag = 'input window, operand 2, single buffered']
    #allocation8 [shape = 'u8[65536]{0}', space=vmem, size = 0x10000, scoped, tag = 'input window, operand 3, single buffered']
    #allocation9 [shape = 's32[1]{0}', space=sflag, size = 0x4, scoped, tag = 'scoped memory for tpu_custom_call.1']
    #allocation10 [shape = 'u8[512]{0}', space=vmem, size = 0x400, scoped, tag = 'input window, operand 4, single buffered']
    #allocation11 [shape = 'u8[512]{0}', space=vmem, size = 0x400, scoped, tag = 'input window, operand 5, single buffered']
    #allocation12 [shape = 's32[1]{0}', space=sflag, size = 0x4, scoped, tag = 'scoped memory for tpu_custom_call.1']
    #allocation13 [shape = 'u8[8192]{0}', space=vmem, size = 0x2000, scoped, tag = 'output window, operand 0']
    #allocation14 [shape = 'u8[8192]{0}', space=vmem, size = 0x2000, scoped, tag = 'output window, operand 1']
    #allocation15 [shape = 's32[2]{0}', space=sflag, size = 0x8, scoped, tag = 'scoped memory for tpu_custom_call.1']
    %13 = vsyncpa [#allocation3], 0
    %s14 = scalar_lea.sflag [#allocation3], 1
    %15 = vsyncpa %s14, 0
    %16 = vsyncpa [#allocation6], 0
    %s17 = scalar_lea.sflag [#allocation6], 1
    %18 = vsyncpa %s17, 0
    %19 = vsyncpa [#allocation9], 0
    %20 = vsyncpa [#allocation12], 0
    %21 = vsyncpa [#allocation4], 0
    %s22 = scalar_lea.sflag [#allocation4], 1
    %23 = vsyncpa %s22, 0
    %24 = vsyncpa [#allocation15], 0
    %s25 = scalar_lea.sflag [#allocation15], 1
    %26 = vsyncpa %s25, 0
    loop: start=0, step=1, limit=10
    $region2: #{tpu_custom_call.1} parent=1 // loop_pre_header
      _
    $region3: #{tpu_custom_call.1} parent=1 // loop_header
      %s28 = sphi 0, %s32
      %p29 = scmp.ge.s32.totalorder %s28, 10
      %s38 = sphi 0, %s40
      %s41 = sphi 0, %s38
      %s42 = sphi 0, %s41
      %s58 = sphi 0, %s42
      %s64 = sphi 0, %s66
      %s67 = sphi 0, %s64
      %s68 = sphi 0, %s67
      %s84 = sphi 0, %s68
      %s88 = sphi 0, %s88
      %s90 = sphi 0, %s88
      %s91 = sphi 0, %s90
      %s105 = sphi 0, %s91
      %s109 = sphi 0, %s109
      %s111 = sphi 0, %s109
      %s112 = sphi 0, %s111
      %s126 = sphi 0, %s112
      %s130 = sphi 0, %s130
      %s132 = sphi 0, %s130
      %s133 = sphi 0, %s132
      %s147 = sphi 0, %s133
      %s151 = sphi 0, %s151
      %s153 = sphi 0, %s151
      %s154 = sphi 0, %s153
      %s168 = sphi 0, %s154
      %s174 = sphi 0, %s176
      %s177 = sphi 0, %s174
      %s178 = sphi 0, %s177
      %s194 = sphi 0, %s178
      %s200 = sphi 0, %s202
      %s203 = sphi 0, %s200
      %s204 = sphi 0, %s203
      %s220 = sphi 0, %s204
    $region4: #{tpu_custom_call.1} parent=1 // loop_header_branch
      %31 = sbr.rel (%p29) target = $region8
    $region5: #{tpu_custom_call.1} parent=1 // loop_body
      %s33 = ssub.s32 %s28, 1
      %s34 = ssub.s32 %s28, 2
      %s35 = sadd.s32 %s28, 1
      %s36 = ssub.s32 %s28, %s35
      %p37 = scmp.eq.s32.totalorder %s36, 0
      %s39 = sadd.s32 %s38, 1
      %s40 = scalar_select %p37, %s38, %s39
      %p43 = pneg %p37
      %p44 = scmp.eq.s32.totalorder %s28, 7
      %p45 = por %p43, %p44
      %p46 = scmp.ne.s32.totalorder %s38, %s41
      %p47 = scmp.eq.s32.totalorder %s28, 0
      %p48 = por %p46, %p47
      %p49 = scmp.ne.s32.totalorder %s38, %s41
      %p50 = scmp.eq.s32.totalorder %s33, 7
      %p51 = por %p49, %p50
      %p52 = scmp.ne.s32.totalorder %s41, %s42
      %p53 = scmp.eq.s32.totalorder %s33, 0
      %p54 = por %p52, %p53
      %p55 = scmp.ne.s32.totalorder %s41, %s42
      %p56 = scmp.eq.s32.totalorder %s34, 7
      %p57 = por %p55, %p56
      %p59 = scmp.ne.s32.totalorder %s42, %s58
      %p60 = scmp.eq.s32.totalorder %s34, 0
      %p61 = por %p59, %p60
      %s62 = ssub.s32 %s28, %s35
      %p63 = scmp.eq.s32.totalorder %s62, 0
      %s65 = sadd.s32 %s64, 1
      %s66 = scalar_select %p63, %s64, %s65
      %p69 = pneg %p63
      %p70 = scmp.eq.s32.totalorder %s28, 7
      %p71 = por %p69, %p70
      %p72 = scmp.ne.s32.totalorder %s64, %s67
      %p73 = scmp.eq.s32.totalorder %s28, 0
      %p74 = por %p72, %p73
      %p75 = scmp.ne.s32.totalorder %s64, %s67
      %p76 = scmp.eq.s32.totalorder %s33, 7
      %p77 = por %p75, %p76
      %p78 = scmp.ne.s32.totalorder %s67, %s68
      %p79 = scmp.eq.s32.totalorder %s33, 0
      %p80 = por %p78, %p79
      %p81 = scmp.ne.s32.totalorder %s67, %s68
      %p82 = scmp.eq.s32.totalorder %s34, 7
      %p83 = por %p81, %p82
      %p85 = scmp.ne.s32.totalorder %s68, %s84
      %p86 = scmp.eq.s32.totalorder %s34, 0
      %p87 = por %p85, %p86
      %s89 = sadd.s32 %s88, 1
      %p92 = scmp.eq.s32.totalorder %s28, 7
      %p93 = scmp.ne.s32.totalorder %s88, %s90
      %p94 = scmp.eq.s32.totalorder %s28, 0
      %p95 = por %p93, %p94
      %p96 = scmp.ne.s32.totalorder %s88, %s90
      %p97 = scmp.eq.s32.totalorder %s33, 7
      %p98 = por %p96, %p97
      %p99 = scmp.ne.s32.totalorder %s90, %s91
      %p100 = scmp.eq.s32.totalorder %s33, 0
      %p101 = por %p99, %p100
      %p102 = scmp.ne.s32.totalorder %s90, %s91
      %p103 = scmp.eq.s32.totalorder %s34, 7
      %p104 = por %p102, %p103
      %p106 = scmp.ne.s32.totalorder %s91, %s105
      %p107 = scmp.eq.s32.totalorder %s34, 0
      %p108 = por %p106, %p107
      %s110 = sadd.s32 %s109, 1
      %p113 = scmp.eq.s32.totalorder %s28, 7
      %p114 = scmp.ne.s32.totalorder %s109, %s111
      %p115 = scmp.eq.s32.totalorder %s28, 0
      %p116 = por %p114, %p115
      %p117 = scmp.ne.s32.totalorder %s109, %s111
      %p118 = scmp.eq.s32.totalorder %s33, 7
      %p119 = por %p117, %p118
      %p120 = scmp.ne.s32.totalorder %s111, %s112
      %p121 = scmp.eq.s32.totalorder %s33, 0
      %p122 = por %p120, %p121
      %p123 = scmp.ne.s32.totalorder %s111, %s112
      %p124 = scmp.eq.s32.totalorder %s34, 7
      %p125 = por %p123, %p124
      %p127 = scmp.ne.s32.totalorder %s112, %s126
      %p128 = scmp.eq.s32.totalorder %s34, 0
      %p129 = por %p127, %p128
      %s131 = sadd.s32 %s130, 1
      %p134 = scmp.eq.s32.totalorder %s28, 7
      %p135 = scmp.ne.s32.totalorder %s130, %s132
      %p136 = scmp.eq.s32.totalorder %s28, 0
      %p137 = por %p135, %p136
      %p138 = scmp.ne.s32.totalorder %s130, %s132
      %p139 = scmp.eq.s32.totalorder %s33, 7
      %p140 = por %p138, %p139
      %p141 = scmp.ne.s32.totalorder %s132, %s133
      %p142 = scmp.eq.s32.totalorder %s33, 0
      %p143 = por %p141, %p142
      %p144 = scmp.ne.s32.totalorder %s132, %s133
      %p145 = scmp.eq.s32.totalorder %s34, 7
      %p146 = por %p144, %p145
      %p148 = scmp.ne.s32.totalorder %s133, %s147
      %p149 = scmp.eq.s32.totalorder %s34, 0
      %p150 = por %p148, %p149
      %s152 = sadd.s32 %s151, 1
      %p155 = scmp.eq.s32.totalorder %s28, 7
      %p156 = scmp.ne.s32.totalorder %s151, %s153
      %p157 = scmp.eq.s32.totalorder %s28, 0
      %p158 = por %p156, %p157
      %p159 = scmp.ne.s32.totalorder %s151, %s153
      %p160 = scmp.eq.s32.totalorder %s33, 7
      %p161 = por %p159, %p160
      %p162 = scmp.ne.s32.totalorder %s153, %s154
      %p163 = scmp.eq.s32.totalorder %s33, 0
      %p164 = por %p162, %p163
      %p165 = scmp.ne.s32.totalorder %s153, %s154
      %p166 = scmp.eq.s32.totalorder %s34, 7
      %p167 = por %p165, %p166
      %p169 = scmp.ne.s32.totalorder %s154, %s168
      %p170 = scmp.eq.s32.totalorder %s34, 0
      %p171 = por %p169, %p170
      %s172 = ssub.s32 %s28, %s35
      %p173 = scmp.eq.s32.totalorder %s172, 0
      %s175 = sadd.s32 %s174, 1
      %s176 = scalar_select %p173, %s174, %s175
      %p179 = pneg %p173
      %p180 = scmp.eq.s32.totalorder %s28, 7
      %p181 = por %p179, %p180
      %p182 = scmp.ne.s32.totalorder %s174, %s177
      %p183 = scmp.eq.s32.totalorder %s28, 0
      %p184 = por %p182, %p183
      %p185 = scmp.ne.s32.totalorder %s174, %s177
      %p186 = scmp.eq.s32.totalorder %s33, 7
      %p187 = por %p185, %p186
      %p188 = scmp.ne.s32.totalorder %s177, %s178
      %p189 = scmp.eq.s32.totalorder %s33, 0
      %p190 = por %p188, %p189
      %p191 = scmp.ne.s32.totalorder %s177, %s178
      %p192 = scmp.eq.s32.totalorder %s34, 7
      %p193 = por %p191, %p192
      %p195 = scmp.ne.s32.totalorder %s178, %s194
      %p196 = scmp.eq.s32.totalorder %s34, 0
      %p197 = por %p195, %p196
      %s198 = ssub.s32 %s28, %s35
      %p199 = scmp.eq.s32.totalorder %s198, 0
      %s201 = sadd.s32 %s200, 1
      %s202 = scalar_select %p199, %s200, %s201
      %p205 = pneg %p199
      %p206 = scmp.eq.s32.totalorder %s28, 7
      %p207 = por %p205, %p206
      %p208 = scmp.ne.s32.totalorder %s200, %s203
      %p209 = scmp.eq.s32.totalorder %s28, 0
      %p210 = por %p208, %p209
      %p211 = scmp.ne.s32.totalorder %s200, %s203
      %p212 = scmp.eq.s32.totalorder %s33, 7
      %p213 = por %p211, %p212
      %p214 = scmp.ne.s32.totalorder %s203, %s204
      %p215 = scmp.eq.s32.totalorder %s33, 0
      %p216 = por %p214, %p215
      %p217 = scmp.ne.s32.totalorder %s203, %s204
      %p218 = scmp.eq.s32.totalorder %s34, 7
      %p219 = por %p217, %p218
      %p221 = scmp.ne.s32.totalorder %s204, %s220
      %p222 = scmp.eq.s32.totalorder %s34, 0
      %p223 = por %p221, %p222
      %p224 = scmp.le.s32.totalorder 1, %s28
      %p225 = scmp.lt.s32.totalorder %s28, 9
      %p226 = pnand %p224, %p225
      %p227 = pneg %p226
      // Predicated region
      $region9: #{tpu_custom_call.1} parent=5 // pred_check
        _
      $region10: #{tpu_custom_call.1} parent=5 // pred_check_branch
        %229 = sbr.rel (%p226) target = $region12
      $region11: #{tpu_custom_call.1} parent=5 // pred_region
        %s230 = ssub.s32 %s28, 1
        // Predicated region
        $region13: #{tpu_custom_call.1} parent=11 // pred_check
          %p231 = pneg %p101
        $region14: #{tpu_custom_call.1} parent=11 // pred_check_branch
          %233 = sbr.rel (%p231) target = $region16
        $region15: #{tpu_custom_call.1} parent=11 // pred_region
          %s235 = ssub.s32 2048, 2048
          %236 = vsyncadd [#allocation6], %s235
          %s237 = sshll.u32 [#allocation7], 4
          %s238 = int_to_ptr.vmem [resolvable:$true] %s237
          %243 = dma.hbm_to_vmem [thread:$0]  %s2, 2048, %s238, [#allocation6], 128, 128, 8
        $region16: #{tpu_custom_call.1} parent=11 // pred_fallthru
          _
        // Predicated region
        $region17: #{tpu_custom_call.1} parent=11 // pred_check
          %p244 = pneg %p122
        $region18: #{tpu_custom_call.1} parent=11 // pred_check_branch
          %246 = sbr.rel (%p244) target = $region20
        $region19: #{tpu_custom_call.1} parent=11 // pred_region
          %s248 = ssub.s32 2048, 2048
          %249 = vsyncadd [#allocation9], %s248
          %s250 = sshll.u32 [#allocation8], 4
          %s251 = int_to_ptr.vmem [resolvable:$true] %s250
          %256 = dma.hbm_to_vmem [thread:$0]  %s3, 2048, %s251, [#allocation9], 128, 128, 8
        $region20: #{tpu_custom_call.1} parent=11 // pred_fallthru
          _
        // Predicated region
        $region21: #{tpu_custom_call.1} parent=11 // pred_check
          %p257 = pneg %p143
        $region22: #{tpu_custom_call.1} parent=11 // pred_check_branch
          %259 = sbr.rel (%p257) target = $region24
        $region23: #{tpu_custom_call.1} parent=11 // pred_region
          %s261 = ssub.s32 16, 16
          %262 = vsyncadd [#allocation9], %s261
          %s264 = sshll.u32 [#allocation10], 4
          %s265 = int_to_ptr.vmem [resolvable:$true] %s264
          %267 = dma.hbm_to_vmem [thread:$0]  %s4, 16, %s265, [#allocation9]
        $region24: #{tpu_custom_call.1} parent=11 // pred_fallthru
          _
        // Predicated region
        $region25: #{tpu_custom_call.1} parent=11 // pred_check
          %p268 = pneg %p164
        $region26: #{tpu_custom_call.1} parent=11 // pred_check_branch
          %270 = sbr.rel (%p268) target = $region28
        $region27: #{tpu_custom_call.1} parent=11 // pred_region
          %s272 = ssub.s32 16, 16
          %273 = vsyncadd [#allocation12], %s272
          %s275 = sshll.u32 [#allocation11], 4
          %s276 = int_to_ptr.vmem [resolvable:$true] %s275
          %278 = dma.hbm_to_vmem [thread:$0]  %s5, 16, %s276, [#allocation12]
        $region28: #{tpu_custom_call.1} parent=11 // pred_fallthru
          _
      $region12: #{tpu_custom_call.1} parent=5 // pred_fallthru
        _
      %p279 = scmp.lt.s32.totalorder %s28, 8
      // Predicated region
      $region29: #{tpu_custom_call.1} parent=5 // pred_check
        %p280 = pneg %p279
      $region30: #{tpu_custom_call.1} parent=5 // pred_check_branch
        %282 = sbr.rel (%p280) target = $region32
      $region31: #{tpu_custom_call.1} parent=5 // pred_region
        // Predicated region
        $region33: #{tpu_custom_call.1} parent=31 // pred_check
          %p283 = pneg %p48
        $region34: #{tpu_custom_call.1} parent=31 // pred_check_branch
          %285 = sbr.rel (%p283) target = $region36
        $region35: #{tpu_custom_call.1} parent=31 // pred_region
          %s286 = sand.u32 %s38, 1
          %s287 = scalar_lea.sflag [#allocation3], %s286
          %s288 = sand.u32 %s38, 1
          %s289 = smul.addr %s288, 8
          %s290 = scalar_lea.vmem [#allocation2], %s289
          %s292 = ssub.s32 128, 128
          %293 = vsyncadd %s287, %s292
          %s294 = smul.addr %s28, 128
          %s295 = scalar_lea.hbm %s0, %s294
          %s297 = sshll.u32 %s290, 4
          %s298 = int_to_ptr.vmem [resolvable:$true] %s297
          %300 = dma.hbm_to_vmem [thread:$0]  %s295, 128, %s298, %s287
        $region36: #{tpu_custom_call.1} parent=31 // pred_fallthru
          _
        // Predicated region
        $region37: #{tpu_custom_call.1} parent=31 // pred_check
          %p301 = pneg %p74
        $region38: #{tpu_custom_call.1} parent=31 // pred_check_branch
          %303 = sbr.rel (%p301) target = $region40
        $region39: #{tpu_custom_call.1} parent=31 // pred_region
          %s304 = sand.u32 %s28, 1
          %s305 = scalar_lea.sflag [#allocation6], %s304
          %s306 = sand.u32 %s64, 1
          %s307 = smul.addr %s306, 1024
          %s308 = scalar_lea.vmem [#allocation5], %s307
          %s309 = smul.u32 8, %s28
          %s311 = ssub.s32 16384, 16384
          %312 = vsyncadd %s305, %s311
          %s313 = smul.addr %s309, 16
          %s314 = smul.addr %s313, 128
          %s315 = scalar_lea.hbm %s1, %s314
          %s316 = sshll.u32 %s308, 4
          %s317 = int_to_ptr.vmem [resolvable:$true] %s316
          %322 = dma.hbm_to_vmem [thread:$0]  %s315, 16384, %s317, %s305, 128, 128, 8
        $region40: #{tpu_custom_call.1} parent=31 // pred_fallthru
          _
      $region32: #{tpu_custom_call.1} parent=5 // pred_fallthru
        _
      %p323 = scmp.le.s32.totalorder 1, %s28
      %p324 = scmp.lt.s32.totalorder %s28, 9
      %p325 = pnand %p323, %p324
      %p326 = pneg %p325
      // Predicated region
      $region41: #{tpu_custom_call.1} parent=5 // pred_check
        _
      $region42: #{tpu_custom_call.1} parent=5 // pred_check_branch
        %328 = sbr.rel (%p325) target = $region44
      $region43: #{tpu_custom_call.1} parent=5 // pred_region
        %s329 = ssub.s32 %s28, 1
        %s330 = sand.u32 %s41, 1
        %s331 = scalar_lea.sflag [#allocation3], %s330
        %s332 = sand.u32 %s41, 1
        %s333 = smul.addr %s332, 8
        %s334 = scalar_lea.vmem [#allocation2], %s333
        // Predicated region
        $region45: #{tpu_custom_call.1} parent=43 // pred_check
          %p335 = pneg %p54
        $region46: #{tpu_custom_call.1} parent=43 // pred_check_branch
          %337 = sbr.rel (%p335) target = $region48
        $region47: #{tpu_custom_call.1} parent=43 // pred_region
          %338 = dma.done %s331, 128
        $region48: #{tpu_custom_call.1} parent=43 // pred_fallthru
          _
        %s339 = sand.u32 %s33, 1
        %s340 = scalar_lea.sflag [#allocation6], %s339
        %s341 = sand.u32 %s67, 1
        %s342 = smul.addr %s341, 1024
        %s343 = scalar_lea.vmem [#allocation5], %s342
        // Predicated region
        $region49: #{tpu_custom_call.1} parent=43 // pred_check
          %p344 = pneg %p80
        $region50: #{tpu_custom_call.1} parent=43 // pred_check_branch
          %346 = sbr.rel (%p344) target = $region52
        $region51: #{tpu_custom_call.1} parent=43 // pred_region
          %347 = dma.done %s340, 16384
        $region52: #{tpu_custom_call.1} parent=43 // pred_fallthru
          _
        // Predicated region
        $region53: #{tpu_custom_call.1} parent=43 // pred_check
          %p348 = pneg %p101
        $region54: #{tpu_custom_call.1} parent=43 // pred_check_branch
          %350 = sbr.rel (%p348) target = $region56
        $region55: #{tpu_custom_call.1} parent=43 // pred_region
          %351 = dma.done [#allocation6], 2048
        $region56: #{tpu_custom_call.1} parent=43 // pred_fallthru
          _
        // Predicated region
        $region57: #{tpu_custom_call.1} parent=43 // pred_check
          %p352 = pneg %p122
        $region58: #{tpu_custom_call.1} parent=43 // pred_check_branch
          %354 = sbr.rel (%p352) target = $region60
        $region59: #{tpu_custom_call.1} parent=43 // pred_region
          %355 = dma.done [#allocation9], 2048
        $region60: #{tpu_custom_call.1} parent=43 // pred_fallthru
          _
        // Predicated region
        $region61: #{tpu_custom_call.1} parent=43 // pred_check
          %p356 = pneg %p143
        $region62: #{tpu_custom_call.1} parent=43 // pred_check_branch
          %358 = sbr.rel (%p356) target = $region64
        $region63: #{tpu_custom_call.1} parent=43 // pred_region
          %359 = dma.done [#allocation9], 16
        $region64: #{tpu_custom_call.1} parent=43 // pred_fallthru
          _
        // Predicated region
        $region65: #{tpu_custom_call.1} parent=43 // pred_check
          %p360 = pneg %p164
        $region66: #{tpu_custom_call.1} parent=43 // pred_check_branch
          %362 = sbr.rel (%p360) target = $region68
        $region67: #{tpu_custom_call.1} parent=43 // pred_region
          %363 = dma.done [#allocation12], 16
        $region68: #{tpu_custom_call.1} parent=43 // pred_fallthru
          _
        %s364 = sand.u32 %s41, 1
        %s365 = scalar_lea.sflag [#allocation3], %s364
        %s366 = sand.u32 %s41, 1
        %s367 = smul.addr %s366, 8
        %s368 = scalar_lea.vmem [#allocation2], %s367
        %p369 = pneg %p54
        %p370 = pneg %p51
        %s371 = sand.u32 %s33, 1
        %s372 = scalar_lea.sflag [#allocation6], %s371
        %s373 = sand.u32 %s67, 1
        %s374 = smul.addr %s373, 1024
        %s375 = scalar_lea.vmem [#allocation5], %s374
        %p376 = pneg %p80
        %p377 = pneg %p77
        %p378 = pneg %p101
        %p379 = pneg %p98
        %p380 = pneg %p122
        %p381 = pneg %p119
        %p382 = pneg %p143
        %p383 = pneg %p140
        %p384 = pneg %p164
        %p385 = pneg %p161
        %p386 = pneg %p190
        %p387 = pneg %p187
        %s388 = sand.u32 %s177, 1
        %s389 = scalar_lea.sflag [#allocation4], %s388
        %s390 = sand.u32 %s177, 1
        %s391 = smul.addr %s390, 8
        %s392 = scalar_lea.vmem [#allocation13], %s391
        %p393 = pneg %p216
        %p394 = pneg %p213
        %s395 = sand.u32 %s203, 1
        %s396 = scalar_lea.sflag [#allocation15], %s395
        %s397 = sand.u32 %s203, 1
        %s398 = smul.addr %s397, 8
        %s399 = scalar_lea.vmem [#allocation14], %s398
        %s400 = smul.u32 8, %s33
        %v402 = vld [vmem:[#allocation7] sm:$0xff]
        %v403 = vld [vmem:[#allocation7 + $0x8] sm:$0xff]
        %v404 = vld [vmem:[#allocation7 + $0x10] sm:$0xff]
        %v405 = vld [vmem:[#allocation7 + $0x18] sm:$0xff]
        %v406 = vld [vmem:[#allocation7 + $0x20] sm:$0xff]
        %v407 = vld [vmem:[#allocation7 + $0x28] sm:$0xff]
        %v408 = vld [vmem:[#allocation7 + $0x30] sm:$0xff]
        %v409 = vld [vmem:[#allocation7 + $0x38] sm:$0xff]
        %v410 = vld [vmem:[#allocation7 + $0x40] sm:$0xff]
        %v411 = vld [vmem:[#allocation7 + $0x48] sm:$0xff]
        %v412 = vld [vmem:[#allocation7 + $0x50] sm:$0xff]
        %v413 = vld [vmem:[#allocation7 + $0x58] sm:$0xff]
        %v414 = vld [vmem:[#allocation7 + $0x60] sm:$0xff]
        %v415 = vld [vmem:[#allocation7 + $0x68] sm:$0xff]
        %v416 = vld [vmem:[#allocation7 + $0x70] sm:$0xff]
        %v417 = vld [vmem:[#allocation7 + $0x78] sm:$0xff]
        %v418 = vpack.c.bf16 %v403, %v402
        %v419 = vpack.c.bf16 %v405, %v404
        %v420 = vpack.c.bf16 %v407, %v406
        %v421 = vpack.c.bf16 %v409, %v408
        %v422 = vpack.c.bf16 %v411, %v410
        %v423 = vpack.c.bf16 %v413, %v412
        %v424 = vpack.c.bf16 %v415, %v414
        %v425 = vpack.c.bf16 %v417, %v416
        %v426 = vld [vmem:[#allocation8] sm:$0xff]
        %v427 = vld [vmem:[#allocation8 + $0x8] sm:$0xff]
        %v428 = vld [vmem:[#allocation8 + $0x10] sm:$0xff]
        %v429 = vld [vmem:[#allocation8 + $0x18] sm:$0xff]
        %v430 = vld [vmem:[#allocation8 + $0x20] sm:$0xff]
        %v431 = vld [vmem:[#allocation8 + $0x28] sm:$0xff]
        %v432 = vld [vmem:[#allocation8 + $0x30] sm:$0xff]
        %v433 = vld [vmem:[#allocation8 + $0x38] sm:$0xff]
        %v434 = vld [vmem:[#allocation8 + $0x40] sm:$0xff]
        %v435 = vld [vmem:[#allocation8 + $0x48] sm:$0xff]
        %v436 = vld [vmem:[#allocation8 + $0x50] sm:$0xff]
        %v437 = vld [vmem:[#allocation8 + $0x58] sm:$0xff]
        %v438 = vld [vmem:[#allocation8 + $0x60] sm:$0xff]
        %v439 = vld [vmem:[#allocation8 + $0x68] sm:$0xff]
        %v440 = vld [vmem:[#allocation8 + $0x70] sm:$0xff]
        %v441 = vld [vmem:[#allocation8 + $0x78] sm:$0xff]
        %v442 = vpack.c.bf16 %v427, %v426
        %v443 = vpack.c.bf16 %v429, %v428
        %v444 = vpack.c.bf16 %v431, %v430
        %v445 = vpack.c.bf16 %v433, %v432
        %v446 = vpack.c.bf16 %v435, %v434
        %v447 = vpack.c.bf16 %v437, %v436
        %v448 = vpack.c.bf16 %v439, %v438
        %v449 = vpack.c.bf16 %v441, %v440
        %v450 = vld [vmem:[#allocation11] sm:$0x1]
        %v451 = vpack.c.bf16 %v450, %v450
        %v452 = vld [vmem:[#allocation10] sm:$0x1]
        %v453 = vld [vmem:[%s334] sm:$0xff]
        %v454 = vpack.c.bf16 %v453, %v453
        %v456 = vlaneseq
        %v457 = vshrl.u32 %v456, 7
        %v458 = vsub.s32 0, %v457
        %v459 = vrot.slane %v452, %v458
        %461 = vmatprep.subr.bf16.mxu0 0
        %462 = vmatpush1.bf16.msra.mxu0 %v418
        %463 = vmatprep.subr.bf16.mxu0 0
        %464 = vmatpush1.bf16.msra.mxu0 %v419
        %465 = vmatprep.subr.bf16.mxu0 0
        %466 = vmatpush1.bf16.msra.mxu0 %v420
        %467 = vmatprep.subr.bf16.mxu0 0
        %468 = vmatpush1.bf16.msra.mxu0 %v421
        %469 = vmatprep.subr.bf16.mxu0 0
        %470 = vmatpush1.bf16.msra.mxu0 %v422
        %471 = vmatprep.subr.bf16.mxu0 0
        %472 = vmatpush1.bf16.msra.mxu0 %v423
        %473 = vmatprep.subr.bf16.mxu0 0
        %474 = vmatpush1.bf16.msra.mxu0 %v424
        %475 = vmatprep.subr.bf16.mxu0 0
        %476 = vmatpush1.bf16.msra.mxu0 %v425
        %477 = vmatprep.subr.bf16.mxu0 0
        %478 = vmatpush1.bf16.msra.mxu0 0
        %479 = vmatprep.subr.bf16.mxu0 0
        %480 = vmatpush1.bf16.msra.mxu0 0
        %481 = vmatprep.subr.bf16.mxu0 0
        %482 = vmatpush1.bf16.msra.mxu0 0
        %483 = vmatprep.subr.bf16.mxu0 0
        %484 = vmatpush1.bf16.msra.mxu0 0
        %485 = vmatprep.subr.bf16.mxu0 0
        %486 = vmatpush1.bf16.msra.mxu0 0
        %487 = vmatprep.subr.bf16.mxu0 0
        %488 = vmatpush1.bf16.msra.mxu0 0
        %489 = vmatprep.subr.bf16.mxu0 0
        %490 = vmatpush1.bf16.msra.mxu0 0
        %491 = vmatprep.subr.bf16.mxu0 0
        %492 = vmatpush1.bf16.msra.mxu0 0
        %493 = vmatprep.mubr.bf16.mxu0 0
        %494 = vmatmul.mubr.bf16.gmra.mrb[0].mxu0 %v454
        %v495 = vpop.f32.mrb[0].mxu0
        %v496 = vadd.f32 %v459, %v495
        %v497 = vpop.f32.mrb[0].mxu0
        %v498 = vpop.f32.mrb[0].mxu0
        %v499 = vpop.f32.mrb[0].mxu0
        %500 = vdwg.mxu0
        %v501 = vld [vmem:[%s343] sm:$0xff]
        %v502 = vld [vmem:[%s343 + $0x8] sm:$0xff]
        %v503 = vld [vmem:[%s343 + $0x10] sm:$0xff]
        %v504 = vld [vmem:[%s343 + $0x18] sm:$0xff]
        %v505 = vld [vmem:[%s343 + $0x20] sm:$0xff]
        %v506 = vld [vmem:[%s343 + $0x28] sm:$0xff]
        %v507 = vld [vmem:[%s343 + $0x30] sm:$0xff]
        %v508 = vld [vmem:[%s343 + $0x38] sm:$0xff]
        %v509 = vld [vmem:[%s343 + $0x40] sm:$0xff]
        %v510 = vld [vmem:[%s343 + $0x48] sm:$0xff]
        %v511 = vld [vmem:[%s343 + $0x50] sm:$0xff]
        %v512 = vld [vmem:[%s343 + $0x58] sm:$0xff]
        %v513 = vld [vmem:[%s343 + $0x60] sm:$0xff]
        %v514 = vld [vmem:[%s343 + $0x68] sm:$0xff]
        %v515 = vld [vmem:[%s343 + $0x70] sm:$0xff]
        %v516 = vld [vmem:[%s343 + $0x78] sm:$0xff]
        %v517 = vld [vmem:[%s343 + $0x80] sm:$0xff]
        %v518 = vld [vmem:[%s343 + $0x88] sm:$0xff]
        %v519 = vld [vmem:[%s343 + $0x90] sm:$0xff]
        %v520 = vld [vmem:[%s343 + $0x98] sm:$0xff]
        %v521 = vld [vmem:[%s343 + $0xa0] sm:$0xff]
        %v522 = vld [vmem:[%s343 + $0xa8] sm:$0xff]
        %v523 = vld [vmem:[%s343 + $0xb0] sm:$0xff]
        %v524 = vld [vmem:[%s343 + $0xb8] sm:$0xff]
        %v525 = vld [vmem:[%s343 + $0xc0] sm:$0xff]
        %v526 = vld [vmem:[%s343 + $0xc8] sm:$0xff]
        %v527 = vld [vmem:[%s343 + $0xd0] sm:$0xff]
        %v528 = vld [vmem:[%s343 + $0xd8] sm:$0xff]
        %v529 = vld [vmem:[%s343 + $0xe0] sm:$0xff]
        %v530 = vld [vmem:[%s343 + $0xe8] sm:$0xff]
        %v531 = vld [vmem:[%s343 + $0xf0] sm:$0xff]
        %v532 = vld [vmem:[%s343 + $0xf8] sm:$0xff]
        %v533 = vpack.c.bf16 %v502, %v501
        %v534 = vpack.c.bf16 %v504, %v503
        %v535 = vpack.c.bf16 %v506, %v505
        %v536 = vpack.c.bf16 %v508, %v507
        %v537 = vpack.c.bf16 %v510, %v509
        %v538 = vpack.c.bf16 %v512, %v511
        %v539 = vpack.c.bf16 %v514, %v513
        %v540 = vpack.c.bf16 %v516, %v515
        %v541 = vpack.c.bf16 %v518, %v517
        %v542 = vpack.c.bf16 %v520, %v519
        %v543 = vpack.c.bf16 %v522, %v521
        %v544 = vpack.c.bf16 %v524, %v523
        %v545 = vpack.c.bf16 %v526, %v525
        %v546 = vpack.c.bf16 %v528, %v527
        %v547 = vpack.c.bf16 %v530, %v529
        %v548 = vpack.c.bf16 %v532, %v531
        %549 = vmatprep.subr.bf16.mxu0 0
        %550 = vmatpush1.bf16.msra.mxu0 %v442
        %551 = vmatprep.subr.bf16.mxu0 0
        %552 = vmatpush1.bf16.msra.mxu0 %v443
        %553 = vmatprep.subr.bf16.mxu0 0
        %554 = vmatpush1.bf16.msra.mxu0 %v444
        %555 = vmatprep.subr.bf16.mxu0 0
        %556 = vmatpush1.bf16.msra.mxu0 %v445
        %557 = vmatprep.subr.bf16.mxu0 0
        %558 = vmatpush1.bf16.msra.mxu0 %v446
        %559 = vmatprep.subr.bf16.mxu0 0
        %560 = vmatpush1.bf16.msra.mxu0 %v447
        %561 = vmatprep.subr.bf16.mxu0 0
        %562 = vmatpush1.bf16.msra.mxu0 %v448
        %563 = vmatprep.subr.bf16.mxu0 0
        %564 = vmatpush1.bf16.msra.mxu0 %v449
        %565 = vmatprep.subr.bf16.mxu0 0
        %566 = vmatpush1.bf16.msra.mxu0 0
        %567 = vmatprep.subr.bf16.mxu0 0
        %568 = vmatpush1.bf16.msra.mxu0 0
        %569 = vmatprep.subr.bf16.mxu0 0
        %570 = vmatpush1.bf16.msra.mxu0 0
        %571 = vmatprep.subr.bf16.mxu0 0
        %572 = vmatpush1.bf16.msra.mxu0 0
        %573 = vmatprep.subr.bf16.mxu0 0
        %574 = vmatpush1.bf16.msra.mxu0 0
        %575 = vmatprep.subr.bf16.mxu0 0
        %576 = vmatpush1.bf16.msra.mxu0 0
        %577 = vmatprep.subr.bf16.mxu0 0
        %578 = vmatpush1.bf16.msra.mxu0 0
        %579 = vmatprep.subr.bf16.mxu0 0
        %580 = vmatpush1.bf16.msra.mxu0 0
        %581 = vmatprep.mubr.bf16.mxu0 0
        %582 = vmatmul.mubr.bf16.gmra.mrb[0].mxu0 %v533
        %v583 = vpop.f32.mrb[0].mxu0
        %v584 = vadd.f32 0.0, %v583
        %v585 = vpop.f32.mrb[0].mxu0
        %v586 = vpop.f32.mrb[0].mxu0
        %v587 = vadd.f32 0.0, %v586
        %v588 = vpop.f32.mrb[0].mxu0
        %589 = vmatprep.mubr.bf16.mxu0 0
        %590 = vmatmul.mubr.bf16.gmra.mrb[0].mxu0 %v534
        %v591 = vpop.f32.mrb[0].mxu0
        %v592 = vadd.f32 0.0, %v591
        %v593 = vpop.f32.mrb[0].mxu0
        %v594 = vpop.f32.mrb[0].mxu0
        %v595 = vadd.f32 0.0, %v594
        %v596 = vpop.f32.mrb[0].mxu0
        %597 = vmatprep.mubr.bf16.mxu0 0
        %598 = vmatmul.mubr.bf16.gmra.mrb[0].mxu0 %v535
        %v599 = vpop.f32.mrb[0].mxu0
        %v600 = vadd.f32 0.0, %v599
        %v601 = vpop.f32.mrb[0].mxu0
        %v602 = vpop.f32.mrb[0].mxu0
        %v603 = vadd.f32 0.0, %v602
        %v604 = vpop.f32.mrb[0].mxu0
        %605 = vmatprep.mubr.bf16.mxu0 0
        %606 = vmatmul.mubr.bf16.gmra.mrb[0].mxu0 %v536
        %v607 = vpop.f32.mrb[0].mxu0
        %v608 = vadd.f32 0.0, %v607
        %v609 = vpop.f32.mrb[0].mxu0
        %v610 = vpop.f32.mrb[0].mxu0
        %v611 = vadd.f32 0.0, %v610
        %v612 = vpop.f32.mrb[0].mxu0
        %613 = vmatprep.mubr.bf16.mxu0 0
        %614 = vmatmul.mubr.bf16.gmra.mrb[0].mxu0 %v537
        %v615 = vpop.f32.mrb[0].mxu0
        %v616 = vadd.f32 0.0, %v615
        %v617 = vpop.f32.mrb[0].mxu0
        %v618 = vpop.f32.mrb[0].mxu0
        %v619 = vadd.f32 0.0, %v618
        %v620 = vpop.f32.mrb[0].mxu0
        %621 = vmatprep.mubr.bf16.mxu0 0
        %622 = vmatmul.mubr.bf16.gmra.mrb[0].mxu0 %v538
        %v623 = vpop.f32.mrb[0].mxu0
        %v624 = vadd.f32 0.0, %v623
        %v625 = vpop.f32.mrb[0].mxu0
        %v626 = vpop.f32.mrb[0].mxu0
        %v627 = vadd.f32 0.0, %v626
        %v628 = vpop.f32.mrb[0].mxu0
        %629 = vmatprep.mubr.bf16.mxu0 0
        %630 = vmatmul.mubr.bf16.gmra.mrb[0].mxu0 %v539
        %v631 = vpop.f32.mrb[0].mxu0
        %v632 = vadd.f32 0.0, %v631
        %v633 = vpop.f32.mrb[0].mxu0
        %v634 = vpop.f32.mrb[0].mxu0
        %v635 = vadd.f32 0.0, %v634
        %v636 = vpop.f32.mrb[0].mxu0
        %637 = vmatprep.mubr.bf16.mxu0 0
        %638 = vmatmul.mubr.bf16.gmra.mrb[0].mxu0 %v540
        %v639 = vpop.f32.mrb[0].mxu0
        %v640 = vadd.f32 0.0, %v639
        %v641 = vpop.f32.mrb[0].mxu0
        %v642 = vpop.f32.mrb[0].mxu0
        %v643 = vadd.f32 0.0, %v642
        %v644 = vpop.f32.mrb[0].mxu0
        %645 = vmatprep.mubr.bf16.mxu0 0
        %646 = vmatmul.mubr.bf16.gmra.mrb[0].mxu0 %v541
        %v647 = vpop.f32.mrb[0].mxu0
        %v648 = vadd.f32 0.0, %v647
        %v649 = vpop.f32.mrb[0].mxu0
        %v650 = vpop.f32.mrb[0].mxu0
        %v651 = vadd.f32 0.0, %v650
        %v652 = vpop.f32.mrb[0].mxu0
        %653 = vmatprep.mubr.bf16.mxu0 0
        %654 = vmatmul.mubr.bf16.gmra.mrb[0].mxu0 %v542
        %v655 = vpop.f32.mrb[0].mxu0
        %v656 = vadd.f32 0.0, %v655
        %v657 = vpop.f32.mrb[0].mxu0
        %v658 = vpop.f32.mrb[0].mxu0
        %v659 = vadd.f32 0.0, %v658
        %v660 = vpop.f32.mrb[0].mxu0
        %661 = vmatprep.mubr.bf16.mxu0 0
        %662 = vmatmul.mubr.bf16.gmra.mrb[0].mxu0 %v543
        %v663 = vpop.f32.mrb[0].mxu0
        %v664 = vadd.f32 0.0, %v663
        %v665 = vpop.f32.mrb[0].mxu0
        %v666 = vpop.f32.mrb[0].mxu0
        %v667 = vadd.f32 0.0, %v666
        %v668 = vpop.f32.mrb[0].mxu0
        %669 = vmatprep.mubr.bf16.mxu0 0
        %670 = vmatmul.mubr.bf16.gmra.mrb[0].mxu0 %v544
        %v671 = vpop.f32.mrb[0].mxu0
        %v672 = vadd.f32 0.0, %v671
        %v673 = vpop.f32.mrb[0].mxu0
        %v674 = vpop.f32.mrb[0].mxu0
        %v675 = vadd.f32 0.0, %v674
        %v676 = vpop.f32.mrb[0].mxu0
        %677 = vmatprep.mubr.bf16.mxu0 0
        %678 = vmatmul.mubr.bf16.gmra.mrb[0].mxu0 %v545
        %v679 = vpop.f32.mrb[0].mxu0
        %v680 = vadd.f32 0.0, %v679
        %v681 = vpop.f32.mrb[0].mxu0
        %v682 = vpop.f32.mrb[0].mxu0
        %v683 = vadd.f32 0.0, %v682
        %v684 = vpop.f32.mrb[0].mxu0
        %685 = vmatprep.mubr.bf16.mxu0 0
        %686 = vmatmul.mubr.bf16.gmra.mrb[0].mxu0 %v546
        %v687 = vpop.f32.mrb[0].mxu0
        %v688 = vadd.f32 0.0, %v687
        %v689 = vpop.f32.mrb[0].mxu0
        %v690 = vpop.f32.mrb[0].mxu0
        %v691 = vadd.f32 0.0, %v690
        %v692 = vpop.f32.mrb[0].mxu0
        %693 = vmatprep.mubr.bf16.mxu0 0
        %694 = vmatmul.mubr.bf16.gmra.mrb[0].mxu0 %v547
        %v695 = vpop.f32.mrb[0].mxu0
        %v696 = vadd.f32 0.0, %v695
        %v697 = vpop.f32.mrb[0].mxu0
        %v698 = vpop.f32.mrb[0].mxu0
        %v699 = vadd.f32 0.0, %v698
        %v700 = vpop.f32.mrb[0].mxu0
        %701 = vmatprep.mubr.bf16.mxu0 0
        %702 = vmatmul.mubr.bf16.gmra.mrb[0].mxu0 %v548
        %v703 = vpop.f32.mrb[0].mxu0
        %v704 = vadd.f32 0.0, %v703
        %v705 = vpop.f32.mrb[0].mxu0
        %v706 = vpop.f32.mrb[0].mxu0
        %v707 = vadd.f32 0.0, %v706
        %v708 = vpop.f32.mrb[0].mxu0
        %709 = vdwg.mxu0
        %v712 = vunpack.c.l.s4 1966171168
        %v713 = vunpack.c.0.s8 %v712
        %v714 = vlaneseq
        %v715 = vshrl.u32 %v714, 7
        %v716 = vsub.s32 %v713, %v715
        %v717 = vrot.slane %v496, %v716
        %v718 = vcombine.high %v717, %v717
        %v720 = vunpack.c.l.s4 1966171168
        %v721 = vunpack.c.0.s8 %v720
        %v722 = vlaneseq
        %v723 = vshrl.u32 %v722, 7
        %v724 = vsub.s32 %v721, %v723
        %v725 = vrot.slane %v717, %v724
        %v727 = vunpack.c.l.s4 1966171168
        %v728 = vunpack.c.0.s8 %v727
        %v729 = vlaneseq
        %v730 = vshrl.u32 %v729, 7
        %v731 = vsub.s32 %v728, %v730
        %v732 = vrot.slane %v718, %v731
        %v733 = vlaneseq
        %v734 = vshrl.u32 %v733, 7
        %v735 = vsub.s32 0, %v734
        %v736 = vrot.slane %v725, %v735
        %v737 = vlaneseq
        %v738 = vshrl.u32 %v737, 7
        %v739 = vsub.s32 0, %v738
        %v740 = vrot.slane %v732, %v739
        %v743 = vadd.f32 %v584, %v736
        %v744 = vadd.f32 %v587, %v736
        %v745 = vadd.f32 %v592, %v736
        %v746 = vadd.f32 %v595, %v736
        %v747 = vadd.f32 %v600, %v736
        %v748 = vadd.f32 %v603, %v736
        %v749 = vadd.f32 %v608, %v736
        %v750 = vadd.f32 %v611, %v736
        %v751 = vadd.f32 %v616, %v736
        %v752 = vadd.f32 %v619, %v736
        %v753 = vadd.f32 %v624, %v736
        %v754 = vadd.f32 %v627, %v736
        %v755 = vadd.f32 %v632, %v736
        %v756 = vadd.f32 %v635, %v736
        %v757 = vadd.f32 %v640, %v736
        %v758 = vadd.f32 %v643, %v736
        %v759 = vadd.f32 %v648, %v740
        %v760 = vadd.f32 %v651, %v740
        %v761 = vadd.f32 %v656, %v740
        %v762 = vadd.f32 %v659, %v740
        %v763 = vadd.f32 %v664, %v740
        %v764 = vadd.f32 %v667, %v740
        %v765 = vadd.f32 %v672, %v740
        %v766 = vadd.f32 %v675, %v740
        %v767 = vadd.f32 %v680, %v740
        %v768 = vadd.f32 %v683, %v740
        %v769 = vadd.f32 %v688, %v740
        %v770 = vadd.f32 %v691, %v740
        %v771 = vadd.f32 %v696, %v740
        %v772 = vadd.f32 %v699, %v740
        %v773 = vadd.f32 %v704, %v740
        %v774 = vadd.f32 %v707, %v740
        %v775 = vpack.c.bf16 %v744, %v743
        %v776 = vpack.c.bf16 %v746, %v745
        %v777 = vpack.c.bf16 %v748, %v747
        %v778 = vpack.c.bf16 %v750, %v749
        %v779 = vpack.c.bf16 %v752, %v751
        %v780 = vpack.c.bf16 %v754, %v753
        %v781 = vpack.c.bf16 %v756, %v755
        %v782 = vpack.c.bf16 %v758, %v757
        %v783 = vpack.c.bf16 %v760, %v759
        %v784 = vpack.c.bf16 %v762, %v761
        %v785 = vpack.c.bf16 %v764, %v763
        %v786 = vpack.c.bf16 %v766, %v765
        %v787 = vpack.c.bf16 %v768, %v767
        %v788 = vpack.c.bf16 %v770, %v769
        %v789 = vpack.c.bf16 %v772, %v771
        %v790 = vpack.c.bf16 %v774, %v773
        %v791 = vtanh.bf16.pop %v775
        %v792 = vtanh.bf16.pop %v776
        %v793 = vtanh.bf16.pop %v777
        %v794 = vtanh.bf16.pop %v778
        %v795 = vtanh.bf16.pop %v779
        %v796 = vtanh.bf16.pop %v780
        %v797 = vtanh.bf16.pop %v781
        %v798 = vtanh.bf16.pop %v782
        %v799 = vtanh.bf16.pop %v783
        %v800 = vtanh.bf16.pop %v784
        %v801 = vtanh.bf16.pop %v785
        %v802 = vtanh.bf16.pop %v786
        %v803 = vtanh.bf16.pop %v787
        %v804 = vtanh.bf16.pop %v788
        %v805 = vtanh.bf16.pop %v789
        %v806 = vtanh.bf16.pop %v790
        %v808 = vpack.i.b16 %v451, %v451
        %v810 = vlaneseq
        %v811 = vshrl.u32 %v810, 7
        %v812 = vsub.s32 0, %v811
        %v813 = vrot.slane %v808, %v812
        %v814 = vmul.bf16 %v791, %v813
        %v815 = vmul.bf16 %v792, %v813
        %v816 = vmul.bf16 %v793, %v813
        %v817 = vmul.bf16 %v794, %v813
        %v818 = vmul.bf16 %v795, %v813
        %v819 = vmul.bf16 %v796, %v813
        %v820 = vmul.bf16 %v797, %v813
        %v821 = vmul.bf16 %v798, %v813
        %v822 = vmul.bf16 %v799, %v813
        %v823 = vmul.bf16 %v800, %v813
        %v824 = vmul.bf16 %v801, %v813
        %v825 = vmul.bf16 %v802, %v813
        %v826 = vmul.bf16 %v803, %v813
        %v827 = vmul.bf16 %v804, %v813
        %v828 = vmul.bf16 %v805, %v813
        %v829 = vmul.bf16 %v806, %v813
        %v830 = vunpack.c.l.bf16 %v814
        %v831 = vunpack.c.h.bf16 %v814
        %v832 = vunpack.c.l.bf16 %v815
        %v833 = vunpack.c.h.bf16 %v815
        %v834 = vunpack.c.l.bf16 %v816
        %v835 = vunpack.c.h.bf16 %v816
        %v836 = vunpack.c.l.bf16 %v817
        %v837 = vunpack.c.h.bf16 %v817
        %v838 = vunpack.c.l.bf16 %v818
        %v839 = vunpack.c.h.bf16 %v818
        %v840 = vunpack.c.l.bf16 %v819
        %v841 = vunpack.c.h.bf16 %v819
        %v842 = vunpack.c.l.bf16 %v820
        %v843 = vunpack.c.h.bf16 %v820
        %v844 = vunpack.c.l.bf16 %v821
        %v845 = vunpack.c.h.bf16 %v821
        %v846 = vunpack.c.l.bf16 %v822
        %v847 = vunpack.c.h.bf16 %v822
        %v848 = vunpack.c.l.bf16 %v823
        %v849 = vunpack.c.h.bf16 %v823
        %v850 = vunpack.c.l.bf16 %v824
        %v851 = vunpack.c.h.bf16 %v824
        %v852 = vunpack.c.l.bf16 %v825
        %v853 = vunpack.c.h.bf16 %v825
        %v854 = vunpack.c.l.bf16 %v826
        %v855 = vunpack.c.h.bf16 %v826
        %v856 = vunpack.c.l.bf16 %v827
        %v857 = vunpack.c.h.bf16 %v827
        %v858 = vunpack.c.l.bf16 %v828
        %v859 = vunpack.c.h.bf16 %v828
        %v860 = vunpack.c.l.bf16 %v829
        %v861 = vunpack.c.h.bf16 %v829
        %862 = vadd.xlane.f32.xlu0 %v830
        %v863 = vpop.xlane.xlu0 %862
        %864 = vadd.xlane.f32.xlu0 %v831
        %v865 = vpop.xlane.xlu0 %864
        %866 = vadd.xlane.f32.xlu0 %v832
        %v867 = vpop.xlane.xlu0 %866
        %868 = vadd.xlane.f32.xlu0 %v833
        %v869 = vpop.xlane.xlu0 %868
        %870 = vadd.xlane.f32.xlu0 %v834
        %v871 = vpop.xlane.xlu0 %870
        %872 = vadd.xlane.f32.xlu0 %v835
        %v873 = vpop.xlane.xlu0 %872
        %874 = vadd.xlane.f32.xlu0 %v836
        %v875 = vpop.xlane.xlu0 %874
        %876 = vadd.xlane.f32.xlu0 %v837
        %v877 = vpop.xlane.xlu0 %876
        %878 = vadd.xlane.f32.xlu0 %v838
        %v879 = vpop.xlane.xlu0 %878
        %880 = vadd.xlane.f32.xlu0 %v839
        %v881 = vpop.xlane.xlu0 %880
        %882 = vadd.xlane.f32.xlu0 %v840
        %v883 = vpop.xlane.xlu0 %882
        %884 = vadd.xlane.f32.xlu0 %v841
        %v885 = vpop.xlane.xlu0 %884
        %886 = vadd.xlane.f32.xlu0 %v842
        %v887 = vpop.xlane.xlu0 %886
        %888 = vadd.xlane.f32.xlu0 %v843
        %v889 = vpop.xlane.xlu0 %888
        %890 = vadd.xlane.f32.xlu0 %v844
        %v891 = vpop.xlane.xlu0 %890
        %892 = vadd.xlane.f32.xlu0 %v845
        %v893 = vpop.xlane.xlu0 %892
        %894 = vadd.xlane.f32.xlu0 %v846
        %v895 = vpop.xlane.xlu0 %894
        %896 = vadd.xlane.f32.xlu0 %v847
        %v897 = vpop.xlane.xlu0 %896
        %898 = vadd.xlane.f32.xlu0 %v848
        %v899 = vpop.xlane.xlu0 %898
        %900 = vadd.xlane.f32.xlu0 %v849
        %v901 = vpop.xlane.xlu0 %900
        %902 = vadd.xlane.f32.xlu0 %v850
        %v903 = vpop.xlane.xlu0 %902
        %904 = vadd.xlane.f32.xlu0 %v851
        %v905 = vpop.xlane.xlu0 %904
        %906 = vadd.xlane.f32.xlu0 %v852
        %v907 = vpop.xlane.xlu0 %906
        %908 = vadd.xlane.f32.xlu0 %v853
        %v909 = vpop.xlane.xlu0 %908
        %910 = vadd.xlane.f32.xlu0 %v854
        %v911 = vpop.xlane.xlu0 %910
        %912 = vadd.xlane.f32.xlu0 %v855
        %v913 = vpop.xlane.xlu0 %912
        %914 = vadd.xlane.f32.xlu0 %v856
        %v915 = vpop.xlane.xlu0 %914
        %916 = vadd.xlane.f32.xlu0 %v857
        %v917 = vpop.xlane.xlu0 %916
        %918 = vadd.xlane.f32.xlu0 %v858
        %v919 = vpop.xlane.xlu0 %918
        %920 = vadd.xlane.f32.xlu0 %v859
        %v921 = vpop.xlane.xlu0 %920
        %922 = vadd.xlane.f32.xlu0 %v860
        %v923 = vpop.xlane.xlu0 %922
        %924 = vadd.xlane.f32.xlu0 %v861
        %v925 = vpop.xlane.xlu0 %924
        %v958 = vlaneseq
        %v959 = vand.u32 %v958, 127
        %v960 = vlaneseq
        %v961 = vshrl.u32 %v960, 7
        %v962 = vsub.s32 %v959, %v961
        %v963 = vrot.slane %v863, %v962
        %v964 = vadd.s32 %v959, 4294967288
        %v965 = vlaneseq
        %v966 = vshrl.u32 %v965, 7
        %v967 = vsub.s32 %v964, %v966
        %v968 = vrot.slane %v865, %v967
        %vm969 = vcmask 130112
        %v970 = vsel %vm969, %v968, %v963
        %v971 = vadd.s32 %v959, 4294967280
        %v972 = vlaneseq
        %v973 = vshrl.u32 %v972, 7
        %v974 = vsub.s32 %v971, %v973
        %v975 = vrot.slane %v867, %v974
        %vm976 = vcmask 195712
        %v977 = vsel %vm976, %v975, %v970
        %v978 = vadd.s32 %v959, 4294967272
        %v979 = vlaneseq
        %v980 = vshrl.u32 %v979, 7
        %v981 = vsub.s32 %v978, %v980
        %v982 = vrot.slane %v869, %v981
        %vm983 = vcmask 261312
        %v984 = vsel %vm983, %v982, %v977
        %v985 = vadd.s32 %v959, 4294967264
        %v986 = vlaneseq
        %v987 = vshrl.u32 %v986, 7
        %v988 = vsub.s32 %v985, %v987
        %v989 = vrot.slane %v871, %v988
        %vm990 = vcmask 326912
        %v991 = vsel %vm990, %v989, %v984
        %v992 = vadd.s32 %v959, 4294967256
        %v993 = vlaneseq
        %v994 = vshrl.u32 %v993, 7
        %v995 = vsub.s32 %v992, %v994
        %v996 = vrot.slane %v873, %v995
        %vm997 = vcmask 392512
        %v998 = vsel %vm997, %v996, %v991
        %v999 = vadd.s32 %v959, 4294967248
        %v1000 = vlaneseq
        %v1001 = vshrl.u32 %v1000, 7
        %v1002 = vsub.s32 %v999, %v1001
        %v1003 = vrot.slane %v875, %v1002
        %vm1004 = vcmask 458112
        %v1005 = vsel %vm1004, %v1003, %v998
        %v1006 = vadd.s32 %v959, 4294967240
        %v1007 = vlaneseq
        %v1008 = vshrl.u32 %v1007, 7
        %v1009 = vsub.s32 %v1006, %v1008
        %v1010 = vrot.slane %v877, %v1009
        %vm1011 = vcmask 523712
        %v1012 = vsel %vm1011, %v1010, %v1005
        %v1013 = vadd.s32 %v959, 4294967232
        %v1014 = vlaneseq
        %v1015 = vshrl.u32 %v1014, 7
        %v1016 = vsub.s32 %v1013, %v1015
        %v1017 = vrot.slane %v879, %v1016
        %vm1018 = vcmask 589312
        %v1019 = vsel %vm1018, %v1017, %v1012
        %v1020 = vadd.s32 %v959, 4294967224
        %v1021 = vlaneseq
        %v1022 = vshrl.u32 %v1021, 7
        %v1023 = vsub.s32 %v1020, %v1022
        %v1024 = vrot.slane %v881, %v1023
        %vm1025 = vcmask 654912
        %v1026 = vsel %vm1025, %v1024, %v1019
        %v1027 = vadd.s32 %v959, 4294967216
        %v1028 = vlaneseq
        %v1029 = vshrl.u32 %v1028, 7
        %v1030 = vsub.s32 %v1027, %v1029
        %v1031 = vrot.slane %v883, %v1030
        %vm1032 = vcmask 720512
        %v1033 = vsel %vm1032, %v1031, %v1026
        %v1034 = vadd.s32 %v959, 4294967208
        %v1035 = vlaneseq
        %v1036 = vshrl.u32 %v1035, 7
        %v1037 = vsub.s32 %v1034, %v1036
        %v1038 = vrot.slane %v885, %v1037
        %vm1039 = vcmask 786112
        %v1040 = vsel %vm1039, %v1038, %v1033
        %v1041 = vadd.s32 %v959, 4294967200
        %v1042 = vlaneseq
        %v1043 = vshrl.u32 %v1042, 7
        %v1044 = vsub.s32 %v1041, %v1043
        %v1045 = vrot.slane %v887, %v1044
        %vm1046 = vcmask 851712
        %v1047 = vsel %vm1046, %v1045, %v1040
        %v1048 = vadd.s32 %v959, 4294967192
        %v1049 = vlaneseq
        %v1050 = vshrl.u32 %v1049, 7
        %v1051 = vsub.s32 %v1048, %v1050
        %v1052 = vrot.slane %v889, %v1051
        %vm1053 = vcmask 917312
        %v1054 = vsel %vm1053, %v1052, %v1047
        %v1055 = vadd.s32 %v959, 4294967184
        %v1056 = vlaneseq
        %v1057 = vshrl.u32 %v1056, 7
        %v1058 = vsub.s32 %v1055, %v1057
        %v1059 = vrot.slane %v891, %v1058
        %vm1060 = vcmask 982912
        %v1061 = vsel %vm1060, %v1059, %v1054
        %v1062 = vadd.s32 %v959, 4294967176
        %v1063 = vlaneseq
        %v1064 = vshrl.u32 %v1063, 7
        %v1065 = vsub.s32 %v1062, %v1064
        %v1066 = vrot.slane %v893, %v1065
        %vm1067 = vcmask 1048512
        %v1068 = vsel %vm1067, %v1066, %v1061
        %v1069 = vlaneseq
        %v1070 = vshrl.u32 %v1069, 7
        %v1071 = vsub.s32 %v959, %v1070
        %v1072 = vrot.slane %v895, %v1071
        %v1073 = vlaneseq
        %v1074 = vshrl.u32 %v1073, 7
        %v1075 = vsub.s32 %v964, %v1074
        %v1076 = vrot.slane %v897, %v1075
        %v1077 = vsel %vm969, %v1076, %v1072
        %v1078 = vlaneseq
        %v1079 = vshrl.u32 %v1078, 7
        %v1080 = vsub.s32 %v971, %v1079
        %v1081 = vrot.slane %v899, %v1080
        %v1082 = vsel %vm976, %v1081, %v1077
        %v1083 = vlaneseq
        %v1084 = vshrl.u32 %v1083, 7
        %v1085 = vsub.s32 %v978, %v1084
        %v1086 = vrot.slane %v901, %v1085
        %v1087 = vsel %vm983, %v1086, %v1082
        %v1088 = vlaneseq
        %v1089 = vshrl.u32 %v1088, 7
        %v1090 = vsub.s32 %v985, %v1089
        %v1091 = vrot.slane %v903, %v1090
        %v1092 = vsel %vm990, %v1091, %v1087
        %v1093 = vlaneseq
        %v1094 = vshrl.u32 %v1093, 7
        %v1095 = vsub.s32 %v992, %v1094
        %v1096 = vrot.slane %v905, %v1095
        %v1097 = vsel %vm997, %v1096, %v1092
        %v1098 = vlaneseq
        %v1099 = vshrl.u32 %v1098, 7
        %v1100 = vsub.s32 %v999, %v1099
        %v1101 = vrot.slane %v907, %v1100
        %v1102 = vsel %vm1004, %v1101, %v1097
        %v1103 = vlaneseq
        %v1104 = vshrl.u32 %v1103, 7
        %v1105 = vsub.s32 %v1006, %v1104
        %v1106 = vrot.slane %v909, %v1105
        %v1107 = vsel %vm1011, %v1106, %v1102
        %v1108 = vlaneseq
        %v1109 = vshrl.u32 %v1108, 7
        %v1110 = vsub.s32 %v1013, %v1109
        %v1111 = vrot.slane %v911, %v1110
        %v1112 = vsel %vm1018, %v1111, %v1107
        %v1113 = vlaneseq
        %v1114 = vshrl.u32 %v1113, 7
        %v1115 = vsub.s32 %v1020, %v1114
        %v1116 = vrot.slane %v913, %v1115
        %v1117 = vsel %vm1025, %v1116, %v1112
        %v1118 = vlaneseq
        %v1119 = vshrl.u32 %v1118, 7
        %v1120 = vsub.s32 %v1027, %v1119
        %v1121 = vrot.slane %v915, %v1120
        %v1122 = vsel %vm1032, %v1121, %v1117
        %v1123 = vlaneseq
        %v1124 = vshrl.u32 %v1123, 7
        %v1125 = vsub.s32 %v1034, %v1124
        %v1126 = vrot.slane %v917, %v1125
        %v1127 = vsel %vm1039, %v1126, %v1122
        %v1128 = vlaneseq
        %v1129 = vshrl.u32 %v1128, 7
        %v1130 = vsub.s32 %v1041, %v1129
        %v1131 = vrot.slane %v919, %v1130
        %v1132 = vsel %vm1046, %v1131, %v1127
        %v1133 = vlaneseq
        %v1134 = vshrl.u32 %v1133, 7
        %v1135 = vsub.s32 %v1048, %v1134
        %v1136 = vrot.slane %v921, %v1135
        %v1137 = vsel %vm1053, %v1136, %v1132
        %v1138 = vlaneseq
        %v1139 = vshrl.u32 %v1138, 7
        %v1140 = vsub.s32 %v1055, %v1139
        %v1141 = vrot.slane %v923, %v1140
        %v1142 = vsel %vm1060, %v1141, %v1137
        %v1143 = vlaneseq
        %v1144 = vshrl.u32 %v1143, 7
        %v1145 = vsub.s32 %v1062, %v1144
        %v1146 = vrot.slane %v925, %v1145
        %v1147 = vsel %vm1067, %v1146, %v1142
        %vm1148 = vcmask 1041409
        %v1149 = vsel %vm1148, %v1147, %v1068
        %vm1151 = vcmask 1041408
        %v1152 = vsel %vm1151, %v1149, -inf
        %1153 = vmax.xlane.f32.xlu0 %v1152
        %v1154 = vpop.xlane.xlu0 %1153
        %v1156 = vlaneseq
        %v1157 = vshrl.u32 %v1156, 7
        %v1158 = vsub.s32 0, %v1157
        %v1159 = vrot.slane %v1154, %v1158
        %v1160 = vlaneseq
        %v1161 = vshrl.u32 %v1160, 7
        %v1162 = vsub.s32 1, %v1161
        %v1163 = vrot.slane %v1154, %v1162
        %v1166 = vsub.f32 %v863, %v1159
        %v1167 = vsub.f32 %v865, %v1159
        %v1168 = vsub.f32 %v867, %v1159
        %v1169 = vsub.f32 %v869, %v1159
        %v1170 = vsub.f32 %v871, %v1159
        %v1171 = vsub.f32 %v873, %v1159
        %v1172 = vsub.f32 %v875, %v1159
        %v1173 = vsub.f32 %v877, %v1159
        %v1174 = vsub.f32 %v879, %v1159
        %v1175 = vsub.f32 %v881, %v1159
        %v1176 = vsub.f32 %v883, %v1159
        %v1177 = vsub.f32 %v885, %v1159
        %v1178 = vsub.f32 %v887, %v1159
        %v1179 = vsub.f32 %v889, %v1159
        %v1180 = vsub.f32 %v891, %v1159
        %v1181 = vsub.f32 %v893, %v1159
        %v1182 = vsub.f32 %v895, %v1163
        %v1183 = vsub.f32 %v897, %v1163
        %v1184 = vsub.f32 %v899, %v1163
        %v1185 = vsub.f32 %v901, %v1163
        %v1186 = vsub.f32 %v903, %v1163
        %v1187 = vsub.f32 %v905, %v1163
        %v1188 = vsub.f32 %v907, %v1163
        %v1189 = vsub.f32 %v909, %v1163
        %v1190 = vsub.f32 %v911, %v1163
        %v1191 = vsub.f32 %v913, %v1163
        %v1192 = vsub.f32 %v915, %v1163
        %v1193 = vsub.f32 %v917, %v1163
        %v1194 = vsub.f32 %v919, %v1163
        %v1195 = vsub.f32 %v921, %v1163
        %v1196 = vsub.f32 %v923, %v1163
        %v1197 = vsub.f32 %v925, %v1163
        %v1198 = vmul.f32 %v1166, 1.442695
        %v1199 = vpow.pop %v1198
        %v1200 = vmul.f32 %v1167, 1.442695
        %v1201 = vpow.pop %v1200
        %v1202 = vmul.f32 %v1168, 1.442695
        %v1203 = vpow.pop %v1202
        %v1204 = vmul.f32 %v1169, 1.442695
        %v1205 = vpow.pop %v1204
        %v1206 = vmul.f32 %v1170, 1.442695
        %v1207 = vpow.pop %v1206
        %v1208 = vmul.f32 %v1171, 1.442695
        %v1209 = vpow.pop %v1208
        %v1210 = vmul.f32 %v1172, 1.442695
        %v1211 = vpow.pop %v1210
        %v1212 = vmul.f32 %v1173, 1.442695
        %v1213 = vpow.pop %v1212
        %v1214 = vmul.f32 %v1174, 1.442695
        %v1215 = vpow.pop %v1214
        %v1216 = vmul.f32 %v1175, 1.442695
        %v1217 = vpow.pop %v1216
        %v1218 = vmul.f32 %v1176, 1.442695
        %v1219 = vpow.pop %v1218
        %v1220 = vmul.f32 %v1177, 1.442695
        %v1221 = vpow.pop %v1220
        %v1222 = vmul.f32 %v1178, 1.442695
        %v1223 = vpow.pop %v1222
        %v1224 = vmul.f32 %v1179, 1.442695
        %v1225 = vpow.pop %v1224
        %v1226 = vmul.f32 %v1180, 1.442695
        %v1227 = vpow.pop %v1226
        %v1228 = vmul.f32 %v1181, 1.442695
        %v1229 = vpow.pop %v1228
        %v1230 = vmul.f32 %v1182, 1.442695
        %v1231 = vpow.pop %v1230
        %v1232 = vmul.f32 %v1183, 1.442695
        %v1233 = vpow.pop %v1232
        %v1234 = vmul.f32 %v1184, 1.442695
        %v1235 = vpow.pop %v1234
        %v1236 = vmul.f32 %v1185, 1.442695
        %v1237 = vpow.pop %v1236
        %v1238 = vmul.f32 %v1186, 1.442695
        %v1239 = vpow.pop %v1238
        %v1240 = vmul.f32 %v1187, 1.442695
        %v1241 = vpow.pop %v1240
        %v1242 = vmul.f32 %v1188, 1.442695
        %v1243 = vpow.pop %v1242
        %v1244 = vmul.f32 %v1189, 1.442695
        %v1245 = vpow.pop %v1244
        %v1246 = vmul.f32 %v1190, 1.442695
        %v1247 = vpow.pop %v1246
        %v1248 = vmul.f32 %v1191, 1.442695
        %v1249 = vpow.pop %v1248
        %v1250 = vmul.f32 %v1192, 1.442695
        %v1251 = vpow.pop %v1250
        %v1252 = vmul.f32 %v1193, 1.442695
        %v1253 = vpow.pop %v1252
        %v1254 = vmul.f32 %v1194, 1.442695
        %v1255 = vpow.pop %v1254
        %v1256 = vmul.f32 %v1195, 1.442695
        %v1257 = vpow.pop %v1256
        %v1258 = vmul.f32 %v1196, 1.442695
        %v1259 = vpow.pop %v1258
        %v1260 = vmul.f32 %v1197, 1.442695
        %v1261 = vpow.pop %v1260
        %1294 = vset.pattern.permute.xlu0 0
        %1295 = vperm.xlu0 %1294, %v1199
        %v1296 = vpop.permute.xlu0 %1295
        %1297 = vset.pattern.permute.xlu0 0
        %1298 = vperm.xlu0 %1297, %v1201
        %v1299 = vpop.permute.xlu0 %1298
        %1300 = vset.pattern.permute.xlu0 0
        %1301 = vperm.xlu0 %1300, %v1203
        %v1302 = vpop.permute.xlu0 %1301
        %1303 = vset.pattern.permute.xlu0 0
        %1304 = vperm.xlu0 %1303, %v1205
        %v1305 = vpop.permute.xlu0 %1304
        %1306 = vset.pattern.permute.xlu0 0
        %1307 = vperm.xlu0 %1306, %v1207
        %v1308 = vpop.permute.xlu0 %1307
        %1309 = vset.pattern.permute.xlu0 0
        %1310 = vperm.xlu0 %1309, %v1209
        %v1311 = vpop.permute.xlu0 %1310
        %1312 = vset.pattern.permute.xlu0 0
        %1313 = vperm.xlu0 %1312, %v1211
        %v1314 = vpop.permute.xlu0 %1313
        %1315 = vset.pattern.permute.xlu0 0
        %1316 = vperm.xlu0 %1315, %v1213
        %v1317 = vpop.permute.xlu0 %1316
        %1318 = vset.pattern.permute.xlu0 0
        %1319 = vperm.xlu0 %1318, %v1215
        %v1320 = vpop.permute.xlu0 %1319
        %1321 = vset.pattern.permute.xlu0 0
        %1322 = vperm.xlu0 %1321, %v1217
        %v1323 = vpop.permute.xlu0 %1322
        %1324 = vset.pattern.permute.xlu0 0
        %1325 = vperm.xlu0 %1324, %v1219
        %v1326 = vpop.permute.xlu0 %1325
        %1327 = vset.pattern.permute.xlu0 0
        %1328 = vperm.xlu0 %1327, %v1221
        %v1329 = vpop.permute.xlu0 %1328
        %1330 = vset.pattern.permute.xlu0 0
        %1331 = vperm.xlu0 %1330, %v1223
        %v1332 = vpop.permute.xlu0 %1331
        %1333 = vset.pattern.permute.xlu0 0
        %1334 = vperm.xlu0 %1333, %v1225
        %v1335 = vpop.permute.xlu0 %1334
        %1336 = vset.pattern.permute.xlu0 0
        %1337 = vperm.xlu0 %1336, %v1227
        %v1338 = vpop.permute.xlu0 %1337
        %1339 = vset.pattern.permute.xlu0 0
        %1340 = vperm.xlu0 %1339, %v1229
        %v1341 = vpop.permute.xlu0 %1340
        %1342 = vset.pattern.permute.xlu0 0
        %1343 = vperm.xlu0 %1342, %v1231
        %v1344 = vpop.permute.xlu0 %1343
        %1345 = vset.pattern.permute.xlu0 0
        %1346 = vperm.xlu0 %1345, %v1233
        %v1347 = vpop.permute.xlu0 %1346
        %1348 = vset.pattern.permute.xlu0 0
        %1349 = vperm.xlu0 %1348, %v1235
        %v1350 = vpop.permute.xlu0 %1349
        %1351 = vset.pattern.permute.xlu0 0
        %1352 = vperm.xlu0 %1351, %v1237
        %v1353 = vpop.permute.xlu0 %1352
        %1354 = vset.pattern.permute.xlu0 0
        %1355 = vperm.xlu0 %1354, %v1239
        %v1356 = vpop.permute.xlu0 %1355
        %1357 = vset.pattern.permute.xlu0 0
        %1358 = vperm.xlu0 %1357, %v1241
        %v1359 = vpop.permute.xlu0 %1358
        %1360 = vset.pattern.permute.xlu0 0
        %1361 = vperm.xlu0 %1360, %v1243
        %v1362 = vpop.permute.xlu0 %1361
        %1363 = vset.pattern.permute.xlu0 0
        %1364 = vperm.xlu0 %1363, %v1245
        %v1365 = vpop.permute.xlu0 %1364
        %1366 = vset.pattern.permute.xlu0 0
        %1367 = vperm.xlu0 %1366, %v1247
        %v1368 = vpop.permute.xlu0 %1367
        %1369 = vset.pattern.permute.xlu0 0
        %1370 = vperm.xlu0 %1369, %v1249
        %v1371 = vpop.permute.xlu0 %1370
        %1372 = vset.pattern.permute.xlu0 0
        %1373 = vperm.xlu0 %1372, %v1251
        %v1374 = vpop.permute.xlu0 %1373
        %1375 = vset.pattern.permute.xlu0 0
        %1376 = vperm.xlu0 %1375, %v1253
        %v1377 = vpop.permute.xlu0 %1376
        %1378 = vset.pattern.permute.xlu0 0
        %1379 = vperm.xlu0 %1378, %v1255
        %v1380 = vpop.permute.xlu0 %1379
        %1381 = vset.pattern.permute.xlu0 0
        %1382 = vperm.xlu0 %1381, %v1257
        %v1383 = vpop.permute.xlu0 %1382
        %1384 = vset.pattern.permute.xlu0 0
        %1385 = vperm.xlu0 %1384, %v1259
        %v1386 = vpop.permute.xlu0 %1385
        %1387 = vset.pattern.permute.xlu0 0
        %1388 = vperm.xlu0 %1387, %v1261
        %v1389 = vpop.permute.xlu0 %1388
        %v1390 = vlaneseq
        %v1391 = vshrl.u32 %v1390, 7
        %v1392 = vsub.s32 %v959, %v1391
        %v1393 = vrot.slane %v1296, %v1392
        %v1394 = vlaneseq
        %v1395 = vshrl.u32 %v1394, 7
        %v1396 = vsub.s32 %v964, %v1395
        %v1397 = vrot.slane %v1299, %v1396
        %v1398 = vsel %vm969, %v1397, %v1393
        %v1399 = vlaneseq
        %v1400 = vshrl.u32 %v1399, 7
        %v1401 = vsub.s32 %v971, %v1400
        %v1402 = vrot.slane %v1302, %v1401
        %v1403 = vsel %vm976, %v1402, %v1398
        %v1404 = vlaneseq
        %v1405 = vshrl.u32 %v1404, 7
        %v1406 = vsub.s32 %v978, %v1405
        %v1407 = vrot.slane %v1305, %v1406
        %v1408 = vsel %vm983, %v1407, %v1403
        %v1409 = vlaneseq
        %v1410 = vshrl.u32 %v1409, 7
        %v1411 = vsub.s32 %v985, %v1410
        %v1412 = vrot.slane %v1308, %v1411
        %v1413 = vsel %vm990, %v1412, %v1408
        %v1414 = vlaneseq
        %v1415 = vshrl.u32 %v1414, 7
        %v1416 = vsub.s32 %v992, %v1415
        %v1417 = vrot.slane %v1311, %v1416
        %v1418 = vsel %vm997, %v1417, %v1413
        %v1419 = vlaneseq
        %v1420 = vshrl.u32 %v1419, 7
        %v1421 = vsub.s32 %v999, %v1420
        %v1422 = vrot.slane %v1314, %v1421
        %v1423 = vsel %vm1004, %v1422, %v1418
        %v1424 = vlaneseq
        %v1425 = vshrl.u32 %v1424, 7
        %v1426 = vsub.s32 %v1006, %v1425
        %v1427 = vrot.slane %v1317, %v1426
        %v1428 = vsel %vm1011, %v1427, %v1423
        %v1429 = vlaneseq
        %v1430 = vshrl.u32 %v1429, 7
        %v1431 = vsub.s32 %v1013, %v1430
        %v1432 = vrot.slane %v1320, %v1431
        %v1433 = vsel %vm1018, %v1432, %v1428
        %v1434 = vlaneseq
        %v1435 = vshrl.u32 %v1434, 7
        %v1436 = vsub.s32 %v1020, %v1435
        %v1437 = vrot.slane %v1323, %v1436
        %v1438 = vsel %vm1025, %v1437, %v1433
        %v1439 = vlaneseq
        %v1440 = vshrl.u32 %v1439, 7
        %v1441 = vsub.s32 %v1027, %v1440
        %v1442 = vrot.slane %v1326, %v1441
        %v1443 = vsel %vm1032, %v1442, %v1438
        %v1444 = vlaneseq
        %v1445 = vshrl.u32 %v1444, 7
        %v1446 = vsub.s32 %v1034, %v1445
        %v1447 = vrot.slane %v1329, %v1446
        %v1448 = vsel %vm1039, %v1447, %v1443
        %v1449 = vlaneseq
        %v1450 = vshrl.u32 %v1449, 7
        %v1451 = vsub.s32 %v1041, %v1450
        %v1452 = vrot.slane %v1332, %v1451
        %v1453 = vsel %vm1046, %v1452, %v1448
        %v1454 = vlaneseq
        %v1455 = vshrl.u32 %v1454, 7
        %v1456 = vsub.s32 %v1048, %v1455
        %v1457 = vrot.slane %v1335, %v1456
        %v1458 = vsel %vm1053, %v1457, %v1453
        %v1459 = vlaneseq
        %v1460 = vshrl.u32 %v1459, 7
        %v1461 = vsub.s32 %v1055, %v1460
        %v1462 = vrot.slane %v1338, %v1461
        %v1463 = vsel %vm1060, %v1462, %v1458
        %v1464 = vlaneseq
        %v1465 = vshrl.u32 %v1464, 7
        %v1466 = vsub.s32 %v1062, %v1465
        %v1467 = vrot.slane %v1341, %v1466
        %v1468 = vsel %vm1067, %v1467, %v1463
        %v1469 = vlaneseq
        %v1470 = vshrl.u32 %v1469, 7
        %v1471 = vsub.s32 %v959, %v1470
        %v1472 = vrot.slane %v1344, %v1471
        %v1473 = vlaneseq
        %v1474 = vshrl.u32 %v1473, 7
        %v1475 = vsub.s32 %v964, %v1474
        %v1476 = vrot.slane %v1347, %v1475
        %v1477 = vsel %vm969, %v1476, %v1472
        %v1478 = vlaneseq
        %v1479 = vshrl.u32 %v1478, 7
        %v1480 = vsub.s32 %v971, %v1479
        %v1481 = vrot.slane %v1350, %v1480
        %v1482 = vsel %vm976, %v1481, %v1477
        %v1483 = vlaneseq
        %v1484 = vshrl.u32 %v1483, 7
        %v1485 = vsub.s32 %v978, %v1484
        %v1486 = vrot.slane %v1353, %v1485
        %v1487 = vsel %vm983, %v1486, %v1482
        %v1488 = vlaneseq
        %v1489 = vshrl.u32 %v1488, 7
        %v1490 = vsub.s32 %v985, %v1489
        %v1491 = vrot.slane %v1356, %v1490
        %v1492 = vsel %vm990, %v1491, %v1487
        %v1493 = vlaneseq
        %v1494 = vshrl.u32 %v1493, 7
        %v1495 = vsub.s32 %v992, %v1494
        %v1496 = vrot.slane %v1359, %v1495
        %v1497 = vsel %vm997, %v1496, %v1492
        %v1498 = vlaneseq
        %v1499 = vshrl.u32 %v1498, 7
        %v1500 = vsub.s32 %v999, %v1499
        %v1501 = vrot.slane %v1362, %v1500
        %v1502 = vsel %vm1004, %v1501, %v1497
        %v1503 = vlaneseq
        %v1504 = vshrl.u32 %v1503, 7
        %v1505 = vsub.s32 %v1006, %v1504
        %v1506 = vrot.slane %v1365, %v1505
        %v1507 = vsel %vm1011, %v1506, %v1502
        %v1508 = vlaneseq
        %v1509 = vshrl.u32 %v1508, 7
        %v1510 = vsub.s32 %v1013, %v1509
        %v1511 = vrot.slane %v1368, %v1510
        %v1512 = vsel %vm1018, %v1511, %v1507
        %v1513 = vlaneseq
        %v1514 = vshrl.u32 %v1513, 7
        %v1515 = vsub.s32 %v1020, %v1514
        %v1516 = vrot.slane %v1371, %v1515
        %v1517 = vsel %vm1025, %v1516, %v1512
        %v1518 = vlaneseq
        %v1519 = vshrl.u32 %v1518, 7
        %v1520 = vsub.s32 %v1027, %v1519
        %v1521 = vrot.slane %v1374, %v1520
        %v1522 = vsel %vm1032, %v1521, %v1517
        %v1523 = vlaneseq
        %v1524 = vshrl.u32 %v1523, 7
        %v1525 = vsub.s32 %v1034, %v1524
        %v1526 = vrot.slane %v1377, %v1525
        %v1527 = vsel %vm1039, %v1526, %v1522
        %v1528 = vlaneseq
        %v1529 = vshrl.u32 %v1528, 7
        %v1530 = vsub.s32 %v1041, %v1529
        %v1531 = vrot.slane %v1380, %v1530
        %v1532 = vsel %vm1046, %v1531, %v1527
        %v1533 = vlaneseq
        %v1534 = vshrl.u32 %v1533, 7
        %v1535 = vsub.s32 %v1048, %v1534
        %v1536 = vrot.slane %v1383, %v1535
        %v1537 = vsel %vm1053, %v1536, %v1532
        %v1538 = vlaneseq
        %v1539 = vshrl.u32 %v1538, 7
        %v1540 = vsub.s32 %v1055, %v1539
        %v1541 = vrot.slane %v1386, %v1540
        %v1542 = vsel %vm1060, %v1541, %v1537
        %v1543 = vlaneseq
        %v1544 = vshrl.u32 %v1543, 7
        %v1545 = vsub.s32 %v1062, %v1544
        %v1546 = vrot.slane %v1389, %v1545
        %v1547 = vsel %vm1067, %v1546, %v1542
        %v1548 = vsel %vm1148, %v1547, %v1468
        %v1550 = vsel %vm1151, %v1548, 0.0
        %1551 = vadd.xlane.f32.xlu0 %v1550
        %v1552 = vpop.xlane.xlu0 %1551
        %v1553 = vrcp.pop %v1552
        %v1555 = vlaneseq
        %v1556 = vshrl.u32 %v1555, 7
        %v1557 = vsub.s32 0, %v1556
        %v1558 = vrot.slane %v1553, %v1557
        %v1559 = vlaneseq
        %v1560 = vshrl.u32 %v1559, 7
        %v1561 = vsub.s32 1, %v1560
        %v1562 = vrot.slane %v1553, %v1561
        %v1565 = vmul.f32 %v1199, %v1558
        %v1566 = vmul.f32 %v1201, %v1558
        %v1567 = vmul.f32 %v1203, %v1558
        %v1568 = vmul.f32 %v1205, %v1558
        %v1569 = vmul.f32 %v1207, %v1558
        %v1570 = vmul.f32 %v1209, %v1558
        %v1571 = vmul.f32 %v1211, %v1558
        %v1572 = vmul.f32 %v1213, %v1558
        %v1573 = vmul.f32 %v1215, %v1558
        %v1574 = vmul.f32 %v1217, %v1558
        %v1575 = vmul.f32 %v1219, %v1558
        %v1576 = vmul.f32 %v1221, %v1558
        %v1577 = vmul.f32 %v1223, %v1558
        %v1578 = vmul.f32 %v1225, %v1558
        %v1579 = vmul.f32 %v1227, %v1558
        %v1580 = vmul.f32 %v1229, %v1558
        %v1581 = vmul.f32 %v1231, %v1562
        %v1582 = vmul.f32 %v1233, %v1562
        %v1583 = vmul.f32 %v1235, %v1562
        %v1584 = vmul.f32 %v1237, %v1562
        %v1585 = vmul.f32 %v1239, %v1562
        %v1586 = vmul.f32 %v1241, %v1562
        %v1587 = vmul.f32 %v1243, %v1562
        %v1588 = vmul.f32 %v1245, %v1562
        %v1589 = vmul.f32 %v1247, %v1562
        %v1590 = vmul.f32 %v1249, %v1562
        %v1591 = vmul.f32 %v1251, %v1562
        %v1592 = vmul.f32 %v1253, %v1562
        %v1593 = vmul.f32 %v1255, %v1562
        %v1594 = vmul.f32 %v1257, %v1562
        %v1595 = vmul.f32 %v1259, %v1562
        %v1596 = vmul.f32 %v1261, %v1562
        %v1597 = vpack.c.bf16 %v1566, %v1565
        %v1598 = vpack.c.bf16 %v1568, %v1567
        %v1599 = vpack.c.bf16 %v1570, %v1569
        %v1600 = vpack.c.bf16 %v1572, %v1571
        %v1601 = vpack.c.bf16 %v1574, %v1573
        %v1602 = vpack.c.bf16 %v1576, %v1575
        %v1603 = vpack.c.bf16 %v1578, %v1577
        %v1604 = vpack.c.bf16 %v1580, %v1579
        %v1605 = vpack.c.bf16 %v1582, %v1581
        %v1606 = vpack.c.bf16 %v1584, %v1583
        %v1607 = vpack.c.bf16 %v1586, %v1585
        %v1608 = vpack.c.bf16 %v1588, %v1587
        %v1609 = vpack.c.bf16 %v1590, %v1589
        %v1610 = vpack.c.bf16 %v1592, %v1591
        %v1611 = vpack.c.bf16 %v1594, %v1593
        %v1612 = vpack.c.bf16 %v1596, %v1595
        %v1621 = vunpack.c.l.b16 %v1597
        %v1622 = vunpack.c.h.b16 %v1597
        %v1623 = vunpack.c.l.b16 %v1598
        %v1624 = vunpack.c.h.b16 %v1598
        %v1625 = vunpack.c.l.b16 %v1599
        %v1626 = vunpack.c.h.b16 %v1599
        %v1627 = vunpack.c.l.b16 %v1600
        %v1628 = vunpack.c.h.b16 %v1600
        %v1629 = vunpack.c.l.b16 %v1601
        %v1630 = vunpack.c.h.b16 %v1601
        %v1631 = vunpack.c.l.b16 %v1602
        %v1632 = vunpack.c.h.b16 %v1602
        %v1633 = vunpack.c.l.b16 %v1603
        %v1634 = vunpack.c.h.b16 %v1603
        %v1635 = vunpack.c.l.b16 %v1604
        %v1636 = vunpack.c.h.b16 %v1604
        %1637 = vset.pattern.permute.xlu0 0
        %1638 = vperm.xlu0 %1637, %v1621
        %v1639 = vpop.permute.xlu0 %1638
        %1640 = vset.pattern.permute.xlu0 0
        %1641 = vperm.xlu0 %1640, %v1622
        %v1642 = vpop.permute.xlu0 %1641
        %1643 = vset.pattern.permute.xlu0 0
        %1644 = vperm.xlu0 %1643, %v1623
        %v1645 = vpop.permute.xlu0 %1644
        %1646 = vset.pattern.permute.xlu0 0
        %1647 = vperm.xlu0 %1646, %v1624
        %v1648 = vpop.permute.xlu0 %1647
        %1649 = vset.pattern.permute.xlu0 0
        %1650 = vperm.xlu0 %1649, %v1625
        %v1651 = vpop.permute.xlu0 %1650
        %1652 = vset.pattern.permute.xlu0 0
        %1653 = vperm.xlu0 %1652, %v1626
        %v1654 = vpop.permute.xlu0 %1653
        %1655 = vset.pattern.permute.xlu0 0
        %1656 = vperm.xlu0 %1655, %v1627
        %v1657 = vpop.permute.xlu0 %1656
        %1658 = vset.pattern.permute.xlu0 0
        %1659 = vperm.xlu0 %1658, %v1628
        %v1660 = vpop.permute.xlu0 %1659
        %1661 = vset.pattern.permute.xlu0 0
        %1662 = vperm.xlu0 %1661, %v1629
        %v1663 = vpop.permute.xlu0 %1662
        %1664 = vset.pattern.permute.xlu0 0
        %1665 = vperm.xlu0 %1664, %v1630
        %v1666 = vpop.permute.xlu0 %1665
        %1667 = vset.pattern.permute.xlu0 0
        %1668 = vperm.xlu0 %1667, %v1631
        %v1669 = vpop.permute.xlu0 %1668
        %1670 = vset.pattern.permute.xlu0 0
        %1671 = vperm.xlu0 %1670, %v1632
        %v1672 = vpop.permute.xlu0 %1671
        %1673 = vset.pattern.permute.xlu0 0
        %1674 = vperm.xlu0 %1673, %v1633
        %v1675 = vpop.permute.xlu0 %1674
        %1676 = vset.pattern.permute.xlu0 0
        %1677 = vperm.xlu0 %1676, %v1634
        %v1678 = vpop.permute.xlu0 %1677
        %1679 = vset.pattern.permute.xlu0 0
        %1680 = vperm.xlu0 %1679, %v1635
        %v1681 = vpop.permute.xlu0 %1680
        %1682 = vset.pattern.permute.xlu0 0
        %1683 = vperm.xlu0 %1682, %v1636
        %v1684 = vpop.permute.xlu0 %1683
        %v1685 = vlaneseq
        %v1686 = vshrl.u32 %v1685, 7
        %v1687 = vsub.s32 %v959, %v1686
        %v1688 = vrot.slane %v1639, %v1687
        %v1689 = vlaneseq
        %v1690 = vshrl.u32 %v1689, 7
        %v1691 = vsub.s32 %v964, %v1690
        %v1692 = vrot.slane %v1642, %v1691
        %v1693 = vsel %vm969, %v1692, %v1688
        %v1694 = vlaneseq
        %v1695 = vshrl.u32 %v1694, 7
        %v1696 = vsub.s32 %v971, %v1695
        %v1697 = vrot.slane %v1645, %v1696
        %v1698 = vsel %vm976, %v1697, %v1693
        %v1699 = vlaneseq
        %v1700 = vshrl.u32 %v1699, 7
        %v1701 = vsub.s32 %v978, %v1700
        %v1702 = vrot.slane %v1648, %v1701
        %v1703 = vsel %vm983, %v1702, %v1698
        %v1704 = vlaneseq
        %v1705 = vshrl.u32 %v1704, 7
        %v1706 = vsub.s32 %v985, %v1705
        %v1707 = vrot.slane %v1651, %v1706
        %v1708 = vsel %vm990, %v1707, %v1703
        %v1709 = vlaneseq
        %v1710 = vshrl.u32 %v1709, 7
        %v1711 = vsub.s32 %v992, %v1710
        %v1712 = vrot.slane %v1654, %v1711
        %v1713 = vsel %vm997, %v1712, %v1708
        %v1714 = vlaneseq
        %v1715 = vshrl.u32 %v1714, 7
        %v1716 = vsub.s32 %v999, %v1715
        %v1717 = vrot.slane %v1657, %v1716
        %v1718 = vsel %vm1004, %v1717, %v1713
        %v1719 = vlaneseq
        %v1720 = vshrl.u32 %v1719, 7
        %v1721 = vsub.s32 %v1006, %v1720
        %v1722 = vrot.slane %v1660, %v1721
        %v1723 = vsel %vm1011, %v1722, %v1718
        %v1724 = vlaneseq
        %v1725 = vshrl.u32 %v1724, 7
        %v1726 = vsub.s32 %v1013, %v1725
        %v1727 = vrot.slane %v1663, %v1726
        %v1728 = vsel %vm1018, %v1727, %v1723
        %v1729 = vlaneseq
        %v1730 = vshrl.u32 %v1729, 7
        %v1731 = vsub.s32 %v1020, %v1730
        %v1732 = vrot.slane %v1666, %v1731
        %v1733 = vsel %vm1025, %v1732, %v1728
        %v1734 = vlaneseq
        %v1735 = vshrl.u32 %v1734, 7
        %v1736 = vsub.s32 %v1027, %v1735
        %v1737 = vrot.slane %v1669, %v1736
        %v1738 = vsel %vm1032, %v1737, %v1733
        %v1739 = vlaneseq
        %v1740 = vshrl.u32 %v1739, 7
        %v1741 = vsub.s32 %v1034, %v1740
        %v1742 = vrot.slane %v1672, %v1741
        %v1743 = vsel %vm1039, %v1742, %v1738
        %v1744 = vlaneseq
        %v1745 = vshrl.u32 %v1744, 7
        %v1746 = vsub.s32 %v1041, %v1745
        %v1747 = vrot.slane %v1675, %v1746
        %v1748 = vsel %vm1046, %v1747, %v1743
        %v1749 = vlaneseq
        %v1750 = vshrl.u32 %v1749, 7
        %v1751 = vsub.s32 %v1048, %v1750
        %v1752 = vrot.slane %v1678, %v1751
        %v1753 = vsel %vm1053, %v1752, %v1748
        %v1754 = vlaneseq
        %v1755 = vshrl.u32 %v1754, 7
        %v1756 = vsub.s32 %v1055, %v1755
        %v1757 = vrot.slane %v1681, %v1756
        %v1758 = vsel %vm1060, %v1757, %v1753
        %v1759 = vlaneseq
        %v1760 = vshrl.u32 %v1759, 7
        %v1761 = vsub.s32 %v1062, %v1760
        %v1762 = vrot.slane %v1684, %v1761
        %v1763 = vsel %vm1067, %v1762, %v1758
        %v1764 = vpack.c.b16 %v1763, %v1763
        %1766 = vmatprep.subr.bf16.mxu0 0
        %1767 = vmatpush1.bf16.msra.mxu0 %v533
        %1768 = vmatprep.subr.bf16.mxu0 0
        %1769 = vmatpush1.bf16.msra.mxu0 %v534
        %1770 = vmatprep.subr.bf16.mxu0 0
        %1771 = vmatpush1.bf16.msra.mxu0 %v535
        %1772 = vmatprep.subr.bf16.mxu0 0
        %1773 = vmatpush1.bf16.msra.mxu0 %v536
        %1774 = vmatprep.subr.bf16.mxu0 0
        %1775 = vmatpush1.bf16.msra.mxu0 %v537
        %1776 = vmatprep.subr.bf16.mxu0 0
        %1777 = vmatpush1.bf16.msra.mxu0 %v538
        %1778 = vmatprep.subr.bf16.mxu0 0
        %1779 = vmatpush1.bf16.msra.mxu0 %v539
        %1780 = vmatprep.subr.bf16.mxu0 0
        %1781 = vmatpush1.bf16.msra.mxu0 %v540
        %1782 = vmatprep.subr.bf16.mxu0 0
        %1783 = vmatpush1.bf16.msra.mxu0 0
        %1784 = vmatprep.subr.bf16.mxu0 0
        %1785 = vmatpush1.bf16.msra.mxu0 0
        %1786 = vmatprep.subr.bf16.mxu0 0
        %1787 = vmatpush1.bf16.msra.mxu0 0
        %1788 = vmatprep.subr.bf16.mxu0 0
        %1789 = vmatpush1.bf16.msra.mxu0 0
        %1790 = vmatprep.subr.bf16.mxu0 0
        %1791 = vmatpush1.bf16.msra.mxu0 0
        %1792 = vmatprep.subr.bf16.mxu0 0
        %1793 = vmatpush1.bf16.msra.mxu0 0
        %1794 = vmatprep.subr.bf16.mxu0 0
        %1795 = vmatpush1.bf16.msra.mxu0 0
        %1796 = vmatprep.subr.bf16.mxu0 0
        %1797 = vmatpush1.bf16.msra.mxu0 0
        %1798 = vmatprep.mubr.bf16.mxu0 0
        %1799 = vmatmul.mubr.bf16.gmra.mrb[0].mxu0 %v1764
        %v1800 = vpop.f32.mrb[0].mxu0
        %v1801 = vadd.f32 0.0, %v1800
        %v1802 = vpop.f32.mrb[0].mxu0
        %v1803 = vpop.f32.mrb[0].mxu0
        %v1804 = vpop.f32.mrb[0].mxu0
        %1805 = vdwg.mxu0
        %v1814 = vunpack.c.l.b16 %v1605
        %v1815 = vunpack.c.h.b16 %v1605
        %v1816 = vunpack.c.l.b16 %v1606
        %v1817 = vunpack.c.h.b16 %v1606
        %v1818 = vunpack.c.l.b16 %v1607
        %v1819 = vunpack.c.h.b16 %v1607
        %v1820 = vunpack.c.l.b16 %v1608
        %v1821 = vunpack.c.h.b16 %v1608
        %v1822 = vunpack.c.l.b16 %v1609
        %v1823 = vunpack.c.h.b16 %v1609
        %v1824 = vunpack.c.l.b16 %v1610
        %v1825 = vunpack.c.h.b16 %v1610
        %v1826 = vunpack.c.l.b16 %v1611
        %v1827 = vunpack.c.h.b16 %v1611
        %v1828 = vunpack.c.l.b16 %v1612
        %v1829 = vunpack.c.h.b16 %v1612
        %1830 = vset.pattern.permute.xlu0 0
        %1831 = vperm.xlu0 %1830, %v1814
        %v1832 = vpop.permute.xlu0 %1831
        %1833 = vset.pattern.permute.xlu0 0
        %1834 = vperm.xlu0 %1833, %v1815
        %v1835 = vpop.permute.xlu0 %1834
        %1836 = vset.pattern.permute.xlu0 0
        %1837 = vperm.xlu0 %1836, %v1816
        %v1838 = vpop.permute.xlu0 %1837
        %1839 = vset.pattern.permute.xlu0 0
        %1840 = vperm.xlu0 %1839, %v1817
        %v1841 = vpop.permute.xlu0 %1840
        %1842 = vset.pattern.permute.xlu0 0
        %1843 = vperm.xlu0 %1842, %v1818
        %v1844 = vpop.permute.xlu0 %1843
        %1845 = vset.pattern.permute.xlu0 0
        %1846 = vperm.xlu0 %1845, %v1819
        %v1847 = vpop.permute.xlu0 %1846
        %1848 = vset.pattern.permute.xlu0 0
        %1849 = vperm.xlu0 %1848, %v1820
        %v1850 = vpop.permute.xlu0 %1849
        %1851 = vset.pattern.permute.xlu0 0
        %1852 = vperm.xlu0 %1851, %v1821
        %v1853 = vpop.permute.xlu0 %1852
        %1854 = vset.pattern.permute.xlu0 0
        %1855 = vperm.xlu0 %1854, %v1822
        %v1856 = vpop.permute.xlu0 %1855
        %1857 = vset.pattern.permute.xlu0 0
        %1858 = vperm.xlu0 %1857, %v1823
        %v1859 = vpop.permute.xlu0 %1858
        %1860 = vset.pattern.permute.xlu0 0
        %1861 = vperm.xlu0 %1860, %v1824
        %v1862 = vpop.permute.xlu0 %1861
        %1863 = vset.pattern.permute.xlu0 0
        %1864 = vperm.xlu0 %1863, %v1825
        %v1865 = vpop.permute.xlu0 %1864
        %1866 = vset.pattern.permute.xlu0 0
        %1867 = vperm.xlu0 %1866, %v1826
        %v1868 = vpop.permute.xlu0 %1867
        %1869 = vset.pattern.permute.xlu0 0
        %1870 = vperm.xlu0 %1869, %v1827
        %v1871 = vpop.permute.xlu0 %1870
        %1872 = vset.pattern.permute.xlu0 0
        %1873 = vperm.xlu0 %1872, %v1828
        %v1874 = vpop.permute.xlu0 %1873
        %1875 = vset.pattern.permute.xlu0 0
        %1876 = vperm.xlu0 %1875, %v1829
        %v1877 = vpop.permute.xlu0 %1876
        %v1878 = vlaneseq
        %v1879 = vshrl.u32 %v1878, 7
        %v1880 = vsub.s32 %v959, %v1879
        %v1881 = vrot.slane %v1832, %v1880
        %v1882 = vlaneseq
        %v1883 = vshrl.u32 %v1882, 7
        %v1884 = vsub.s32 %v964, %v1883
        %v1885 = vrot.slane %v1835, %v1884
        %v1886 = vsel %vm969, %v1885, %v1881
        %v1887 = vlaneseq
        %v1888 = vshrl.u32 %v1887, 7
        %v1889 = vsub.s32 %v971, %v1888
        %v1890 = vrot.slane %v1838, %v1889
        %v1891 = vsel %vm976, %v1890, %v1886
        %v1892 = vlaneseq
        %v1893 = vshrl.u32 %v1892, 7
        %v1894 = vsub.s32 %v978, %v1893
        %v1895 = vrot.slane %v1841, %v1894
        %v1896 = vsel %vm983, %v1895, %v1891
        %v1897 = vlaneseq
        %v1898 = vshrl.u32 %v1897, 7
        %v1899 = vsub.s32 %v985, %v1898
        %v1900 = vrot.slane %v1844, %v1899
        %v1901 = vsel %vm990, %v1900, %v1896
        %v1902 = vlaneseq
        %v1903 = vshrl.u32 %v1902, 7
        %v1904 = vsub.s32 %v992, %v1903
        %v1905 = vrot.slane %v1847, %v1904
        %v1906 = vsel %vm997, %v1905, %v1901
        %v1907 = vlaneseq
        %v1908 = vshrl.u32 %v1907, 7
        %v1909 = vsub.s32 %v999, %v1908
        %v1910 = vrot.slane %v1850, %v1909
        %v1911 = vsel %vm1004, %v1910, %v1906
        %v1912 = vlaneseq
        %v1913 = vshrl.u32 %v1912, 7
        %v1914 = vsub.s32 %v1006, %v1913
        %v1915 = vrot.slane %v1853, %v1914
        %v1916 = vsel %vm1011, %v1915, %v1911
        %v1917 = vlaneseq
        %v1918 = vshrl.u32 %v1917, 7
        %v1919 = vsub.s32 %v1013, %v1918
        %v1920 = vrot.slane %v1856, %v1919
        %v1921 = vsel %vm1018, %v1920, %v1916
        %v1922 = vlaneseq
        %v1923 = vshrl.u32 %v1922, 7
        %v1924 = vsub.s32 %v1020, %v1923
        %v1925 = vrot.slane %v1859, %v1924
        %v1926 = vsel %vm1025, %v1925, %v1921
        %v1927 = vlaneseq
        %v1928 = vshrl.u32 %v1927, 7
        %v1929 = vsub.s32 %v1027, %v1928
        %v1930 = vrot.slane %v1862, %v1929
        %v1931 = vsel %vm1032, %v1930, %v1926
        %v1932 = vlaneseq
        %v1933 = vshrl.u32 %v1932, 7
        %v1934 = vsub.s32 %v1034, %v1933
        %v1935 = vrot.slane %v1865, %v1934
        %v1936 = vsel %vm1039, %v1935, %v1931
        %v1937 = vlaneseq
        %v1938 = vshrl.u32 %v1937, 7
        %v1939 = vsub.s32 %v1041, %v1938
        %v1940 = vrot.slane %v1868, %v1939
        %v1941 = vsel %vm1046, %v1940, %v1936
        %v1942 = vlaneseq
        %v1943 = vshrl.u32 %v1942, 7
        %v1944 = vsub.s32 %v1048, %v1943
        %v1945 = vrot.slane %v1871, %v1944
        %v1946 = vsel %vm1053, %v1945, %v1941
        %v1947 = vlaneseq
        %v1948 = vshrl.u32 %v1947, 7
        %v1949 = vsub.s32 %v1055, %v1948
        %v1950 = vrot.slane %v1874, %v1949
        %v1951 = vsel %vm1060, %v1950, %v1946
        %v1952 = vlaneseq
        %v1953 = vshrl.u32 %v1952, 7
        %v1954 = vsub.s32 %v1062, %v1953
        %v1955 = vrot.slane %v1877, %v1954
        %v1956 = vsel %vm1067, %v1955, %v1951
        %v1957 = vpack.c.b16 %v1956, %v1956
        %1959 = vmatprep.subr.bf16.mxu0 0
        %1960 = vmatpush1.bf16.msra.mxu0 %v541
        %1961 = vmatprep.subr.bf16.mxu0 0
        %1962 = vmatpush1.bf16.msra.mxu0 %v542
        %1963 = vmatprep.subr.bf16.mxu0 0
        %1964 = vmatpush1.bf16.msra.mxu0 %v543
        %1965 = vmatprep.subr.bf16.mxu0 0
        %1966 = vmatpush1.bf16.msra.mxu0 %v544
        %1967 = vmatprep.subr.bf16.mxu0 0
        %1968 = vmatpush1.bf16.msra.mxu0 %v545
        %1969 = vmatprep.subr.bf16.mxu0 0
        %1970 = vmatpush1.bf16.msra.mxu0 %v546
        %1971 = vmatprep.subr.bf16.mxu0 0
        %1972 = vmatpush1.bf16.msra.mxu0 %v547
        %1973 = vmatprep.subr.bf16.mxu0 0
        %1974 = vmatpush1.bf16.msra.mxu0 %v548
        %1975 = vmatprep.subr.bf16.mxu0 0
        %1976 = vmatpush1.bf16.msra.mxu0 0
        %1977 = vmatprep.subr.bf16.mxu0 0
        %1978 = vmatpush1.bf16.msra.mxu0 0
        %1979 = vmatprep.subr.bf16.mxu0 0
        %1980 = vmatpush1.bf16.msra.mxu0 0
        %1981 = vmatprep.subr.bf16.mxu0 0
        %1982 = vmatpush1.bf16.msra.mxu0 0
        %1983 = vmatprep.subr.bf16.mxu0 0
        %1984 = vmatpush1.bf16.msra.mxu0 0
        %1985 = vmatprep.subr.bf16.mxu0 0
        %1986 = vmatpush1.bf16.msra.mxu0 0
        %1987 = vmatprep.subr.bf16.mxu0 0
        %1988 = vmatpush1.bf16.msra.mxu0 0
        %1989 = vmatprep.subr.bf16.mxu0 0
        %1990 = vmatpush1.bf16.msra.mxu0 0
        %1991 = vmatprep.mubr.bf16.mxu0 0
        %1992 = vmatmul.mubr.bf16.gmra.mrb[0].mxu0 %v1957
        %v1993 = vpop.f32.mrb[0].mxu0
        %v1994 = vadd.f32 0.0, %v1993
        %v1995 = vpop.f32.mrb[0].mxu0
        %v1996 = vpop.f32.mrb[0].mxu0
        %v1997 = vpop.f32.mrb[0].mxu0
        %1998 = vdwg.mxu0
        %v2001 = vrot.slane %v1994, 7
        %v2002 = vsel %vm1148, %v2001, %v1801
        %2004 = vst [vmem:[%s392] sm:$0x3] %v2002
        %2037 = vset.pattern.permute.xlu0 0
        %2038 = vperm.xlu0 %2037, %v1565
        %v2039 = vpop.permute.xlu0 %2038
        %2040 = vset.pattern.permute.xlu0 0
        %2041 = vperm.xlu0 %2040, %v1566
        %v2042 = vpop.permute.xlu0 %2041
        %2043 = vset.pattern.permute.xlu0 0
        %2044 = vperm.xlu0 %2043, %v1567
        %v2045 = vpop.permute.xlu0 %2044
        %2046 = vset.pattern.permute.xlu0 0
        %2047 = vperm.xlu0 %2046, %v1568
        %v2048 = vpop.permute.xlu0 %2047
        %2049 = vset.pattern.permute.xlu0 0
        %2050 = vperm.xlu0 %2049, %v1569
        %v2051 = vpop.permute.xlu0 %2050
        %2052 = vset.pattern.permute.xlu0 0
        %2053 = vperm.xlu0 %2052, %v1570
        %v2054 = vpop.permute.xlu0 %2053
        %2055 = vset.pattern.permute.xlu0 0
        %2056 = vperm.xlu0 %2055, %v1571
        %v2057 = vpop.permute.xlu0 %2056
        %2058 = vset.pattern.permute.xlu0 0
        %2059 = vperm.xlu0 %2058, %v1572
        %v2060 = vpop.permute.xlu0 %2059
        %2061 = vset.pattern.permute.xlu0 0
        %2062 = vperm.xlu0 %2061, %v1573
        %v2063 = vpop.permute.xlu0 %2062
        %2064 = vset.pattern.permute.xlu0 0
        %2065 = vperm.xlu0 %2064, %v1574
        %v2066 = vpop.permute.xlu0 %2065
        %2067 = vset.pattern.permute.xlu0 0
        %2068 = vperm.xlu0 %2067, %v1575
        %v2069 = vpop.permute.xlu0 %2068
        %2070 = vset.pattern.permute.xlu0 0
        %2071 = vperm.xlu0 %2070, %v1576
        %v2072 = vpop.permute.xlu0 %2071
        %2073 = vset.pattern.permute.xlu0 0
        %2074 = vperm.xlu0 %2073, %v1577
        %v2075 = vpop.permute.xlu0 %2074
        %2076 = vset.pattern.permute.xlu0 0
        %2077 = vperm.xlu0 %2076, %v1578
        %v2078 = vpop.permute.xlu0 %2077
        %2079 = vset.pattern.permute.xlu0 0
        %2080 = vperm.xlu0 %2079, %v1579
        %v2081 = vpop.permute.xlu0 %2080
        %2082 = vset.pattern.permute.xlu0 0
        %2083 = vperm.xlu0 %2082, %v1580
        %v2084 = vpop.permute.xlu0 %2083
        %2085 = vset.pattern.permute.xlu0 0
        %2086 = vperm.xlu0 %2085, %v1581
        %v2087 = vpop.permute.xlu0 %2086
        %2088 = vset.pattern.permute.xlu0 0
        %2089 = vperm.xlu0 %2088, %v1582
        %v2090 = vpop.permute.xlu0 %2089
        %2091 = vset.pattern.permute.xlu0 0
        %2092 = vperm.xlu0 %2091, %v1583
        %v2093 = vpop.permute.xlu0 %2092
        %2094 = vset.pattern.permute.xlu0 0
        %2095 = vperm.xlu0 %2094, %v1584
        %v2096 = vpop.permute.xlu0 %2095
        %2097 = vset.pattern.permute.xlu0 0
        %2098 = vperm.xlu0 %2097, %v1585
        %v2099 = vpop.permute.xlu0 %2098
        %2100 = vset.pattern.permute.xlu0 0
        %2101 = vperm.xlu0 %2100, %v1586
        %v2102 = vpop.permute.xlu0 %2101
        %2103 = vset.pattern.permute.xlu0 0
        %2104 = vperm.xlu0 %2103, %v1587
        %v2105 = vpop.permute.xlu0 %2104
        %2106 = vset.pattern.permute.xlu0 0
        %2107 = vperm.xlu0 %2106, %v1588
        %v2108 = vpop.permute.xlu0 %2107
        %2109 = vset.pattern.permute.xlu0 0
        %2110 = vperm.xlu0 %2109, %v1589
        %v2111 = vpop.permute.xlu0 %2110
        %2112 = vset.pattern.permute.xlu0 0
        %2113 = vperm.xlu0 %2112, %v1590
        %v2114 = vpop.permute.xlu0 %2113
        %2115 = vset.pattern.permute.xlu0 0
        %2116 = vperm.xlu0 %2115, %v1591
        %v2117 = vpop.permute.xlu0 %2116
        %2118 = vset.pattern.permute.xlu0 0
        %2119 = vperm.xlu0 %2118, %v1592
        %v2120 = vpop.permute.xlu0 %2119
        %2121 = vset.pattern.permute.xlu0 0
        %2122 = vperm.xlu0 %2121, %v1593
        %v2123 = vpop.permute.xlu0 %2122
        %2124 = vset.pattern.permute.xlu0 0
        %2125 = vperm.xlu0 %2124, %v1594
        %v2126 = vpop.permute.xlu0 %2125
        %2127 = vset.pattern.permute.xlu0 0
        %2128 = vperm.xlu0 %2127, %v1595
        %v2129 = vpop.permute.xlu0 %2128
        %2130 = vset.pattern.permute.xlu0 0
        %2131 = vperm.xlu0 %2130, %v1596
        %v2132 = vpop.permute.xlu0 %2131
        %v2133 = vlaneseq
        %v2134 = vshrl.u32 %v2133, 7
        %v2135 = vsub.s32 %v959, %v2134
        %v2136 = vrot.slane %v2039, %v2135
        %v2137 = vlaneseq
        %v2138 = vshrl.u32 %v2137, 7
        %v2139 = vsub.s32 %v964, %v2138
        %v2140 = vrot.slane %v2042, %v2139
        %v2141 = vsel %vm969, %v2140, %v2136
        %v2142 = vlaneseq
        %v2143 = vshrl.u32 %v2142, 7
        %v2144 = vsub.s32 %v971, %v2143
        %v2145 = vrot.slane %v2045, %v2144
        %v2146 = vsel %vm976, %v2145, %v2141
        %v2147 = vlaneseq
        %v2148 = vshrl.u32 %v2147, 7
        %v2149 = vsub.s32 %v978, %v2148
        %v2150 = vrot.slane %v2048, %v2149
        %v2151 = vsel %vm983, %v2150, %v2146
        %v2152 = vlaneseq
        %v2153 = vshrl.u32 %v2152, 7
        %v2154 = vsub.s32 %v985, %v2153
        %v2155 = vrot.slane %v2051, %v2154
        %v2156 = vsel %vm990, %v2155, %v2151
        %v2157 = vlaneseq
        %v2158 = vshrl.u32 %v2157, 7
        %v2159 = vsub.s32 %v992, %v2158
        %v2160 = vrot.slane %v2054, %v2159
        %v2161 = vsel %vm997, %v2160, %v2156
        %v2162 = vlaneseq
        %v2163 = vshrl.u32 %v2162, 7
        %v2164 = vsub.s32 %v999, %v2163
        %v2165 = vrot.slane %v2057, %v2164
        %v2166 = vsel %vm1004, %v2165, %v2161
        %v2167 = vlaneseq
        %v2168 = vshrl.u32 %v2167, 7
        %v2169 = vsub.s32 %v1006, %v2168
        %v2170 = vrot.slane %v2060, %v2169
        %v2171 = vsel %vm1011, %v2170, %v2166
        %v2172 = vlaneseq
        %v2173 = vshrl.u32 %v2172, 7
        %v2174 = vsub.s32 %v1013, %v2173
        %v2175 = vrot.slane %v2063, %v2174
        %v2176 = vsel %vm1018, %v2175, %v2171
        %v2177 = vlaneseq
        %v2178 = vshrl.u32 %v2177, 7
        %v2179 = vsub.s32 %v1020, %v2178
        %v2180 = vrot.slane %v2066, %v2179
        %v2181 = vsel %vm1025, %v2180, %v2176
        %v2182 = vlaneseq
        %v2183 = vshrl.u32 %v2182, 7
        %v2184 = vsub.s32 %v1027, %v2183
        %v2185 = vrot.slane %v2069, %v2184
        %v2186 = vsel %vm1032, %v2185, %v2181
        %v2187 = vlaneseq
        %v2188 = vshrl.u32 %v2187, 7
        %v2189 = vsub.s32 %v1034, %v2188
        %v2190 = vrot.slane %v2072, %v2189
        %v2191 = vsel %vm1039, %v2190, %v2186
        %v2192 = vlaneseq
        %v2193 = vshrl.u32 %v2192, 7
        %v2194 = vsub.s32 %v1041, %v2193
        %v2195 = vrot.slane %v2075, %v2194
        %v2196 = vsel %vm1046, %v2195, %v2191
        %v2197 = vlaneseq
        %v2198 = vshrl.u32 %v2197, 7
        %v2199 = vsub.s32 %v1048, %v2198
        %v2200 = vrot.slane %v2078, %v2199
        %v2201 = vsel %vm1053, %v2200, %v2196
        %v2202 = vlaneseq
        %v2203 = vshrl.u32 %v2202, 7
        %v2204 = vsub.s32 %v1055, %v2203
        %v2205 = vrot.slane %v2081, %v2204
        %v2206 = vsel %vm1060, %v2205, %v2201
        %v2207 = vlaneseq
        %v2208 = vshrl.u32 %v2207, 7
        %v2209 = vsub.s32 %v1062, %v2208
        %v2210 = vrot.slane %v2084, %v2209
        %v2211 = vsel %vm1067, %v2210, %v2206
        %v2212 = vlaneseq
        %v2213 = vshrl.u32 %v2212, 7
        %v2214 = vsub.s32 %v959, %v2213
        %v2215 = vrot.slane %v2087, %v2214
        %v2216 = vlaneseq
        %v2217 = vshrl.u32 %v2216, 7
        %v2218 = vsub.s32 %v964, %v2217
        %v2219 = vrot.slane %v2090, %v2218
        %v2220 = vsel %vm969, %v2219, %v2215
        %v2221 = vlaneseq
        %v2222 = vshrl.u32 %v2221, 7
        %v2223 = vsub.s32 %v971, %v2222
        %v2224 = vrot.slane %v2093, %v2223
        %v2225 = vsel %vm976, %v2224, %v2220
        %v2226 = vlaneseq
        %v2227 = vshrl.u32 %v2226, 7
        %v2228 = vsub.s32 %v978, %v2227
        %v2229 = vrot.slane %v2096, %v2228
        %v2230 = vsel %vm983, %v2229, %v2225
        %v2231 = vlaneseq
        %v2232 = vshrl.u32 %v2231, 7
        %v2233 = vsub.s32 %v985, %v2232
        %v2234 = vrot.slane %v2099, %v2233
        %v2235 = vsel %vm990, %v2234, %v2230
        %v2236 = vlaneseq
        %v2237 = vshrl.u32 %v2236, 7
        %v2238 = vsub.s32 %v992, %v2237
        %v2239 = vrot.slane %v2102, %v2238
        %v2240 = vsel %vm997, %v2239, %v2235
        %v2241 = vlaneseq
        %v2242 = vshrl.u32 %v2241, 7
        %v2243 = vsub.s32 %v999, %v2242
        %v2244 = vrot.slane %v2105, %v2243
        %v2245 = vsel %vm1004, %v2244, %v2240
        %v2246 = vlaneseq
        %v2247 = vshrl.u32 %v2246, 7
        %v2248 = vsub.s32 %v1006, %v2247
        %v2249 = vrot.slane %v2108, %v2248
        %v2250 = vsel %vm1011, %v2249, %v2245
        %v2251 = vlaneseq
        %v2252 = vshrl.u32 %v2251, 7
        %v2253 = vsub.s32 %v1013, %v2252
        %v2254 = vrot.slane %v2111, %v2253
        %v2255 = vsel %vm1018, %v2254, %v2250
        %v2256 = vlaneseq
        %v2257 = vshrl.u32 %v2256, 7
        %v2258 = vsub.s32 %v1020, %v2257
        %v2259 = vrot.slane %v2114, %v2258
        %v2260 = vsel %vm1025, %v2259, %v2255
        %v2261 = vlaneseq
        %v2262 = vshrl.u32 %v2261, 7
        %v2263 = vsub.s32 %v1027, %v2262
        %v2264 = vrot.slane %v2117, %v2263
        %v2265 = vsel %vm1032, %v2264, %v2260
        %v2266 = vlaneseq
        %v2267 = vshrl.u32 %v2266, 7
        %v2268 = vsub.s32 %v1034, %v2267
        %v2269 = vrot.slane %v2120, %v2268
        %v2270 = vsel %vm1039, %v2269, %v2265
        %v2271 = vlaneseq
        %v2272 = vshrl.u32 %v2271, 7
        %v2273 = vsub.s32 %v1041, %v2272
        %v2274 = vrot.slane %v2123, %v2273
        %v2275 = vsel %vm1046, %v2274, %v2270
        %v2276 = vlaneseq
        %v2277 = vshrl.u32 %v2276, 7
        %v2278 = vsub.s32 %v1048, %v2277
        %v2279 = vrot.slane %v2126, %v2278
        %v2280 = vsel %vm1053, %v2279, %v2275
        %v2281 = vlaneseq
        %v2282 = vshrl.u32 %v2281, 7
        %v2283 = vsub.s32 %v1055, %v2282
        %v2284 = vrot.slane %v2129, %v2283
        %v2285 = vsel %vm1060, %v2284, %v2280
        %v2286 = vlaneseq
        %v2287 = vshrl.u32 %v2286, 7
        %v2288 = vsub.s32 %v1062, %v2287
        %v2289 = vrot.slane %v2132, %v2288
        %v2290 = vsel %vm1067, %v2289, %v2285
        %v2291 = vsel %vm1148, %v2290, %v2211
        %2293 = vst [vmem:[%s399] sm:$0x3] %v2291
        %s2294 = scalar_lea.vmem %s343, 256 [#allocation5]
        %v2295 = vld [vmem:[%s2294] sm:$0xff]
        %v2296 = vld [vmem:[%s2294 + $0x8] sm:$0xff]
        %v2297 = vld [vmem:[%s2294 + $0x10] sm:$0xff]
        %v2298 = vld [vmem:[%s2294 + $0x18] sm:$0xff]
        %v2299 = vld [vmem:[%s2294 + $0x20] sm:$0xff]
        %v2300 = vld [vmem:[%s2294 + $0x28] sm:$0xff]
        %v2301 = vld [vmem:[%s2294 + $0x30] sm:$0xff]
        %v2302 = vld [vmem:[%s2294 + $0x38] sm:$0xff]
        %v2303 = vld [vmem:[%s2294 + $0x40] sm:$0xff]
        %v2304 = vld [vmem:[%s2294 + $0x48] sm:$0xff]
        %v2305 = vld [vmem:[%s2294 + $0x50] sm:$0xff]
        %v2306 = vld [vmem:[%s2294 + $0x58] sm:$0xff]
        %v2307 = vld [vmem:[%s2294 + $0x60] sm:$0xff]
        %v2308 = vld [vmem:[%s2294 + $0x68] sm:$0xff]
        %v2309 = vld [vmem:[%s2294 + $0x70] sm:$0xff]
        %v2310 = vld [vmem:[%s2294 + $0x78] sm:$0xff]
        %v2311 = vld [vmem:[%s2294 + $0x80] sm:$0xff]
        %v2312 = vld [vmem:[%s2294 + $0x88] sm:$0xff]
        %v2313 = vld [vmem:[%s2294 + $0x90] sm:$0xff]
        %v2314 = vld [vmem:[%s2294 + $0x98] sm:$0xff]
        %v2315 = vld [vmem:[%s2294 + $0xa0] sm:$0xff]
        %v2316 = vld [vmem:[%s2294 + $0xa8] sm:$0xff]
        %v2317 = vld [vmem:[%s2294 + $0xb0] sm:$0xff]
        %v2318 = vld [vmem:[%s2294 + $0xb8] sm:$0xff]
        %v2319 = vld [vmem:[%s2294 + $0xc0] sm:$0xff]
        %v2320 = vld [vmem:[%s2294 + $0xc8] sm:$0xff]
        %v2321 = vld [vmem:[%s2294 + $0xd0] sm:$0xff]
        %v2322 = vld [vmem:[%s2294 + $0xd8] sm:$0xff]
        %v2323 = vld [vmem:[%s2294 + $0xe0] sm:$0xff]
        %v2324 = vld [vmem:[%s2294 + $0xe8] sm:$0xff]
        %v2325 = vld [vmem:[%s2294 + $0xf0] sm:$0xff]
        %v2326 = vld [vmem:[%s2294 + $0xf8] sm:$0xff]
        %v2327 = vpack.c.bf16 %v2296, %v2295
        %v2328 = vpack.c.bf16 %v2298, %v2297
        %v2329 = vpack.c.bf16 %v2300, %v2299
        %v2330 = vpack.c.bf16 %v2302, %v2301
        %v2331 = vpack.c.bf16 %v2304, %v2303
        %v2332 = vpack.c.bf16 %v2306, %v2305
        %v2333 = vpack.c.bf16 %v2308, %v2307
        %v2334 = vpack.c.bf16 %v2310, %v2309
        %v2335 = vpack.c.bf16 %v2312, %v2311
        %v2336 = vpack.c.bf16 %v2314, %v2313
        %v2337 = vpack.c.bf16 %v2316, %v2315
        %v2338 = vpack.c.bf16 %v2318, %v2317
        %v2339 = vpack.c.bf16 %v2320, %v2319
        %v2340 = vpack.c.bf16 %v2322, %v2321
        %v2341 = vpack.c.bf16 %v2324, %v2323
        %v2342 = vpack.c.bf16 %v2326, %v2325
        %2343 = vmatprep.subr.bf16.mxu0 0
        %2344 = vmatpush1.bf16.msra.mxu0 %v442
        %2345 = vmatprep.subr.bf16.mxu0 0
        %2346 = vmatpush1.bf16.msra.mxu0 %v443
        %2347 = vmatprep.subr.bf16.mxu0 0
        %2348 = vmatpush1.bf16.msra.mxu0 %v444
        %2349 = vmatprep.subr.bf16.mxu0 0
        %2350 = vmatpush1.bf16.msra.mxu0 %v445
        %2351 = vmatprep.subr.bf16.mxu0 0
        %2352 = vmatpush1.bf16.msra.mxu0 %v446
        %2353 = vmatprep.subr.bf16.mxu0 0
        %2354 = vmatpush1.bf16.msra.mxu0 %v447
        %2355 = vmatprep.subr.bf16.mxu0 0
        %2356 = vmatpush1.bf16.msra.mxu0 %v448
        %2357 = vmatprep.subr.bf16.mxu0 0
        %2358 = vmatpush1.bf16.msra.mxu0 %v449
        %2359 = vmatprep.subr.bf16.mxu0 0
        %2360 = vmatpush1.bf16.msra.mxu0 0
        %2361 = vmatprep.subr.bf16.mxu0 0
        %2362 = vmatpush1.bf16.msra.mxu0 0
        %2363 = vmatprep.subr.bf16.mxu0 0
        %2364 = vmatpush1.bf16.msra.mxu0 0
        %2365 = vmatprep.subr.bf16.mxu0 0
        %2366 = vmatpush1.bf16.msra.mxu0 0
        %2367 = vmatprep.subr.bf16.mxu0 0
        %2368 = vmatpush1.bf16.msra.mxu0 0
        %2369 = vmatprep.subr.bf16.mxu0 0
        %2370 = vmatpush1.bf16.msra.mxu0 0
        %2371 = vmatprep.subr.bf16.mxu0 0
        %2372 = vmatpush1.bf16.msra.mxu0 0
        %2373 = vmatprep.subr.bf16.mxu0 0
        %2374 = vmatpush1.bf16.msra.mxu0 0
        %2375 = vmatprep.mubr.bf16.mxu0 0
        %2376 = vmatmul.mubr.bf16.gmra.mrb[0].mxu0 %v2327
        %v2377 = vpop.f32.mrb[0].mxu0
        %v2378 = vadd.f32 0.0, %v2377
        %v2379 = vpop.f32.mrb[0].mxu0
        %v2380 = vpop.f32.mrb[0].mxu0
        %v2381 = vadd.f32 0.0, %v2380
        %v2382 = vpop.f32.mrb[0].mxu0
        %2383 = vmatprep.mubr.bf16.mxu0 0
        %2384 = vmatmul.mubr.bf16.gmra.mrb[0].mxu0 %v2328
        %v2385 = vpop.f32.mrb[0].mxu0
        %v2386 = vadd.f32 0.0, %v2385
        %v2387 = vpop.f32.mrb[0].mxu0
        %v2388 = vpop.f32.mrb[0].mxu0
        %v2389 = vadd.f32 0.0, %v2388
        %v2390 = vpop.f32.mrb[0].mxu0
        %2391 = vmatprep.mubr.bf16.mxu0 0
        %2392 = vmatmul.mubr.bf16.gmra.mrb[0].mxu0 %v2329
        %v2393 = vpop.f32.mrb[0].mxu0
        %v2394 = vadd.f32 0.0, %v2393
        %v2395 = vpop.f32.mrb[0].mxu0
        %v2396 = vpop.f32.mrb[0].mxu0
        %v2397 = vadd.f32 0.0, %v2396
        %v2398 = vpop.f32.mrb[0].mxu0
        %2399 = vmatprep.mubr.bf16.mxu0 0
        %2400 = vmatmul.mubr.bf16.gmra.mrb[0].mxu0 %v2330
        %v2401 = vpop.f32.mrb[0].mxu0
        %v2402 = vadd.f32 0.0, %v2401
        %v2403 = vpop.f32.mrb[0].mxu0
        %v2404 = vpop.f32.mrb[0].mxu0
        %v2405 = vadd.f32 0.0, %v2404
        %v2406 = vpop.f32.mrb[0].mxu0
        %2407 = vmatprep.mubr.bf16.mxu0 0
        %2408 = vmatmul.mubr.bf16.gmra.mrb[0].mxu0 %v2331
        %v2409 = vpop.f32.mrb[0].mxu0
        %v2410 = vadd.f32 0.0, %v2409
        %v2411 = vpop.f32.mrb[0].mxu0
        %v2412 = vpop.f32.mrb[0].mxu0
        %v2413 = vadd.f32 0.0, %v2412
        %v2414 = vpop.f32.mrb[0].mxu0
        %2415 = vmatprep.mubr.bf16.mxu0 0
        %2416 = vmatmul.mubr.bf16.gmra.mrb[0].mxu0 %v2332
        %v2417 = vpop.f32.mrb[0].mxu0
        %v2418 = vadd.f32 0.0, %v2417
        %v2419 = vpop.f32.mrb[0].mxu0
        %v2420 = vpop.f32.mrb[0].mxu0
        %v2421 = vadd.f32 0.0, %v2420
        %v2422 = vpop.f32.mrb[0].mxu0
        %2423 = vmatprep.mubr.bf16.mxu0 0
        %2424 = vmatmul.mubr.bf16.gmra.mrb[0].mxu0 %v2333
        %v2425 = vpop.f32.mrb[0].mxu0
        %v2426 = vadd.f32 0.0, %v2425
        %v2427 = vpop.f32.mrb[0].mxu0
        %v2428 = vpop.f32.mrb[0].mxu0
        %v2429 = vadd.f32 0.0, %v2428
        %v2430 = vpop.f32.mrb[0].mxu0
        %2431 = vmatprep.mubr.bf16.mxu0 0
        %2432 = vmatmul.mubr.bf16.gmra.mrb[0].mxu0 %v2334
        %v2433 = vpop.f32.mrb[0].mxu0
        %v2434 = vadd.f32 0.0, %v2433
        %v2435 = vpop.f32.mrb[0].mxu0
        %v2436 = vpop.f32.mrb[0].mxu0
        %v2437 = vadd.f32 0.0, %v2436
        %v2438 = vpop.f32.mrb[0].mxu0
        %2439 = vmatprep.mubr.bf16.mxu0 0
        %2440 = vmatmul.mubr.bf16.gmra.mrb[0].mxu0 %v2335
        %v2441 = vpop.f32.mrb[0].mxu0
        %v2442 = vadd.f32 0.0, %v2441
        %v2443 = vpop.f32.mrb[0].mxu0
        %v2444 = vpop.f32.mrb[0].mxu0
        %v2445 = vadd.f32 0.0, %v2444
        %v2446 = vpop.f32.mrb[0].mxu0
        %2447 = vmatprep.mubr.bf16.mxu0 0
        %2448 = vmatmul.mubr.bf16.gmra.mrb[0].mxu0 %v2336
        %v2449 = vpop.f32.mrb[0].mxu0
        %v2450 = vadd.f32 0.0, %v2449
        %v2451 = vpop.f32.mrb[0].mxu0
        %v2452 = vpop.f32.mrb[0].mxu0
        %v2453 = vadd.f32 0.0, %v2452
        %v2454 = vpop.f32.mrb[0].mxu0
        %2455 = vmatprep.mubr.bf16.mxu0 0
        %2456 = vmatmul.mubr.bf16.gmra.mrb[0].mxu0 %v2337
        %v2457 = vpop.f32.mrb[0].mxu0
        %v2458 = vadd.f32 0.0, %v2457
        %v2459 = vpop.f32.mrb[0].mxu0
        %v2460 = vpop.f32.mrb[0].mxu0
        %v2461 = vadd.f32 0.0, %v2460
        %v2462 = vpop.f32.mrb[0].mxu0
        %2463 = vmatprep.mubr.bf16.mxu0 0
        %2464 = vmatmul.mubr.bf16.gmra.mrb[0].mxu0 %v2338
        %v2465 = vpop.f32.mrb[0].mxu0
        %v2466 = vadd.f32 0.0, %v2465
        %v2467 = vpop.f32.mrb[0].mxu0
        %v2468 = vpop.f32.mrb[0].mxu0
        %v2469 = vadd.f32 0.0, %v2468
        %v2470 = vpop.f32.mrb[0].mxu0
        %2471 = vmatprep.mubr.bf16.mxu0 0
        %2472 = vmatmul.mubr.bf16.gmra.mrb[0].mxu0 %v2339
        %v2473 = vpop.f32.mrb[0].mxu0
        %v2474 = vadd.f32 0.0, %v2473
        %v2475 = vpop.f32.mrb[0].mxu0
        %v2476 = vpop.f32.mrb[0].mxu0
        %v2477 = vadd.f32 0.0, %v2476
        %v2478 = vpop.f32.mrb[0].mxu0
        %2479 = vmatprep.mubr.bf16.mxu0 0
        %2480 = vmatmul.mubr.bf16.gmra.mrb[0].mxu0 %v2340
        %v2481 = vpop.f32.mrb[0].mxu0
        %v2482 = vadd.f32 0.0, %v2481
        %v2483 = vpop.f32.mrb[0].mxu0
        %v2484 = vpop.f32.mrb[0].mxu0
        %v2485 = vadd.f32 0.0, %v2484
        %v2486 = vpop.f32.mrb[0].mxu0
        %2487 = vmatprep.mubr.bf16.mxu0 0
        %2488 = vmatmul.mubr.bf16.gmra.mrb[0].mxu0 %v2341
        %v2489 = vpop.f32.mrb[0].mxu0
        %v2490 = vadd.f32 0.0, %v2489
        %v2491 = vpop.f32.mrb[0].mxu0
        %v2492 = vpop.f32.mrb[0].mxu0
        %v2493 = vadd.f32 0.0, %v2492
        %v2494 = vpop.f32.mrb[0].mxu0
        %2495 = vmatprep.mubr.bf16.mxu0 0
        %2496 = vmatmul.mubr.bf16.gmra.mrb[0].mxu0 %v2342
        %v2497 = vpop.f32.mrb[0].mxu0
        %v2498 = vadd.f32 0.0, %v2497
        %v2499 = vpop.f32.mrb[0].mxu0
        %v2500 = vpop.f32.mrb[0].mxu0
        %v2501 = vadd.f32 0.0, %v2500
        %v2502 = vpop.f32.mrb[0].mxu0
        %2503 = vdwg.mxu0
        %v2504 = vcombine.high %v725, %v725
        %v2505 = vcombine.high %v732, %v732
        %v2506 = vlaneseq
        %v2507 = vshrl.u32 %v2506, 7
        %v2508 = vsub.s32 0, %v2507
        %v2509 = vrot.slane %v2504, %v2508
        %v2510 = vlaneseq
        %v2511 = vshrl.u32 %v2510, 7
        %v2512 = vsub.s32 0, %v2511
        %v2513 = vrot.slane %v2505, %v2512
        %v2516 = vadd.f32 %v2378, %v2509
        %v2517 = vadd.f32 %v2381, %v2509
        %v2518 = vadd.f32 %v2386, %v2509
        %v2519 = vadd.f32 %v2389, %v2509
        %v2520 = vadd.f32 %v2394, %v2509
        %v2521 = vadd.f32 %v2397, %v2509
        %v2522 = vadd.f32 %v2402, %v2509
        %v2523 = vadd.f32 %v2405, %v2509
        %v2524 = vadd.f32 %v2410, %v2509
        %v2525 = vadd.f32 %v2413, %v2509
        %v2526 = vadd.f32 %v2418, %v2509
        %v2527 = vadd.f32 %v2421, %v2509
        %v2528 = vadd.f32 %v2426, %v2509
        %v2529 = vadd.f32 %v2429, %v2509
        %v2530 = vadd.f32 %v2434, %v2509
        %v2531 = vadd.f32 %v2437, %v2509
        %v2532 = vadd.f32 %v2442, %v2513
        %v2533 = vadd.f32 %v2445, %v2513
        %v2534 = vadd.f32 %v2450, %v2513
        %v2535 = vadd.f32 %v2453, %v2513
        %v2536 = vadd.f32 %v2458, %v2513
        %v2537 = vadd.f32 %v2461, %v2513
        %v2538 = vadd.f32 %v2466, %v2513
        %v2539 = vadd.f32 %v2469, %v2513
        %v2540 = vadd.f32 %v2474, %v2513
        %v2541 = vadd.f32 %v2477, %v2513
        %v2542 = vadd.f32 %v2482, %v2513
        %v2543 = vadd.f32 %v2485, %v2513
        %v2544 = vadd.f32 %v2490, %v2513
        %v2545 = vadd.f32 %v2493, %v2513
        %v2546 = vadd.f32 %v2498, %v2513
        %v2547 = vadd.f32 %v2501, %v2513
        %v2548 = vpack.c.bf16 %v2517, %v2516
        %v2549 = vpack.c.bf16 %v2519, %v2518
        %v2550 = vpack.c.bf16 %v2521, %v2520
        %v2551 = vpack.c.bf16 %v2523, %v2522
        %v2552 = vpack.c.bf16 %v2525, %v2524
        %v2553 = vpack.c.bf16 %v2527, %v2526
        %v2554 = vpack.c.bf16 %v2529, %v2528
        %v2555 = vpack.c.bf16 %v2531, %v2530
        %v2556 = vpack.c.bf16 %v2533, %v2532
        %v2557 = vpack.c.bf16 %v2535, %v2534
        %v2558 = vpack.c.bf16 %v2537, %v2536
        %v2559 = vpack.c.bf16 %v2539, %v2538
        %v2560 = vpack.c.bf16 %v2541, %v2540
        %v2561 = vpack.c.bf16 %v2543, %v2542
        %v2562 = vpack.c.bf16 %v2545, %v2544
        %v2563 = vpack.c.bf16 %v2547, %v2546
        %v2564 = vtanh.bf16.pop %v2548
        %v2565 = vtanh.bf16.pop %v2549
        %v2566 = vtanh.bf16.pop %v2550
        %v2567 = vtanh.bf16.pop %v2551
        %v2568 = vtanh.bf16.pop %v2552
        %v2569 = vtanh.bf16.pop %v2553
        %v2570 = vtanh.bf16.pop %v2554
        %v2571 = vtanh.bf16.pop %v2555
        %v2572 = vtanh.bf16.pop %v2556
        %v2573 = vtanh.bf16.pop %v2557
        %v2574 = vtanh.bf16.pop %v2558
        %v2575 = vtanh.bf16.pop %v2559
        %v2576 = vtanh.bf16.pop %v2560
        %v2577 = vtanh.bf16.pop %v2561
        %v2578 = vtanh.bf16.pop %v2562
        %v2579 = vtanh.bf16.pop %v2563
        %v2580 = vmul.bf16 %v2564, %v813
        %v2581 = vmul.bf16 %v2565, %v813
        %v2582 = vmul.bf16 %v2566, %v813
        %v2583 = vmul.bf16 %v2567, %v813
        %v2584 = vmul.bf16 %v2568, %v813
        %v2585 = vmul.bf16 %v2569, %v813
        %v2586 = vmul.bf16 %v2570, %v813
        %v2587 = vmul.bf16 %v2571, %v813
        %v2588 = vmul.bf16 %v2572, %v813
        %v2589 = vmul.bf16 %v2573, %v813
        %v2590 = vmul.bf16 %v2574, %v813
        %v2591 = vmul.bf16 %v2575, %v813
        %v2592 = vmul.bf16 %v2576, %v813
        %v2593 = vmul.bf16 %v2577, %v813
        %v2594 = vmul.bf16 %v2578, %v813
        %v2595 = vmul.bf16 %v2579, %v813
        %v2596 = vunpack.c.l.bf16 %v2580
        %v2597 = vunpack.c.h.bf16 %v2580
        %v2598 = vunpack.c.l.bf16 %v2581
        %v2599 = vunpack.c.h.bf16 %v2581
        %v2600 = vunpack.c.l.bf16 %v2582
        %v2601 = vunpack.c.h.bf16 %v2582
        %v2602 = vunpack.c.l.bf16 %v2583
        %v2603 = vunpack.c.h.bf16 %v2583
        %v2604 = vunpack.c.l.bf16 %v2584
        %v2605 = vunpack.c.h.bf16 %v2584
        %v2606 = vunpack.c.l.bf16 %v2585
        %v2607 = vunpack.c.h.bf16 %v2585
        %v2608 = vunpack.c.l.bf16 %v2586
        %v2609 = vunpack.c.h.bf16 %v2586
        %v2610 = vunpack.c.l.bf16 %v2587
        %v2611 = vunpack.c.h.bf16 %v2587
        %v2612 = vunpack.c.l.bf16 %v2588
        %v2613 = vunpack.c.h.bf16 %v2588
        %v2614 = vunpack.c.l.bf16 %v2589
        %v2615 = vunpack.c.h.bf16 %v2589
        %v2616 = vunpack.c.l.bf16 %v2590
        %v2617 = vunpack.c.h.bf16 %v2590
        %v2618 = vunpack.c.l.bf16 %v2591
        %v2619 = vunpack.c.h.bf16 %v2591
        %v2620 = vunpack.c.l.bf16 %v2592
        %v2621 = vunpack.c.h.bf16 %v2592
        %v2622 = vunpack.c.l.bf16 %v2593
        %v2623 = vunpack.c.h.bf16 %v2593
        %v2624 = vunpack.c.l.bf16 %v2594
        %v2625 = vunpack.c.h.bf16 %v2594
        %v2626 = vunpack.c.l.bf16 %v2595
        %v2627 = vunpack.c.h.bf16 %v2595
        %2628 = vadd.xlane.f32.xlu0 %v2596
        %v2629 = vpop.xlane.xlu0 %2628
        %2630 = vadd.xlane.f32.xlu0 %v2597
        %v2631 = vpop.xlane.xlu0 %2630
        %2632 = vadd.xlane.f32.xlu0 %v2598
        %v2633 = vpop.xlane.xlu0 %2632
        %2634 = vadd.xlane.f32.xlu0 %v2599
        %v2635 = vpop.xlane.xlu0 %2634
        %2636 = vadd.xlane.f32.xlu0 %v2600
        %v2637 = vpop.xlane.xlu0 %2636
        %2638 = vadd.xlane.f32.xlu0 %v2601
        %v2639 = vpop.xlane.xlu0 %2638
        %2640 = vadd.xlane.f32.xlu0 %v2602
        %v2641 = vpop.xlane.xlu0 %2640
        %2642 = vadd.xlane.f32.xlu0 %v2603
        %v2643 = vpop.xlane.xlu0 %2642
        %2644 = vadd.xlane.f32.xlu0 %v2604
        %v2645 = vpop.xlane.xlu0 %2644
        %2646 = vadd.xlane.f32.xlu0 %v2605
        %v2647 = vpop.xlane.xlu0 %2646
        %2648 = vadd.xlane.f32.xlu0 %v2606
        %v2649 = vpop.xlane.xlu0 %2648
        %2650 = vadd.xlane.f32.xlu0 %v2607
        %v2651 = vpop.xlane.xlu0 %2650
        %2652 = vadd.xlane.f32.xlu0 %v2608
        %v2653 = vpop.xlane.xlu0 %2652
        %2654 = vadd.xlane.f32.xlu0 %v2609
        %v2655 = vpop.xlane.xlu0 %2654
        %2656 = vadd.xlane.f32.xlu0 %v2610
        %v2657 = vpop.xlane.xlu0 %2656
        %2658 = vadd.xlane.f32.xlu0 %v2611
        %v2659 = vpop.xlane.xlu0 %2658
        %2660 = vadd.xlane.f32.xlu0 %v2612
        %v2661 = vpop.xlane.xlu0 %2660
        %2662 = vadd.xlane.f32.xlu0 %v2613
        %v2663 = vpop.xlane.xlu0 %2662
        %2664 = vadd.xlane.f32.xlu0 %v2614
        %v2665 = vpop.xlane.xlu0 %2664
        %2666 = vadd.xlane.f32.xlu0 %v2615
        %v2667 = vpop.xlane.xlu0 %2666
        %2668 = vadd.xlane.f32.xlu0 %v2616
        %v2669 = vpop.xlane.xlu0 %2668
        %2670 = vadd.xlane.f32.xlu0 %v2617
        %v2671 = vpop.xlane.xlu0 %2670
        %2672 = vadd.xlane.f32.xlu0 %v2618
        %v2673 = vpop.xlane.xlu0 %2672
        %2674 = vadd.xlane.f32.xlu0 %v2619
        %v2675 = vpop.xlane.xlu0 %2674
        %2676 = vadd.xlane.f32.xlu0 %v2620
        %v2677 = vpop.xlane.xlu0 %2676
        %2678 = vadd.xlane.f32.xlu0 %v2621
        %v2679 = vpop.xlane.xlu0 %2678
        %2680 = vadd.xlane.f32.xlu0 %v2622
        %v2681 = vpop.xlane.xlu0 %2680
        %2682 = vadd.xlane.f32.xlu0 %v2623
        %v2683 = vpop.xlane.xlu0 %2682
        %2684 = vadd.xlane.f32.xlu0 %v2624
        %v2685 = vpop.xlane.xlu0 %2684
        %2686 = vadd.xlane.f32.xlu0 %v2625
        %v2687 = vpop.xlane.xlu0 %2686
        %2688 = vadd.xlane.f32.xlu0 %v2626
        %v2689 = vpop.xlane.xlu0 %2688
        %2690 = vadd.xlane.f32.xlu0 %v2627
        %v2691 = vpop.xlane.xlu0 %2690
        %v2724 = vlaneseq
        %v2725 = vshrl.u32 %v2724, 7
        %v2726 = vsub.s32 %v959, %v2725
        %v2727 = vrot.slane %v2629, %v2726
        %v2728 = vlaneseq
        %v2729 = vshrl.u32 %v2728, 7
        %v2730 = vsub.s32 %v964, %v2729
        %v2731 = vrot.slane %v2631, %v2730
        %v2732 = vsel %vm969, %v2731, %v2727
        %v2733 = vlaneseq
        %v2734 = vshrl.u32 %v2733, 7
        %v2735 = vsub.s32 %v971, %v2734
        %v2736 = vrot.slane %v2633, %v2735
        %v2737 = vsel %vm976, %v2736, %v2732
        %v2738 = vlaneseq
        %v2739 = vshrl.u32 %v2738, 7
        %v2740 = vsub.s32 %v978, %v2739
        %v2741 = vrot.slane %v2635, %v2740
        %v2742 = vsel %vm983, %v2741, %v2737
        %v2743 = vlaneseq
        %v2744 = vshrl.u32 %v2743, 7
        %v2745 = vsub.s32 %v985, %v2744
        %v2746 = vrot.slane %v2637, %v2745
        %v2747 = vsel %vm990, %v2746, %v2742
        %v2748 = vlaneseq
        %v2749 = vshrl.u32 %v2748, 7
        %v2750 = vsub.s32 %v992, %v2749
        %v2751 = vrot.slane %v2639, %v2750
        %v2752 = vsel %vm997, %v2751, %v2747
        %v2753 = vlaneseq
        %v2754 = vshrl.u32 %v2753, 7
        %v2755 = vsub.s32 %v999, %v2754
        %v2756 = vrot.slane %v2641, %v2755
        %v2757 = vsel %vm1004, %v2756, %v2752
        %v2758 = vlaneseq
        %v2759 = vshrl.u32 %v2758, 7
        %v2760 = vsub.s32 %v1006, %v2759
        %v2761 = vrot.slane %v2643, %v2760
        %v2762 = vsel %vm1011, %v2761, %v2757
        %v2763 = vlaneseq
        %v2764 = vshrl.u32 %v2763, 7
        %v2765 = vsub.s32 %v1013, %v2764
        %v2766 = vrot.slane %v2645, %v2765
        %v2767 = vsel %vm1018, %v2766, %v2762
        %v2768 = vlaneseq
        %v2769 = vshrl.u32 %v2768, 7
        %v2770 = vsub.s32 %v1020, %v2769
        %v2771 = vrot.slane %v2647, %v2770
        %v2772 = vsel %vm1025, %v2771, %v2767
        %v2773 = vlaneseq
        %v2774 = vshrl.u32 %v2773, 7
        %v2775 = vsub.s32 %v1027, %v2774
        %v2776 = vrot.slane %v2649, %v2775
        %v2777 = vsel %vm1032, %v2776, %v2772
        %v2778 = vlaneseq
        %v2779 = vshrl.u32 %v2778, 7
        %v2780 = vsub.s32 %v1034, %v2779
        %v2781 = vrot.slane %v2651, %v2780
        %v2782 = vsel %vm1039, %v2781, %v2777
        %v2783 = vlaneseq
        %v2784 = vshrl.u32 %v2783, 7
        %v2785 = vsub.s32 %v1041, %v2784
        %v2786 = vrot.slane %v2653, %v2785
        %v2787 = vsel %vm1046, %v2786, %v2782
        %v2788 = vlaneseq
        %v2789 = vshrl.u32 %v2788, 7
        %v2790 = vsub.s32 %v1048, %v2789
        %v2791 = vrot.slane %v2655, %v2790
        %v2792 = vsel %vm1053, %v2791, %v2787
        %v2793 = vlaneseq
        %v2794 = vshrl.u32 %v2793, 7
        %v2795 = vsub.s32 %v1055, %v2794
        %v2796 = vrot.slane %v2657, %v2795
        %v2797 = vsel %vm1060, %v2796, %v2792
        %v2798 = vlaneseq
        %v2799 = vshrl.u32 %v2798, 7
        %v2800 = vsub.s32 %v1062, %v2799
        %v2801 = vrot.slane %v2659, %v2800
        %v2802 = vsel %vm1067, %v2801, %v2797
        %v2803 = vlaneseq
        %v2804 = vshrl.u32 %v2803, 7
        %v2805 = vsub.s32 %v959, %v2804
        %v2806 = vrot.slane %v2661, %v2805
        %v2807 = vlaneseq
        %v2808 = vshrl.u32 %v2807, 7
        %v2809 = vsub.s32 %v964, %v2808
        %v2810 = vrot.slane %v2663, %v2809
        %v2811 = vsel %vm969, %v2810, %v2806
        %v2812 = vlaneseq
        %v2813 = vshrl.u32 %v2812, 7
        %v2814 = vsub.s32 %v971, %v2813
        %v2815 = vrot.slane %v2665, %v2814
        %v2816 = vsel %vm976, %v2815, %v2811
        %v2817 = vlaneseq
        %v2818 = vshrl.u32 %v2817, 7
        %v2819 = vsub.s32 %v978, %v2818
        %v2820 = vrot.slane %v2667, %v2819
        %v2821 = vsel %vm983, %v2820, %v2816
        %v2822 = vlaneseq
        %v2823 = vshrl.u32 %v2822, 7
        %v2824 = vsub.s32 %v985, %v2823
        %v2825 = vrot.slane %v2669, %v2824
        %v2826 = vsel %vm990, %v2825, %v2821
        %v2827 = vlaneseq
        %v2828 = vshrl.u32 %v2827, 7
        %v2829 = vsub.s32 %v992, %v2828
        %v2830 = vrot.slane %v2671, %v2829
        %v2831 = vsel %vm997, %v2830, %v2826
        %v2832 = vlaneseq
        %v2833 = vshrl.u32 %v2832, 7
        %v2834 = vsub.s32 %v999, %v2833
        %v2835 = vrot.slane %v2673, %v2834
        %v2836 = vsel %vm1004, %v2835, %v2831
        %v2837 = vlaneseq
        %v2838 = vshrl.u32 %v2837, 7
        %v2839 = vsub.s32 %v1006, %v2838
        %v2840 = vrot.slane %v2675, %v2839
        %v2841 = vsel %vm1011, %v2840, %v2836
        %v2842 = vlaneseq
        %v2843 = vshrl.u32 %v2842, 7
        %v2844 = vsub.s32 %v1013, %v2843
        %v2845 = vrot.slane %v2677, %v2844
        %v2846 = vsel %vm1018, %v2845, %v2841
        %v2847 = vlaneseq
        %v2848 = vshrl.u32 %v2847, 7
        %v2849 = vsub.s32 %v1020, %v2848
        %v2850 = vrot.slane %v2679, %v2849
        %v2851 = vsel %vm1025, %v2850, %v2846
        %v2852 = vlaneseq
        %v2853 = vshrl.u32 %v2852, 7
        %v2854 = vsub.s32 %v1027, %v2853
        %v2855 = vrot.slane %v2681, %v2854
        %v2856 = vsel %vm1032, %v2855, %v2851
        %v2857 = vlaneseq
        %v2858 = vshrl.u32 %v2857, 7
        %v2859 = vsub.s32 %v1034, %v2858
        %v2860 = vrot.slane %v2683, %v2859
        %v2861 = vsel %vm1039, %v2860, %v2856
        %v2862 = vlaneseq
        %v2863 = vshrl.u32 %v2862, 7
        %v2864 = vsub.s32 %v1041, %v2863
        %v2865 = vrot.slane %v2685, %v2864
        %v2866 = vsel %vm1046, %v2865, %v2861
        %v2867 = vlaneseq
        %v2868 = vshrl.u32 %v2867, 7
        %v2869 = vsub.s32 %v1048, %v2868
        %v2870 = vrot.slane %v2687, %v2869
        %v2871 = vsel %vm1053, %v2870, %v2866
        %v2872 = vlaneseq
        %v2873 = vshrl.u32 %v2872, 7
        %v2874 = vsub.s32 %v1055, %v2873
        %v2875 = vrot.slane %v2689, %v2874
        %v2876 = vsel %vm1060, %v2875, %v2871
        %v2877 = vlaneseq
        %v2878 = vshrl.u32 %v2877, 7
        %v2879 = vsub.s32 %v1062, %v2878
        %v2880 = vrot.slane %v2691, %v2879
        %v2881 = vsel %vm1067, %v2880, %v2876
        %v2882 = vsel %vm1148, %v2881, %v2802
        %v2884 = vsel %vm1151, %v2882, -inf
        %2885 = vmax.xlane.f32.xlu0 %v2884
        %v2886 = vpop.xlane.xlu0 %2885
        %v2888 = vlaneseq
        %v2889 = vshrl.u32 %v2888, 7
        %v2890 = vsub.s32 0, %v2889
        %v2891 = vrot.slane %v2886, %v2890
        %v2892 = vlaneseq
        %v2893 = vshrl.u32 %v2892, 7
        %v2894 = vsub.s32 1, %v2893
        %v2895 = vrot.slane %v2886, %v2894
        %v2898 = vsub.f32 %v2629, %v2891
        %v2899 = vsub.f32 %v2631, %v2891
        %v2900 = vsub.f32 %v2633, %v2891
        %v2901 = vsub.f32 %v2635, %v2891
        %v2902 = vsub.f32 %v2637, %v2891
        %v2903 = vsub.f32 %v2639, %v2891
        %v2904 = vsub.f32 %v2641, %v2891
        %v2905 = vsub.f32 %v2643, %v2891
        %v2906 = vsub.f32 %v2645, %v2891
        %v2907 = vsub.f32 %v2647, %v2891
        %v2908 = vsub.f32 %v2649, %v2891
        %v2909 = vsub.f32 %v2651, %v2891
        %v2910 = vsub.f32 %v2653, %v2891
        %v2911 = vsub.f32 %v2655, %v2891
        %v2912 = vsub.f32 %v2657, %v2891
        %v2913 = vsub.f32 %v2659, %v2891
        %v2914 = vsub.f32 %v2661, %v2895
        %v2915 = vsub.f32 %v2663, %v2895
        %v2916 = vsub.f32 %v2665, %v2895
        %v2917 = vsub.f32 %v2667, %v2895
        %v2918 = vsub.f32 %v2669, %v2895
        %v2919 = vsub.f32 %v2671, %v2895
        %v2920 = vsub.f32 %v2673, %v2895
        %v2921 = vsub.f32 %v2675, %v2895
        %v2922 = vsub.f32 %v2677, %v2895
        %v2923 = vsub.f32 %v2679, %v2895
        %v2924 = vsub.f32 %v2681, %v2895
        %v2925 = vsub.f32 %v2683, %v2895
        %v2926 = vsub.f32 %v2685, %v2895
        %v2927 = vsub.f32 %v2687, %v2895
        %v2928 = vsub.f32 %v2689, %v2895
        %v2929 = vsub.f32 %v2691, %v2895
        %v2930 = vmul.f32 %v2898, 1.442695
        %v2931 = vpow.pop %v2930
        %v2932 = vmul.f32 %v2899, 1.442695
        %v2933 = vpow.pop %v2932
        %v2934 = vmul.f32 %v2900, 1.442695
        %v2935 = vpow.pop %v2934
        %v2936 = vmul.f32 %v2901, 1.442695
        %v2937 = vpow.pop %v2936
        %v2938 = vmul.f32 %v2902, 1.442695
        %v2939 = vpow.pop %v2938
        %v2940 = vmul.f32 %v2903, 1.442695
        %v2941 = vpow.pop %v2940
        %v2942 = vmul.f32 %v2904, 1.442695
        %v2943 = vpow.pop %v2942
        %v2944 = vmul.f32 %v2905, 1.442695
        %v2945 = vpow.pop %v2944
        %v2946 = vmul.f32 %v2906, 1.442695
        %v2947 = vpow.pop %v2946
        %v2948 = vmul.f32 %v2907, 1.442695
        %v2949 = vpow.pop %v2948
        %v2950 = vmul.f32 %v2908, 1.442695
        %v2951 = vpow.pop %v2950
        %v2952 = vmul.f32 %v2909, 1.442695
        %v2953 = vpow.pop %v2952
        %v2954 = vmul.f32 %v2910, 1.442695
        %v2955 = vpow.pop %v2954
        %v2956 = vmul.f32 %v2911, 1.442695
        %v2957 = vpow.pop %v2956
        %v2958 = vmul.f32 %v2912, 1.442695
        %v2959 = vpow.pop %v2958
        %v2960 = vmul.f32 %v2913, 1.442695
        %v2961 = vpow.pop %v2960
        %v2962 = vmul.f32 %v2914, 1.442695
        %v2963 = vpow.pop %v2962
        %v2964 = vmul.f32 %v2915, 1.442695
        %v2965 = vpow.pop %v2964
        %v2966 = vmul.f32 %v2916, 1.442695
        %v2967 = vpow.pop %v2966
        %v2968 = vmul.f32 %v2917, 1.442695
        %v2969 = vpow.pop %v2968
        %v2970 = vmul.f32 %v2918, 1.442695
        %v2971 = vpow.pop %v2970
        %v2972 = vmul.f32 %v2919, 1.442695
        %v2973 = vpow.pop %v2972
        %v2974 = vmul.f32 %v2920, 1.442695
        %v2975 = vpow.pop %v2974
        %v2976 = vmul.f32 %v2921, 1.442695
        %v2977 = vpow.pop %v2976
        %v2978 = vmul.f32 %v2922, 1.442695
        %v2979 = vpow.pop %v2978
        %v2980 = vmul.f32 %v2923, 1.442695
        %v2981 = vpow.pop %v2980
        %v2982 = vmul.f32 %v2924, 1.442695
        %v2983 = vpow.pop %v2982
        %v2984 = vmul.f32 %v2925, 1.442695
        %v2985 = vpow.pop %v2984
        %v2986 = vmul.f32 %v2926, 1.442695
        %v2987 = vpow.pop %v2986
        %v2988 = vmul.f32 %v2927, 1.442695
        %v2989 = vpow.pop %v2988
        %v2990 = vmul.f32 %v2928, 1.442695
        %v2991 = vpow.pop %v2990
        %v2992 = vmul.f32 %v2929, 1.442695
        %v2993 = vpow.pop %v2992
        %3026 = vset.pattern.permute.xlu0 0
        %3027 = vperm.xlu0 %3026, %v2931
        %v3028 = vpop.permute.xlu0 %3027
        %3029 = vset.pattern.permute.xlu0 0
        %3030 = vperm.xlu0 %3029, %v2933
        %v3031 = vpop.permute.xlu0 %3030
        %3032 = vset.pattern.permute.xlu0 0
        %3033 = vperm.xlu0 %3032, %v2935
        %v3034 = vpop.permute.xlu0 %3033
        %3035 = vset.pattern.permute.xlu0 0
        %3036 = vperm.xlu0 %3035, %v2937
        %v3037 = vpop.permute.xlu0 %3036
        %3038 = vset.pattern.permute.xlu0 0
        %3039 = vperm.xlu0 %3038, %v2939
        %v3040 = vpop.permute.xlu0 %3039
        %3041 = vset.pattern.permute.xlu0 0
        %3042 = vperm.xlu0 %3041, %v2941
        %v3043 = vpop.permute.xlu0 %3042
        %3044 = vset.pattern.permute.xlu0 0
        %3045 = vperm.xlu0 %3044, %v2943
        %v3046 = vpop.permute.xlu0 %3045
        %3047 = vset.pattern.permute.xlu0 0
        %3048 = vperm.xlu0 %3047, %v2945
        %v3049 = vpop.permute.xlu0 %3048
        %3050 = vset.pattern.permute.xlu0 0
        %3051 = vperm.xlu0 %3050, %v2947
        %v3052 = vpop.permute.xlu0 %3051
        %3053 = vset.pattern.permute.xlu0 0
        %3054 = vperm.xlu0 %3053, %v2949
        %v3055 = vpop.permute.xlu0 %3054
        %3056 = vset.pattern.permute.xlu0 0
        %3057 = vperm.xlu0 %3056, %v2951
        %v3058 = vpop.permute.xlu0 %3057
        %3059 = vset.pattern.permute.xlu0 0
        %3060 = vperm.xlu0 %3059, %v2953
        %v3061 = vpop.permute.xlu0 %3060
        %3062 = vset.pattern.permute.xlu0 0
        %3063 = vperm.xlu0 %3062, %v2955
        %v3064 = vpop.permute.xlu0 %3063
        %3065 = vset.pattern.permute.xlu0 0
        %3066 = vperm.xlu0 %3065, %v2957
        %v3067 = vpop.permute.xlu0 %3066
        %3068 = vset.pattern.permute.xlu0 0
        %3069 = vperm.xlu0 %3068, %v2959
        %v3070 = vpop.permute.xlu0 %3069
        %3071 = vset.pattern.permute.xlu0 0
        %3072 = vperm.xlu0 %3071, %v2961
        %v3073 = vpop.permute.xlu0 %3072
        %3074 = vset.pattern.permute.xlu0 0
        %3075 = vperm.xlu0 %3074, %v2963
        %v3076 = vpop.permute.xlu0 %3075
        %3077 = vset.pattern.permute.xlu0 0
        %3078 = vperm.xlu0 %3077, %v2965
        %v3079 = vpop.permute.xlu0 %3078
        %3080 = vset.pattern.permute.xlu0 0
        %3081 = vperm.xlu0 %3080, %v2967
        %v3082 = vpop.permute.xlu0 %3081
        %3083 = vset.pattern.permute.xlu0 0
        %3084 = vperm.xlu0 %3083, %v2969
        %v3085 = vpop.permute.xlu0 %3084
        %3086 = vset.pattern.permute.xlu0 0
        %3087 = vperm.xlu0 %3086, %v2971
        %v3088 = vpop.permute.xlu0 %3087
        %3089 = vset.pattern.permute.xlu0 0
        %3090 = vperm.xlu0 %3089, %v2973
        %v3091 = vpop.permute.xlu0 %3090
        %3092 = vset.pattern.permute.xlu0 0
        %3093 = vperm.xlu0 %3092, %v2975
        %v3094 = vpop.permute.xlu0 %3093
        %3095 = vset.pattern.permute.xlu0 0
        %3096 = vperm.xlu0 %3095, %v2977
        %v3097 = vpop.permute.xlu0 %3096
        %3098 = vset.pattern.permute.xlu0 0
        %3099 = vperm.xlu0 %3098, %v2979
        %v3100 = vpop.permute.xlu0 %3099
        %3101 = vset.pattern.permute.xlu0 0
        %3102 = vperm.xlu0 %3101, %v2981
        %v3103 = vpop.permute.xlu0 %3102
        %3104 = vset.pattern.permute.xlu0 0
        %3105 = vperm.xlu0 %3104, %v2983
        %v3106 = vpop.permute.xlu0 %3105
        %3107 = vset.pattern.permute.xlu0 0
        %3108 = vperm.xlu0 %3107, %v2985
        %v3109 = vpop.permute.xlu0 %3108
        %3110 = vset.pattern.permute.xlu0 0
        %3111 = vperm.xlu0 %3110, %v2987
        %v3112 = vpop.permute.xlu0 %3111
        %3113 = vset.pattern.permute.xlu0 0
        %3114 = vperm.xlu0 %3113, %v2989
        %v3115 = vpop.permute.xlu0 %3114
        %3116 = vset.pattern.permute.xlu0 0
        %3117 = vperm.xlu0 %3116, %v2991
        %v3118 = vpop.permute.xlu0 %3117
        %3119 = vset.pattern.permute.xlu0 0
        %3120 = vperm.xlu0 %3119, %v2993
        %v3121 = vpop.permute.xlu0 %3120
        %v3122 = vlaneseq
        %v3123 = vshrl.u32 %v3122, 7
        %v3124 = vsub.s32 %v959, %v3123
        %v3125 = vrot.slane %v3028, %v3124
        %v3126 = vlaneseq
        %v3127 = vshrl.u32 %v3126, 7
        %v3128 = vsub.s32 %v964, %v3127
        %v3129 = vrot.slane %v3031, %v3128
        %v3130 = vsel %vm969, %v3129, %v3125
        %v3131 = vlaneseq
        %v3132 = vshrl.u32 %v3131, 7
        %v3133 = vsub.s32 %v971, %v3132
        %v3134 = vrot.slane %v3034, %v3133
        %v3135 = vsel %vm976, %v3134, %v3130
        %v3136 = vlaneseq
        %v3137 = vshrl.u32 %v3136, 7
        %v3138 = vsub.s32 %v978, %v3137
        %v3139 = vrot.slane %v3037, %v3138
        %v3140 = vsel %vm983, %v3139, %v3135
        %v3141 = vlaneseq
        %v3142 = vshrl.u32 %v3141, 7
        %v3143 = vsub.s32 %v985, %v3142
        %v3144 = vrot.slane %v3040, %v3143
        %v3145 = vsel %vm990, %v3144, %v3140
        %v3146 = vlaneseq
        %v3147 = vshrl.u32 %v3146, 7
        %v3148 = vsub.s32 %v992, %v3147
        %v3149 = vrot.slane %v3043, %v3148
        %v3150 = vsel %vm997, %v3149, %v3145
        %v3151 = vlaneseq
        %v3152 = vshrl.u32 %v3151, 7
        %v3153 = vsub.s32 %v999, %v3152
        %v3154 = vrot.slane %v3046, %v3153
        %v3155 = vsel %vm1004, %v3154, %v3150
        %v3156 = vlaneseq
        %v3157 = vshrl.u32 %v3156, 7
        %v3158 = vsub.s32 %v1006, %v3157
        %v3159 = vrot.slane %v3049, %v3158
        %v3160 = vsel %vm1011, %v3159, %v3155
        %v3161 = vlaneseq
        %v3162 = vshrl.u32 %v3161, 7
        %v3163 = vsub.s32 %v1013, %v3162
        %v3164 = vrot.slane %v3052, %v3163
        %v3165 = vsel %vm1018, %v3164, %v3160
        %v3166 = vlaneseq
        %v3167 = vshrl.u32 %v3166, 7
        %v3168 = vsub.s32 %v1020, %v3167
        %v3169 = vrot.slane %v3055, %v3168
        %v3170 = vsel %vm1025, %v3169, %v3165
        %v3171 = vlaneseq
        %v3172 = vshrl.u32 %v3171, 7
        %v3173 = vsub.s32 %v1027, %v3172
        %v3174 = vrot.slane %v3058, %v3173
        %v3175 = vsel %vm1032, %v3174, %v3170
        %v3176 = vlaneseq
        %v3177 = vshrl.u32 %v3176, 7
        %v3178 = vsub.s32 %v1034, %v3177
        %v3179 = vrot.slane %v3061, %v3178
        %v3180 = vsel %vm1039, %v3179, %v3175
        %v3181 = vlaneseq
        %v3182 = vshrl.u32 %v3181, 7
        %v3183 = vsub.s32 %v1041, %v3182
        %v3184 = vrot.slane %v3064, %v3183
        %v3185 = vsel %vm1046, %v3184, %v3180
        %v3186 = vlaneseq
        %v3187 = vshrl.u32 %v3186, 7
        %v3188 = vsub.s32 %v1048, %v3187
        %v3189 = vrot.slane %v3067, %v3188
        %v3190 = vsel %vm1053, %v3189, %v3185
        %v3191 = vlaneseq
        %v3192 = vshrl.u32 %v3191, 7
        %v3193 = vsub.s32 %v1055, %v3192
        %v3194 = vrot.slane %v3070, %v3193
        %v3195 = vsel %vm1060, %v3194, %v3190
        %v3196 = vlaneseq
        %v3197 = vshrl.u32 %v3196, 7
        %v3198 = vsub.s32 %v1062, %v3197
        %v3199 = vrot.slane %v3073, %v3198
        %v3200 = vsel %vm1067, %v3199, %v3195
        %v3201 = vlaneseq
        %v3202 = vshrl.u32 %v3201, 7
        %v3203 = vsub.s32 %v959, %v3202
        %v3204 = vrot.slane %v3076, %v3203
        %v3205 = vlaneseq
        %v3206 = vshrl.u32 %v3205, 7
        %v3207 = vsub.s32 %v964, %v3206
        %v3208 = vrot.slane %v3079, %v3207
        %v3209 = vsel %vm969, %v3208, %v3204
        %v3210 = vlaneseq
        %v3211 = vshrl.u32 %v3210, 7
        %v3212 = vsub.s32 %v971, %v3211
        %v3213 = vrot.slane %v3082, %v3212
        %v3214 = vsel %vm976, %v3213, %v3209
        %v3215 = vlaneseq
        %v3216 = vshrl.u32 %v3215, 7
        %v3217 = vsub.s32 %v978, %v3216
        %v3218 = vrot.slane %v3085, %v3217
        %v3219 = vsel %vm983, %v3218, %v3214
        %v3220 = vlaneseq
        %v3221 = vshrl.u32 %v3220, 7
        %v3222 = vsub.s32 %v985, %v3221
        %v3223 = vrot.slane %v3088, %v3222
        %v3224 = vsel %vm990, %v3223, %v3219
        %v3225 = vlaneseq
        %v3226 = vshrl.u32 %v3225, 7
        %v3227 = vsub.s32 %v992, %v3226
        %v3228 = vrot.slane %v3091, %v3227
        %v3229 = vsel %vm997, %v3228, %v3224
        %v3230 = vlaneseq
        %v3231 = vshrl.u32 %v3230, 7
        %v3232 = vsub.s32 %v999, %v3231
        %v3233 = vrot.slane %v3094, %v3232
        %v3234 = vsel %vm1004, %v3233, %v3229
        %v3235 = vlaneseq
        %v3236 = vshrl.u32 %v3235, 7
        %v3237 = vsub.s32 %v1006, %v3236
        %v3238 = vrot.slane %v3097, %v3237
        %v3239 = vsel %vm1011, %v3238, %v3234
        %v3240 = vlaneseq
        %v3241 = vshrl.u32 %v3240, 7
        %v3242 = vsub.s32 %v1013, %v3241
        %v3243 = vrot.slane %v3100, %v3242
        %v3244 = vsel %vm1018, %v3243, %v3239
        %v3245 = vlaneseq
        %v3246 = vshrl.u32 %v3245, 7
        %v3247 = vsub.s32 %v1020, %v3246
        %v3248 = vrot.slane %v3103, %v3247
        %v3249 = vsel %vm1025, %v3248, %v3244
        %v3250 = vlaneseq
        %v3251 = vshrl.u32 %v3250, 7
        %v3252 = vsub.s32 %v1027, %v3251
        %v3253 = vrot.slane %v3106, %v3252
        %v3254 = vsel %vm1032, %v3253, %v3249
        %v3255 = vlaneseq
        %v3256 = vshrl.u32 %v3255, 7
        %v3257 = vsub.s32 %v1034, %v3256
        %v3258 = vrot.slane %v3109, %v3257
        %v3259 = vsel %vm1039, %v3258, %v3254
        %v3260 = vlaneseq
        %v3261 = vshrl.u32 %v3260, 7
        %v3262 = vsub.s32 %v1041, %v3261
        %v3263 = vrot.slane %v3112, %v3262
        %v3264 = vsel %vm1046, %v3263, %v3259
        %v3265 = vlaneseq
        %v3266 = vshrl.u32 %v3265, 7
        %v3267 = vsub.s32 %v1048, %v3266
        %v3268 = vrot.slane %v3115, %v3267
        %v3269 = vsel %vm1053, %v3268, %v3264
        %v3270 = vlaneseq
        %v3271 = vshrl.u32 %v3270, 7
        %v3272 = vsub.s32 %v1055, %v3271
        %v3273 = vrot.slane %v3118, %v3272
        %v3274 = vsel %vm1060, %v3273, %v3269
        %v3275 = vlaneseq
        %v3276 = vshrl.u32 %v3275, 7
        %v3277 = vsub.s32 %v1062, %v3276
        %v3278 = vrot.slane %v3121, %v3277
        %v3279 = vsel %vm1067, %v3278, %v3274
        %v3280 = vsel %vm1148, %v3279, %v3200
        %v3282 = vsel %vm1151, %v3280, 0.0
        %3283 = vadd.xlane.f32.xlu0 %v3282
        %v3284 = vpop.xlane.xlu0 %3283
        %v3285 = vrcp.pop %v3284
        %v3287 = vlaneseq
        %v3288 = vshrl.u32 %v3287, 7
        %v3289 = vsub.s32 0, %v3288
        %v3290 = vrot.slane %v3285, %v3289
        %v3291 = vlaneseq
        %v3292 = vshrl.u32 %v3291, 7
        %v3293 = vsub.s32 1, %v3292
        %v3294 = vrot.slane %v3285, %v3293
        %v3297 = vmul.f32 %v2931, %v3290
        %v3298 = vmul.f32 %v2933, %v3290
        %v3299 = vmul.f32 %v2935, %v3290
        %v3300 = vmul.f32 %v2937, %v3290
        %v3301 = vmul.f32 %v2939, %v3290
        %v3302 = vmul.f32 %v2941, %v3290
        %v3303 = vmul.f32 %v2943, %v3290
        %v3304 = vmul.f32 %v2945, %v3290
        %v3305 = vmul.f32 %v2947, %v3290
        %v3306 = vmul.f32 %v2949, %v3290
        %v3307 = vmul.f32 %v2951, %v3290
        %v3308 = vmul.f32 %v2953, %v3290
        %v3309 = vmul.f32 %v2955, %v3290
        %v3310 = vmul.f32 %v2957, %v3290
        %v3311 = vmul.f32 %v2959, %v3290
        %v3312 = vmul.f32 %v2961, %v3290
        %v3313 = vmul.f32 %v2963, %v3294
        %v3314 = vmul.f32 %v2965, %v3294
        %v3315 = vmul.f32 %v2967, %v3294
        %v3316 = vmul.f32 %v2969, %v3294
        %v3317 = vmul.f32 %v2971, %v3294
        %v3318 = vmul.f32 %v2973, %v3294
        %v3319 = vmul.f32 %v2975, %v3294
        %v3320 = vmul.f32 %v2977, %v3294
        %v3321 = vmul.f32 %v2979, %v3294
        %v3322 = vmul.f32 %v2981, %v3294
        %v3323 = vmul.f32 %v2983, %v3294
        %v3324 = vmul.f32 %v2985, %v3294
        %v3325 = vmul.f32 %v2987, %v3294
        %v3326 = vmul.f32 %v2989, %v3294
        %v3327 = vmul.f32 %v2991, %v3294
        %v3328 = vmul.f32 %v2993, %v3294
        %v3329 = vpack.c.bf16 %v3298, %v3297
        %v3330 = vpack.c.bf16 %v3300, %v3299
        %v3331 = vpack.c.bf16 %v3302, %v3301
        %v3332 = vpack.c.bf16 %v3304, %v3303
        %v3333 = vpack.c.bf16 %v3306, %v3305
        %v3334 = vpack.c.bf16 %v3308, %v3307
        %v3335 = vpack.c.bf16 %v3310, %v3309
        %v3336 = vpack.c.bf16 %v3312, %v3311
        %v3337 = vpack.c.bf16 %v3314, %v3313
        %v3338 = vpack.c.bf16 %v3316, %v3315
        %v3339 = vpack.c.bf16 %v3318, %v3317
        %v3340 = vpack.c.bf16 %v3320, %v3319
        %v3341 = vpack.c.bf16 %v3322, %v3321
        %v3342 = vpack.c.bf16 %v3324, %v3323
        %v3343 = vpack.c.bf16 %v3326, %v3325
        %v3344 = vpack.c.bf16 %v3328, %v3327
        %v3353 = vunpack.c.l.b16 %v3329
        %v3354 = vunpack.c.h.b16 %v3329
        %v3355 = vunpack.c.l.b16 %v3330
        %v3356 = vunpack.c.h.b16 %v3330
        %v3357 = vunpack.c.l.b16 %v3331
        %v3358 = vunpack.c.h.b16 %v3331
        %v3359 = vunpack.c.l.b16 %v3332
        %v3360 = vunpack.c.h.b16 %v3332
        %v3361 = vunpack.c.l.b16 %v3333
        %v3362 = vunpack.c.h.b16 %v3333
        %v3363 = vunpack.c.l.b16 %v3334
        %v3364 = vunpack.c.h.b16 %v3334
        %v3365 = vunpack.c.l.b16 %v3335
        %v3366 = vunpack.c.h.b16 %v3335
        %v3367 = vunpack.c.l.b16 %v3336
        %v3368 = vunpack.c.h.b16 %v3336
        %3369 = vset.pattern.permute.xlu0 0
        %3370 = vperm.xlu0 %3369, %v3353
        %v3371 = vpop.permute.xlu0 %3370
        %3372 = vset.pattern.permute.xlu0 0
        %3373 = vperm.xlu0 %3372, %v3354
        %v3374 = vpop.permute.xlu0 %3373
        %3375 = vset.pattern.permute.xlu0 0
        %3376 = vperm.xlu0 %3375, %v3355
        %v3377 = vpop.permute.xlu0 %3376
        %3378 = vset.pattern.permute.xlu0 0
        %3379 = vperm.xlu0 %3378, %v3356
        %v3380 = vpop.permute.xlu0 %3379
        %3381 = vset.pattern.permute.xlu0 0
        %3382 = vperm.xlu0 %3381, %v3357
        %v3383 = vpop.permute.xlu0 %3382
        %3384 = vset.pattern.permute.xlu0 0
        %3385 = vperm.xlu0 %3384, %v3358
        %v3386 = vpop.permute.xlu0 %3385
        %3387 = vset.pattern.permute.xlu0 0
        %3388 = vperm.xlu0 %3387, %v3359
        %v3389 = vpop.permute.xlu0 %3388
        %3390 = vset.pattern.permute.xlu0 0
        %3391 = vperm.xlu0 %3390, %v3360
        %v3392 = vpop.permute.xlu0 %3391
        %3393 = vset.pattern.permute.xlu0 0
        %3394 = vperm.xlu0 %3393, %v3361
        %v3395 = vpop.permute.xlu0 %3394
        %3396 = vset.pattern.permute.xlu0 0
        %3397 = vperm.xlu0 %3396, %v3362
        %v3398 = vpop.permute.xlu0 %3397
        %3399 = vset.pattern.permute.xlu0 0
        %3400 = vperm.xlu0 %3399, %v3363
        %v3401 = vpop.permute.xlu0 %3400
        %3402 = vset.pattern.permute.xlu0 0
        %3403 = vperm.xlu0 %3402, %v3364
        %v3404 = vpop.permute.xlu0 %3403
        %3405 = vset.pattern.permute.xlu0 0
        %3406 = vperm.xlu0 %3405, %v3365
        %v3407 = vpop.permute.xlu0 %3406
        %3408 = vset.pattern.permute.xlu0 0
        %3409 = vperm.xlu0 %3408, %v3366
        %v3410 = vpop.permute.xlu0 %3409
        %3411 = vset.pattern.permute.xlu0 0
        %3412 = vperm.xlu0 %3411, %v3367
        %v3413 = vpop.permute.xlu0 %3412
        %3414 = vset.pattern.permute.xlu0 0
        %3415 = vperm.xlu0 %3414, %v3368
        %v3416 = vpop.permute.xlu0 %3415
        %v3417 = vlaneseq
        %v3418 = vshrl.u32 %v3417, 7
        %v3419 = vsub.s32 %v959, %v3418
        %v3420 = vrot.slane %v3371, %v3419
        %v3421 = vlaneseq
        %v3422 = vshrl.u32 %v3421, 7
        %v3423 = vsub.s32 %v964, %v3422
        %v3424 = vrot.slane %v3374, %v3423
        %v3425 = vsel %vm969, %v3424, %v3420
        %v3426 = vlaneseq
        %v3427 = vshrl.u32 %v3426, 7
        %v3428 = vsub.s32 %v971, %v3427
        %v3429 = vrot.slane %v3377, %v3428
        %v3430 = vsel %vm976, %v3429, %v3425
        %v3431 = vlaneseq
        %v3432 = vshrl.u32 %v3431, 7
        %v3433 = vsub.s32 %v978, %v3432
        %v3434 = vrot.slane %v3380, %v3433
        %v3435 = vsel %vm983, %v3434, %v3430
        %v3436 = vlaneseq
        %v3437 = vshrl.u32 %v3436, 7
        %v3438 = vsub.s32 %v985, %v3437
        %v3439 = vrot.slane %v3383, %v3438
        %v3440 = vsel %vm990, %v3439, %v3435
        %v3441 = vlaneseq
        %v3442 = vshrl.u32 %v3441, 7
        %v3443 = vsub.s32 %v992, %v3442
        %v3444 = vrot.slane %v3386, %v3443
        %v3445 = vsel %vm997, %v3444, %v3440
        %v3446 = vlaneseq
        %v3447 = vshrl.u32 %v3446, 7
        %v3448 = vsub.s32 %v999, %v3447
        %v3449 = vrot.slane %v3389, %v3448
        %v3450 = vsel %vm1004, %v3449, %v3445
        %v3451 = vlaneseq
        %v3452 = vshrl.u32 %v3451, 7
        %v3453 = vsub.s32 %v1006, %v3452
        %v3454 = vrot.slane %v3392, %v3453
        %v3455 = vsel %vm1011, %v3454, %v3450
        %v3456 = vlaneseq
        %v3457 = vshrl.u32 %v3456, 7
        %v3458 = vsub.s32 %v1013, %v3457
        %v3459 = vrot.slane %v3395, %v3458
        %v3460 = vsel %vm1018, %v3459, %v3455
        %v3461 = vlaneseq
        %v3462 = vshrl.u32 %v3461, 7
        %v3463 = vsub.s32 %v1020, %v3462
        %v3464 = vrot.slane %v3398, %v3463
        %v3465 = vsel %vm1025, %v3464, %v3460
        %v3466 = vlaneseq
        %v3467 = vshrl.u32 %v3466, 7
        %v3468 = vsub.s32 %v1027, %v3467
        %v3469 = vrot.slane %v3401, %v3468
        %v3470 = vsel %vm1032, %v3469, %v3465
        %v3471 = vlaneseq
        %v3472 = vshrl.u32 %v3471, 7
        %v3473 = vsub.s32 %v1034, %v3472
        %v3474 = vrot.slane %v3404, %v3473
        %v3475 = vsel %vm1039, %v3474, %v3470
        %v3476 = vlaneseq
        %v3477 = vshrl.u32 %v3476, 7
        %v3478 = vsub.s32 %v1041, %v3477
        %v3479 = vrot.slane %v3407, %v3478
        %v3480 = vsel %vm1046, %v3479, %v3475
        %v3481 = vlaneseq
        %v3482 = vshrl.u32 %v3481, 7
        %v3483 = vsub.s32 %v1048, %v3482
        %v3484 = vrot.slane %v3410, %v3483
        %v3485 = vsel %vm1053, %v3484, %v3480
        %v3486 = vlaneseq
        %v3487 = vshrl.u32 %v3486, 7
        %v3488 = vsub.s32 %v1055, %v3487
        %v3489 = vrot.slane %v3413, %v3488
        %v3490 = vsel %vm1060, %v3489, %v3485
        %v3491 = vlaneseq
        %v3492 = vshrl.u32 %v3491, 7
        %v3493 = vsub.s32 %v1062, %v3492
        %v3494 = vrot.slane %v3416, %v3493
        %v3495 = vsel %vm1067, %v3494, %v3490
        %v3496 = vpack.c.b16 %v3495, %v3495
        %3498 = vmatprep.subr.bf16.mxu0 0
        %3499 = vmatpush1.bf16.msra.mxu0 %v2327
        %3500 = vmatprep.subr.bf16.mxu0 0
        %3501 = vmatpush1.bf16.msra.mxu0 %v2328
        %3502 = vmatprep.subr.bf16.mxu0 0
        %3503 = vmatpush1.bf16.msra.mxu0 %v2329
        %3504 = vmatprep.subr.bf16.mxu0 0
        %3505 = vmatpush1.bf16.msra.mxu0 %v2330
        %3506 = vmatprep.subr.bf16.mxu0 0
        %3507 = vmatpush1.bf16.msra.mxu0 %v2331
        %3508 = vmatprep.subr.bf16.mxu0 0
        %3509 = vmatpush1.bf16.msra.mxu0 %v2332
        %3510 = vmatprep.subr.bf16.mxu0 0
        %3511 = vmatpush1.bf16.msra.mxu0 %v2333
        %3512 = vmatprep.subr.bf16.mxu0 0
        %3513 = vmatpush1.bf16.msra.mxu0 %v2334
        %3514 = vmatprep.subr.bf16.mxu0 0
        %3515 = vmatpush1.bf16.msra.mxu0 0
        %3516 = vmatprep.subr.bf16.mxu0 0
        %3517 = vmatpush1.bf16.msra.mxu0 0
        %3518 = vmatprep.subr.bf16.mxu0 0
        %3519 = vmatpush1.bf16.msra.mxu0 0
        %3520 = vmatprep.subr.bf16.mxu0 0
        %3521 = vmatpush1.bf16.msra.mxu0 0
        %3522 = vmatprep.subr.bf16.mxu0 0
        %3523 = vmatpush1.bf16.msra.mxu0 0
        %3524 = vmatprep.subr.bf16.mxu0 0
        %3525 = vmatpush1.bf16.msra.mxu0 0
        %3526 = vmatprep.subr.bf16.mxu0 0
        %3527 = vmatpush1.bf16.msra.mxu0 0
        %3528 = vmatprep.subr.bf16.mxu0 0
        %3529 = vmatpush1.bf16.msra.mxu0 0
        %3530 = vmatprep.mubr.bf16.mxu0 0
        %3531 = vmatmul.mubr.bf16.gmra.mrb[0].mxu0 %v3496
        %v3532 = vpop.f32.mrb[0].mxu0
        %v3533 = vadd.f32 0.0, %v3532
        %v3534 = vpop.f32.mrb[0].mxu0
        %v3535 = vpop.f32.mrb[0].mxu0
        %v3536 = vpop.f32.mrb[0].mxu0
        %3537 = vdwg.mxu0
        %v3546 = vunpack.c.l.b16 %v3337
        %v3547 = vunpack.c.h.b16 %v3337
        %v3548 = vunpack.c.l.b16 %v3338
        %v3549 = vunpack.c.h.b16 %v3338
        %v3550 = vunpack.c.l.b16 %v3339
        %v3551 = vunpack.c.h.b16 %v3339
        %v3552 = vunpack.c.l.b16 %v3340
        %v3553 = vunpack.c.h.b16 %v3340
        %v3554 = vunpack.c.l.b16 %v3341
        %v3555 = vunpack.c.h.b16 %v3341
        %v3556 = vunpack.c.l.b16 %v3342
        %v3557 = vunpack.c.h.b16 %v3342
        %v3558 = vunpack.c.l.b16 %v3343
        %v3559 = vunpack.c.h.b16 %v3343
        %v3560 = vunpack.c.l.b16 %v3344
        %v3561 = vunpack.c.h.b16 %v3344
        %3562 = vset.pattern.permute.xlu0 0
        %3563 = vperm.xlu0 %3562, %v3546
        %v3564 = vpop.permute.xlu0 %3563
        %3565 = vset.pattern.permute.xlu0 0
        %3566 = vperm.xlu0 %3565, %v3547
        %v3567 = vpop.permute.xlu0 %3566
        %3568 = vset.pattern.permute.xlu0 0
        %3569 = vperm.xlu0 %3568, %v3548
        %v3570 = vpop.permute.xlu0 %3569
        %3571 = vset.pattern.permute.xlu0 0
        %3572 = vperm.xlu0 %3571, %v3549
        %v3573 = vpop.permute.xlu0 %3572
        %3574 = vset.pattern.permute.xlu0 0
        %3575 = vperm.xlu0 %3574, %v3550
        %v3576 = vpop.permute.xlu0 %3575
        %3577 = vset.pattern.permute.xlu0 0
        %3578 = vperm.xlu0 %3577, %v3551
        %v3579 = vpop.permute.xlu0 %3578
        %3580 = vset.pattern.permute.xlu0 0
        %3581 = vperm.xlu0 %3580, %v3552
        %v3582 = vpop.permute.xlu0 %3581
        %3583 = vset.pattern.permute.xlu0 0
        %3584 = vperm.xlu0 %3583, %v3553
        %v3585 = vpop.permute.xlu0 %3584
        %3586 = vset.pattern.permute.xlu0 0
        %3587 = vperm.xlu0 %3586, %v3554
        %v3588 = vpop.permute.xlu0 %3587
        %3589 = vset.pattern.permute.xlu0 0
        %3590 = vperm.xlu0 %3589, %v3555
        %v3591 = vpop.permute.xlu0 %3590
        %3592 = vset.pattern.permute.xlu0 0
        %3593 = vperm.xlu0 %3592, %v3556
        %v3594 = vpop.permute.xlu0 %3593
        %3595 = vset.pattern.permute.xlu0 0
        %3596 = vperm.xlu0 %3595, %v3557
        %v3597 = vpop.permute.xlu0 %3596
        %3598 = vset.pattern.permute.xlu0 0
        %3599 = vperm.xlu0 %3598, %v3558
        %v3600 = vpop.permute.xlu0 %3599
        %3601 = vset.pattern.permute.xlu0 0
        %3602 = vperm.xlu0 %3601, %v3559
        %v3603 = vpop.permute.xlu0 %3602
        %3604 = vset.pattern.permute.xlu0 0
        %3605 = vperm.xlu0 %3604, %v3560
        %v3606 = vpop.permute.xlu0 %3605
        %3607 = vset.pattern.permute.xlu0 0
        %3608 = vperm.xlu0 %3607, %v3561
        %v3609 = vpop.permute.xlu0 %3608
        %v3610 = vlaneseq
        %v3611 = vshrl.u32 %v3610, 7
        %v3612 = vsub.s32 %v959, %v3611
        %v3613 = vrot.slane %v3564, %v3612
        %v3614 = vlaneseq
        %v3615 = vshrl.u32 %v3614, 7
        %v3616 = vsub.s32 %v964, %v3615
        %v3617 = vrot.slane %v3567, %v3616
        %v3618 = vsel %vm969, %v3617, %v3613
        %v3619 = vlaneseq
        %v3620 = vshrl.u32 %v3619, 7
        %v3621 = vsub.s32 %v971, %v3620
        %v3622 = vrot.slane %v3570, %v3621
        %v3623 = vsel %vm976, %v3622, %v3618
        %v3624 = vlaneseq
        %v3625 = vshrl.u32 %v3624, 7
        %v3626 = vsub.s32 %v978, %v3625
        %v3627 = vrot.slane %v3573, %v3626
        %v3628 = vsel %vm983, %v3627, %v3623
        %v3629 = vlaneseq
        %v3630 = vshrl.u32 %v3629, 7
        %v3631 = vsub.s32 %v985, %v3630
        %v3632 = vrot.slane %v3576, %v3631
        %v3633 = vsel %vm990, %v3632, %v3628
        %v3634 = vlaneseq
        %v3635 = vshrl.u32 %v3634, 7
        %v3636 = vsub.s32 %v992, %v3635
        %v3637 = vrot.slane %v3579, %v3636
        %v3638 = vsel %vm997, %v3637, %v3633
        %v3639 = vlaneseq
        %v3640 = vshrl.u32 %v3639, 7
        %v3641 = vsub.s32 %v999, %v3640
        %v3642 = vrot.slane %v3582, %v3641
        %v3643 = vsel %vm1004, %v3642, %v3638
        %v3644 = vlaneseq
        %v3645 = vshrl.u32 %v3644, 7
        %v3646 = vsub.s32 %v1006, %v3645
        %v3647 = vrot.slane %v3585, %v3646
        %v3648 = vsel %vm1011, %v3647, %v3643
        %v3649 = vlaneseq
        %v3650 = vshrl.u32 %v3649, 7
        %v3651 = vsub.s32 %v1013, %v3650
        %v3652 = vrot.slane %v3588, %v3651
        %v3653 = vsel %vm1018, %v3652, %v3648
        %v3654 = vlaneseq
        %v3655 = vshrl.u32 %v3654, 7
        %v3656 = vsub.s32 %v1020, %v3655
        %v3657 = vrot.slane %v3591, %v3656
        %v3658 = vsel %vm1025, %v3657, %v3653
        %v3659 = vlaneseq
        %v3660 = vshrl.u32 %v3659, 7
        %v3661 = vsub.s32 %v1027, %v3660
        %v3662 = vrot.slane %v3594, %v3661
        %v3663 = vsel %vm1032, %v3662, %v3658
        %v3664 = vlaneseq
        %v3665 = vshrl.u32 %v3664, 7
        %v3666 = vsub.s32 %v1034, %v3665
        %v3667 = vrot.slane %v3597, %v3666
        %v3668 = vsel %vm1039, %v3667, %v3663
        %v3669 = vlaneseq
        %v3670 = vshrl.u32 %v3669, 7
        %v3671 = vsub.s32 %v1041, %v3670
        %v3672 = vrot.slane %v3600, %v3671
        %v3673 = vsel %vm1046, %v3672, %v3668
        %v3674 = vlaneseq
        %v3675 = vshrl.u32 %v3674, 7
        %v3676 = vsub.s32 %v1048, %v3675
        %v3677 = vrot.slane %v3603, %v3676
        %v3678 = vsel %vm1053, %v3677, %v3673
        %v3679 = vlaneseq
        %v3680 = vshrl.u32 %v3679, 7
        %v3681 = vsub.s32 %v1055, %v3680
        %v3682 = vrot.slane %v3606, %v3681
        %v3683 = vsel %vm1060, %v3682, %v3678
        %v3684 = vlaneseq
        %v3685 = vshrl.u32 %v3684, 7
        %v3686 = vsub.s32 %v1062, %v3685
        %v3687 = vrot.slane %v3609, %v3686
        %v3688 = vsel %vm1067, %v3687, %v3683
        %v3689 = vpack.c.b16 %v3688, %v3688
        %3691 = vmatprep.subr.bf16.mxu0 0
        %3692 = vmatpush1.bf16.msra.mxu0 %v2335
        %3693 = vmatprep.subr.bf16.mxu0 0
        %3694 = vmatpush1.bf16.msra.mxu0 %v2336
        %3695 = vmatprep.subr.bf16.mxu0 0
        %3696 = vmatpush1.bf16.msra.mxu0 %v2337
        %3697 = vmatprep.subr.bf16.mxu0 0
        %3698 = vmatpush1.bf16.msra.mxu0 %v2338
        %3699 = vmatprep.subr.bf16.mxu0 0
        %3700 = vmatpush1.bf16.msra.mxu0 %v2339
        %3701 = vmatprep.subr.bf16.mxu0 0
        %3702 = vmatpush1.bf16.msra.mxu0 %v2340
        %3703 = vmatprep.subr.bf16.mxu0 0
        %3704 = vmatpush1.bf16.msra.mxu0 %v2341
        %3705 = vmatprep.subr.bf16.mxu0 0
        %3706 = vmatpush1.bf16.msra.mxu0 %v2342
        %3707 = vmatprep.subr.bf16.mxu0 0
        %3708 = vmatpush1.bf16.msra.mxu0 0
        %3709 = vmatprep.subr.bf16.mxu0 0
        %3710 = vmatpush1.bf16.msra.mxu0 0
        %3711 = vmatprep.subr.bf16.mxu0 0
        %3712 = vmatpush1.bf16.msra.mxu0 0
        %3713 = vmatprep.subr.bf16.mxu0 0
        %3714 = vmatpush1.bf16.msra.mxu0 0
        %3715 = vmatprep.subr.bf16.mxu0 0
        %3716 = vmatpush1.bf16.msra.mxu0 0
        %3717 = vmatprep.subr.bf16.mxu0 0
        %3718 = vmatpush1.bf16.msra.mxu0 0
        %3719 = vmatprep.subr.bf16.mxu0 0
        %3720 = vmatpush1.bf16.msra.mxu0 0
        %3721 = vmatprep.subr.bf16.mxu0 0
        %3722 = vmatpush1.bf16.msra.mxu0 0
        %3723 = vmatprep.mubr.bf16.mxu0 0
        %3724 = vmatmul.mubr.bf16.gmra.mrb[0].mxu0 %v3689
        %v3725 = vpop.f32.mrb[0].mxu0
        %v3726 = vadd.f32 0.0, %v3725
        %v3727 = vpop.f32.mrb[0].mxu0
        %v3728 = vpop.f32.mrb[0].mxu0
        %v3729 = vpop.f32.mrb[0].mxu0
        %3730 = vdwg.mxu0
        %v3733 = vrot.slane %v3726, 7
        %v3734 = vsel %vm1148, %v3733, %v3533
        %3736 = vst [vmem:[%s392 + $0x2] sm:$0x3] %v3734
        %3769 = vset.pattern.permute.xlu0 0
        %3770 = vperm.xlu0 %3769, %v3297
        %v3771 = vpop.permute.xlu0 %3770
        %3772 = vset.pattern.permute.xlu0 0
        %3773 = vperm.xlu0 %3772, %v3298
        %v3774 = vpop.permute.xlu0 %3773
        %3775 = vset.pattern.permute.xlu0 0
        %3776 = vperm.xlu0 %3775, %v3299
        %v3777 = vpop.permute.xlu0 %3776
        %3778 = vset.pattern.permute.xlu0 0
        %3779 = vperm.xlu0 %3778, %v3300
        %v3780 = vpop.permute.xlu0 %3779
        %3781 = vset.pattern.permute.xlu0 0
        %3782 = vperm.xlu0 %3781, %v3301
        %v3783 = vpop.permute.xlu0 %3782
        %3784 = vset.pattern.permute.xlu0 0
        %3785 = vperm.xlu0 %3784, %v3302
        %v3786 = vpop.permute.xlu0 %3785
        %3787 = vset.pattern.permute.xlu0 0
        %3788 = vperm.xlu0 %3787, %v3303
        %v3789 = vpop.permute.xlu0 %3788
        %3790 = vset.pattern.permute.xlu0 0
        %3791 = vperm.xlu0 %3790, %v3304
        %v3792 = vpop.permute.xlu0 %3791
        %3793 = vset.pattern.permute.xlu0 0
        %3794 = vperm.xlu0 %3793, %v3305
        %v3795 = vpop.permute.xlu0 %3794
        %3796 = vset.pattern.permute.xlu0 0
        %3797 = vperm.xlu0 %3796, %v3306
        %v3798 = vpop.permute.xlu0 %3797
        %3799 = vset.pattern.permute.xlu0 0
        %3800 = vperm.xlu0 %3799, %v3307
        %v3801 = vpop.permute.xlu0 %3800
        %3802 = vset.pattern.permute.xlu0 0
        %3803 = vperm.xlu0 %3802, %v3308
        %v3804 = vpop.permute.xlu0 %3803
        %3805 = vset.pattern.permute.xlu0 0
        %3806 = vperm.xlu0 %3805, %v3309
        %v3807 = vpop.permute.xlu0 %3806
        %3808 = vset.pattern.permute.xlu0 0
        %3809 = vperm.xlu0 %3808, %v3310
        %v3810 = vpop.permute.xlu0 %3809
        %3811 = vset.pattern.permute.xlu0 0
        %3812 = vperm.xlu0 %3811, %v3311
        %v3813 = vpop.permute.xlu0 %3812
        %3814 = vset.pattern.permute.xlu0 0
        %3815 = vperm.xlu0 %3814, %v3312
        %v3816 = vpop.permute.xlu0 %3815
        %3817 = vset.pattern.permute.xlu0 0
        %3818 = vperm.xlu0 %3817, %v3313
        %v3819 = vpop.permute.xlu0 %3818
        %3820 = vset.pattern.permute.xlu0 0
        %3821 = vperm.xlu0 %3820, %v3314
        %v3822 = vpop.permute.xlu0 %3821
        %3823 = vset.pattern.permute.xlu0 0
        %3824 = vperm.xlu0 %3823, %v3315
        %v3825 = vpop.permute.xlu0 %3824
        %3826 = vset.pattern.permute.xlu0 0
        %3827 = vperm.xlu0 %3826, %v3316
        %v3828 = vpop.permute.xlu0 %3827
        %3829 = vset.pattern.permute.xlu0 0
        %3830 = vperm.xlu0 %3829, %v3317
        %v3831 = vpop.permute.xlu0 %3830
        %3832 = vset.pattern.permute.xlu0 0
        %3833 = vperm.xlu0 %3832, %v3318
        %v3834 = vpop.permute.xlu0 %3833
        %3835 = vset.pattern.permute.xlu0 0
        %3836 = vperm.xlu0 %3835, %v3319
        %v3837 = vpop.permute.xlu0 %3836
        %3838 = vset.pattern.permute.xlu0 0
        %3839 = vperm.xlu0 %3838, %v3320
        %v3840 = vpop.permute.xlu0 %3839
        %3841 = vset.pattern.permute.xlu0 0
        %3842 = vperm.xlu0 %3841, %v3321
        %v3843 = vpop.permute.xlu0 %3842
        %3844 = vset.pattern.permute.xlu0 0
        %3845 = vperm.xlu0 %3844, %v3322
        %v3846 = vpop.permute.xlu0 %3845
        %3847 = vset.pattern.permute.xlu0 0
        %3848 = vperm.xlu0 %3847, %v3323
        %v3849 = vpop.permute.xlu0 %3848
        %3850 = vset.pattern.permute.xlu0 0
        %3851 = vperm.xlu0 %3850, %v3324
        %v3852 = vpop.permute.xlu0 %3851
        %3853 = vset.pattern.permute.xlu0 0
        %3854 = vperm.xlu0 %3853, %v3325
        %v3855 = vpop.permute.xlu0 %3854
        %3856 = vset.pattern.permute.xlu0 0
        %3857 = vperm.xlu0 %3856, %v3326
        %v3858 = vpop.permute.xlu0 %3857
        %3859 = vset.pattern.permute.xlu0 0
        %3860 = vperm.xlu0 %3859, %v3327
        %v3861 = vpop.permute.xlu0 %3860
        %3862 = vset.pattern.permute.xlu0 0
        %3863 = vperm.xlu0 %3862, %v3328
        %v3864 = vpop.permute.xlu0 %3863
        %v3865 = vlaneseq
        %v3866 = vshrl.u32 %v3865, 7
        %v3867 = vsub.s32 %v959, %v3866
        %v3868 = vrot.slane %v3771, %v3867
        %v3869 = vlaneseq
        %v3870 = vshrl.u32 %v3869, 7
        %v3871 = vsub.s32 %v964, %v3870
        %v3872 = vrot.slane %v3774, %v3871
        %v3873 = vsel %vm969, %v3872, %v3868
        %v3874 = vlaneseq
        %v3875 = vshrl.u32 %v3874, 7
        %v3876 = vsub.s32 %v971, %v3875
        %v3877 = vrot.slane %v3777, %v3876
        %v3878 = vsel %vm976, %v3877, %v3873
        %v3879 = vlaneseq
        %v3880 = vshrl.u32 %v3879, 7
        %v3881 = vsub.s32 %v978, %v3880
        %v3882 = vrot.slane %v3780, %v3881
        %v3883 = vsel %vm983, %v3882, %v3878
        %v3884 = vlaneseq
        %v3885 = vshrl.u32 %v3884, 7
        %v3886 = vsub.s32 %v985, %v3885
        %v3887 = vrot.slane %v3783, %v3886
        %v3888 = vsel %vm990, %v3887, %v3883
        %v3889 = vlaneseq
        %v3890 = vshrl.u32 %v3889, 7
        %v3891 = vsub.s32 %v992, %v3890
        %v3892 = vrot.slane %v3786, %v3891
        %v3893 = vsel %vm997, %v3892, %v3888
        %v3894 = vlaneseq
        %v3895 = vshrl.u32 %v3894, 7
        %v3896 = vsub.s32 %v999, %v3895
        %v3897 = vrot.slane %v3789, %v3896
        %v3898 = vsel %vm1004, %v3897, %v3893
        %v3899 = vlaneseq
        %v3900 = vshrl.u32 %v3899, 7
        %v3901 = vsub.s32 %v1006, %v3900
        %v3902 = vrot.slane %v3792, %v3901
        %v3903 = vsel %vm1011, %v3902, %v3898
        %v3904 = vlaneseq
        %v3905 = vshrl.u32 %v3904, 7
        %v3906 = vsub.s32 %v1013, %v3905
        %v3907 = vrot.slane %v3795, %v3906
        %v3908 = vsel %vm1018, %v3907, %v3903
        %v3909 = vlaneseq
        %v3910 = vshrl.u32 %v3909, 7
        %v3911 = vsub.s32 %v1020, %v3910
        %v3912 = vrot.slane %v3798, %v3911
        %v3913 = vsel %vm1025, %v3912, %v3908
        %v3914 = vlaneseq
        %v3915 = vshrl.u32 %v3914, 7
        %v3916 = vsub.s32 %v1027, %v3915
        %v3917 = vrot.slane %v3801, %v3916
        %v3918 = vsel %vm1032, %v3917, %v3913
        %v3919 = vlaneseq
        %v3920 = vshrl.u32 %v3919, 7
        %v3921 = vsub.s32 %v1034, %v3920
        %v3922 = vrot.slane %v3804, %v3921
        %v3923 = vsel %vm1039, %v3922, %v3918
        %v3924 = vlaneseq
        %v3925 = vshrl.u32 %v3924, 7
        %v3926 = vsub.s32 %v1041, %v3925
        %v3927 = vrot.slane %v3807, %v3926
        %v3928 = vsel %vm1046, %v3927, %v3923
        %v3929 = vlaneseq
        %v3930 = vshrl.u32 %v3929, 7
        %v3931 = vsub.s32 %v1048, %v3930
        %v3932 = vrot.slane %v3810, %v3931
        %v3933 = vsel %vm1053, %v3932, %v3928
        %v3934 = vlaneseq
        %v3935 = vshrl.u32 %v3934, 7
        %v3936 = vsub.s32 %v1055, %v3935
        %v3937 = vrot.slane %v3813, %v3936
        %v3938 = vsel %vm1060, %v3937, %v3933
        %v3939 = vlaneseq
        %v3940 = vshrl.u32 %v3939, 7
        %v3941 = vsub.s32 %v1062, %v3940
        %v3942 = vrot.slane %v3816, %v3941
        %v3943 = vsel %vm1067, %v3942, %v3938
        %v3944 = vlaneseq
        %v3945 = vshrl.u32 %v3944, 7
        %v3946 = vsub.s32 %v959, %v3945
        %v3947 = vrot.slane %v3819, %v3946
        %v3948 = vlaneseq
        %v3949 = vshrl.u32 %v3948, 7
        %v3950 = vsub.s32 %v964, %v3949
        %v3951 = vrot.slane %v3822, %v3950
        %v3952 = vsel %vm969, %v3951, %v3947
        %v3953 = vlaneseq
        %v3954 = vshrl.u32 %v3953, 7
        %v3955 = vsub.s32 %v971, %v3954
        %v3956 = vrot.slane %v3825, %v3955
        %v3957 = vsel %vm976, %v3956, %v3952
        %v3958 = vlaneseq
        %v3959 = vshrl.u32 %v3958, 7
        %v3960 = vsub.s32 %v978, %v3959
        %v3961 = vrot.slane %v3828, %v3960
        %v3962 = vsel %vm983, %v3961, %v3957
        %v3963 = vlaneseq
        %v3964 = vshrl.u32 %v3963, 7
        %v3965 = vsub.s32 %v985, %v3964
        %v3966 = vrot.slane %v3831, %v3965
        %v3967 = vsel %vm990, %v3966, %v3962
        %v3968 = vlaneseq
        %v3969 = vshrl.u32 %v3968, 7
        %v3970 = vsub.s32 %v992, %v3969
        %v3971 = vrot.slane %v3834, %v3970
        %v3972 = vsel %vm997, %v3971, %v3967
        %v3973 = vlaneseq
        %v3974 = vshrl.u32 %v3973, 7
        %v3975 = vsub.s32 %v999, %v3974
        %v3976 = vrot.slane %v3837, %v3975
        %v3977 = vsel %vm1004, %v3976, %v3972
        %v3978 = vlaneseq
        %v3979 = vshrl.u32 %v3978, 7
        %v3980 = vsub.s32 %v1006, %v3979
        %v3981 = vrot.slane %v3840, %v3980
        %v3982 = vsel %vm1011, %v3981, %v3977
        %v3983 = vlaneseq
        %v3984 = vshrl.u32 %v3983, 7
        %v3985 = vsub.s32 %v1013, %v3984
        %v3986 = vrot.slane %v3843, %v3985
        %v3987 = vsel %vm1018, %v3986, %v3982
        %v3988 = vlaneseq
        %v3989 = vshrl.u32 %v3988, 7
        %v3990 = vsub.s32 %v1020, %v3989
        %v3991 = vrot.slane %v3846, %v3990
        %v3992 = vsel %vm1025, %v3991, %v3987
        %v3993 = vlaneseq
        %v3994 = vshrl.u32 %v3993, 7
        %v3995 = vsub.s32 %v1027, %v3994
        %v3996 = vrot.slane %v3849, %v3995
        %v3997 = vsel %vm1032, %v3996, %v3992
        %v3998 = vlaneseq
        %v3999 = vshrl.u32 %v3998, 7
        %v4000 = vsub.s32 %v1034, %v3999
        %v4001 = vrot.slane %v3852, %v4000
        %v4002 = vsel %vm1039, %v4001, %v3997
        %v4003 = vlaneseq
        %v4004 = vshrl.u32 %v4003, 7
        %v4005 = vsub.s32 %v1041, %v4004
        %v4006 = vrot.slane %v3855, %v4005
        %v4007 = vsel %vm1046, %v4006, %v4002
        %v4008 = vlaneseq
        %v4009 = vshrl.u32 %v4008, 7
        %v4010 = vsub.s32 %v1048, %v4009
        %v4011 = vrot.slane %v3858, %v4010
        %v4012 = vsel %vm1053, %v4011, %v4007
        %v4013 = vlaneseq
        %v4014 = vshrl.u32 %v4013, 7
        %v4015 = vsub.s32 %v1055, %v4014
        %v4016 = vrot.slane %v3861, %v4015
        %v4017 = vsel %vm1060, %v4016, %v4012
        %v4018 = vlaneseq
        %v4019 = vshrl.u32 %v4018, 7
        %v4020 = vsub.s32 %v1062, %v4019
        %v4021 = vrot.slane %v3864, %v4020
        %v4022 = vsel %vm1067, %v4021, %v4017
        %v4023 = vsel %vm1148, %v4022, %v3943
        %4025 = vst [vmem:[%s399 + $0x2] sm:$0x3] %v4023
        %s4026 = scalar_lea.vmem %s343, 512 [#allocation5]
        %v4027 = vld [vmem:[%s4026] sm:$0xff]
        %v4028 = vld [vmem:[%s4026 + $0x8] sm:$0xff]
        %v4029 = vld [vmem:[%s4026 + $0x10] sm:$0xff]
        %v4030 = vld [vmem:[%s4026 + $0x18] sm:$0xff]
        %v4031 = vld [vmem:[%s4026 + $0x20] sm:$0xff]
        %v4032 = vld [vmem:[%s4026 + $0x28] sm:$0xff]
        %v4033 = vld [vmem:[%s4026 + $0x30] sm:$0xff]
        %v4034 = vld [vmem:[%s4026 + $0x38] sm:$0xff]
        %v4035 = vld [vmem:[%s4026 + $0x40] sm:$0xff]
        %v4036 = vld [vmem:[%s4026 + $0x48] sm:$0xff]
        %v4037 = vld [vmem:[%s4026 + $0x50] sm:$0xff]
        %v4038 = vld [vmem:[%s4026 + $0x58] sm:$0xff]
        %v4039 = vld [vmem:[%s4026 + $0x60] sm:$0xff]
        %v4040 = vld [vmem:[%s4026 + $0x68] sm:$0xff]
        %v4041 = vld [vmem:[%s4026 + $0x70] sm:$0xff]
        %v4042 = vld [vmem:[%s4026 + $0x78] sm:$0xff]
        %v4043 = vld [vmem:[%s4026 + $0x80] sm:$0xff]
        %v4044 = vld [vmem:[%s4026 + $0x88] sm:$0xff]
        %v4045 = vld [vmem:[%s4026 + $0x90] sm:$0xff]
        %v4046 = vld [vmem:[%s4026 + $0x98] sm:$0xff]
        %v4047 = vld [vmem:[%s4026 + $0xa0] sm:$0xff]
        %v4048 = vld [vmem:[%s4026 + $0xa8] sm:$0xff]
        %v4049 = vld [vmem:[%s4026 + $0xb0] sm:$0xff]
        %v4050 = vld [vmem:[%s4026 + $0xb8] sm:$0xff]
        %v4051 = vld [vmem:[%s4026 + $0xc0] sm:$0xff]
        %v4052 = vld [vmem:[%s4026 + $0xc8] sm:$0xff]
        %v4053 = vld [vmem:[%s4026 + $0xd0] sm:$0xff]
        %v4054 = vld [vmem:[%s4026 + $0xd8] sm:$0xff]
        %v4055 = vld [vmem:[%s4026 + $0xe0] sm:$0xff]
        %v4056 = vld [vmem:[%s4026 + $0xe8] sm:$0xff]
        %v4057 = vld [vmem:[%s4026 + $0xf0] sm:$0xff]
        %v4058 = vld [vmem:[%s4026 + $0xf8] sm:$0xff]
        %v4059 = vpack.c.bf16 %v4028, %v4027
        %v4060 = vpack.c.bf16 %v4030, %v4029
        %v4061 = vpack.c.bf16 %v4032, %v4031
        %v4062 = vpack.c.bf16 %v4034, %v4033
        %v4063 = vpack.c.bf16 %v4036, %v4035
        %v4064 = vpack.c.bf16 %v4038, %v4037
        %v4065 = vpack.c.bf16 %v4040, %v4039
        %v4066 = vpack.c.bf16 %v4042, %v4041
        %v4067 = vpack.c.bf16 %v4044, %v4043
        %v4068 = vpack.c.bf16 %v4046, %v4045
        %v4069 = vpack.c.bf16 %v4048, %v4047
        %v4070 = vpack.c.bf16 %v4050, %v4049
        %v4071 = vpack.c.bf16 %v4052, %v4051
        %v4072 = vpack.c.bf16 %v4054, %v4053
        %v4073 = vpack.c.bf16 %v4056, %v4055
        %v4074 = vpack.c.bf16 %v4058, %v4057
        %4075 = vmatprep.subr.bf16.mxu0 0
        %4076 = vmatpush1.bf16.msra.mxu0 %v442
        %4077 = vmatprep.subr.bf16.mxu0 0
        %4078 = vmatpush1.bf16.msra.mxu0 %v443
        %4079 = vmatprep.subr.bf16.mxu0 0
        %4080 = vmatpush1.bf16.msra.mxu0 %v444
        %4081 = vmatprep.subr.bf16.mxu0 0
        %4082 = vmatpush1.bf16.msra.mxu0 %v445
        %4083 = vmatprep.subr.bf16.mxu0 0
        %4084 = vmatpush1.bf16.msra.mxu0 %v446
        %4085 = vmatprep.subr.bf16.mxu0 0
        %4086 = vmatpush1.bf16.msra.mxu0 %v447
        %4087 = vmatprep.subr.bf16.mxu0 0
        %4088 = vmatpush1.bf16.msra.mxu0 %v448
        %4089 = vmatprep.subr.bf16.mxu0 0
        %4090 = vmatpush1.bf16.msra.mxu0 %v449
        %4091 = vmatprep.subr.bf16.mxu0 0
        %4092 = vmatpush1.bf16.msra.mxu0 0
        %4093 = vmatprep.subr.bf16.mxu0 0
        %4094 = vmatpush1.bf16.msra.mxu0 0
        %4095 = vmatprep.subr.bf16.mxu0 0
        %4096 = vmatpush1.bf16.msra.mxu0 0
        %4097 = vmatprep.subr.bf16.mxu0 0
        %4098 = vmatpush1.bf16.msra.mxu0 0
        %4099 = vmatprep.subr.bf16.mxu0 0
        %4100 = vmatpush1.bf16.msra.mxu0 0
        %4101 = vmatprep.subr.bf16.mxu0 0
        %4102 = vmatpush1.bf16.msra.mxu0 0
        %4103 = vmatprep.subr.bf16.mxu0 0
        %4104 = vmatpush1.bf16.msra.mxu0 0
        %4105 = vmatprep.subr.bf16.mxu0 0
        %4106 = vmatpush1.bf16.msra.mxu0 0
        %4107 = vmatprep.mubr.bf16.mxu0 0
        %4108 = vmatmul.mubr.bf16.gmra.mrb[0].mxu0 %v4059
        %v4109 = vpop.f32.mrb[0].mxu0
        %v4110 = vadd.f32 0.0, %v4109
        %v4111 = vpop.f32.mrb[0].mxu0
        %v4112 = vpop.f32.mrb[0].mxu0
        %v4113 = vadd.f32 0.0, %v4112
        %v4114 = vpop.f32.mrb[0].mxu0
        %4115 = vmatprep.mubr.bf16.mxu0 0
        %4116 = vmatmul.mubr.bf16.gmra.mrb[0].mxu0 %v4060
        %v4117 = vpop.f32.mrb[0].mxu0
        %v4118 = vadd.f32 0.0, %v4117
        %v4119 = vpop.f32.mrb[0].mxu0
        %v4120 = vpop.f32.mrb[0].mxu0
        %v4121 = vadd.f32 0.0, %v4120
        %v4122 = vpop.f32.mrb[0].mxu0
        %4123 = vmatprep.mubr.bf16.mxu0 0
        %4124 = vmatmul.mubr.bf16.gmra.mrb[0].mxu0 %v4061
        %v4125 = vpop.f32.mrb[0].mxu0
        %v4126 = vadd.f32 0.0, %v4125
        %v4127 = vpop.f32.mrb[0].mxu0
        %v4128 = vpop.f32.mrb[0].mxu0
        %v4129 = vadd.f32 0.0, %v4128
        %v4130 = vpop.f32.mrb[0].mxu0
        %4131 = vmatprep.mubr.bf16.mxu0 0
        %4132 = vmatmul.mubr.bf16.gmra.mrb[0].mxu0 %v4062
        %v4133 = vpop.f32.mrb[0].mxu0
        %v4134 = vadd.f32 0.0, %v4133
        %v4135 = vpop.f32.mrb[0].mxu0
        %v4136 = vpop.f32.mrb[0].mxu0
        %v4137 = vadd.f32 0.0, %v4136
        %v4138 = vpop.f32.mrb[0].mxu0
        %4139 = vmatprep.mubr.bf16.mxu0 0
        %4140 = vmatmul.mubr.bf16.gmra.mrb[0].mxu0 %v4063
        %v4141 = vpop.f32.mrb[0].mxu0
        %v4142 = vadd.f32 0.0, %v4141
        %v4143 = vpop.f32.mrb[0].mxu0
        %v4144 = vpop.f32.mrb[0].mxu0
        %v4145 = vadd.f32 0.0, %v4144
        %v4146 = vpop.f32.mrb[0].mxu0
        %4147 = vmatprep.mubr.bf16.mxu0 0
        %4148 = vmatmul.mubr.bf16.gmra.mrb[0].mxu0 %v4064
        %v4149 = vpop.f32.mrb[0].mxu0
        %v4150 = vadd.f32 0.0, %v4149
        %v4151 = vpop.f32.mrb[0].mxu0
        %v4152 = vpop.f32.mrb[0].mxu0
        %v4153 = vadd.f32 0.0, %v4152
        %v4154 = vpop.f32.mrb[0].mxu0
        %4155 = vmatprep.mubr.bf16.mxu0 0
        %4156 = vmatmul.mubr.bf16.gmra.mrb[0].mxu0 %v4065
        %v4157 = vpop.f32.mrb[0].mxu0
        %v4158 = vadd.f32 0.0, %v4157
        %v4159 = vpop.f32.mrb[0].mxu0
        %v4160 = vpop.f32.mrb[0].mxu0
        %v4161 = vadd.f32 0.0, %v4160
        %v4162 = vpop.f32.mrb[0].mxu0
        %4163 = vmatprep.mubr.bf16.mxu0 0
        %4164 = vmatmul.mubr.bf16.gmra.mrb[0].mxu0 %v4066
        %v4165 = vpop.f32.mrb[0].mxu0
        %v4166 = vadd.f32 0.0, %v4165
        %v4167 = vpop.f32.mrb[0].mxu0
        %v4168 = vpop.f32.mrb[0].mxu0
        %v4169 = vadd.f32 0.0, %v4168
        %v4170 = vpop.f32.mrb[0].mxu0
        %4171 = vmatprep.mubr.bf16.mxu0 0
        %4172 = vmatmul.mubr.bf16.gmra.mrb[0].mxu0 %v4067
        %v4173 = vpop.f32.mrb[0].mxu0
        %v4174 = vadd.f32 0.0, %v4173
        %v4175 = vpop.f32.mrb[0].mxu0
        %v4176 = vpop.f32.mrb[0].mxu0
        %v4177 = vadd.f32 0.0, %v4176
        %v4178 = vpop.f32.mrb[0].mxu0
        %4179 = vmatprep.mubr.bf16.mxu0 0
        %4180 = vmatmul.mubr.bf16.gmra.mrb[0].mxu0 %v4068
        %v4181 = vpop.f32.mrb[0].mxu0
        %v4182 = vadd.f32 0.0, %v4181
        %v4183 = vpop.f32.mrb[0].mxu0
        %v4184 = vpop.f32.mrb[0].mxu0
        %v4185 = vadd.f32 0.0, %v4184
        %v4186 = vpop.f32.mrb[0].mxu0
        %4187 = vmatprep.mubr.bf16.mxu0 0
        %4188 = vmatmul.mubr.bf16.gmra.mrb[0].mxu0 %v4069
        %v4189 = vpop.f32.mrb[0].mxu0
        %v4190 = vadd.f32 0.0, %v4189
        %v4191 = vpop.f32.mrb[0].mxu0
        %v4192 = vpop.f32.mrb[0].mxu0
        %v4193 = vadd.f32 0.0, %v4192
        %v4194 = vpop.f32.mrb[0].mxu0
        %4195 = vmatprep.mubr.bf16.mxu0 0
        %4196 = vmatmul.mubr.bf16.gmra.mrb[0].mxu0 %v4070
        %v4197 = vpop.f32.mrb[0].mxu0
        %v4198 = vadd.f32 0.0, %v4197
        %v4199 = vpop.f32.mrb[0].mxu0
        %v4200 = vpop.f32.mrb[0].mxu0
        %v4201 = vadd.f32 0.0, %v4200
        %v4202 = vpop.f32.mrb[0].mxu0
        %4203 = vmatprep.mubr.bf16.mxu0 0
        %4204 = vmatmul.mubr.bf16.gmra.mrb[0].mxu0 %v4071
        %v4205 = vpop.f32.mrb[0].mxu0
        %v4206 = vadd.f32 0.0, %v4205
        %v4207 = vpop.f32.mrb[0].mxu0
        %v4208 = vpop.f32.mrb[0].mxu0
        %v4209 = vadd.f32 0.0, %v4208
        %v4210 = vpop.f32.mrb[0].mxu0
        %4211 = vmatprep.mubr.bf16.mxu0 0
        %4212 = vmatmul.mubr.bf16.gmra.mrb[0].mxu0 %v4072
        %v4213 = vpop.f32.mrb[0].mxu0
        %v4214 = vadd.f32 0.0, %v4213
        %v4215 = vpop.f32.mrb[0].mxu0
        %v4216 = vpop.f32.mrb[0].mxu0
        %v4217 = vadd.f32 0.0, %v4216
        %v4218 = vpop.f32.mrb[0].mxu0
        %4219 = vmatprep.mubr.bf16.mxu0 0
        %4220 = vmatmul.mubr.bf16.gmra.mrb[0].mxu0 %v4073
        %v4221 = vpop.f32.mrb[0].mxu0
        %v4222 = vadd.f32 0.0, %v4221
        %v4223 = vpop.f32.mrb[0].mxu0
        %v4224 = vpop.f32.mrb[0].mxu0
        %v4225 = vadd.f32 0.0, %v4224
        %v4226 = vpop.f32.mrb[0].mxu0
        %4227 = vmatprep.mubr.bf16.mxu0 0
        %4228 = vmatmul.mubr.bf16.gmra.mrb[0].mxu0 %v4074
        %v4229 = vpop.f32.mrb[0].mxu0
        %v4230 = vadd.f32 0.0, %v4229
        %v4231 = vpop.f32.mrb[0].mxu0
        %v4232 = vpop.f32.mrb[0].mxu0
        %v4233 = vadd.f32 0.0, %v4232
        %v4234 = vpop.f32.mrb[0].mxu0
        %4235 = vdwg.mxu0
        %v4236 = vcombine.high %v496, %v496
        %v4238 = vunpack.c.l.s4 1966171168
        %v4239 = vunpack.c.0.s8 %v4238
        %v4240 = vlaneseq
        %v4241 = vshrl.u32 %v4240, 7
        %v4242 = vsub.s32 %v4239, %v4241
        %v4243 = vrot.slane %v4236, %v4242
        %v4244 = vcombine.high %v4243, %v4243
        %v4246 = vunpack.c.l.s4 1966171168
        %v4247 = vunpack.c.0.s8 %v4246
        %v4248 = vlaneseq
        %v4249 = vshrl.u32 %v4248, 7
        %v4250 = vsub.s32 %v4247, %v4249
        %v4251 = vrot.slane %v4243, %v4250
        %v4253 = vunpack.c.l.s4 1966171168
        %v4254 = vunpack.c.0.s8 %v4253
        %v4255 = vlaneseq
        %v4256 = vshrl.u32 %v4255, 7
        %v4257 = vsub.s32 %v4254, %v4256
        %v4258 = vrot.slane %v4244, %v4257
        %v4259 = vlaneseq
        %v4260 = vshrl.u32 %v4259, 7
        %v4261 = vsub.s32 0, %v4260
        %v4262 = vrot.slane %v4251, %v4261
        %v4263 = vlaneseq
        %v4264 = vshrl.u32 %v4263, 7
        %v4265 = vsub.s32 0, %v4264
        %v4266 = vrot.slane %v4258, %v4265
        %v4269 = vadd.f32 %v4110, %v4262
        %v4270 = vadd.f32 %v4113, %v4262
        %v4271 = vadd.f32 %v4118, %v4262
        %v4272 = vadd.f32 %v4121, %v4262
        %v4273 = vadd.f32 %v4126, %v4262
        %v4274 = vadd.f32 %v4129, %v4262
        %v4275 = vadd.f32 %v4134, %v4262
        %v4276 = vadd.f32 %v4137, %v4262
        %v4277 = vadd.f32 %v4142, %v4262
        %v4278 = vadd.f32 %v4145, %v4262
        %v4279 = vadd.f32 %v4150, %v4262
        %v4280 = vadd.f32 %v4153, %v4262
        %v4281 = vadd.f32 %v4158, %v4262
        %v4282 = vadd.f32 %v4161, %v4262
        %v4283 = vadd.f32 %v4166, %v4262
        %v4284 = vadd.f32 %v4169, %v4262
        %v4285 = vadd.f32 %v4174, %v4266
        %v4286 = vadd.f32 %v4177, %v4266
        %v4287 = vadd.f32 %v4182, %v4266
        %v4288 = vadd.f32 %v4185, %v4266
        %v4289 = vadd.f32 %v4190, %v4266
        %v4290 = vadd.f32 %v4193, %v4266
        %v4291 = vadd.f32 %v4198, %v4266
        %v4292 = vadd.f32 %v4201, %v4266
        %v4293 = vadd.f32 %v4206, %v4266
        %v4294 = vadd.f32 %v4209, %v4266
        %v4295 = vadd.f32 %v4214, %v4266
        %v4296 = vadd.f32 %v4217, %v4266
        %v4297 = vadd.f32 %v4222, %v4266
        %v4298 = vadd.f32 %v4225, %v4266
        %v4299 = vadd.f32 %v4230, %v4266
        %v4300 = vadd.f32 %v4233, %v4266
        %v4301 = vpack.c.bf16 %v4270, %v4269
        %v4302 = vpack.c.bf16 %v4272, %v4271
        %v4303 = vpack.c.bf16 %v4274, %v4273
        %v4304 = vpack.c.bf16 %v4276, %v4275
        %v4305 = vpack.c.bf16 %v4278, %v4277
        %v4306 = vpack.c.bf16 %v4280, %v4279
        %v4307 = vpack.c.bf16 %v4282, %v4281
        %v4308 = vpack.c.bf16 %v4284, %v4283
        %v4309 = vpack.c.bf16 %v4286, %v4285
        %v4310 = vpack.c.bf16 %v4288, %v4287
        %v4311 = vpack.c.bf16 %v4290, %v4289
        %v4312 = vpack.c.bf16 %v4292, %v4291
        %v4313 = vpack.c.bf16 %v4294, %v4293
        %v4314 = vpack.c.bf16 %v4296, %v4295
        %v4315 = vpack.c.bf16 %v4298, %v4297
        %v4316 = vpack.c.bf16 %v4300, %v4299
        %v4317 = vtanh.bf16.pop %v4301
        %v4318 = vtanh.bf16.pop %v4302
        %v4319 = vtanh.bf16.pop %v4303
        %v4320 = vtanh.bf16.pop %v4304
        %v4321 = vtanh.bf16.pop %v4305
        %v4322 = vtanh.bf16.pop %v4306
        %v4323 = vtanh.bf16.pop %v4307
        %v4324 = vtanh.bf16.pop %v4308
        %v4325 = vtanh.bf16.pop %v4309
        %v4326 = vtanh.bf16.pop %v4310
        %v4327 = vtanh.bf16.pop %v4311
        %v4328 = vtanh.bf16.pop %v4312
        %v4329 = vtanh.bf16.pop %v4313
        %v4330 = vtanh.bf16.pop %v4314
        %v4331 = vtanh.bf16.pop %v4315
        %v4332 = vtanh.bf16.pop %v4316
        %v4333 = vmul.bf16 %v4317, %v813
        %v4334 = vmul.bf16 %v4318, %v813
        %v4335 = vmul.bf16 %v4319, %v813
        %v4336 = vmul.bf16 %v4320, %v813
        %v4337 = vmul.bf16 %v4321, %v813
        %v4338 = vmul.bf16 %v4322, %v813
        %v4339 = vmul.bf16 %v4323, %v813
        %v4340 = vmul.bf16 %v4324, %v813
        %v4341 = vmul.bf16 %v4325, %v813
        %v4342 = vmul.bf16 %v4326, %v813
        %v4343 = vmul.bf16 %v4327, %v813
        %v4344 = vmul.bf16 %v4328, %v813
        %v4345 = vmul.bf16 %v4329, %v813
        %v4346 = vmul.bf16 %v4330, %v813
        %v4347 = vmul.bf16 %v4331, %v813
        %v4348 = vmul.bf16 %v4332, %v813
        %v4349 = vunpack.c.l.bf16 %v4333
        %v4350 = vunpack.c.h.bf16 %v4333
        %v4351 = vunpack.c.l.bf16 %v4334
        %v4352 = vunpack.c.h.bf16 %v4334
        %v4353 = vunpack.c.l.bf16 %v4335
        %v4354 = vunpack.c.h.bf16 %v4335
        %v4355 = vunpack.c.l.bf16 %v4336
        %v4356 = vunpack.c.h.bf16 %v4336
        %v4357 = vunpack.c.l.bf16 %v4337
        %v4358 = vunpack.c.h.bf16 %v4337
        %v4359 = vunpack.c.l.bf16 %v4338
        %v4360 = vunpack.c.h.bf16 %v4338
        %v4361 = vunpack.c.l.bf16 %v4339
        %v4362 = vunpack.c.h.bf16 %v4339
        %v4363 = vunpack.c.l.bf16 %v4340
        %v4364 = vunpack.c.h.bf16 %v4340
        %v4365 = vunpack.c.l.bf16 %v4341
        %v4366 = vunpack.c.h.bf16 %v4341
        %v4367 = vunpack.c.l.bf16 %v4342
        %v4368 = vunpack.c.h.bf16 %v4342
        %v4369 = vunpack.c.l.bf16 %v4343
        %v4370 = vunpack.c.h.bf16 %v4343
        %v4371 = vunpack.c.l.bf16 %v4344
        %v4372 = vunpack.c.h.bf16 %v4344
        %v4373 = vunpack.c.l.bf16 %v4345
        %v4374 = vunpack.c.h.bf16 %v4345
        %v4375 = vunpack.c.l.bf16 %v4346
        %v4376 = vunpack.c.h.bf16 %v4346
        %v4377 = vunpack.c.l.bf16 %v4347
        %v4378 = vunpack.c.h.bf16 %v4347
        %v4379 = vunpack.c.l.bf16 %v4348
        %v4380 = vunpack.c.h.bf16 %v4348
        %4381 = vadd.xlane.f32.xlu0 %v4349
        %v4382 = vpop.xlane.xlu0 %4381
        %4383 = vadd.xlane.f32.xlu0 %v4350
        %v4384 = vpop.xlane.xlu0 %4383
        %4385 = vadd.xlane.f32.xlu0 %v4351
        %v4386 = vpop.xlane.xlu0 %4385
        %4387 = vadd.xlane.f32.xlu0 %v4352
        %v4388 = vpop.xlane.xlu0 %4387
        %4389 = vadd.xlane.f32.xlu0 %v4353
        %v4390 = vpop.xlane.xlu0 %4389
        %4391 = vadd.xlane.f32.xlu0 %v4354
        %v4392 = vpop.xlane.xlu0 %4391
        %4393 = vadd.xlane.f32.xlu0 %v4355
        %v4394 = vpop.xlane.xlu0 %4393
        %4395 = vadd.xlane.f32.xlu0 %v4356
        %v4396 = vpop.xlane.xlu0 %4395
        %4397 = vadd.xlane.f32.xlu0 %v4357
        %v4398 = vpop.xlane.xlu0 %4397
        %4399 = vadd.xlane.f32.xlu0 %v4358
        %v4400 = vpop.xlane.xlu0 %4399
        %4401 = vadd.xlane.f32.xlu0 %v4359
        %v4402 = vpop.xlane.xlu0 %4401
        %4403 = vadd.xlane.f32.xlu0 %v4360
        %v4404 = vpop.xlane.xlu0 %4403
        %4405 = vadd.xlane.f32.xlu0 %v4361
        %v4406 = vpop.xlane.xlu0 %4405
        %4407 = vadd.xlane.f32.xlu0 %v4362
        %v4408 = vpop.xlane.xlu0 %4407
        %4409 = vadd.xlane.f32.xlu0 %v4363
        %v4410 = vpop.xlane.xlu0 %4409
        %4411 = vadd.xlane.f32.xlu0 %v4364
        %v4412 = vpop.xlane.xlu0 %4411
        %4413 = vadd.xlane.f32.xlu0 %v4365
        %v4414 = vpop.xlane.xlu0 %4413
        %4415 = vadd.xlane.f32.xlu0 %v4366
        %v4416 = vpop.xlane.xlu0 %4415
        %4417 = vadd.xlane.f32.xlu0 %v4367
        %v4418 = vpop.xlane.xlu0 %4417
        %4419 = vadd.xlane.f32.xlu0 %v4368
        %v4420 = vpop.xlane.xlu0 %4419
        %4421 = vadd.xlane.f32.xlu0 %v4369
        %v4422 = vpop.xlane.xlu0 %4421
        %4423 = vadd.xlane.f32.xlu0 %v4370
        %v4424 = vpop.xlane.xlu0 %4423
        %4425 = vadd.xlane.f32.xlu0 %v4371
        %v4426 = vpop.xlane.xlu0 %4425
        %4427 = vadd.xlane.f32.xlu0 %v4372
        %v4428 = vpop.xlane.xlu0 %4427
        %4429 = vadd.xlane.f32.xlu0 %v4373
        %v4430 = vpop.xlane.xlu0 %4429
        %4431 = vadd.xlane.f32.xlu0 %v4374
        %v4432 = vpop.xlane.xlu0 %4431
        %4433 = vadd.xlane.f32.xlu0 %v4375
        %v4434 = vpop.xlane.xlu0 %4433
        %4435 = vadd.xlane.f32.xlu0 %v4376
        %v4436 = vpop.xlane.xlu0 %4435
        %4437 = vadd.xlane.f32.xlu0 %v4377
        %v4438 = vpop.xlane.xlu0 %4437
        %4439 = vadd.xlane.f32.xlu0 %v4378
        %v4440 = vpop.xlane.xlu0 %4439
        %4441 = vadd.xlane.f32.xlu0 %v4379
        %v4442 = vpop.xlane.xlu0 %4441
        %4443 = vadd.xlane.f32.xlu0 %v4380
        %v4444 = vpop.xlane.xlu0 %4443
        %v4477 = vlaneseq
        %v4478 = vshrl.u32 %v4477, 7
        %v4479 = vsub.s32 %v959, %v4478
        %v4480 = vrot.slane %v4382, %v4479
        %v4481 = vlaneseq
        %v4482 = vshrl.u32 %v4481, 7
        %v4483 = vsub.s32 %v964, %v4482
        %v4484 = vrot.slane %v4384, %v4483
        %v4485 = vsel %vm969, %v4484, %v4480
        %v4486 = vlaneseq
        %v4487 = vshrl.u32 %v4486, 7
        %v4488 = vsub.s32 %v971, %v4487
        %v4489 = vrot.slane %v4386, %v4488
        %v4490 = vsel %vm976, %v4489, %v4485
        %v4491 = vlaneseq
        %v4492 = vshrl.u32 %v4491, 7
        %v4493 = vsub.s32 %v978, %v4492
        %v4494 = vrot.slane %v4388, %v4493
        %v4495 = vsel %vm983, %v4494, %v4490
        %v4496 = vlaneseq
        %v4497 = vshrl.u32 %v4496, 7
        %v4498 = vsub.s32 %v985, %v4497
        %v4499 = vrot.slane %v4390, %v4498
        %v4500 = vsel %vm990, %v4499, %v4495
        %v4501 = vlaneseq
        %v4502 = vshrl.u32 %v4501, 7
        %v4503 = vsub.s32 %v992, %v4502
        %v4504 = vrot.slane %v4392, %v4503
        %v4505 = vsel %vm997, %v4504, %v4500
        %v4506 = vlaneseq
        %v4507 = vshrl.u32 %v4506, 7
        %v4508 = vsub.s32 %v999, %v4507
        %v4509 = vrot.slane %v4394, %v4508
        %v4510 = vsel %vm1004, %v4509, %v4505
        %v4511 = vlaneseq
        %v4512 = vshrl.u32 %v4511, 7
        %v4513 = vsub.s32 %v1006, %v4512
        %v4514 = vrot.slane %v4396, %v4513
        %v4515 = vsel %vm1011, %v4514, %v4510
        %v4516 = vlaneseq
        %v4517 = vshrl.u32 %v4516, 7
        %v4518 = vsub.s32 %v1013, %v4517
        %v4519 = vrot.slane %v4398, %v4518
        %v4520 = vsel %vm1018, %v4519, %v4515
        %v4521 = vlaneseq
        %v4522 = vshrl.u32 %v4521, 7
        %v4523 = vsub.s32 %v1020, %v4522
        %v4524 = vrot.slane %v4400, %v4523
        %v4525 = vsel %vm1025, %v4524, %v4520
        %v4526 = vlaneseq
        %v4527 = vshrl.u32 %v4526, 7
        %v4528 = vsub.s32 %v1027, %v4527
        %v4529 = vrot.slane %v4402, %v4528
        %v4530 = vsel %vm1032, %v4529, %v4525
        %v4531 = vlaneseq
        %v4532 = vshrl.u32 %v4531, 7
        %v4533 = vsub.s32 %v1034, %v4532
        %v4534 = vrot.slane %v4404, %v4533
        %v4535 = vsel %vm1039, %v4534, %v4530
        %v4536 = vlaneseq
        %v4537 = vshrl.u32 %v4536, 7
        %v4538 = vsub.s32 %v1041, %v4537
        %v4539 = vrot.slane %v4406, %v4538
        %v4540 = vsel %vm1046, %v4539, %v4535
        %v4541 = vlaneseq
        %v4542 = vshrl.u32 %v4541, 7
        %v4543 = vsub.s32 %v1048, %v4542
        %v4544 = vrot.slane %v4408, %v4543
        %v4545 = vsel %vm1053, %v4544, %v4540
        %v4546 = vlaneseq
        %v4547 = vshrl.u32 %v4546, 7
        %v4548 = vsub.s32 %v1055, %v4547
        %v4549 = vrot.slane %v4410, %v4548
        %v4550 = vsel %vm1060, %v4549, %v4545
        %v4551 = vlaneseq
        %v4552 = vshrl.u32 %v4551, 7
        %v4553 = vsub.s32 %v1062, %v4552
        %v4554 = vrot.slane %v4412, %v4553
        %v4555 = vsel %vm1067, %v4554, %v4550
        %v4556 = vlaneseq
        %v4557 = vshrl.u32 %v4556, 7
        %v4558 = vsub.s32 %v959, %v4557
        %v4559 = vrot.slane %v4414, %v4558
        %v4560 = vlaneseq
        %v4561 = vshrl.u32 %v4560, 7
        %v4562 = vsub.s32 %v964, %v4561
        %v4563 = vrot.slane %v4416, %v4562
        %v4564 = vsel %vm969, %v4563, %v4559
        %v4565 = vlaneseq
        %v4566 = vshrl.u32 %v4565, 7
        %v4567 = vsub.s32 %v971, %v4566
        %v4568 = vrot.slane %v4418, %v4567
        %v4569 = vsel %vm976, %v4568, %v4564
        %v4570 = vlaneseq
        %v4571 = vshrl.u32 %v4570, 7
        %v4572 = vsub.s32 %v978, %v4571
        %v4573 = vrot.slane %v4420, %v4572
        %v4574 = vsel %vm983, %v4573, %v4569
        %v4575 = vlaneseq
        %v4576 = vshrl.u32 %v4575, 7
        %v4577 = vsub.s32 %v985, %v4576
        %v4578 = vrot.slane %v4422, %v4577
        %v4579 = vsel %vm990, %v4578, %v4574
        %v4580 = vlaneseq
        %v4581 = vshrl.u32 %v4580, 7
        %v4582 = vsub.s32 %v992, %v4581
        %v4583 = vrot.slane %v4424, %v4582
        %v4584 = vsel %vm997, %v4583, %v4579
        %v4585 = vlaneseq
        %v4586 = vshrl.u32 %v4585, 7
        %v4587 = vsub.s32 %v999, %v4586
        %v4588 = vrot.slane %v4426, %v4587
        %v4589 = vsel %vm1004, %v4588, %v4584
        %v4590 = vlaneseq
        %v4591 = vshrl.u32 %v4590, 7
        %v4592 = vsub.s32 %v1006, %v4591
        %v4593 = vrot.slane %v4428, %v4592
        %v4594 = vsel %vm1011, %v4593, %v4589
        %v4595 = vlaneseq
        %v4596 = vshrl.u32 %v4595, 7
        %v4597 = vsub.s32 %v1013, %v4596
        %v4598 = vrot.slane %v4430, %v4597
        %v4599 = vsel %vm1018, %v4598, %v4594
        %v4600 = vlaneseq
        %v4601 = vshrl.u32 %v4600, 7
        %v4602 = vsub.s32 %v1020, %v4601
        %v4603 = vrot.slane %v4432, %v4602
        %v4604 = vsel %vm1025, %v4603, %v4599
        %v4605 = vlaneseq
        %v4606 = vshrl.u32 %v4605, 7
        %v4607 = vsub.s32 %v1027, %v4606
        %v4608 = vrot.slane %v4434, %v4607
        %v4609 = vsel %vm1032, %v4608, %v4604
        %v4610 = vlaneseq
        %v4611 = vshrl.u32 %v4610, 7
        %v4612 = vsub.s32 %v1034, %v4611
        %v4613 = vrot.slane %v4436, %v4612
        %v4614 = vsel %vm1039, %v4613, %v4609
        %v4615 = vlaneseq
        %v4616 = vshrl.u32 %v4615, 7
        %v4617 = vsub.s32 %v1041, %v4616
        %v4618 = vrot.slane %v4438, %v4617
        %v4619 = vsel %vm1046, %v4618, %v4614
        %v4620 = vlaneseq
        %v4621 = vshrl.u32 %v4620, 7
        %v4622 = vsub.s32 %v1048, %v4621
        %v4623 = vrot.slane %v4440, %v4622
        %v4624 = vsel %vm1053, %v4623, %v4619
        %v4625 = vlaneseq
        %v4626 = vshrl.u32 %v4625, 7
        %v4627 = vsub.s32 %v1055, %v4626
        %v4628 = vrot.slane %v4442, %v4627
        %v4629 = vsel %vm1060, %v4628, %v4624
        %v4630 = vlaneseq
        %v4631 = vshrl.u32 %v4630, 7
        %v4632 = vsub.s32 %v1062, %v4631
        %v4633 = vrot.slane %v4444, %v4632
        %v4634 = vsel %vm1067, %v4633, %v4629
        %v4635 = vsel %vm1148, %v4634, %v4555
        %v4637 = vsel %vm1151, %v4635, -inf
        %4638 = vmax.xlane.f32.xlu0 %v4637
        %v4639 = vpop.xlane.xlu0 %4638
        %v4641 = vlaneseq
        %v4642 = vshrl.u32 %v4641, 7
        %v4643 = vsub.s32 0, %v4642
        %v4644 = vrot.slane %v4639, %v4643
        %v4645 = vlaneseq
        %v4646 = vshrl.u32 %v4645, 7
        %v4647 = vsub.s32 1, %v4646
        %v4648 = vrot.slane %v4639, %v4647
        %v4651 = vsub.f32 %v4382, %v4644
        %v4652 = vsub.f32 %v4384, %v4644
        %v4653 = vsub.f32 %v4386, %v4644
        %v4654 = vsub.f32 %v4388, %v4644
        %v4655 = vsub.f32 %v4390, %v4644
        %v4656 = vsub.f32 %v4392, %v4644
        %v4657 = vsub.f32 %v4394, %v4644
        %v4658 = vsub.f32 %v4396, %v4644
        %v4659 = vsub.f32 %v4398, %v4644
        %v4660 = vsub.f32 %v4400, %v4644
        %v4661 = vsub.f32 %v4402, %v4644
        %v4662 = vsub.f32 %v4404, %v4644
        %v4663 = vsub.f32 %v4406, %v4644
        %v4664 = vsub.f32 %v4408, %v4644
        %v4665 = vsub.f32 %v4410, %v4644
        %v4666 = vsub.f32 %v4412, %v4644
        %v4667 = vsub.f32 %v4414, %v4648
        %v4668 = vsub.f32 %v4416, %v4648
        %v4669 = vsub.f32 %v4418, %v4648
        %v4670 = vsub.f32 %v4420, %v4648
        %v4671 = vsub.f32 %v4422, %v4648
        %v4672 = vsub.f32 %v4424, %v4648
        %v4673 = vsub.f32 %v4426, %v4648
        %v4674 = vsub.f32 %v4428, %v4648
        %v4675 = vsub.f32 %v4430, %v4648
        %v4676 = vsub.f32 %v4432, %v4648
        %v4677 = vsub.f32 %v4434, %v4648
        %v4678 = vsub.f32 %v4436, %v4648
        %v4679 = vsub.f32 %v4438, %v4648
        %v4680 = vsub.f32 %v4440, %v4648
        %v4681 = vsub.f32 %v4442, %v4648
        %v4682 = vsub.f32 %v4444, %v4648
        %v4683 = vmul.f32 %v4651, 1.442695
        %v4684 = vpow.pop %v4683
        %v4685 = vmul.f32 %v4652, 1.442695
        %v4686 = vpow.pop %v4685
        %v4687 = vmul.f32 %v4653, 1.442695
        %v4688 = vpow.pop %v4687
        %v4689 = vmul.f32 %v4654, 1.442695
        %v4690 = vpow.pop %v4689
        %v4691 = vmul.f32 %v4655, 1.442695
        %v4692 = vpow.pop %v4691
        %v4693 = vmul.f32 %v4656, 1.442695
        %v4694 = vpow.pop %v4693
        %v4695 = vmul.f32 %v4657, 1.442695
        %v4696 = vpow.pop %v4695
        %v4697 = vmul.f32 %v4658, 1.442695
        %v4698 = vpow.pop %v4697
        %v4699 = vmul.f32 %v4659, 1.442695
        %v4700 = vpow.pop %v4699
        %v4701 = vmul.f32 %v4660, 1.442695
        %v4702 = vpow.pop %v4701
        %v4703 = vmul.f32 %v4661, 1.442695
        %v4704 = vpow.pop %v4703
        %v4705 = vmul.f32 %v4662, 1.442695
        %v4706 = vpow.pop %v4705
        %v4707 = vmul.f32 %v4663, 1.442695
        %v4708 = vpow.pop %v4707
        %v4709 = vmul.f32 %v4664, 1.442695
        %v4710 = vpow.pop %v4709
        %v4711 = vmul.f32 %v4665, 1.442695
        %v4712 = vpow.pop %v4711
        %v4713 = vmul.f32 %v4666, 1.442695
        %v4714 = vpow.pop %v4713
        %v4715 = vmul.f32 %v4667, 1.442695
        %v4716 = vpow.pop %v4715
        %v4717 = vmul.f32 %v4668, 1.442695
        %v4718 = vpow.pop %v4717
        %v4719 = vmul.f32 %v4669, 1.442695
        %v4720 = vpow.pop %v4719
        %v4721 = vmul.f32 %v4670, 1.442695
        %v4722 = vpow.pop %v4721
        %v4723 = vmul.f32 %v4671, 1.442695
        %v4724 = vpow.pop %v4723
        %v4725 = vmul.f32 %v4672, 1.442695
        %v4726 = vpow.pop %v4725
        %v4727 = vmul.f32 %v4673, 1.442695
        %v4728 = vpow.pop %v4727
        %v4729 = vmul.f32 %v4674, 1.442695
        %v4730 = vpow.pop %v4729
        %v4731 = vmul.f32 %v4675, 1.442695
        %v4732 = vpow.pop %v4731
        %v4733 = vmul.f32 %v4676, 1.442695
        %v4734 = vpow.pop %v4733
        %v4735 = vmul.f32 %v4677, 1.442695
        %v4736 = vpow.pop %v4735
        %v4737 = vmul.f32 %v4678, 1.442695
        %v4738 = vpow.pop %v4737
        %v4739 = vmul.f32 %v4679, 1.442695
        %v4740 = vpow.pop %v4739
        %v4741 = vmul.f32 %v4680, 1.442695
        %v4742 = vpow.pop %v4741
        %v4743 = vmul.f32 %v4681, 1.442695
        %v4744 = vpow.pop %v4743
        %v4745 = vmul.f32 %v4682, 1.442695
        %v4746 = vpow.pop %v4745
        %4779 = vset.pattern.permute.xlu0 0
        %4780 = vperm.xlu0 %4779, %v4684
        %v4781 = vpop.permute.xlu0 %4780
        %4782 = vset.pattern.permute.xlu0 0
        %4783 = vperm.xlu0 %4782, %v4686
        %v4784 = vpop.permute.xlu0 %4783
        %4785 = vset.pattern.permute.xlu0 0
        %4786 = vperm.xlu0 %4785, %v4688
        %v4787 = vpop.permute.xlu0 %4786
        %4788 = vset.pattern.permute.xlu0 0
        %4789 = vperm.xlu0 %4788, %v4690
        %v4790 = vpop.permute.xlu0 %4789
        %4791 = vset.pattern.permute.xlu0 0
        %4792 = vperm.xlu0 %4791, %v4692
        %v4793 = vpop.permute.xlu0 %4792
        %4794 = vset.pattern.permute.xlu0 0
        %4795 = vperm.xlu0 %4794, %v4694
        %v4796 = vpop.permute.xlu0 %4795
        %4797 = vset.pattern.permute.xlu0 0
        %4798 = vperm.xlu0 %4797, %v4696
        %v4799 = vpop.permute.xlu0 %4798
        %4800 = vset.pattern.permute.xlu0 0
        %4801 = vperm.xlu0 %4800, %v4698
        %v4802 = vpop.permute.xlu0 %4801
        %4803 = vset.pattern.permute.xlu0 0
        %4804 = vperm.xlu0 %4803, %v4700
        %v4805 = vpop.permute.xlu0 %4804
        %4806 = vset.pattern.permute.xlu0 0
        %4807 = vperm.xlu0 %4806, %v4702
        %v4808 = vpop.permute.xlu0 %4807
        %4809 = vset.pattern.permute.xlu0 0
        %4810 = vperm.xlu0 %4809, %v4704
        %v4811 = vpop.permute.xlu0 %4810
        %4812 = vset.pattern.permute.xlu0 0
        %4813 = vperm.xlu0 %4812, %v4706
        %v4814 = vpop.permute.xlu0 %4813
        %4815 = vset.pattern.permute.xlu0 0
        %4816 = vperm.xlu0 %4815, %v4708
        %v4817 = vpop.permute.xlu0 %4816
        %4818 = vset.pattern.permute.xlu0 0
        %4819 = vperm.xlu0 %4818, %v4710
        %v4820 = vpop.permute.xlu0 %4819
        %4821 = vset.pattern.permute.xlu0 0
        %4822 = vperm.xlu0 %4821, %v4712
        %v4823 = vpop.permute.xlu0 %4822
        %4824 = vset.pattern.permute.xlu0 0
        %4825 = vperm.xlu0 %4824, %v4714
        %v4826 = vpop.permute.xlu0 %4825
        %4827 = vset.pattern.permute.xlu0 0
        %4828 = vperm.xlu0 %4827, %v4716
        %v4829 = vpop.permute.xlu0 %4828
        %4830 = vset.pattern.permute.xlu0 0
        %4831 = vperm.xlu0 %4830, %v4718
        %v4832 = vpop.permute.xlu0 %4831
        %4833 = vset.pattern.permute.xlu0 0
        %4834 = vperm.xlu0 %4833, %v4720
        %v4835 = vpop.permute.xlu0 %4834
        %4836 = vset.pattern.permute.xlu0 0
        %4837 = vperm.xlu0 %4836, %v4722
        %v4838 = vpop.permute.xlu0 %4837
        %4839 = vset.pattern.permute.xlu0 0
        %4840 = vperm.xlu0 %4839, %v4724
        %v4841 = vpop.permute.xlu0 %4840
        %4842 = vset.pattern.permute.xlu0 0
        %4843 = vperm.xlu0 %4842, %v4726
        %v4844 = vpop.permute.xlu0 %4843
        %4845 = vset.pattern.permute.xlu0 0
        %4846 = vperm.xlu0 %4845, %v4728
        %v4847 = vpop.permute.xlu0 %4846
        %4848 = vset.pattern.permute.xlu0 0
        %4849 = vperm.xlu0 %4848, %v4730
        %v4850 = vpop.permute.xlu0 %4849
        %4851 = vset.pattern.permute.xlu0 0
        %4852 = vperm.xlu0 %4851, %v4732
        %v4853 = vpop.permute.xlu0 %4852
        %4854 = vset.pattern.permute.xlu0 0
        %4855 = vperm.xlu0 %4854, %v4734
        %v4856 = vpop.permute.xlu0 %4855
        %4857 = vset.pattern.permute.xlu0 0
        %4858 = vperm.xlu0 %4857, %v4736
        %v4859 = vpop.permute.xlu0 %4858
        %4860 = vset.pattern.permute.xlu0 0
        %4861 = vperm.xlu0 %4860, %v4738
        %v4862 = vpop.permute.xlu0 %4861
        %4863 = vset.pattern.permute.xlu0 0
        %4864 = vperm.xlu0 %4863, %v4740
        %v4865 = vpop.permute.xlu0 %4864
        %4866 = vset.pattern.permute.xlu0 0
        %4867 = vperm.xlu0 %4866, %v4742
        %v4868 = vpop.permute.xlu0 %4867
        %4869 = vset.pattern.permute.xlu0 0
        %4870 = vperm.xlu0 %4869, %v4744
        %v4871 = vpop.permute.xlu0 %4870
        %4872 = vset.pattern.permute.xlu0 0
        %4873 = vperm.xlu0 %4872, %v4746
        %v4874 = vpop.permute.xlu0 %4873
        %v4875 = vlaneseq
        %v4876 = vshrl.u32 %v4875, 7
        %v4877 = vsub.s32 %v959, %v4876
        %v4878 = vrot.slane %v4781, %v4877
        %v4879 = vlaneseq
        %v4880 = vshrl.u32 %v4879, 7
        %v4881 = vsub.s32 %v964, %v4880
        %v4882 = vrot.slane %v4784, %v4881
        %v4883 = vsel %vm969, %v4882, %v4878
        %v4884 = vlaneseq
        %v4885 = vshrl.u32 %v4884, 7
        %v4886 = vsub.s32 %v971, %v4885
        %v4887 = vrot.slane %v4787, %v4886
        %v4888 = vsel %vm976, %v4887, %v4883
        %v4889 = vlaneseq
        %v4890 = vshrl.u32 %v4889, 7
        %v4891 = vsub.s32 %v978, %v4890
        %v4892 = vrot.slane %v4790, %v4891
        %v4893 = vsel %vm983, %v4892, %v4888
        %v4894 = vlaneseq
        %v4895 = vshrl.u32 %v4894, 7
        %v4896 = vsub.s32 %v985, %v4895
        %v4897 = vrot.slane %v4793, %v4896
        %v4898 = vsel %vm990, %v4897, %v4893
        %v4899 = vlaneseq
        %v4900 = vshrl.u32 %v4899, 7
        %v4901 = vsub.s32 %v992, %v4900
        %v4902 = vrot.slane %v4796, %v4901
        %v4903 = vsel %vm997, %v4902, %v4898
        %v4904 = vlaneseq
        %v4905 = vshrl.u32 %v4904, 7
        %v4906 = vsub.s32 %v999, %v4905
        %v4907 = vrot.slane %v4799, %v4906
        %v4908 = vsel %vm1004, %v4907, %v4903
        %v4909 = vlaneseq
        %v4910 = vshrl.u32 %v4909, 7
        %v4911 = vsub.s32 %v1006, %v4910
        %v4912 = vrot.slane %v4802, %v4911
        %v4913 = vsel %vm1011, %v4912, %v4908
        %v4914 = vlaneseq
        %v4915 = vshrl.u32 %v4914, 7
        %v4916 = vsub.s32 %v1013, %v4915
        %v4917 = vrot.slane %v4805, %v4916
        %v4918 = vsel %vm1018, %v4917, %v4913
        %v4919 = vlaneseq
        %v4920 = vshrl.u32 %v4919, 7
        %v4921 = vsub.s32 %v1020, %v4920
        %v4922 = vrot.slane %v4808, %v4921
        %v4923 = vsel %vm1025, %v4922, %v4918
        %v4924 = vlaneseq
        %v4925 = vshrl.u32 %v4924, 7
        %v4926 = vsub.s32 %v1027, %v4925
        %v4927 = vrot.slane %v4811, %v4926
        %v4928 = vsel %vm1032, %v4927, %v4923
        %v4929 = vlaneseq
        %v4930 = vshrl.u32 %v4929, 7
        %v4931 = vsub.s32 %v1034, %v4930
        %v4932 = vrot.slane %v4814, %v4931
        %v4933 = vsel %vm1039, %v4932, %v4928
        %v4934 = vlaneseq
        %v4935 = vshrl.u32 %v4934, 7
        %v4936 = vsub.s32 %v1041, %v4935
        %v4937 = vrot.slane %v4817, %v4936
        %v4938 = vsel %vm1046, %v4937, %v4933
        %v4939 = vlaneseq
        %v4940 = vshrl.u32 %v4939, 7
        %v4941 = vsub.s32 %v1048, %v4940
        %v4942 = vrot.slane %v4820, %v4941
        %v4943 = vsel %vm1053, %v4942, %v4938
        %v4944 = vlaneseq
        %v4945 = vshrl.u32 %v4944, 7
        %v4946 = vsub.s32 %v1055, %v4945
        %v4947 = vrot.slane %v4823, %v4946
        %v4948 = vsel %vm1060, %v4947, %v4943
        %v4949 = vlaneseq
        %v4950 = vshrl.u32 %v4949, 7
        %v4951 = vsub.s32 %v1062, %v4950
        %v4952 = vrot.slane %v4826, %v4951
        %v4953 = vsel %vm1067, %v4952, %v4948
        %v4954 = vlaneseq
        %v4955 = vshrl.u32 %v4954, 7
        %v4956 = vsub.s32 %v959, %v4955
        %v4957 = vrot.slane %v4829, %v4956
        %v4958 = vlaneseq
        %v4959 = vshrl.u32 %v4958, 7
        %v4960 = vsub.s32 %v964, %v4959
        %v4961 = vrot.slane %v4832, %v4960
        %v4962 = vsel %vm969, %v4961, %v4957
        %v4963 = vlaneseq
        %v4964 = vshrl.u32 %v4963, 7
        %v4965 = vsub.s32 %v971, %v4964
        %v4966 = vrot.slane %v4835, %v4965
        %v4967 = vsel %vm976, %v4966, %v4962
        %v4968 = vlaneseq
        %v4969 = vshrl.u32 %v4968, 7
        %v4970 = vsub.s32 %v978, %v4969
        %v4971 = vrot.slane %v4838, %v4970
        %v4972 = vsel %vm983, %v4971, %v4967
        %v4973 = vlaneseq
        %v4974 = vshrl.u32 %v4973, 7
        %v4975 = vsub.s32 %v985, %v4974
        %v4976 = vrot.slane %v4841, %v4975
        %v4977 = vsel %vm990, %v4976, %v4972
        %v4978 = vlaneseq
        %v4979 = vshrl.u32 %v4978, 7
        %v4980 = vsub.s32 %v992, %v4979
        %v4981 = vrot.slane %v4844, %v4980
        %v4982 = vsel %vm997, %v4981, %v4977
        %v4983 = vlaneseq
        %v4984 = vshrl.u32 %v4983, 7
        %v4985 = vsub.s32 %v999, %v4984
        %v4986 = vrot.slane %v4847, %v4985
        %v4987 = vsel %vm1004, %v4986, %v4982
        %v4988 = vlaneseq
        %v4989 = vshrl.u32 %v4988, 7
        %v4990 = vsub.s32 %v1006, %v4989
        %v4991 = vrot.slane %v4850, %v4990
        %v4992 = vsel %vm1011, %v4991, %v4987
        %v4993 = vlaneseq
        %v4994 = vshrl.u32 %v4993, 7
        %v4995 = vsub.s32 %v1013, %v4994
        %v4996 = vrot.slane %v4853, %v4995
        %v4997 = vsel %vm1018, %v4996, %v4992
        %v4998 = vlaneseq
        %v4999 = vshrl.u32 %v4998, 7
        %v5000 = vsub.s32 %v1020, %v4999
        %v5001 = vrot.slane %v4856, %v5000
        %v5002 = vsel %vm1025, %v5001, %v4997
        %v5003 = vlaneseq
        %v5004 = vshrl.u32 %v5003, 7
        %v5005 = vsub.s32 %v1027, %v5004
        %v5006 = vrot.slane %v4859, %v5005
        %v5007 = vsel %vm1032, %v5006, %v5002
        %v5008 = vlaneseq
        %v5009 = vshrl.u32 %v5008, 7
        %v5010 = vsub.s32 %v1034, %v5009
        %v5011 = vrot.slane %v4862, %v5010
        %v5012 = vsel %vm1039, %v5011, %v5007
        %v5013 = vlaneseq
        %v5014 = vshrl.u32 %v5013, 7
        %v5015 = vsub.s32 %v1041, %v5014
        %v5016 = vrot.slane %v4865, %v5015
        %v5017 = vsel %vm1046, %v5016, %v5012
        %v5018 = vlaneseq
        %v5019 = vshrl.u32 %v5018, 7
        %v5020 = vsub.s32 %v1048, %v5019
        %v5021 = vrot.slane %v4868, %v5020
        %v5022 = vsel %vm1053, %v5021, %v5017
        %v5023 = vlaneseq
        %v5024 = vshrl.u32 %v5023, 7
        %v5025 = vsub.s32 %v1055, %v5024
        %v5026 = vrot.slane %v4871, %v5025
        %v5027 = vsel %vm1060, %v5026, %v5022
        %v5028 = vlaneseq
        %v5029 = vshrl.u32 %v5028, 7
        %v5030 = vsub.s32 %v1062, %v5029
        %v5031 = vrot.slane %v4874, %v5030
        %v5032 = vsel %vm1067, %v5031, %v5027
        %v5033 = vsel %vm1148, %v5032, %v4953
        %v5035 = vsel %vm1151, %v5033, 0.0
        %5036 = vadd.xlane.f32.xlu0 %v5035
        %v5037 = vpop.xlane.xlu0 %5036
        %v5038 = vrcp.pop %v5037
        %v5040 = vlaneseq
        %v5041 = vshrl.u32 %v5040, 7
        %v5042 = vsub.s32 0, %v5041
        %v5043 = vrot.slane %v5038, %v5042
        %v5044 = vlaneseq
        %v5045 = vshrl.u32 %v5044, 7
        %v5046 = vsub.s32 1, %v5045
        %v5047 = vrot.slane %v5038, %v5046
        %v5050 = vmul.f32 %v4684, %v5043
        %v5051 = vmul.f32 %v4686, %v5043
        %v5052 = vmul.f32 %v4688, %v5043
        %v5053 = vmul.f32 %v4690, %v5043
        %v5054 = vmul.f32 %v4692, %v5043
        %v5055 = vmul.f32 %v4694, %v5043
        %v5056 = vmul.f32 %v4696, %v5043
        %v5057 = vmul.f32 %v4698, %v5043
        %v5058 = vmul.f32 %v4700, %v5043
        %v5059 = vmul.f32 %v4702, %v5043
        %v5060 = vmul.f32 %v4704, %v5043
        %v5061 = vmul.f32 %v4706, %v5043
        %v5062 = vmul.f32 %v4708, %v5043
        %v5063 = vmul.f32 %v4710, %v5043
        %v5064 = vmul.f32 %v4712, %v5043
        %v5065 = vmul.f32 %v4714, %v5043
        %v5066 = vmul.f32 %v4716, %v5047
        %v5067 = vmul.f32 %v4718, %v5047
        %v5068 = vmul.f32 %v4720, %v5047
        %v5069 = vmul.f32 %v4722, %v5047
        %v5070 = vmul.f32 %v4724, %v5047
        %v5071 = vmul.f32 %v4726, %v5047
        %v5072 = vmul.f32 %v4728, %v5047
        %v5073 = vmul.f32 %v4730, %v5047
        %v5074 = vmul.f32 %v4732, %v5047
        %v5075 = vmul.f32 %v4734, %v5047
        %v5076 = vmul.f32 %v4736, %v5047
        %v5077 = vmul.f32 %v4738, %v5047
        %v5078 = vmul.f32 %v4740, %v5047
        %v5079 = vmul.f32 %v4742, %v5047
        %v5080 = vmul.f32 %v4744, %v5047
        %v5081 = vmul.f32 %v4746, %v5047
        %v5082 = vpack.c.bf16 %v5051, %v5050
        %v5083 = vpack.c.bf16 %v5053, %v5052
        %v5084 = vpack.c.bf16 %v5055, %v5054
        %v5085 = vpack.c.bf16 %v5057, %v5056
        %v5086 = vpack.c.bf16 %v5059, %v5058
        %v5087 = vpack.c.bf16 %v5061, %v5060
        %v5088 = vpack.c.bf16 %v5063, %v5062
        %v5089 = vpack.c.bf16 %v5065, %v5064
        %v5090 = vpack.c.bf16 %v5067, %v5066
        %v5091 = vpack.c.bf16 %v5069, %v5068
        %v5092 = vpack.c.bf16 %v5071, %v5070
        %v5093 = vpack.c.bf16 %v5073, %v5072
        %v5094 = vpack.c.bf16 %v5075, %v5074
        %v5095 = vpack.c.bf16 %v5077, %v5076
        %v5096 = vpack.c.bf16 %v5079, %v5078
        %v5097 = vpack.c.bf16 %v5081, %v5080
        %v5106 = vunpack.c.l.b16 %v5082
        %v5107 = vunpack.c.h.b16 %v5082
        %v5108 = vunpack.c.l.b16 %v5083
        %v5109 = vunpack.c.h.b16 %v5083
        %v5110 = vunpack.c.l.b16 %v5084
        %v5111 = vunpack.c.h.b16 %v5084
        %v5112 = vunpack.c.l.b16 %v5085
        %v5113 = vunpack.c.h.b16 %v5085
        %v5114 = vunpack.c.l.b16 %v5086
        %v5115 = vunpack.c.h.b16 %v5086
        %v5116 = vunpack.c.l.b16 %v5087
        %v5117 = vunpack.c.h.b16 %v5087
        %v5118 = vunpack.c.l.b16 %v5088
        %v5119 = vunpack.c.h.b16 %v5088
        %v5120 = vunpack.c.l.b16 %v5089
        %v5121 = vunpack.c.h.b16 %v5089
        %5122 = vset.pattern.permute.xlu0 0
        %5123 = vperm.xlu0 %5122, %v5106
        %v5124 = vpop.permute.xlu0 %5123
        %5125 = vset.pattern.permute.xlu0 0
        %5126 = vperm.xlu0 %5125, %v5107
        %v5127 = vpop.permute.xlu0 %5126
        %5128 = vset.pattern.permute.xlu0 0
        %5129 = vperm.xlu0 %5128, %v5108
        %v5130 = vpop.permute.xlu0 %5129
        %5131 = vset.pattern.permute.xlu0 0
        %5132 = vperm.xlu0 %5131, %v5109
        %v5133 = vpop.permute.xlu0 %5132
        %5134 = vset.pattern.permute.xlu0 0
        %5135 = vperm.xlu0 %5134, %v5110
        %v5136 = vpop.permute.xlu0 %5135
        %5137 = vset.pattern.permute.xlu0 0
        %5138 = vperm.xlu0 %5137, %v5111
        %v5139 = vpop.permute.xlu0 %5138
        %5140 = vset.pattern.permute.xlu0 0
        %5141 = vperm.xlu0 %5140, %v5112
        %v5142 = vpop.permute.xlu0 %5141
        %5143 = vset.pattern.permute.xlu0 0
        %5144 = vperm.xlu0 %5143, %v5113
        %v5145 = vpop.permute.xlu0 %5144
        %5146 = vset.pattern.permute.xlu0 0
        %5147 = vperm.xlu0 %5146, %v5114
        %v5148 = vpop.permute.xlu0 %5147
        %5149 = vset.pattern.permute.xlu0 0
        %5150 = vperm.xlu0 %5149, %v5115
        %v5151 = vpop.permute.xlu0 %5150
        %5152 = vset.pattern.permute.xlu0 0
        %5153 = vperm.xlu0 %5152, %v5116
        %v5154 = vpop.permute.xlu0 %5153
        %5155 = vset.pattern.permute.xlu0 0
        %5156 = vperm.xlu0 %5155, %v5117
        %v5157 = vpop.permute.xlu0 %5156
        %5158 = vset.pattern.permute.xlu0 0
        %5159 = vperm.xlu0 %5158, %v5118
        %v5160 = vpop.permute.xlu0 %5159
        %5161 = vset.pattern.permute.xlu0 0
        %5162 = vperm.xlu0 %5161, %v5119
        %v5163 = vpop.permute.xlu0 %5162
        %5164 = vset.pattern.permute.xlu0 0
        %5165 = vperm.xlu0 %5164, %v5120
        %v5166 = vpop.permute.xlu0 %5165
        %5167 = vset.pattern.permute.xlu0 0
        %5168 = vperm.xlu0 %5167, %v5121
        %v5169 = vpop.permute.xlu0 %5168
        %v5170 = vlaneseq
        %v5171 = vshrl.u32 %v5170, 7
        %v5172 = vsub.s32 %v959, %v5171
        %v5173 = vrot.slane %v5124, %v5172
        %v5174 = vlaneseq
        %v5175 = vshrl.u32 %v5174, 7
        %v5176 = vsub.s32 %v964, %v5175
        %v5177 = vrot.slane %v5127, %v5176
        %v5178 = vsel %vm969, %v5177, %v5173
        %v5179 = vlaneseq
        %v5180 = vshrl.u32 %v5179, 7
        %v5181 = vsub.s32 %v971, %v5180
        %v5182 = vrot.slane %v5130, %v5181
        %v5183 = vsel %vm976, %v5182, %v5178
        %v5184 = vlaneseq
        %v5185 = vshrl.u32 %v5184, 7
        %v5186 = vsub.s32 %v978, %v5185
        %v5187 = vrot.slane %v5133, %v5186
        %v5188 = vsel %vm983, %v5187, %v5183
        %v5189 = vlaneseq
        %v5190 = vshrl.u32 %v5189, 7
        %v5191 = vsub.s32 %v985, %v5190
        %v5192 = vrot.slane %v5136, %v5191
        %v5193 = vsel %vm990, %v5192, %v5188
        %v5194 = vlaneseq
        %v5195 = vshrl.u32 %v5194, 7
        %v5196 = vsub.s32 %v992, %v5195
        %v5197 = vrot.slane %v5139, %v5196
        %v5198 = vsel %vm997, %v5197, %v5193
        %v5199 = vlaneseq
        %v5200 = vshrl.u32 %v5199, 7
        %v5201 = vsub.s32 %v999, %v5200
        %v5202 = vrot.slane %v5142, %v5201
        %v5203 = vsel %vm1004, %v5202, %v5198
        %v5204 = vlaneseq
        %v5205 = vshrl.u32 %v5204, 7
        %v5206 = vsub.s32 %v1006, %v5205
        %v5207 = vrot.slane %v5145, %v5206
        %v5208 = vsel %vm1011, %v5207, %v5203
        %v5209 = vlaneseq
        %v5210 = vshrl.u32 %v5209, 7
        %v5211 = vsub.s32 %v1013, %v5210
        %v5212 = vrot.slane %v5148, %v5211
        %v5213 = vsel %vm1018, %v5212, %v5208
        %v5214 = vlaneseq
        %v5215 = vshrl.u32 %v5214, 7
        %v5216 = vsub.s32 %v1020, %v5215
        %v5217 = vrot.slane %v5151, %v5216
        %v5218 = vsel %vm1025, %v5217, %v5213
        %v5219 = vlaneseq
        %v5220 = vshrl.u32 %v5219, 7
        %v5221 = vsub.s32 %v1027, %v5220
        %v5222 = vrot.slane %v5154, %v5221
        %v5223 = vsel %vm1032, %v5222, %v5218
        %v5224 = vlaneseq
        %v5225 = vshrl.u32 %v5224, 7
        %v5226 = vsub.s32 %v1034, %v5225
        %v5227 = vrot.slane %v5157, %v5226
        %v5228 = vsel %vm1039, %v5227, %v5223
        %v5229 = vlaneseq
        %v5230 = vshrl.u32 %v5229, 7
        %v5231 = vsub.s32 %v1041, %v5230
        %v5232 = vrot.slane %v5160, %v5231
        %v5233 = vsel %vm1046, %v5232, %v5228
        %v5234 = vlaneseq
        %v5235 = vshrl.u32 %v5234, 7
        %v5236 = vsub.s32 %v1048, %v5235
        %v5237 = vrot.slane %v5163, %v5236
        %v5238 = vsel %vm1053, %v5237, %v5233
        %v5239 = vlaneseq
        %v5240 = vshrl.u32 %v5239, 7
        %v5241 = vsub.s32 %v1055, %v5240
        %v5242 = vrot.slane %v5166, %v5241
        %v5243 = vsel %vm1060, %v5242, %v5238
        %v5244 = vlaneseq
        %v5245 = vshrl.u32 %v5244, 7
        %v5246 = vsub.s32 %v1062, %v5245
        %v5247 = vrot.slane %v5169, %v5246
        %v5248 = vsel %vm1067, %v5247, %v5243
        %v5249 = vpack.c.b16 %v5248, %v5248
        %5251 = vmatprep.subr.bf16.mxu0 0
        %5252 = vmatpush1.bf16.msra.mxu0 %v4059
        %5253 = vmatprep.subr.bf16.mxu0 0
        %5254 = vmatpush1.bf16.msra.mxu0 %v4060
        %5255 = vmatprep.subr.bf16.mxu0 0
        %5256 = vmatpush1.bf16.msra.mxu0 %v4061
        %5257 = vmatprep.subr.bf16.mxu0 0
        %5258 = vmatpush1.bf16.msra.mxu0 %v4062
        %5259 = vmatprep.subr.bf16.mxu0 0
        %5260 = vmatpush1.bf16.msra.mxu0 %v4063
        %5261 = vmatprep.subr.bf16.mxu0 0
        %5262 = vmatpush1.bf16.msra.mxu0 %v4064
        %5263 = vmatprep.subr.bf16.mxu0 0
        %5264 = vmatpush1.bf16.msra.mxu0 %v4065
        %5265 = vmatprep.subr.bf16.mxu0 0
        %5266 = vmatpush1.bf16.msra.mxu0 %v4066
        %5267 = vmatprep.subr.bf16.mxu0 0
        %5268 = vmatpush1.bf16.msra.mxu0 0
        %5269 = vmatprep.subr.bf16.mxu0 0
        %5270 = vmatpush1.bf16.msra.mxu0 0
        %5271 = vmatprep.subr.bf16.mxu0 0
        %5272 = vmatpush1.bf16.msra.mxu0 0
        %5273 = vmatprep.subr.bf16.mxu0 0
        %5274 = vmatpush1.bf16.msra.mxu0 0
        %5275 = vmatprep.subr.bf16.mxu0 0
        %5276 = vmatpush1.bf16.msra.mxu0 0
        %5277 = vmatprep.subr.bf16.mxu0 0
        %5278 = vmatpush1.bf16.msra.mxu0 0
        %5279 = vmatprep.subr.bf16.mxu0 0
        %5280 = vmatpush1.bf16.msra.mxu0 0
        %5281 = vmatprep.subr.bf16.mxu0 0
        %5282 = vmatpush1.bf16.msra.mxu0 0
        %5283 = vmatprep.mubr.bf16.mxu0 0
        %5284 = vmatmul.mubr.bf16.gmra.mrb[0].mxu0 %v5249
        %v5285 = vpop.f32.mrb[0].mxu0
        %v5286 = vadd.f32 0.0, %v5285
        %v5287 = vpop.f32.mrb[0].mxu0
        %v5288 = vpop.f32.mrb[0].mxu0
        %v5289 = vpop.f32.mrb[0].mxu0
        %5290 = vdwg.mxu0
        %v5299 = vunpack.c.l.b16 %v5090
        %v5300 = vunpack.c.h.b16 %v5090
        %v5301 = vunpack.c.l.b16 %v5091
        %v5302 = vunpack.c.h.b16 %v5091
        %v5303 = vunpack.c.l.b16 %v5092
        %v5304 = vunpack.c.h.b16 %v5092
        %v5305 = vunpack.c.l.b16 %v5093
        %v5306 = vunpack.c.h.b16 %v5093
        %v5307 = vunpack.c.l.b16 %v5094
        %v5308 = vunpack.c.h.b16 %v5094
        %v5309 = vunpack.c.l.b16 %v5095
        %v5310 = vunpack.c.h.b16 %v5095
        %v5311 = vunpack.c.l.b16 %v5096
        %v5312 = vunpack.c.h.b16 %v5096
        %v5313 = vunpack.c.l.b16 %v5097
        %v5314 = vunpack.c.h.b16 %v5097
        %5315 = vset.pattern.permute.xlu0 0
        %5316 = vperm.xlu0 %5315, %v5299
        %v5317 = vpop.permute.xlu0 %5316
        %5318 = vset.pattern.permute.xlu0 0
        %5319 = vperm.xlu0 %5318, %v5300
        %v5320 = vpop.permute.xlu0 %5319
        %5321 = vset.pattern.permute.xlu0 0
        %5322 = vperm.xlu0 %5321, %v5301
        %v5323 = vpop.permute.xlu0 %5322
        %5324 = vset.pattern.permute.xlu0 0
        %5325 = vperm.xlu0 %5324, %v5302
        %v5326 = vpop.permute.xlu0 %5325
        %5327 = vset.pattern.permute.xlu0 0
        %5328 = vperm.xlu0 %5327, %v5303
        %v5329 = vpop.permute.xlu0 %5328
        %5330 = vset.pattern.permute.xlu0 0
        %5331 = vperm.xlu0 %5330, %v5304
        %v5332 = vpop.permute.xlu0 %5331
        %5333 = vset.pattern.permute.xlu0 0
        %5334 = vperm.xlu0 %5333, %v5305
        %v5335 = vpop.permute.xlu0 %5334
        %5336 = vset.pattern.permute.xlu0 0
        %5337 = vperm.xlu0 %5336, %v5306
        %v5338 = vpop.permute.xlu0 %5337
        %5339 = vset.pattern.permute.xlu0 0
        %5340 = vperm.xlu0 %5339, %v5307
        %v5341 = vpop.permute.xlu0 %5340
        %5342 = vset.pattern.permute.xlu0 0
        %5343 = vperm.xlu0 %5342, %v5308
        %v5344 = vpop.permute.xlu0 %5343
        %5345 = vset.pattern.permute.xlu0 0
        %5346 = vperm.xlu0 %5345, %v5309
        %v5347 = vpop.permute.xlu0 %5346
        %5348 = vset.pattern.permute.xlu0 0
        %5349 = vperm.xlu0 %5348, %v5310
        %v5350 = vpop.permute.xlu0 %5349
        %5351 = vset.pattern.permute.xlu0 0
        %5352 = vperm.xlu0 %5351, %v5311
        %v5353 = vpop.permute.xlu0 %5352
        %5354 = vset.pattern.permute.xlu0 0
        %5355 = vperm.xlu0 %5354, %v5312
        %v5356 = vpop.permute.xlu0 %5355
        %5357 = vset.pattern.permute.xlu0 0
        %5358 = vperm.xlu0 %5357, %v5313
        %v5359 = vpop.permute.xlu0 %5358
        %5360 = vset.pattern.permute.xlu0 0
        %5361 = vperm.xlu0 %5360, %v5314
        %v5362 = vpop.permute.xlu0 %5361
        %v5363 = vlaneseq
        %v5364 = vshrl.u32 %v5363, 7
        %v5365 = vsub.s32 %v959, %v5364
        %v5366 = vrot.slane %v5317, %v5365
        %v5367 = vlaneseq
        %v5368 = vshrl.u32 %v5367, 7
        %v5369 = vsub.s32 %v964, %v5368
        %v5370 = vrot.slane %v5320, %v5369
        %v5371 = vsel %vm969, %v5370, %v5366
        %v5372 = vlaneseq
        %v5373 = vshrl.u32 %v5372, 7
        %v5374 = vsub.s32 %v971, %v5373
        %v5375 = vrot.slane %v5323, %v5374
        %v5376 = vsel %vm976, %v5375, %v5371
        %v5377 = vlaneseq
        %v5378 = vshrl.u32 %v5377, 7
        %v5379 = vsub.s32 %v978, %v5378
        %v5380 = vrot.slane %v5326, %v5379
        %v5381 = vsel %vm983, %v5380, %v5376
        %v5382 = vlaneseq
        %v5383 = vshrl.u32 %v5382, 7
        %v5384 = vsub.s32 %v985, %v5383
        %v5385 = vrot.slane %v5329, %v5384
        %v5386 = vsel %vm990, %v5385, %v5381
        %v5387 = vlaneseq
        %v5388 = vshrl.u32 %v5387, 7
        %v5389 = vsub.s32 %v992, %v5388
        %v5390 = vrot.slane %v5332, %v5389
        %v5391 = vsel %vm997, %v5390, %v5386
        %v5392 = vlaneseq
        %v5393 = vshrl.u32 %v5392, 7
        %v5394 = vsub.s32 %v999, %v5393
        %v5395 = vrot.slane %v5335, %v5394
        %v5396 = vsel %vm1004, %v5395, %v5391
        %v5397 = vlaneseq
        %v5398 = vshrl.u32 %v5397, 7
        %v5399 = vsub.s32 %v1006, %v5398
        %v5400 = vrot.slane %v5338, %v5399
        %v5401 = vsel %vm1011, %v5400, %v5396
        %v5402 = vlaneseq
        %v5403 = vshrl.u32 %v5402, 7
        %v5404 = vsub.s32 %v1013, %v5403
        %v5405 = vrot.slane %v5341, %v5404
        %v5406 = vsel %vm1018, %v5405, %v5401
        %v5407 = vlaneseq
        %v5408 = vshrl.u32 %v5407, 7
        %v5409 = vsub.s32 %v1020, %v5408
        %v5410 = vrot.slane %v5344, %v5409
        %v5411 = vsel %vm1025, %v5410, %v5406
        %v5412 = vlaneseq
        %v5413 = vshrl.u32 %v5412, 7
        %v5414 = vsub.s32 %v1027, %v5413
        %v5415 = vrot.slane %v5347, %v5414
        %v5416 = vsel %vm1032, %v5415, %v5411
        %v5417 = vlaneseq
        %v5418 = vshrl.u32 %v5417, 7
        %v5419 = vsub.s32 %v1034, %v5418
        %v5420 = vrot.slane %v5350, %v5419
        %v5421 = vsel %vm1039, %v5420, %v5416
        %v5422 = vlaneseq
        %v5423 = vshrl.u32 %v5422, 7
        %v5424 = vsub.s32 %v1041, %v5423
        %v5425 = vrot.slane %v5353, %v5424
        %v5426 = vsel %vm1046, %v5425, %v5421
        %v5427 = vlaneseq
        %v5428 = vshrl.u32 %v5427, 7
        %v5429 = vsub.s32 %v1048, %v5428
        %v5430 = vrot.slane %v5356, %v5429
        %v5431 = vsel %vm1053, %v5430, %v5426
        %v5432 = vlaneseq
        %v5433 = vshrl.u32 %v5432, 7
        %v5434 = vsub.s32 %v1055, %v5433
        %v5435 = vrot.slane %v5359, %v5434
        %v5436 = vsel %vm1060, %v5435, %v5431
        %v5437 = vlaneseq
        %v5438 = vshrl.u32 %v5437, 7
        %v5439 = vsub.s32 %v1062, %v5438
        %v5440 = vrot.slane %v5362, %v5439
        %v5441 = vsel %vm1067, %v5440, %v5436
        %v5442 = vpack.c.b16 %v5441, %v5441
        %5444 = vmatprep.subr.bf16.mxu0 0
        %5445 = vmatpush1.bf16.msra.mxu0 %v4067
        %5446 = vmatprep.subr.bf16.mxu0 0
        %5447 = vmatpush1.bf16.msra.mxu0 %v4068
        %5448 = vmatprep.subr.bf16.mxu0 0
        %5449 = vmatpush1.bf16.msra.mxu0 %v4069
        %5450 = vmatprep.subr.bf16.mxu0 0
        %5451 = vmatpush1.bf16.msra.mxu0 %v4070
        %5452 = vmatprep.subr.bf16.mxu0 0
        %5453 = vmatpush1.bf16.msra.mxu0 %v4071
        %5454 = vmatprep.subr.bf16.mxu0 0
        %5455 = vmatpush1.bf16.msra.mxu0 %v4072
        %5456 = vmatprep.subr.bf16.mxu0 0
        %5457 = vmatpush1.bf16.msra.mxu0 %v4073
        %5458 = vmatprep.subr.bf16.mxu0 0
        %5459 = vmatpush1.bf16.msra.mxu0 %v4074
        %5460 = vmatprep.subr.bf16.mxu0 0
        %5461 = vmatpush1.bf16.msra.mxu0 0
        %5462 = vmatprep.subr.bf16.mxu0 0
        %5463 = vmatpush1.bf16.msra.mxu0 0
        %5464 = vmatprep.subr.bf16.mxu0 0
        %5465 = vmatpush1.bf16.msra.mxu0 0
        %5466 = vmatprep.subr.bf16.mxu0 0
        %5467 = vmatpush1.bf16.msra.mxu0 0
        %5468 = vmatprep.subr.bf16.mxu0 0
        %5469 = vmatpush1.bf16.msra.mxu0 0
        %5470 = vmatprep.subr.bf16.mxu0 0
        %5471 = vmatpush1.bf16.msra.mxu0 0
        %5472 = vmatprep.subr.bf16.mxu0 0
        %5473 = vmatpush1.bf16.msra.mxu0 0
        %5474 = vmatprep.subr.bf16.mxu0 0
        %5475 = vmatpush1.bf16.msra.mxu0 0
        %5476 = vmatprep.mubr.bf16.mxu0 0
        %5477 = vmatmul.mubr.bf16.gmra.mrb[0].mxu0 %v5442
        %v5478 = vpop.f32.mrb[0].mxu0
        %v5479 = vadd.f32 0.0, %v5478
        %v5480 = vpop.f32.mrb[0].mxu0
        %v5481 = vpop.f32.mrb[0].mxu0
        %v5482 = vpop.f32.mrb[0].mxu0
        %5483 = vdwg.mxu0
        %v5486 = vrot.slane %v5479, 7
        %v5487 = vsel %vm1148, %v5486, %v5286
        %5489 = vst [vmem:[%s392 + $0x4] sm:$0x3] %v5487
        %5522 = vset.pattern.permute.xlu0 0
        %5523 = vperm.xlu0 %5522, %v5050
        %v5524 = vpop.permute.xlu0 %5523
        %5525 = vset.pattern.permute.xlu0 0
        %5526 = vperm.xlu0 %5525, %v5051
        %v5527 = vpop.permute.xlu0 %5526
        %5528 = vset.pattern.permute.xlu0 0
        %5529 = vperm.xlu0 %5528, %v5052
        %v5530 = vpop.permute.xlu0 %5529
        %5531 = vset.pattern.permute.xlu0 0
        %5532 = vperm.xlu0 %5531, %v5053
        %v5533 = vpop.permute.xlu0 %5532
        %5534 = vset.pattern.permute.xlu0 0
        %5535 = vperm.xlu0 %5534, %v5054
        %v5536 = vpop.permute.xlu0 %5535
        %5537 = vset.pattern.permute.xlu0 0
        %5538 = vperm.xlu0 %5537, %v5055
        %v5539 = vpop.permute.xlu0 %5538
        %5540 = vset.pattern.permute.xlu0 0
        %5541 = vperm.xlu0 %5540, %v5056
        %v5542 = vpop.permute.xlu0 %5541
        %5543 = vset.pattern.permute.xlu0 0
        %5544 = vperm.xlu0 %5543, %v5057
        %v5545 = vpop.permute.xlu0 %5544
        %5546 = vset.pattern.permute.xlu0 0
        %5547 = vperm.xlu0 %5546, %v5058
        %v5548 = vpop.permute.xlu0 %5547
        %5549 = vset.pattern.permute.xlu0 0
        %5550 = vperm.xlu0 %5549, %v5059
        %v5551 = vpop.permute.xlu0 %5550
        %5552 = vset.pattern.permute.xlu0 0
        %5553 = vperm.xlu0 %5552, %v5060
        %v5554 = vpop.permute.xlu0 %5553
        %5555 = vset.pattern.permute.xlu0 0
        %5556 = vperm.xlu0 %5555, %v5061
        %v5557 = vpop.permute.xlu0 %5556
        %5558 = vset.pattern.permute.xlu0 0
        %5559 = vperm.xlu0 %5558, %v5062
        %v5560 = vpop.permute.xlu0 %5559
        %5561 = vset.pattern.permute.xlu0 0
        %5562 = vperm.xlu0 %5561, %v5063
        %v5563 = vpop.permute.xlu0 %5562
        %5564 = vset.pattern.permute.xlu0 0
        %5565 = vperm.xlu0 %5564, %v5064
        %v5566 = vpop.permute.xlu0 %5565
        %5567 = vset.pattern.permute.xlu0 0
        %5568 = vperm.xlu0 %5567, %v5065
        %v5569 = vpop.permute.xlu0 %5568
        %5570 = vset.pattern.permute.xlu0 0
        %5571 = vperm.xlu0 %5570, %v5066
        %v5572 = vpop.permute.xlu0 %5571
        %5573 = vset.pattern.permute.xlu0 0
        %5574 = vperm.xlu0 %5573, %v5067
        %v5575 = vpop.permute.xlu0 %5574
        %5576 = vset.pattern.permute.xlu0 0
        %5577 = vperm.xlu0 %5576, %v5068
        %v5578 = vpop.permute.xlu0 %5577
        %5579 = vset.pattern.permute.xlu0 0
        %5580 = vperm.xlu0 %5579, %v5069
        %v5581 = vpop.permute.xlu0 %5580
        %5582 = vset.pattern.permute.xlu0 0
        %5583 = vperm.xlu0 %5582, %v5070
        %v5584 = vpop.permute.xlu0 %5583
        %5585 = vset.pattern.permute.xlu0 0
        %5586 = vperm.xlu0 %5585, %v5071
        %v5587 = vpop.permute.xlu0 %5586
        %5588 = vset.pattern.permute.xlu0 0
        %5589 = vperm.xlu0 %5588, %v5072
        %v5590 = vpop.permute.xlu0 %5589
        %5591 = vset.pattern.permute.xlu0 0
        %5592 = vperm.xlu0 %5591, %v5073
        %v5593 = vpop.permute.xlu0 %5592
        %5594 = vset.pattern.permute.xlu0 0
        %5595 = vperm.xlu0 %5594, %v5074
        %v5596 = vpop.permute.xlu0 %5595
        %5597 = vset.pattern.permute.xlu0 0
        %5598 = vperm.xlu0 %5597, %v5075
        %v5599 = vpop.permute.xlu0 %5598
        %5600 = vset.pattern.permute.xlu0 0
        %5601 = vperm.xlu0 %5600, %v5076
        %v5602 = vpop.permute.xlu0 %5601
        %5603 = vset.pattern.permute.xlu0 0
        %5604 = vperm.xlu0 %5603, %v5077
        %v5605 = vpop.permute.xlu0 %5604
        %5606 = vset.pattern.permute.xlu0 0
        %5607 = vperm.xlu0 %5606, %v5078
        %v5608 = vpop.permute.xlu0 %5607
        %5609 = vset.pattern.permute.xlu0 0
        %5610 = vperm.xlu0 %5609, %v5079
        %v5611 = vpop.permute.xlu0 %5610
        %5612 = vset.pattern.permute.xlu0 0
        %5613 = vperm.xlu0 %5612, %v5080
        %v5614 = vpop.permute.xlu0 %5613
        %5615 = vset.pattern.permute.xlu0 0
        %5616 = vperm.xlu0 %5615, %v5081
        %v5617 = vpop.permute.xlu0 %5616
        %v5618 = vlaneseq
        %v5619 = vshrl.u32 %v5618, 7
        %v5620 = vsub.s32 %v959, %v5619
        %v5621 = vrot.slane %v5524, %v5620
        %v5622 = vlaneseq
        %v5623 = vshrl.u32 %v5622, 7
        %v5624 = vsub.s32 %v964, %v5623
        %v5625 = vrot.slane %v5527, %v5624
        %v5626 = vsel %vm969, %v5625, %v5621
        %v5627 = vlaneseq
        %v5628 = vshrl.u32 %v5627, 7
        %v5629 = vsub.s32 %v971, %v5628
        %v5630 = vrot.slane %v5530, %v5629
        %v5631 = vsel %vm976, %v5630, %v5626
        %v5632 = vlaneseq
        %v5633 = vshrl.u32 %v5632, 7
        %v5634 = vsub.s32 %v978, %v5633
        %v5635 = vrot.slane %v5533, %v5634
        %v5636 = vsel %vm983, %v5635, %v5631
        %v5637 = vlaneseq
        %v5638 = vshrl.u32 %v5637, 7
        %v5639 = vsub.s32 %v985, %v5638
        %v5640 = vrot.slane %v5536, %v5639
        %v5641 = vsel %vm990, %v5640, %v5636
        %v5642 = vlaneseq
        %v5643 = vshrl.u32 %v5642, 7
        %v5644 = vsub.s32 %v992, %v5643
        %v5645 = vrot.slane %v5539, %v5644
        %v5646 = vsel %vm997, %v5645, %v5641
        %v5647 = vlaneseq
        %v5648 = vshrl.u32 %v5647, 7
        %v5649 = vsub.s32 %v999, %v5648
        %v5650 = vrot.slane %v5542, %v5649
        %v5651 = vsel %vm1004, %v5650, %v5646
        %v5652 = vlaneseq
        %v5653 = vshrl.u32 %v5652, 7
        %v5654 = vsub.s32 %v1006, %v5653
        %v5655 = vrot.slane %v5545, %v5654
        %v5656 = vsel %vm1011, %v5655, %v5651
        %v5657 = vlaneseq
        %v5658 = vshrl.u32 %v5657, 7
        %v5659 = vsub.s32 %v1013, %v5658
        %v5660 = vrot.slane %v5548, %v5659
        %v5661 = vsel %vm1018, %v5660, %v5656
        %v5662 = vlaneseq
        %v5663 = vshrl.u32 %v5662, 7
        %v5664 = vsub.s32 %v1020, %v5663
        %v5665 = vrot.slane %v5551, %v5664
        %v5666 = vsel %vm1025, %v5665, %v5661
        %v5667 = vlaneseq
        %v5668 = vshrl.u32 %v5667, 7
        %v5669 = vsub.s32 %v1027, %v5668
        %v5670 = vrot.slane %v5554, %v5669
        %v5671 = vsel %vm1032, %v5670, %v5666
        %v5672 = vlaneseq
        %v5673 = vshrl.u32 %v5672, 7
        %v5674 = vsub.s32 %v1034, %v5673
        %v5675 = vrot.slane %v5557, %v5674
        %v5676 = vsel %vm1039, %v5675, %v5671
        %v5677 = vlaneseq
        %v5678 = vshrl.u32 %v5677, 7
        %v5679 = vsub.s32 %v1041, %v5678
        %v5680 = vrot.slane %v5560, %v5679
        %v5681 = vsel %vm1046, %v5680, %v5676
        %v5682 = vlaneseq
        %v5683 = vshrl.u32 %v5682, 7
        %v5684 = vsub.s32 %v1048, %v5683
        %v5685 = vrot.slane %v5563, %v5684
        %v5686 = vsel %vm1053, %v5685, %v5681
        %v5687 = vlaneseq
        %v5688 = vshrl.u32 %v5687, 7
        %v5689 = vsub.s32 %v1055, %v5688
        %v5690 = vrot.slane %v5566, %v5689
        %v5691 = vsel %vm1060, %v5690, %v5686
        %v5692 = vlaneseq
        %v5693 = vshrl.u32 %v5692, 7
        %v5694 = vsub.s32 %v1062, %v5693
        %v5695 = vrot.slane %v5569, %v5694
        %v5696 = vsel %vm1067, %v5695, %v5691
        %v5697 = vlaneseq
        %v5698 = vshrl.u32 %v5697, 7
        %v5699 = vsub.s32 %v959, %v5698
        %v5700 = vrot.slane %v5572, %v5699
        %v5701 = vlaneseq
        %v5702 = vshrl.u32 %v5701, 7
        %v5703 = vsub.s32 %v964, %v5702
        %v5704 = vrot.slane %v5575, %v5703
        %v5705 = vsel %vm969, %v5704, %v5700
        %v5706 = vlaneseq
        %v5707 = vshrl.u32 %v5706, 7
        %v5708 = vsub.s32 %v971, %v5707
        %v5709 = vrot.slane %v5578, %v5708
        %v5710 = vsel %vm976, %v5709, %v5705
        %v5711 = vlaneseq
        %v5712 = vshrl.u32 %v5711, 7
        %v5713 = vsub.s32 %v978, %v5712
        %v5714 = vrot.slane %v5581, %v5713
        %v5715 = vsel %vm983, %v5714, %v5710
        %v5716 = vlaneseq
        %v5717 = vshrl.u32 %v5716, 7
        %v5718 = vsub.s32 %v985, %v5717
        %v5719 = vrot.slane %v5584, %v5718
        %v5720 = vsel %vm990, %v5719, %v5715
        %v5721 = vlaneseq
        %v5722 = vshrl.u32 %v5721, 7
        %v5723 = vsub.s32 %v992, %v5722
        %v5724 = vrot.slane %v5587, %v5723
        %v5725 = vsel %vm997, %v5724, %v5720
        %v5726 = vlaneseq
        %v5727 = vshrl.u32 %v5726, 7
        %v5728 = vsub.s32 %v999, %v5727
        %v5729 = vrot.slane %v5590, %v5728
        %v5730 = vsel %vm1004, %v5729, %v5725
        %v5731 = vlaneseq
        %v5732 = vshrl.u32 %v5731, 7
        %v5733 = vsub.s32 %v1006, %v5732
        %v5734 = vrot.slane %v5593, %v5733
        %v5735 = vsel %vm1011, %v5734, %v5730
        %v5736 = vlaneseq
        %v5737 = vshrl.u32 %v5736, 7
        %v5738 = vsub.s32 %v1013, %v5737
        %v5739 = vrot.slane %v5596, %v5738
        %v5740 = vsel %vm1018, %v5739, %v5735
        %v5741 = vlaneseq
        %v5742 = vshrl.u32 %v5741, 7
        %v5743 = vsub.s32 %v1020, %v5742
        %v5744 = vrot.slane %v5599, %v5743
        %v5745 = vsel %vm1025, %v5744, %v5740
        %v5746 = vlaneseq
        %v5747 = vshrl.u32 %v5746, 7
        %v5748 = vsub.s32 %v1027, %v5747
        %v5749 = vrot.slane %v5602, %v5748
        %v5750 = vsel %vm1032, %v5749, %v5745
        %v5751 = vlaneseq
        %v5752 = vshrl.u32 %v5751, 7
        %v5753 = vsub.s32 %v1034, %v5752
        %v5754 = vrot.slane %v5605, %v5753
        %v5755 = vsel %vm1039, %v5754, %v5750
        %v5756 = vlaneseq
        %v5757 = vshrl.u32 %v5756, 7
        %v5758 = vsub.s32 %v1041, %v5757
        %v5759 = vrot.slane %v5608, %v5758
        %v5760 = vsel %vm1046, %v5759, %v5755
        %v5761 = vlaneseq
        %v5762 = vshrl.u32 %v5761, 7
        %v5763 = vsub.s32 %v1048, %v5762
        %v5764 = vrot.slane %v5611, %v5763
        %v5765 = vsel %vm1053, %v5764, %v5760
        %v5766 = vlaneseq
        %v5767 = vshrl.u32 %v5766, 7
        %v5768 = vsub.s32 %v1055, %v5767
        %v5769 = vrot.slane %v5614, %v5768
        %v5770 = vsel %vm1060, %v5769, %v5765
        %v5771 = vlaneseq
        %v5772 = vshrl.u32 %v5771, 7
        %v5773 = vsub.s32 %v1062, %v5772
        %v5774 = vrot.slane %v5617, %v5773
        %v5775 = vsel %vm1067, %v5774, %v5770
        %v5776 = vsel %vm1148, %v5775, %v5696
        %5778 = vst [vmem:[%s399 + $0x4] sm:$0x3] %v5776
        %s5779 = scalar_lea.vmem %s343, 768 [#allocation5]
        %v5780 = vld [vmem:[%s5779] sm:$0xff]
        %v5781 = vld [vmem:[%s5779 + $0x8] sm:$0xff]
        %v5782 = vld [vmem:[%s5779 + $0x10] sm:$0xff]
        %v5783 = vld [vmem:[%s5779 + $0x18] sm:$0xff]
        %v5784 = vld [vmem:[%s5779 + $0x20] sm:$0xff]
        %v5785 = vld [vmem:[%s5779 + $0x28] sm:$0xff]
        %v5786 = vld [vmem:[%s5779 + $0x30] sm:$0xff]
        %v5787 = vld [vmem:[%s5779 + $0x38] sm:$0xff]
        %v5788 = vld [vmem:[%s5779 + $0x40] sm:$0xff]
        %v5789 = vld [vmem:[%s5779 + $0x48] sm:$0xff]
        %v5790 = vld [vmem:[%s5779 + $0x50] sm:$0xff]
        %v5791 = vld [vmem:[%s5779 + $0x58] sm:$0xff]
        %v5792 = vld [vmem:[%s5779 + $0x60] sm:$0xff]
        %v5793 = vld [vmem:[%s5779 + $0x68] sm:$0xff]
        %v5794 = vld [vmem:[%s5779 + $0x70] sm:$0xff]
        %v5795 = vld [vmem:[%s5779 + $0x78] sm:$0xff]
        %v5796 = vld [vmem:[%s5779 + $0x80] sm:$0xff]
        %v5797 = vld [vmem:[%s5779 + $0x88] sm:$0xff]
        %v5798 = vld [vmem:[%s5779 + $0x90] sm:$0xff]
        %v5799 = vld [vmem:[%s5779 + $0x98] sm:$0xff]
        %v5800 = vld [vmem:[%s5779 + $0xa0] sm:$0xff]
        %v5801 = vld [vmem:[%s5779 + $0xa8] sm:$0xff]
        %v5802 = vld [vmem:[%s5779 + $0xb0] sm:$0xff]
        %v5803 = vld [vmem:[%s5779 + $0xb8] sm:$0xff]
        %v5804 = vld [vmem:[%s5779 + $0xc0] sm:$0xff]
        %v5805 = vld [vmem:[%s5779 + $0xc8] sm:$0xff]
        %v5806 = vld [vmem:[%s5779 + $0xd0] sm:$0xff]
        %v5807 = vld [vmem:[%s5779 + $0xd8] sm:$0xff]
        %v5808 = vld [vmem:[%s5779 + $0xe0] sm:$0xff]
        %v5809 = vld [vmem:[%s5779 + $0xe8] sm:$0xff]
        %v5810 = vld [vmem:[%s5779 + $0xf0] sm:$0xff]
        %v5811 = vld [vmem:[%s5779 + $0xf8] sm:$0xff]
        %v5812 = vpack.c.bf16 %v5781, %v5780
        %v5813 = vpack.c.bf16 %v5783, %v5782
        %v5814 = vpack.c.bf16 %v5785, %v5784
        %v5815 = vpack.c.bf16 %v5787, %v5786
        %v5816 = vpack.c.bf16 %v5789, %v5788
        %v5817 = vpack.c.bf16 %v5791, %v5790
        %v5818 = vpack.c.bf16 %v5793, %v5792
        %v5819 = vpack.c.bf16 %v5795, %v5794
        %v5820 = vpack.c.bf16 %v5797, %v5796
        %v5821 = vpack.c.bf16 %v5799, %v5798
        %v5822 = vpack.c.bf16 %v5801, %v5800
        %v5823 = vpack.c.bf16 %v5803, %v5802
        %v5824 = vpack.c.bf16 %v5805, %v5804
        %v5825 = vpack.c.bf16 %v5807, %v5806
        %v5826 = vpack.c.bf16 %v5809, %v5808
        %v5827 = vpack.c.bf16 %v5811, %v5810
        %5828 = vmatprep.subr.bf16.mxu0 0
        %5829 = vmatpush1.bf16.msra.mxu0 %v442
        %5830 = vmatprep.subr.bf16.mxu0 0
        %5831 = vmatpush1.bf16.msra.mxu0 %v443
        %5832 = vmatprep.subr.bf16.mxu0 0
        %5833 = vmatpush1.bf16.msra.mxu0 %v444
        %5834 = vmatprep.subr.bf16.mxu0 0
        %5835 = vmatpush1.bf16.msra.mxu0 %v445
        %5836 = vmatprep.subr.bf16.mxu0 0
        %5837 = vmatpush1.bf16.msra.mxu0 %v446
        %5838 = vmatprep.subr.bf16.mxu0 0
        %5839 = vmatpush1.bf16.msra.mxu0 %v447
        %5840 = vmatprep.subr.bf16.mxu0 0
        %5841 = vmatpush1.bf16.msra.mxu0 %v448
        %5842 = vmatprep.subr.bf16.mxu0 0
        %5843 = vmatpush1.bf16.msra.mxu0 %v449
        %5844 = vmatprep.subr.bf16.mxu0 0
        %5845 = vmatpush1.bf16.msra.mxu0 0
        %5846 = vmatprep.subr.bf16.mxu0 0
        %5847 = vmatpush1.bf16.msra.mxu0 0
        %5848 = vmatprep.subr.bf16.mxu0 0
        %5849 = vmatpush1.bf16.msra.mxu0 0
        %5850 = vmatprep.subr.bf16.mxu0 0
        %5851 = vmatpush1.bf16.msra.mxu0 0
        %5852 = vmatprep.subr.bf16.mxu0 0
        %5853 = vmatpush1.bf16.msra.mxu0 0
        %5854 = vmatprep.subr.bf16.mxu0 0
        %5855 = vmatpush1.bf16.msra.mxu0 0
        %5856 = vmatprep.subr.bf16.mxu0 0
        %5857 = vmatpush1.bf16.msra.mxu0 0
        %5858 = vmatprep.subr.bf16.mxu0 0
        %5859 = vmatpush1.bf16.msra.mxu0 0
        %5860 = vmatprep.mubr.bf16.mxu0 0
        %5861 = vmatmul.mubr.bf16.gmra.mrb[0].mxu0 %v5812
        %v5862 = vpop.f32.mrb[0].mxu0
        %v5863 = vadd.f32 0.0, %v5862
        %v5864 = vpop.f32.mrb[0].mxu0
        %v5865 = vpop.f32.mrb[0].mxu0
        %v5866 = vadd.f32 0.0, %v5865
        %v5867 = vpop.f32.mrb[0].mxu0
        %5868 = vmatprep.mubr.bf16.mxu0 0
        %5869 = vmatmul.mubr.bf16.gmra.mrb[0].mxu0 %v5813
        %v5870 = vpop.f32.mrb[0].mxu0
        %v5871 = vadd.f32 0.0, %v5870
        %v5872 = vpop.f32.mrb[0].mxu0
        %v5873 = vpop.f32.mrb[0].mxu0
        %v5874 = vadd.f32 0.0, %v5873
        %v5875 = vpop.f32.mrb[0].mxu0
        %5876 = vmatprep.mubr.bf16.mxu0 0
        %5877 = vmatmul.mubr.bf16.gmra.mrb[0].mxu0 %v5814
        %v5878 = vpop.f32.mrb[0].mxu0
        %v5879 = vadd.f32 0.0, %v5878
        %v5880 = vpop.f32.mrb[0].mxu0
        %v5881 = vpop.f32.mrb[0].mxu0
        %v5882 = vadd.f32 0.0, %v5881
        %v5883 = vpop.f32.mrb[0].mxu0
        %5884 = vmatprep.mubr.bf16.mxu0 0
        %5885 = vmatmul.mubr.bf16.gmra.mrb[0].mxu0 %v5815
        %v5886 = vpop.f32.mrb[0].mxu0
        %v5887 = vadd.f32 0.0, %v5886
        %v5888 = vpop.f32.mrb[0].mxu0
        %v5889 = vpop.f32.mrb[0].mxu0
        %v5890 = vadd.f32 0.0, %v5889
        %v5891 = vpop.f32.mrb[0].mxu0
        %5892 = vmatprep.mubr.bf16.mxu0 0
        %5893 = vmatmul.mubr.bf16.gmra.mrb[0].mxu0 %v5816
        %v5894 = vpop.f32.mrb[0].mxu0
        %v5895 = vadd.f32 0.0, %v5894
        %v5896 = vpop.f32.mrb[0].mxu0
        %v5897 = vpop.f32.mrb[0].mxu0
        %v5898 = vadd.f32 0.0, %v5897
        %v5899 = vpop.f32.mrb[0].mxu0
        %5900 = vmatprep.mubr.bf16.mxu0 0
        %5901 = vmatmul.mubr.bf16.gmra.mrb[0].mxu0 %v5817
        %v5902 = vpop.f32.mrb[0].mxu0
        %v5903 = vadd.f32 0.0, %v5902
        %v5904 = vpop.f32.mrb[0].mxu0
        %v5905 = vpop.f32.mrb[0].mxu0
        %v5906 = vadd.f32 0.0, %v5905
        %v5907 = vpop.f32.mrb[0].mxu0
        %5908 = vmatprep.mubr.bf16.mxu0 0
        %5909 = vmatmul.mubr.bf16.gmra.mrb[0].mxu0 %v5818
        %v5910 = vpop.f32.mrb[0].mxu0
        %v5911 = vadd.f32 0.0, %v5910
        %v5912 = vpop.f32.mrb[0].mxu0
        %v5913 = vpop.f32.mrb[0].mxu0
        %v5914 = vadd.f32 0.0, %v5913
        %v5915 = vpop.f32.mrb[0].mxu0
        %5916 = vmatprep.mubr.bf16.mxu0 0
        %5917 = vmatmul.mubr.bf16.gmra.mrb[0].mxu0 %v5819
        %v5918 = vpop.f32.mrb[0].mxu0
        %v5919 = vadd.f32 0.0, %v5918
        %v5920 = vpop.f32.mrb[0].mxu0
        %v5921 = vpop.f32.mrb[0].mxu0
        %v5922 = vadd.f32 0.0, %v5921
        %v5923 = vpop.f32.mrb[0].mxu0
        %5924 = vmatprep.mubr.bf16.mxu0 0
        %5925 = vmatmul.mubr.bf16.gmra.mrb[0].mxu0 %v5820
        %v5926 = vpop.f32.mrb[0].mxu0
        %v5927 = vadd.f32 0.0, %v5926
        %v5928 = vpop.f32.mrb[0].mxu0
        %v5929 = vpop.f32.mrb[0].mxu0
        %v5930 = vadd.f32 0.0, %v5929
        %v5931 = vpop.f32.mrb[0].mxu0
        %5932 = vmatprep.mubr.bf16.mxu0 0
        %5933 = vmatmul.mubr.bf16.gmra.mrb[0].mxu0 %v5821
        %v5934 = vpop.f32.mrb[0].mxu0
        %v5935 = vadd.f32 0.0, %v5934
        %v5936 = vpop.f32.mrb[0].mxu0
        %v5937 = vpop.f32.mrb[0].mxu0
        %v5938 = vadd.f32 0.0, %v5937
        %v5939 = vpop.f32.mrb[0].mxu0
        %5940 = vmatprep.mubr.bf16.mxu0 0
        %5941 = vmatmul.mubr.bf16.gmra.mrb[0].mxu0 %v5822
        %v5942 = vpop.f32.mrb[0].mxu0
        %v5943 = vadd.f32 0.0, %v5942
        %v5944 = vpop.f32.mrb[0].mxu0
        %v5945 = vpop.f32.mrb[0].mxu0
        %v5946 = vadd.f32 0.0, %v5945
        %v5947 = vpop.f32.mrb[0].mxu0
        %5948 = vmatprep.mubr.bf16.mxu0 0
        %5949 = vmatmul.mubr.bf16.gmra.mrb[0].mxu0 %v5823
        %v5950 = vpop.f32.mrb[0].mxu0
        %v5951 = vadd.f32 0.0, %v5950
        %v5952 = vpop.f32.mrb[0].mxu0
        %v5953 = vpop.f32.mrb[0].mxu0
        %v5954 = vadd.f32 0.0, %v5953
        %v5955 = vpop.f32.mrb[0].mxu0
        %5956 = vmatprep.mubr.bf16.mxu0 0
        %5957 = vmatmul.mubr.bf16.gmra.mrb[0].mxu0 %v5824
        %v5958 = vpop.f32.mrb[0].mxu0
        %v5959 = vadd.f32 0.0, %v5958
        %v5960 = vpop.f32.mrb[0].mxu0
        %v5961 = vpop.f32.mrb[0].mxu0
        %v5962 = vadd.f32 0.0, %v5961
        %v5963 = vpop.f32.mrb[0].mxu0
        %5964 = vmatprep.mubr.bf16.mxu0 0
        %5965 = vmatmul.mubr.bf16.gmra.mrb[0].mxu0 %v5825
        %v5966 = vpop.f32.mrb[0].mxu0
        %v5967 = vadd.f32 0.0, %v5966
        %v5968 = vpop.f32.mrb[0].mxu0
        %v5969 = vpop.f32.mrb[0].mxu0
        %v5970 = vadd.f32 0.0, %v5969
        %v5971 = vpop.f32.mrb[0].mxu0
        %5972 = vmatprep.mubr.bf16.mxu0 0
        %5973 = vmatmul.mubr.bf16.gmra.mrb[0].mxu0 %v5826
        %v5974 = vpop.f32.mrb[0].mxu0
        %v5975 = vadd.f32 0.0, %v5974
        %v5976 = vpop.f32.mrb[0].mxu0
        %v5977 = vpop.f32.mrb[0].mxu0
        %v5978 = vadd.f32 0.0, %v5977
        %v5979 = vpop.f32.mrb[0].mxu0
        %5980 = vmatprep.mubr.bf16.mxu0 0
        %5981 = vmatmul.mubr.bf16.gmra.mrb[0].mxu0 %v5827
        %v5982 = vpop.f32.mrb[0].mxu0
        %v5983 = vadd.f32 0.0, %v5982
        %v5984 = vpop.f32.mrb[0].mxu0
        %v5985 = vpop.f32.mrb[0].mxu0
        %v5986 = vadd.f32 0.0, %v5985
        %v5987 = vpop.f32.mrb[0].mxu0
        %5988 = vdwg.mxu0
        %v5989 = vcombine.high %v4251, %v4251
        %v5990 = vcombine.high %v4258, %v4258
        %v5991 = vlaneseq
        %v5992 = vshrl.u32 %v5991, 7
        %v5993 = vsub.s32 0, %v5992
        %v5994 = vrot.slane %v5989, %v5993
        %v5995 = vlaneseq
        %v5996 = vshrl.u32 %v5995, 7
        %v5997 = vsub.s32 0, %v5996
        %v5998 = vrot.slane %v5990, %v5997
        %v6001 = vadd.f32 %v5863, %v5994
        %v6002 = vadd.f32 %v5866, %v5994
        %v6003 = vadd.f32 %v5871, %v5994
        %v6004 = vadd.f32 %v5874, %v5994
        %v6005 = vadd.f32 %v5879, %v5994
        %v6006 = vadd.f32 %v5882, %v5994
        %v6007 = vadd.f32 %v5887, %v5994
        %v6008 = vadd.f32 %v5890, %v5994
        %v6009 = vadd.f32 %v5895, %v5994
        %v6010 = vadd.f32 %v5898, %v5994
        %v6011 = vadd.f32 %v5903, %v5994
        %v6012 = vadd.f32 %v5906, %v5994
        %v6013 = vadd.f32 %v5911, %v5994
        %v6014 = vadd.f32 %v5914, %v5994
        %v6015 = vadd.f32 %v5919, %v5994
        %v6016 = vadd.f32 %v5922, %v5994
        %v6017 = vadd.f32 %v5927, %v5998
        %v6018 = vadd.f32 %v5930, %v5998
        %v6019 = vadd.f32 %v5935, %v5998
        %v6020 = vadd.f32 %v5938, %v5998
        %v6021 = vadd.f32 %v5943, %v5998
        %v6022 = vadd.f32 %v5946, %v5998
        %v6023 = vadd.f32 %v5951, %v5998
        %v6024 = vadd.f32 %v5954, %v5998
        %v6025 = vadd.f32 %v5959, %v5998
        %v6026 = vadd.f32 %v5962, %v5998
        %v6027 = vadd.f32 %v5967, %v5998
        %v6028 = vadd.f32 %v5970, %v5998
        %v6029 = vadd.f32 %v5975, %v5998
        %v6030 = vadd.f32 %v5978, %v5998
        %v6031 = vadd.f32 %v5983, %v5998
        %v6032 = vadd.f32 %v5986, %v5998
        %v6033 = vpack.c.bf16 %v6002, %v6001
        %v6034 = vpack.c.bf16 %v6004, %v6003
        %v6035 = vpack.c.bf16 %v6006, %v6005
        %v6036 = vpack.c.bf16 %v6008, %v6007
        %v6037 = vpack.c.bf16 %v6010, %v6009
        %v6038 = vpack.c.bf16 %v6012, %v6011
        %v6039 = vpack.c.bf16 %v6014, %v6013
        %v6040 = vpack.c.bf16 %v6016, %v6015
        %v6041 = vpack.c.bf16 %v6018, %v6017
        %v6042 = vpack.c.bf16 %v6020, %v6019
        %v6043 = vpack.c.bf16 %v6022, %v6021
        %v6044 = vpack.c.bf16 %v6024, %v6023
        %v6045 = vpack.c.bf16 %v6026, %v6025
        %v6046 = vpack.c.bf16 %v6028, %v6027
        %v6047 = vpack.c.bf16 %v6030, %v6029
        %v6048 = vpack.c.bf16 %v6032, %v6031
        %v6049 = vtanh.bf16.pop %v6033
        %v6050 = vtanh.bf16.pop %v6034
        %v6051 = vtanh.bf16.pop %v6035
        %v6052 = vtanh.bf16.pop %v6036
        %v6053 = vtanh.bf16.pop %v6037
        %v6054 = vtanh.bf16.pop %v6038
        %v6055 = vtanh.bf16.pop %v6039
        %v6056 = vtanh.bf16.pop %v6040
        %v6057 = vtanh.bf16.pop %v6041
        %v6058 = vtanh.bf16.pop %v6042
        %v6059 = vtanh.bf16.pop %v6043
        %v6060 = vtanh.bf16.pop %v6044
        %v6061 = vtanh.bf16.pop %v6045
        %v6062 = vtanh.bf16.pop %v6046
        %v6063 = vtanh.bf16.pop %v6047
        %v6064 = vtanh.bf16.pop %v6048
        %v6065 = vmul.bf16 %v6049, %v813
        %v6066 = vmul.bf16 %v6050, %v813
        %v6067 = vmul.bf16 %v6051, %v813
        %v6068 = vmul.bf16 %v6052, %v813
        %v6069 = vmul.bf16 %v6053, %v813
        %v6070 = vmul.bf16 %v6054, %v813
        %v6071 = vmul.bf16 %v6055, %v813
        %v6072 = vmul.bf16 %v6056, %v813
        %v6073 = vmul.bf16 %v6057, %v813
        %v6074 = vmul.bf16 %v6058, %v813
        %v6075 = vmul.bf16 %v6059, %v813
        %v6076 = vmul.bf16 %v6060, %v813
        %v6077 = vmul.bf16 %v6061, %v813
        %v6078 = vmul.bf16 %v6062, %v813
        %v6079 = vmul.bf16 %v6063, %v813
        %v6080 = vmul.bf16 %v6064, %v813
        %v6081 = vunpack.c.l.bf16 %v6065
        %v6082 = vunpack.c.h.bf16 %v6065
        %v6083 = vunpack.c.l.bf16 %v6066
        %v6084 = vunpack.c.h.bf16 %v6066
        %v6085 = vunpack.c.l.bf16 %v6067
        %v6086 = vunpack.c.h.bf16 %v6067
        %v6087 = vunpack.c.l.bf16 %v6068
        %v6088 = vunpack.c.h.bf16 %v6068
        %v6089 = vunpack.c.l.bf16 %v6069
        %v6090 = vunpack.c.h.bf16 %v6069
        %v6091 = vunpack.c.l.bf16 %v6070
        %v6092 = vunpack.c.h.bf16 %v6070
        %v6093 = vunpack.c.l.bf16 %v6071
        %v6094 = vunpack.c.h.bf16 %v6071
        %v6095 = vunpack.c.l.bf16 %v6072
        %v6096 = vunpack.c.h.bf16 %v6072
        %v6097 = vunpack.c.l.bf16 %v6073
        %v6098 = vunpack.c.h.bf16 %v6073
        %v6099 = vunpack.c.l.bf16 %v6074
        %v6100 = vunpack.c.h.bf16 %v6074
        %v6101 = vunpack.c.l.bf16 %v6075
        %v6102 = vunpack.c.h.bf16 %v6075
        %v6103 = vunpack.c.l.bf16 %v6076
        %v6104 = vunpack.c.h.bf16 %v6076
        %v6105 = vunpack.c.l.bf16 %v6077
        %v6106 = vunpack.c.h.bf16 %v6077
        %v6107 = vunpack.c.l.bf16 %v6078
        %v6108 = vunpack.c.h.bf16 %v6078
        %v6109 = vunpack.c.l.bf16 %v6079
        %v6110 = vunpack.c.h.bf16 %v6079
        %v6111 = vunpack.c.l.bf16 %v6080
        %v6112 = vunpack.c.h.bf16 %v6080
        %6113 = vadd.xlane.f32.xlu0 %v6081
        %v6114 = vpop.xlane.xlu0 %6113
        %6115 = vadd.xlane.f32.xlu0 %v6082
        %v6116 = vpop.xlane.xlu0 %6115
        %6117 = vadd.xlane.f32.xlu0 %v6083
        %v6118 = vpop.xlane.xlu0 %6117
        %6119 = vadd.xlane.f32.xlu0 %v6084
        %v6120 = vpop.xlane.xlu0 %6119
        %6121 = vadd.xlane.f32.xlu0 %v6085
        %v6122 = vpop.xlane.xlu0 %6121
        %6123 = vadd.xlane.f32.xlu0 %v6086
        %v6124 = vpop.xlane.xlu0 %6123
        %6125 = vadd.xlane.f32.xlu0 %v6087
        %v6126 = vpop.xlane.xlu0 %6125
        %6127 = vadd.xlane.f32.xlu0 %v6088
        %v6128 = vpop.xlane.xlu0 %6127
        %6129 = vadd.xlane.f32.xlu0 %v6089
        %v6130 = vpop.xlane.xlu0 %6129
        %6131 = vadd.xlane.f32.xlu0 %v6090
        %v6132 = vpop.xlane.xlu0 %6131
        %6133 = vadd.xlane.f32.xlu0 %v6091
        %v6134 = vpop.xlane.xlu0 %6133
        %6135 = vadd.xlane.f32.xlu0 %v6092
        %v6136 = vpop.xlane.xlu0 %6135
        %6137 = vadd.xlane.f32.xlu0 %v6093
        %v6138 = vpop.xlane.xlu0 %6137
        %6139 = vadd.xlane.f32.xlu0 %v6094
        %v6140 = vpop.xlane.xlu0 %6139
        %6141 = vadd.xlane.f32.xlu0 %v6095
        %v6142 = vpop.xlane.xlu0 %6141
        %6143 = vadd.xlane.f32.xlu0 %v6096
        %v6144 = vpop.xlane.xlu0 %6143
        %6145 = vadd.xlane.f32.xlu0 %v6097
        %v6146 = vpop.xlane.xlu0 %6145
        %6147 = vadd.xlane.f32.xlu0 %v6098
        %v6148 = vpop.xlane.xlu0 %6147
        %6149 = vadd.xlane.f32.xlu0 %v6099
        %v6150 = vpop.xlane.xlu0 %6149
        %6151 = vadd.xlane.f32.xlu0 %v6100
        %v6152 = vpop.xlane.xlu0 %6151
        %6153 = vadd.xlane.f32.xlu0 %v6101
        %v6154 = vpop.xlane.xlu0 %6153
        %6155 = vadd.xlane.f32.xlu0 %v6102
        %v6156 = vpop.xlane.xlu0 %6155
        %6157 = vadd.xlane.f32.xlu0 %v6103
        %v6158 = vpop.xlane.xlu0 %6157
        %6159 = vadd.xlane.f32.xlu0 %v6104
        %v6160 = vpop.xlane.xlu0 %6159
        %6161 = vadd.xlane.f32.xlu0 %v6105
        %v6162 = vpop.xlane.xlu0 %6161
        %6163 = vadd.xlane.f32.xlu0 %v6106
        %v6164 = vpop.xlane.xlu0 %6163
        %6165 = vadd.xlane.f32.xlu0 %v6107
        %v6166 = vpop.xlane.xlu0 %6165
        %6167 = vadd.xlane.f32.xlu0 %v6108
        %v6168 = vpop.xlane.xlu0 %6167
        %6169 = vadd.xlane.f32.xlu0 %v6109
        %v6170 = vpop.xlane.xlu0 %6169
        %6171 = vadd.xlane.f32.xlu0 %v6110
        %v6172 = vpop.xlane.xlu0 %6171
        %6173 = vadd.xlane.f32.xlu0 %v6111
        %v6174 = vpop.xlane.xlu0 %6173
        %6175 = vadd.xlane.f32.xlu0 %v6112
        %v6176 = vpop.xlane.xlu0 %6175
        %v6209 = vlaneseq
        %v6210 = vshrl.u32 %v6209, 7
        %v6211 = vsub.s32 %v959, %v6210
        %v6212 = vrot.slane %v6114, %v6211
        %v6213 = vlaneseq
        %v6214 = vshrl.u32 %v6213, 7
        %v6215 = vsub.s32 %v964, %v6214
        %v6216 = vrot.slane %v6116, %v6215
        %v6217 = vsel %vm969, %v6216, %v6212
        %v6218 = vlaneseq
        %v6219 = vshrl.u32 %v6218, 7
        %v6220 = vsub.s32 %v971, %v6219
        %v6221 = vrot.slane %v6118, %v6220
        %v6222 = vsel %vm976, %v6221, %v6217
        %v6223 = vlaneseq
        %v6224 = vshrl.u32 %v6223, 7
        %v6225 = vsub.s32 %v978, %v6224
        %v6226 = vrot.slane %v6120, %v6225
        %v6227 = vsel %vm983, %v6226, %v6222
        %v6228 = vlaneseq
        %v6229 = vshrl.u32 %v6228, 7
        %v6230 = vsub.s32 %v985, %v6229
        %v6231 = vrot.slane %v6122, %v6230
        %v6232 = vsel %vm990, %v6231, %v6227
        %v6233 = vlaneseq
        %v6234 = vshrl.u32 %v6233, 7
        %v6235 = vsub.s32 %v992, %v6234
        %v6236 = vrot.slane %v6124, %v6235
        %v6237 = vsel %vm997, %v6236, %v6232
        %v6238 = vlaneseq
        %v6239 = vshrl.u32 %v6238, 7
        %v6240 = vsub.s32 %v999, %v6239
        %v6241 = vrot.slane %v6126, %v6240
        %v6242 = vsel %vm1004, %v6241, %v6237
        %v6243 = vlaneseq
        %v6244 = vshrl.u32 %v6243, 7
        %v6245 = vsub.s32 %v1006, %v6244
        %v6246 = vrot.slane %v6128, %v6245
        %v6247 = vsel %vm1011, %v6246, %v6242
        %v6248 = vlaneseq
        %v6249 = vshrl.u32 %v6248, 7
        %v6250 = vsub.s32 %v1013, %v6249
        %v6251 = vrot.slane %v6130, %v6250
        %v6252 = vsel %vm1018, %v6251, %v6247
        %v6253 = vlaneseq
        %v6254 = vshrl.u32 %v6253, 7
        %v6255 = vsub.s32 %v1020, %v6254
        %v6256 = vrot.slane %v6132, %v6255
        %v6257 = vsel %vm1025, %v6256, %v6252
        %v6258 = vlaneseq
        %v6259 = vshrl.u32 %v6258, 7
        %v6260 = vsub.s32 %v1027, %v6259
        %v6261 = vrot.slane %v6134, %v6260
        %v6262 = vsel %vm1032, %v6261, %v6257
        %v6263 = vlaneseq
        %v6264 = vshrl.u32 %v6263, 7
        %v6265 = vsub.s32 %v1034, %v6264
        %v6266 = vrot.slane %v6136, %v6265
        %v6267 = vsel %vm1039, %v6266, %v6262
        %v6268 = vlaneseq
        %v6269 = vshrl.u32 %v6268, 7
        %v6270 = vsub.s32 %v1041, %v6269
        %v6271 = vrot.slane %v6138, %v6270
        %v6272 = vsel %vm1046, %v6271, %v6267
        %v6273 = vlaneseq
        %v6274 = vshrl.u32 %v6273, 7
        %v6275 = vsub.s32 %v1048, %v6274
        %v6276 = vrot.slane %v6140, %v6275
        %v6277 = vsel %vm1053, %v6276, %v6272
        %v6278 = vlaneseq
        %v6279 = vshrl.u32 %v6278, 7
        %v6280 = vsub.s32 %v1055, %v6279
        %v6281 = vrot.slane %v6142, %v6280
        %v6282 = vsel %vm1060, %v6281, %v6277
        %v6283 = vlaneseq
        %v6284 = vshrl.u32 %v6283, 7
        %v6285 = vsub.s32 %v1062, %v6284
        %v6286 = vrot.slane %v6144, %v6285
        %v6287 = vsel %vm1067, %v6286, %v6282
        %v6288 = vlaneseq
        %v6289 = vshrl.u32 %v6288, 7
        %v6290 = vsub.s32 %v959, %v6289
        %v6291 = vrot.slane %v6146, %v6290
        %v6292 = vlaneseq
        %v6293 = vshrl.u32 %v6292, 7
        %v6294 = vsub.s32 %v964, %v6293
        %v6295 = vrot.slane %v6148, %v6294
        %v6296 = vsel %vm969, %v6295, %v6291
        %v6297 = vlaneseq
        %v6298 = vshrl.u32 %v6297, 7
        %v6299 = vsub.s32 %v971, %v6298
        %v6300 = vrot.slane %v6150, %v6299
        %v6301 = vsel %vm976, %v6300, %v6296
        %v6302 = vlaneseq
        %v6303 = vshrl.u32 %v6302, 7
        %v6304 = vsub.s32 %v978, %v6303
        %v6305 = vrot.slane %v6152, %v6304
        %v6306 = vsel %vm983, %v6305, %v6301
        %v6307 = vlaneseq
        %v6308 = vshrl.u32 %v6307, 7
        %v6309 = vsub.s32 %v985, %v6308
        %v6310 = vrot.slane %v6154, %v6309
        %v6311 = vsel %vm990, %v6310, %v6306
        %v6312 = vlaneseq
        %v6313 = vshrl.u32 %v6312, 7
        %v6314 = vsub.s32 %v992, %v6313
        %v6315 = vrot.slane %v6156, %v6314
        %v6316 = vsel %vm997, %v6315, %v6311
        %v6317 = vlaneseq
        %v6318 = vshrl.u32 %v6317, 7
        %v6319 = vsub.s32 %v999, %v6318
        %v6320 = vrot.slane %v6158, %v6319
        %v6321 = vsel %vm1004, %v6320, %v6316
        %v6322 = vlaneseq
        %v6323 = vshrl.u32 %v6322, 7
        %v6324 = vsub.s32 %v1006, %v6323
        %v6325 = vrot.slane %v6160, %v6324
        %v6326 = vsel %vm1011, %v6325, %v6321
        %v6327 = vlaneseq
        %v6328 = vshrl.u32 %v6327, 7
        %v6329 = vsub.s32 %v1013, %v6328
        %v6330 = vrot.slane %v6162, %v6329
        %v6331 = vsel %vm1018, %v6330, %v6326
        %v6332 = vlaneseq
        %v6333 = vshrl.u32 %v6332, 7
        %v6334 = vsub.s32 %v1020, %v6333
        %v6335 = vrot.slane %v6164, %v6334
        %v6336 = vsel %vm1025, %v6335, %v6331
        %v6337 = vlaneseq
        %v6338 = vshrl.u32 %v6337, 7
        %v6339 = vsub.s32 %v1027, %v6338
        %v6340 = vrot.slane %v6166, %v6339
        %v6341 = vsel %vm1032, %v6340, %v6336
        %v6342 = vlaneseq
        %v6343 = vshrl.u32 %v6342, 7
        %v6344 = vsub.s32 %v1034, %v6343
        %v6345 = vrot.slane %v6168, %v6344
        %v6346 = vsel %vm1039, %v6345, %v6341
        %v6347 = vlaneseq
        %v6348 = vshrl.u32 %v6347, 7
        %v6349 = vsub.s32 %v1041, %v6348
        %v6350 = vrot.slane %v6170, %v6349
        %v6351 = vsel %vm1046, %v6350, %v6346
        %v6352 = vlaneseq
        %v6353 = vshrl.u32 %v6352, 7
        %v6354 = vsub.s32 %v1048, %v6353
        %v6355 = vrot.slane %v6172, %v6354
        %v6356 = vsel %vm1053, %v6355, %v6351
        %v6357 = vlaneseq
        %v6358 = vshrl.u32 %v6357, 7
        %v6359 = vsub.s32 %v1055, %v6358
        %v6360 = vrot.slane %v6174, %v6359
        %v6361 = vsel %vm1060, %v6360, %v6356
        %v6362 = vlaneseq
        %v6363 = vshrl.u32 %v6362, 7
        %v6364 = vsub.s32 %v1062, %v6363
        %v6365 = vrot.slane %v6176, %v6364
        %v6366 = vsel %vm1067, %v6365, %v6361
        %v6367 = vsel %vm1148, %v6366, %v6287
        %v6369 = vsel %vm1151, %v6367, -inf
        %6370 = vmax.xlane.f32.xlu0 %v6369
        %v6371 = vpop.xlane.xlu0 %6370
        %v6373 = vlaneseq
        %v6374 = vshrl.u32 %v6373, 7
        %v6375 = vsub.s32 0, %v6374
        %v6376 = vrot.slane %v6371, %v6375
        %v6377 = vlaneseq
        %v6378 = vshrl.u32 %v6377, 7
        %v6379 = vsub.s32 1, %v6378
        %v6380 = vrot.slane %v6371, %v6379
        %v6383 = vsub.f32 %v6114, %v6376
        %v6384 = vsub.f32 %v6116, %v6376
        %v6385 = vsub.f32 %v6118, %v6376
        %v6386 = vsub.f32 %v6120, %v6376
        %v6387 = vsub.f32 %v6122, %v6376
        %v6388 = vsub.f32 %v6124, %v6376
        %v6389 = vsub.f32 %v6126, %v6376
        %v6390 = vsub.f32 %v6128, %v6376
        %v6391 = vsub.f32 %v6130, %v6376
        %v6392 = vsub.f32 %v6132, %v6376
        %v6393 = vsub.f32 %v6134, %v6376
        %v6394 = vsub.f32 %v6136, %v6376
        %v6395 = vsub.f32 %v6138, %v6376
        %v6396 = vsub.f32 %v6140, %v6376
        %v6397 = vsub.f32 %v6142, %v6376
        %v6398 = vsub.f32 %v6144, %v6376
        %v6399 = vsub.f32 %v6146, %v6380
        %v6400 = vsub.f32 %v6148, %v6380
        %v6401 = vsub.f32 %v6150, %v6380
        %v6402 = vsub.f32 %v6152, %v6380
        %v6403 = vsub.f32 %v6154, %v6380
        %v6404 = vsub.f32 %v6156, %v6380
        %v6405 = vsub.f32 %v6158, %v6380
        %v6406 = vsub.f32 %v6160, %v6380
        %v6407 = vsub.f32 %v6162, %v6380
        %v6408 = vsub.f32 %v6164, %v6380
        %v6409 = vsub.f32 %v6166, %v6380
        %v6410 = vsub.f32 %v6168, %v6380
        %v6411 = vsub.f32 %v6170, %v6380
        %v6412 = vsub.f32 %v6172, %v6380
        %v6413 = vsub.f32 %v6174, %v6380
        %v6414 = vsub.f32 %v6176, %v6380
        %v6415 = vmul.f32 %v6383, 1.442695
        %v6416 = vpow.pop %v6415
        %v6417 = vmul.f32 %v6384, 1.442695
        %v6418 = vpow.pop %v6417
        %v6419 = vmul.f32 %v6385, 1.442695
        %v6420 = vpow.pop %v6419
        %v6421 = vmul.f32 %v6386, 1.442695
        %v6422 = vpow.pop %v6421
        %v6423 = vmul.f32 %v6387, 1.442695
        %v6424 = vpow.pop %v6423
        %v6425 = vmul.f32 %v6388, 1.442695
        %v6426 = vpow.pop %v6425
        %v6427 = vmul.f32 %v6389, 1.442695
        %v6428 = vpow.pop %v6427
        %v6429 = vmul.f32 %v6390, 1.442695
        %v6430 = vpow.pop %v6429
        %v6431 = vmul.f32 %v6391, 1.442695
        %v6432 = vpow.pop %v6431
        %v6433 = vmul.f32 %v6392, 1.442695
        %v6434 = vpow.pop %v6433
        %v6435 = vmul.f32 %v6393, 1.442695
        %v6436 = vpow.pop %v6435
        %v6437 = vmul.f32 %v6394, 1.442695
        %v6438 = vpow.pop %v6437
        %v6439 = vmul.f32 %v6395, 1.442695
        %v6440 = vpow.pop %v6439
        %v6441 = vmul.f32 %v6396, 1.442695
        %v6442 = vpow.pop %v6441
        %v6443 = vmul.f32 %v6397, 1.442695
        %v6444 = vpow.pop %v6443
        %v6445 = vmul.f32 %v6398, 1.442695
        %v6446 = vpow.pop %v6445
        %v6447 = vmul.f32 %v6399, 1.442695
        %v6448 = vpow.pop %v6447
        %v6449 = vmul.f32 %v6400, 1.442695
        %v6450 = vpow.pop %v6449
        %v6451 = vmul.f32 %v6401, 1.442695
        %v6452 = vpow.pop %v6451
        %v6453 = vmul.f32 %v6402, 1.442695
        %v6454 = vpow.pop %v6453
        %v6455 = vmul.f32 %v6403, 1.442695
        %v6456 = vpow.pop %v6455
        %v6457 = vmul.f32 %v6404, 1.442695
        %v6458 = vpow.pop %v6457
        %v6459 = vmul.f32 %v6405, 1.442695
        %v6460 = vpow.pop %v6459
        %v6461 = vmul.f32 %v6406, 1.442695
        %v6462 = vpow.pop %v6461
        %v6463 = vmul.f32 %v6407, 1.442695
        %v6464 = vpow.pop %v6463
        %v6465 = vmul.f32 %v6408, 1.442695
        %v6466 = vpow.pop %v6465
        %v6467 = vmul.f32 %v6409, 1.442695
        %v6468 = vpow.pop %v6467
        %v6469 = vmul.f32 %v6410, 1.442695
        %v6470 = vpow.pop %v6469
        %v6471 = vmul.f32 %v6411, 1.442695
        %v6472 = vpow.pop %v6471
        %v6473 = vmul.f32 %v6412, 1.442695
        %v6474 = vpow.pop %v6473
        %v6475 = vmul.f32 %v6413, 1.442695
        %v6476 = vpow.pop %v6475
        %v6477 = vmul.f32 %v6414, 1.442695
        %v6478 = vpow.pop %v6477
        %6511 = vset.pattern.permute.xlu0 0
        %6512 = vperm.xlu0 %6511, %v6416
        %v6513 = vpop.permute.xlu0 %6512
        %6514 = vset.pattern.permute.xlu0 0
        %6515 = vperm.xlu0 %6514, %v6418
        %v6516 = vpop.permute.xlu0 %6515
        %6517 = vset.pattern.permute.xlu0 0
        %6518 = vperm.xlu0 %6517, %v6420
        %v6519 = vpop.permute.xlu0 %6518
        %6520 = vset.pattern.permute.xlu0 0
        %6521 = vperm.xlu0 %6520, %v6422
        %v6522 = vpop.permute.xlu0 %6521
        %6523 = vset.pattern.permute.xlu0 0
        %6524 = vperm.xlu0 %6523, %v6424
        %v6525 = vpop.permute.xlu0 %6524
        %6526 = vset.pattern.permute.xlu0 0
        %6527 = vperm.xlu0 %6526, %v6426
        %v6528 = vpop.permute.xlu0 %6527
        %6529 = vset.pattern.permute.xlu0 0
        %6530 = vperm.xlu0 %6529, %v6428
        %v6531 = vpop.permute.xlu0 %6530
        %6532 = vset.pattern.permute.xlu0 0
        %6533 = vperm.xlu0 %6532, %v6430
        %v6534 = vpop.permute.xlu0 %6533
        %6535 = vset.pattern.permute.xlu0 0
        %6536 = vperm.xlu0 %6535, %v6432
        %v6537 = vpop.permute.xlu0 %6536
        %6538 = vset.pattern.permute.xlu0 0
        %6539 = vperm.xlu0 %6538, %v6434
        %v6540 = vpop.permute.xlu0 %6539
        %6541 = vset.pattern.permute.xlu0 0
        %6542 = vperm.xlu0 %6541, %v6436
        %v6543 = vpop.permute.xlu0 %6542
        %6544 = vset.pattern.permute.xlu0 0
        %6545 = vperm.xlu0 %6544, %v6438
        %v6546 = vpop.permute.xlu0 %6545
        %6547 = vset.pattern.permute.xlu0 0
        %6548 = vperm.xlu0 %6547, %v6440
        %v6549 = vpop.permute.xlu0 %6548
        %6550 = vset.pattern.permute.xlu0 0
        %6551 = vperm.xlu0 %6550, %v6442
        %v6552 = vpop.permute.xlu0 %6551
        %6553 = vset.pattern.permute.xlu0 0
        %6554 = vperm.xlu0 %6553, %v6444
        %v6555 = vpop.permute.xlu0 %6554
        %6556 = vset.pattern.permute.xlu0 0
        %6557 = vperm.xlu0 %6556, %v6446
        %v6558 = vpop.permute.xlu0 %6557
        %6559 = vset.pattern.permute.xlu0 0
        %6560 = vperm.xlu0 %6559, %v6448
        %v6561 = vpop.permute.xlu0 %6560
        %6562 = vset.pattern.permute.xlu0 0
        %6563 = vperm.xlu0 %6562, %v6450
        %v6564 = vpop.permute.xlu0 %6563
        %6565 = vset.pattern.permute.xlu0 0
        %6566 = vperm.xlu0 %6565, %v6452
        %v6567 = vpop.permute.xlu0 %6566
        %6568 = vset.pattern.permute.xlu0 0
        %6569 = vperm.xlu0 %6568, %v6454
        %v6570 = vpop.permute.xlu0 %6569
        %6571 = vset.pattern.permute.xlu0 0
        %6572 = vperm.xlu0 %6571, %v6456
        %v6573 = vpop.permute.xlu0 %6572
        %6574 = vset.pattern.permute.xlu0 0
        %6575 = vperm.xlu0 %6574, %v6458
        %v6576 = vpop.permute.xlu0 %6575
        %6577 = vset.pattern.permute.xlu0 0
        %6578 = vperm.xlu0 %6577, %v6460
        %v6579 = vpop.permute.xlu0 %6578
        %6580 = vset.pattern.permute.xlu0 0
        %6581 = vperm.xlu0 %6580, %v6462
        %v6582 = vpop.permute.xlu0 %6581
        %6583 = vset.pattern.permute.xlu0 0
        %6584 = vperm.xlu0 %6583, %v6464
        %v6585 = vpop.permute.xlu0 %6584
        %6586 = vset.pattern.permute.xlu0 0
        %6587 = vperm.xlu0 %6586, %v6466
        %v6588 = vpop.permute.xlu0 %6587
        %6589 = vset.pattern.permute.xlu0 0
        %6590 = vperm.xlu0 %6589, %v6468
        %v6591 = vpop.permute.xlu0 %6590
        %6592 = vset.pattern.permute.xlu0 0
        %6593 = vperm.xlu0 %6592, %v6470
        %v6594 = vpop.permute.xlu0 %6593
        %6595 = vset.pattern.permute.xlu0 0
        %6596 = vperm.xlu0 %6595, %v6472
        %v6597 = vpop.permute.xlu0 %6596
        %6598 = vset.pattern.permute.xlu0 0
        %6599 = vperm.xlu0 %6598, %v6474
        %v6600 = vpop.permute.xlu0 %6599
        %6601 = vset.pattern.permute.xlu0 0
        %6602 = vperm.xlu0 %6601, %v6476
        %v6603 = vpop.permute.xlu0 %6602
        %6604 = vset.pattern.permute.xlu0 0
        %6605 = vperm.xlu0 %6604, %v6478
        %v6606 = vpop.permute.xlu0 %6605
        %v6607 = vlaneseq
        %v6608 = vshrl.u32 %v6607, 7
        %v6609 = vsub.s32 %v959, %v6608
        %v6610 = vrot.slane %v6513, %v6609
        %v6611 = vlaneseq
        %v6612 = vshrl.u32 %v6611, 7
        %v6613 = vsub.s32 %v964, %v6612
        %v6614 = vrot.slane %v6516, %v6613
        %v6615 = vsel %vm969, %v6614, %v6610
        %v6616 = vlaneseq
        %v6617 = vshrl.u32 %v6616, 7
        %v6618 = vsub.s32 %v971, %v6617
        %v6619 = vrot.slane %v6519, %v6618
        %v6620 = vsel %vm976, %v6619, %v6615
        %v6621 = vlaneseq
        %v6622 = vshrl.u32 %v6621, 7
        %v6623 = vsub.s32 %v978, %v6622
        %v6624 = vrot.slane %v6522, %v6623
        %v6625 = vsel %vm983, %v6624, %v6620
        %v6626 = vlaneseq
        %v6627 = vshrl.u32 %v6626, 7
        %v6628 = vsub.s32 %v985, %v6627
        %v6629 = vrot.slane %v6525, %v6628
        %v6630 = vsel %vm990, %v6629, %v6625
        %v6631 = vlaneseq
        %v6632 = vshrl.u32 %v6631, 7
        %v6633 = vsub.s32 %v992, %v6632
        %v6634 = vrot.slane %v6528, %v6633
        %v6635 = vsel %vm997, %v6634, %v6630
        %v6636 = vlaneseq
        %v6637 = vshrl.u32 %v6636, 7
        %v6638 = vsub.s32 %v999, %v6637
        %v6639 = vrot.slane %v6531, %v6638
        %v6640 = vsel %vm1004, %v6639, %v6635
        %v6641 = vlaneseq
        %v6642 = vshrl.u32 %v6641, 7
        %v6643 = vsub.s32 %v1006, %v6642
        %v6644 = vrot.slane %v6534, %v6643
        %v6645 = vsel %vm1011, %v6644, %v6640
        %v6646 = vlaneseq
        %v6647 = vshrl.u32 %v6646, 7
        %v6648 = vsub.s32 %v1013, %v6647
        %v6649 = vrot.slane %v6537, %v6648
        %v6650 = vsel %vm1018, %v6649, %v6645
        %v6651 = vlaneseq
        %v6652 = vshrl.u32 %v6651, 7
        %v6653 = vsub.s32 %v1020, %v6652
        %v6654 = vrot.slane %v6540, %v6653
        %v6655 = vsel %vm1025, %v6654, %v6650
        %v6656 = vlaneseq
        %v6657 = vshrl.u32 %v6656, 7
        %v6658 = vsub.s32 %v1027, %v6657
        %v6659 = vrot.slane %v6543, %v6658
        %v6660 = vsel %vm1032, %v6659, %v6655
        %v6661 = vlaneseq
        %v6662 = vshrl.u32 %v6661, 7
        %v6663 = vsub.s32 %v1034, %v6662
        %v6664 = vrot.slane %v6546, %v6663
        %v6665 = vsel %vm1039, %v6664, %v6660
        %v6666 = vlaneseq
        %v6667 = vshrl.u32 %v6666, 7
        %v6668 = vsub.s32 %v1041, %v6667
        %v6669 = vrot.slane %v6549, %v6668
        %v6670 = vsel %vm1046, %v6669, %v6665
        %v6671 = vlaneseq
        %v6672 = vshrl.u32 %v6671, 7
        %v6673 = vsub.s32 %v1048, %v6672
        %v6674 = vrot.slane %v6552, %v6673
        %v6675 = vsel %vm1053, %v6674, %v6670
        %v6676 = vlaneseq
        %v6677 = vshrl.u32 %v6676, 7
        %v6678 = vsub.s32 %v1055, %v6677
        %v6679 = vrot.slane %v6555, %v6678
        %v6680 = vsel %vm1060, %v6679, %v6675
        %v6681 = vlaneseq
        %v6682 = vshrl.u32 %v6681, 7
        %v6683 = vsub.s32 %v1062, %v6682
        %v6684 = vrot.slane %v6558, %v6683
        %v6685 = vsel %vm1067, %v6684, %v6680
        %v6686 = vlaneseq
        %v6687 = vshrl.u32 %v6686, 7
        %v6688 = vsub.s32 %v959, %v6687
        %v6689 = vrot.slane %v6561, %v6688
        %v6690 = vlaneseq
        %v6691 = vshrl.u32 %v6690, 7
        %v6692 = vsub.s32 %v964, %v6691
        %v6693 = vrot.slane %v6564, %v6692
        %v6694 = vsel %vm969, %v6693, %v6689
        %v6695 = vlaneseq
        %v6696 = vshrl.u32 %v6695, 7
        %v6697 = vsub.s32 %v971, %v6696
        %v6698 = vrot.slane %v6567, %v6697
        %v6699 = vsel %vm976, %v6698, %v6694
        %v6700 = vlaneseq
        %v6701 = vshrl.u32 %v6700, 7
        %v6702 = vsub.s32 %v978, %v6701
        %v6703 = vrot.slane %v6570, %v6702
        %v6704 = vsel %vm983, %v6703, %v6699
        %v6705 = vlaneseq
        %v6706 = vshrl.u32 %v6705, 7
        %v6707 = vsub.s32 %v985, %v6706
        %v6708 = vrot.slane %v6573, %v6707
        %v6709 = vsel %vm990, %v6708, %v6704
        %v6710 = vlaneseq
        %v6711 = vshrl.u32 %v6710, 7
        %v6712 = vsub.s32 %v992, %v6711
        %v6713 = vrot.slane %v6576, %v6712
        %v6714 = vsel %vm997, %v6713, %v6709
        %v6715 = vlaneseq
        %v6716 = vshrl.u32 %v6715, 7
        %v6717 = vsub.s32 %v999, %v6716
        %v6718 = vrot.slane %v6579, %v6717
        %v6719 = vsel %vm1004, %v6718, %v6714
        %v6720 = vlaneseq
        %v6721 = vshrl.u32 %v6720, 7
        %v6722 = vsub.s32 %v1006, %v6721
        %v6723 = vrot.slane %v6582, %v6722
        %v6724 = vsel %vm1011, %v6723, %v6719
        %v6725 = vlaneseq
        %v6726 = vshrl.u32 %v6725, 7
        %v6727 = vsub.s32 %v1013, %v6726
        %v6728 = vrot.slane %v6585, %v6727
        %v6729 = vsel %vm1018, %v6728, %v6724
        %v6730 = vlaneseq
        %v6731 = vshrl.u32 %v6730, 7
        %v6732 = vsub.s32 %v1020, %v6731
        %v6733 = vrot.slane %v6588, %v6732
        %v6734 = vsel %vm1025, %v6733, %v6729
        %v6735 = vlaneseq
        %v6736 = vshrl.u32 %v6735, 7
        %v6737 = vsub.s32 %v1027, %v6736
        %v6738 = vrot.slane %v6591, %v6737
        %v6739 = vsel %vm1032, %v6738, %v6734
        %v6740 = vlaneseq
        %v6741 = vshrl.u32 %v6740, 7
        %v6742 = vsub.s32 %v1034, %v6741
        %v6743 = vrot.slane %v6594, %v6742
        %v6744 = vsel %vm1039, %v6743, %v6739
        %v6745 = vlaneseq
        %v6746 = vshrl.u32 %v6745, 7
        %v6747 = vsub.s32 %v1041, %v6746
        %v6748 = vrot.slane %v6597, %v6747
        %v6749 = vsel %vm1046, %v6748, %v6744
        %v6750 = vlaneseq
        %v6751 = vshrl.u32 %v6750, 7
        %v6752 = vsub.s32 %v1048, %v6751
        %v6753 = vrot.slane %v6600, %v6752
        %v6754 = vsel %vm1053, %v6753, %v6749
        %v6755 = vlaneseq
        %v6756 = vshrl.u32 %v6755, 7
        %v6757 = vsub.s32 %v1055, %v6756
        %v6758 = vrot.slane %v6603, %v6757
        %v6759 = vsel %vm1060, %v6758, %v6754
        %v6760 = vlaneseq
        %v6761 = vshrl.u32 %v6760, 7
        %v6762 = vsub.s32 %v1062, %v6761
        %v6763 = vrot.slane %v6606, %v6762
        %v6764 = vsel %vm1067, %v6763, %v6759
        %v6765 = vsel %vm1148, %v6764, %v6685
        %v6767 = vsel %vm1151, %v6765, 0.0
        %6768 = vadd.xlane.f32.xlu0 %v6767
        %v6769 = vpop.xlane.xlu0 %6768
        %v6770 = vrcp.pop %v6769
        %v6772 = vlaneseq
        %v6773 = vshrl.u32 %v6772, 7
        %v6774 = vsub.s32 0, %v6773
        %v6775 = vrot.slane %v6770, %v6774
        %v6776 = vlaneseq
        %v6777 = vshrl.u32 %v6776, 7
        %v6778 = vsub.s32 1, %v6777
        %v6779 = vrot.slane %v6770, %v6778
        %v6782 = vmul.f32 %v6416, %v6775
        %v6783 = vmul.f32 %v6418, %v6775
        %v6784 = vmul.f32 %v6420, %v6775
        %v6785 = vmul.f32 %v6422, %v6775
        %v6786 = vmul.f32 %v6424, %v6775
        %v6787 = vmul.f32 %v6426, %v6775
        %v6788 = vmul.f32 %v6428, %v6775
        %v6789 = vmul.f32 %v6430, %v6775
        %v6790 = vmul.f32 %v6432, %v6775
        %v6791 = vmul.f32 %v6434, %v6775
        %v6792 = vmul.f32 %v6436, %v6775
        %v6793 = vmul.f32 %v6438, %v6775
        %v6794 = vmul.f32 %v6440, %v6775
        %v6795 = vmul.f32 %v6442, %v6775
        %v6796 = vmul.f32 %v6444, %v6775
        %v6797 = vmul.f32 %v6446, %v6775
        %v6798 = vmul.f32 %v6448, %v6779
        %v6799 = vmul.f32 %v6450, %v6779
        %v6800 = vmul.f32 %v6452, %v6779
        %v6801 = vmul.f32 %v6454, %v6779
        %v6802 = vmul.f32 %v6456, %v6779
        %v6803 = vmul.f32 %v6458, %v6779
        %v6804 = vmul.f32 %v6460, %v6779
        %v6805 = vmul.f32 %v6462, %v6779
        %v6806 = vmul.f32 %v6464, %v6779
        %v6807 = vmul.f32 %v6466, %v6779
        %v6808 = vmul.f32 %v6468, %v6779
        %v6809 = vmul.f32 %v6470, %v6779
        %v6810 = vmul.f32 %v6472, %v6779
        %v6811 = vmul.f32 %v6474, %v6779
        %v6812 = vmul.f32 %v6476, %v6779
        %v6813 = vmul.f32 %v6478, %v6779
        %v6814 = vpack.c.bf16 %v6783, %v6782
        %v6815 = vpack.c.bf16 %v6785, %v6784
        %v6816 = vpack.c.bf16 %v6787, %v6786
        %v6817 = vpack.c.bf16 %v6789, %v6788
        %v6818 = vpack.c.bf16 %v6791, %v6790
        %v6819 = vpack.c.bf16 %v6793, %v6792
        %v6820 = vpack.c.bf16 %v6795, %v6794
        %v6821 = vpack.c.bf16 %v6797, %v6796
        %v6822 = vpack.c.bf16 %v6799, %v6798
        %v6823 = vpack.c.bf16 %v6801, %v6800
        %v6824 = vpack.c.bf16 %v6803, %v6802
        %v6825 = vpack.c.bf16 %v6805, %v6804
        %v6826 = vpack.c.bf16 %v6807, %v6806
        %v6827 = vpack.c.bf16 %v6809, %v6808
        %v6828 = vpack.c.bf16 %v6811, %v6810
        %v6829 = vpack.c.bf16 %v6813, %v6812
        %v6838 = vunpack.c.l.b16 %v6814
        %v6839 = vunpack.c.h.b16 %v6814
        %v6840 = vunpack.c.l.b16 %v6815
        %v6841 = vunpack.c.h.b16 %v6815
        %v6842 = vunpack.c.l.b16 %v6816
        %v6843 = vunpack.c.h.b16 %v6816
        %v6844 = vunpack.c.l.b16 %v6817
        %v6845 = vunpack.c.h.b16 %v6817
        %v6846 = vunpack.c.l.b16 %v6818
        %v6847 = vunpack.c.h.b16 %v6818
        %v6848 = vunpack.c.l.b16 %v6819
        %v6849 = vunpack.c.h.b16 %v6819
        %v6850 = vunpack.c.l.b16 %v6820
        %v6851 = vunpack.c.h.b16 %v6820
        %v6852 = vunpack.c.l.b16 %v6821
        %v6853 = vunpack.c.h.b16 %v6821
        %6854 = vset.pattern.permute.xlu0 0
        %6855 = vperm.xlu0 %6854, %v6838
        %v6856 = vpop.permute.xlu0 %6855
        %6857 = vset.pattern.permute.xlu0 0
        %6858 = vperm.xlu0 %6857, %v6839
        %v6859 = vpop.permute.xlu0 %6858
        %6860 = vset.pattern.permute.xlu0 0
        %6861 = vperm.xlu0 %6860, %v6840
        %v6862 = vpop.permute.xlu0 %6861
        %6863 = vset.pattern.permute.xlu0 0
        %6864 = vperm.xlu0 %6863, %v6841
        %v6865 = vpop.permute.xlu0 %6864
        %6866 = vset.pattern.permute.xlu0 0
        %6867 = vperm.xlu0 %6866, %v6842
        %v6868 = vpop.permute.xlu0 %6867
        %6869 = vset.pattern.permute.xlu0 0
        %6870 = vperm.xlu0 %6869, %v6843
        %v6871 = vpop.permute.xlu0 %6870
        %6872 = vset.pattern.permute.xlu0 0
        %6873 = vperm.xlu0 %6872, %v6844
        %v6874 = vpop.permute.xlu0 %6873
        %6875 = vset.pattern.permute.xlu0 0
        %6876 = vperm.xlu0 %6875, %v6845
        %v6877 = vpop.permute.xlu0 %6876
        %6878 = vset.pattern.permute.xlu0 0
        %6879 = vperm.xlu0 %6878, %v6846
        %v6880 = vpop.permute.xlu0 %6879
        %6881 = vset.pattern.permute.xlu0 0
        %6882 = vperm.xlu0 %6881, %v6847
        %v6883 = vpop.permute.xlu0 %6882
        %6884 = vset.pattern.permute.xlu0 0
        %6885 = vperm.xlu0 %6884, %v6848
        %v6886 = vpop.permute.xlu0 %6885
        %6887 = vset.pattern.permute.xlu0 0
        %6888 = vperm.xlu0 %6887, %v6849
        %v6889 = vpop.permute.xlu0 %6888
        %6890 = vset.pattern.permute.xlu0 0
        %6891 = vperm.xlu0 %6890, %v6850
        %v6892 = vpop.permute.xlu0 %6891
        %6893 = vset.pattern.permute.xlu0 0
        %6894 = vperm.xlu0 %6893, %v6851
        %v6895 = vpop.permute.xlu0 %6894
        %6896 = vset.pattern.permute.xlu0 0
        %6897 = vperm.xlu0 %6896, %v6852
        %v6898 = vpop.permute.xlu0 %6897
        %6899 = vset.pattern.permute.xlu0 0
        %6900 = vperm.xlu0 %6899, %v6853
        %v6901 = vpop.permute.xlu0 %6900
        %v6902 = vlaneseq
        %v6903 = vshrl.u32 %v6902, 7
        %v6904 = vsub.s32 %v959, %v6903
        %v6905 = vrot.slane %v6856, %v6904
        %v6906 = vlaneseq
        %v6907 = vshrl.u32 %v6906, 7
        %v6908 = vsub.s32 %v964, %v6907
        %v6909 = vrot.slane %v6859, %v6908
        %v6910 = vsel %vm969, %v6909, %v6905
        %v6911 = vlaneseq
        %v6912 = vshrl.u32 %v6911, 7
        %v6913 = vsub.s32 %v971, %v6912
        %v6914 = vrot.slane %v6862, %v6913
        %v6915 = vsel %vm976, %v6914, %v6910
        %v6916 = vlaneseq
        %v6917 = vshrl.u32 %v6916, 7
        %v6918 = vsub.s32 %v978, %v6917
        %v6919 = vrot.slane %v6865, %v6918
        %v6920 = vsel %vm983, %v6919, %v6915
        %v6921 = vlaneseq
        %v6922 = vshrl.u32 %v6921, 7
        %v6923 = vsub.s32 %v985, %v6922
        %v6924 = vrot.slane %v6868, %v6923
        %v6925 = vsel %vm990, %v6924, %v6920
        %v6926 = vlaneseq
        %v6927 = vshrl.u32 %v6926, 7
        %v6928 = vsub.s32 %v992, %v6927
        %v6929 = vrot.slane %v6871, %v6928
        %v6930 = vsel %vm997, %v6929, %v6925
        %v6931 = vlaneseq
        %v6932 = vshrl.u32 %v6931, 7
        %v6933 = vsub.s32 %v999, %v6932
        %v6934 = vrot.slane %v6874, %v6933
        %v6935 = vsel %vm1004, %v6934, %v6930
        %v6936 = vlaneseq
        %v6937 = vshrl.u32 %v6936, 7
        %v6938 = vsub.s32 %v1006, %v6937
        %v6939 = vrot.slane %v6877, %v6938
        %v6940 = vsel %vm1011, %v6939, %v6935
        %v6941 = vlaneseq
        %v6942 = vshrl.u32 %v6941, 7
        %v6943 = vsub.s32 %v1013, %v6942
        %v6944 = vrot.slane %v6880, %v6943
        %v6945 = vsel %vm1018, %v6944, %v6940
        %v6946 = vlaneseq
        %v6947 = vshrl.u32 %v6946, 7
        %v6948 = vsub.s32 %v1020, %v6947
        %v6949 = vrot.slane %v6883, %v6948
        %v6950 = vsel %vm1025, %v6949, %v6945
        %v6951 = vlaneseq
        %v6952 = vshrl.u32 %v6951, 7
        %v6953 = vsub.s32 %v1027, %v6952
        %v6954 = vrot.slane %v6886, %v6953
        %v6955 = vsel %vm1032, %v6954, %v6950
        %v6956 = vlaneseq
        %v6957 = vshrl.u32 %v6956, 7
        %v6958 = vsub.s32 %v1034, %v6957
        %v6959 = vrot.slane %v6889, %v6958
        %v6960 = vsel %vm1039, %v6959, %v6955
        %v6961 = vlaneseq
        %v6962 = vshrl.u32 %v6961, 7
        %v6963 = vsub.s32 %v1041, %v6962
        %v6964 = vrot.slane %v6892, %v6963
        %v6965 = vsel %vm1046, %v6964, %v6960
        %v6966 = vlaneseq
        %v6967 = vshrl.u32 %v6966, 7
        %v6968 = vsub.s32 %v1048, %v6967
        %v6969 = vrot.slane %v6895, %v6968
        %v6970 = vsel %vm1053, %v6969, %v6965
        %v6971 = vlaneseq
        %v6972 = vshrl.u32 %v6971, 7
        %v6973 = vsub.s32 %v1055, %v6972
        %v6974 = vrot.slane %v6898, %v6973
        %v6975 = vsel %vm1060, %v6974, %v6970
        %v6976 = vlaneseq
        %v6977 = vshrl.u32 %v6976, 7
        %v6978 = vsub.s32 %v1062, %v6977
        %v6979 = vrot.slane %v6901, %v6978
        %v6980 = vsel %vm1067, %v6979, %v6975
        %v6981 = vpack.c.b16 %v6980, %v6980
        %6983 = vmatprep.subr.bf16.mxu0 0
        %6984 = vmatpush1.bf16.msra.mxu0 %v5812
        %6985 = vmatprep.subr.bf16.mxu0 0
        %6986 = vmatpush1.bf16.msra.mxu0 %v5813
        %6987 = vmatprep.subr.bf16.mxu0 0
        %6988 = vmatpush1.bf16.msra.mxu0 %v5814
        %6989 = vmatprep.subr.bf16.mxu0 0
        %6990 = vmatpush1.bf16.msra.mxu0 %v5815
        %6991 = vmatprep.subr.bf16.mxu0 0
        %6992 = vmatpush1.bf16.msra.mxu0 %v5816
        %6993 = vmatprep.subr.bf16.mxu0 0
        %6994 = vmatpush1.bf16.msra.mxu0 %v5817
        %6995 = vmatprep.subr.bf16.mxu0 0
        %6996 = vmatpush1.bf16.msra.mxu0 %v5818
        %6997 = vmatprep.subr.bf16.mxu0 0
        %6998 = vmatpush1.bf16.msra.mxu0 %v5819
        %6999 = vmatprep.subr.bf16.mxu0 0
        %7000 = vmatpush1.bf16.msra.mxu0 0
        %7001 = vmatprep.subr.bf16.mxu0 0
        %7002 = vmatpush1.bf16.msra.mxu0 0
        %7003 = vmatprep.subr.bf16.mxu0 0
        %7004 = vmatpush1.bf16.msra.mxu0 0
        %7005 = vmatprep.subr.bf16.mxu0 0
        %7006 = vmatpush1.bf16.msra.mxu0 0
        %7007 = vmatprep.subr.bf16.mxu0 0
        %7008 = vmatpush1.bf16.msra.mxu0 0
        %7009 = vmatprep.subr.bf16.mxu0 0
        %7010 = vmatpush1.bf16.msra.mxu0 0
        %7011 = vmatprep.subr.bf16.mxu0 0
        %7012 = vmatpush1.bf16.msra.mxu0 0
        %7013 = vmatprep.subr.bf16.mxu0 0
        %7014 = vmatpush1.bf16.msra.mxu0 0
        %7015 = vmatprep.mubr.bf16.mxu0 0
        %7016 = vmatmul.mubr.bf16.gmra.mrb[0].mxu0 %v6981
        %v7017 = vpop.f32.mrb[0].mxu0
        %v7018 = vadd.f32 0.0, %v7017
        %v7019 = vpop.f32.mrb[0].mxu0
        %v7020 = vpop.f32.mrb[0].mxu0
        %v7021 = vpop.f32.mrb[0].mxu0
        %7022 = vdwg.mxu0
        %v7031 = vunpack.c.l.b16 %v6822
        %v7032 = vunpack.c.h.b16 %v6822
        %v7033 = vunpack.c.l.b16 %v6823
        %v7034 = vunpack.c.h.b16 %v6823
        %v7035 = vunpack.c.l.b16 %v6824
        %v7036 = vunpack.c.h.b16 %v6824
        %v7037 = vunpack.c.l.b16 %v6825
        %v7038 = vunpack.c.h.b16 %v6825
        %v7039 = vunpack.c.l.b16 %v6826
        %v7040 = vunpack.c.h.b16 %v6826
        %v7041 = vunpack.c.l.b16 %v6827
        %v7042 = vunpack.c.h.b16 %v6827
        %v7043 = vunpack.c.l.b16 %v6828
        %v7044 = vunpack.c.h.b16 %v6828
        %v7045 = vunpack.c.l.b16 %v6829
        %v7046 = vunpack.c.h.b16 %v6829
        %7047 = vset.pattern.permute.xlu0 0
        %7048 = vperm.xlu0 %7047, %v7031
        %v7049 = vpop.permute.xlu0 %7048
        %7050 = vset.pattern.permute.xlu0 0
        %7051 = vperm.xlu0 %7050, %v7032
        %v7052 = vpop.permute.xlu0 %7051
        %7053 = vset.pattern.permute.xlu0 0
        %7054 = vperm.xlu0 %7053, %v7033
        %v7055 = vpop.permute.xlu0 %7054
        %7056 = vset.pattern.permute.xlu0 0
        %7057 = vperm.xlu0 %7056, %v7034
        %v7058 = vpop.permute.xlu0 %7057
        %7059 = vset.pattern.permute.xlu0 0
        %7060 = vperm.xlu0 %7059, %v7035
        %v7061 = vpop.permute.xlu0 %7060
        %7062 = vset.pattern.permute.xlu0 0
        %7063 = vperm.xlu0 %7062, %v7036
        %v7064 = vpop.permute.xlu0 %7063
        %7065 = vset.pattern.permute.xlu0 0
        %7066 = vperm.xlu0 %7065, %v7037
        %v7067 = vpop.permute.xlu0 %7066
        %7068 = vset.pattern.permute.xlu0 0
        %7069 = vperm.xlu0 %7068, %v7038
        %v7070 = vpop.permute.xlu0 %7069
        %7071 = vset.pattern.permute.xlu0 0
        %7072 = vperm.xlu0 %7071, %v7039
        %v7073 = vpop.permute.xlu0 %7072
        %7074 = vset.pattern.permute.xlu0 0
        %7075 = vperm.xlu0 %7074, %v7040
        %v7076 = vpop.permute.xlu0 %7075
        %7077 = vset.pattern.permute.xlu0 0
        %7078 = vperm.xlu0 %7077, %v7041
        %v7079 = vpop.permute.xlu0 %7078
        %7080 = vset.pattern.permute.xlu0 0
        %7081 = vperm.xlu0 %7080, %v7042
        %v7082 = vpop.permute.xlu0 %7081
        %7083 = vset.pattern.permute.xlu0 0
        %7084 = vperm.xlu0 %7083, %v7043
        %v7085 = vpop.permute.xlu0 %7084
        %7086 = vset.pattern.permute.xlu0 0
        %7087 = vperm.xlu0 %7086, %v7044
        %v7088 = vpop.permute.xlu0 %7087
        %7089 = vset.pattern.permute.xlu0 0
        %7090 = vperm.xlu0 %7089, %v7045
        %v7091 = vpop.permute.xlu0 %7090
        %7092 = vset.pattern.permute.xlu0 0
        %7093 = vperm.xlu0 %7092, %v7046
        %v7094 = vpop.permute.xlu0 %7093
        %v7095 = vlaneseq
        %v7096 = vshrl.u32 %v7095, 7
        %v7097 = vsub.s32 %v959, %v7096
        %v7098 = vrot.slane %v7049, %v7097
        %v7099 = vlaneseq
        %v7100 = vshrl.u32 %v7099, 7
        %v7101 = vsub.s32 %v964, %v7100
        %v7102 = vrot.slane %v7052, %v7101
        %v7103 = vsel %vm969, %v7102, %v7098
        %v7104 = vlaneseq
        %v7105 = vshrl.u32 %v7104, 7
        %v7106 = vsub.s32 %v971, %v7105
        %v7107 = vrot.slane %v7055, %v7106
        %v7108 = vsel %vm976, %v7107, %v7103
        %v7109 = vlaneseq
        %v7110 = vshrl.u32 %v7109, 7
        %v7111 = vsub.s32 %v978, %v7110
        %v7112 = vrot.slane %v7058, %v7111
        %v7113 = vsel %vm983, %v7112, %v7108
        %v7114 = vlaneseq
        %v7115 = vshrl.u32 %v7114, 7
        %v7116 = vsub.s32 %v985, %v7115
        %v7117 = vrot.slane %v7061, %v7116
        %v7118 = vsel %vm990, %v7117, %v7113
        %v7119 = vlaneseq
        %v7120 = vshrl.u32 %v7119, 7
        %v7121 = vsub.s32 %v992, %v7120
        %v7122 = vrot.slane %v7064, %v7121
        %v7123 = vsel %vm997, %v7122, %v7118
        %v7124 = vlaneseq
        %v7125 = vshrl.u32 %v7124, 7
        %v7126 = vsub.s32 %v999, %v7125
        %v7127 = vrot.slane %v7067, %v7126
        %v7128 = vsel %vm1004, %v7127, %v7123
        %v7129 = vlaneseq
        %v7130 = vshrl.u32 %v7129, 7
        %v7131 = vsub.s32 %v1006, %v7130
        %v7132 = vrot.slane %v7070, %v7131
        %v7133 = vsel %vm1011, %v7132, %v7128
        %v7134 = vlaneseq
        %v7135 = vshrl.u32 %v7134, 7
        %v7136 = vsub.s32 %v1013, %v7135
        %v7137 = vrot.slane %v7073, %v7136
        %v7138 = vsel %vm1018, %v7137, %v7133
        %v7139 = vlaneseq
        %v7140 = vshrl.u32 %v7139, 7
        %v7141 = vsub.s32 %v1020, %v7140
        %v7142 = vrot.slane %v7076, %v7141
        %v7143 = vsel %vm1025, %v7142, %v7138
        %v7144 = vlaneseq
        %v7145 = vshrl.u32 %v7144, 7
        %v7146 = vsub.s32 %v1027, %v7145
        %v7147 = vrot.slane %v7079, %v7146
        %v7148 = vsel %vm1032, %v7147, %v7143
        %v7149 = vlaneseq
        %v7150 = vshrl.u32 %v7149, 7
        %v7151 = vsub.s32 %v1034, %v7150
        %v7152 = vrot.slane %v7082, %v7151
        %v7153 = vsel %vm1039, %v7152, %v7148
        %v7154 = vlaneseq
        %v7155 = vshrl.u32 %v7154, 7
        %v7156 = vsub.s32 %v1041, %v7155
        %v7157 = vrot.slane %v7085, %v7156
        %v7158 = vsel %vm1046, %v7157, %v7153
        %v7159 = vlaneseq
        %v7160 = vshrl.u32 %v7159, 7
        %v7161 = vsub.s32 %v1048, %v7160
        %v7162 = vrot.slane %v7088, %v7161
        %v7163 = vsel %vm1053, %v7162, %v7158
        %v7164 = vlaneseq
        %v7165 = vshrl.u32 %v7164, 7
        %v7166 = vsub.s32 %v1055, %v7165
        %v7167 = vrot.slane %v7091, %v7166
        %v7168 = vsel %vm1060, %v7167, %v7163
        %v7169 = vlaneseq
        %v7170 = vshrl.u32 %v7169, 7
        %v7171 = vsub.s32 %v1062, %v7170
        %v7172 = vrot.slane %v7094, %v7171
        %v7173 = vsel %vm1067, %v7172, %v7168
        %v7174 = vpack.c.b16 %v7173, %v7173
        %7176 = vmatprep.subr.bf16.mxu0 0
        %7177 = vmatpush1.bf16.msra.mxu0 %v5820
        %7178 = vmatprep.subr.bf16.mxu0 0
        %7179 = vmatpush1.bf16.msra.mxu0 %v5821
        %7180 = vmatprep.subr.bf16.mxu0 0
        %7181 = vmatpush1.bf16.msra.mxu0 %v5822
        %7182 = vmatprep.subr.bf16.mxu0 0
        %7183 = vmatpush1.bf16.msra.mxu0 %v5823
        %7184 = vmatprep.subr.bf16.mxu0 0
        %7185 = vmatpush1.bf16.msra.mxu0 %v5824
        %7186 = vmatprep.subr.bf16.mxu0 0
        %7187 = vmatpush1.bf16.msra.mxu0 %v5825
        %7188 = vmatprep.subr.bf16.mxu0 0
        %7189 = vmatpush1.bf16.msra.mxu0 %v5826
        %7190 = vmatprep.subr.bf16.mxu0 0
        %7191 = vmatpush1.bf16.msra.mxu0 %v5827
        %7192 = vmatprep.subr.bf16.mxu0 0
        %7193 = vmatpush1.bf16.msra.mxu0 0
        %7194 = vmatprep.subr.bf16.mxu0 0
        %7195 = vmatpush1.bf16.msra.mxu0 0
        %7196 = vmatprep.subr.bf16.mxu0 0
        %7197 = vmatpush1.bf16.msra.mxu0 0
        %7198 = vmatprep.subr.bf16.mxu0 0
        %7199 = vmatpush1.bf16.msra.mxu0 0
        %7200 = vmatprep.subr.bf16.mxu0 0
        %7201 = vmatpush1.bf16.msra.mxu0 0
        %7202 = vmatprep.subr.bf16.mxu0 0
        %7203 = vmatpush1.bf16.msra.mxu0 0
        %7204 = vmatprep.subr.bf16.mxu0 0
        %7205 = vmatpush1.bf16.msra.mxu0 0
        %7206 = vmatprep.subr.bf16.mxu0 0
        %7207 = vmatpush1.bf16.msra.mxu0 0
        %7208 = vmatprep.mubr.bf16.mxu0 0
        %7209 = vmatmul.mubr.bf16.gmra.mrb[0].mxu0 %v7174
        %v7210 = vpop.f32.mrb[0].mxu0
        %v7211 = vadd.f32 0.0, %v7210
        %v7212 = vpop.f32.mrb[0].mxu0
        %v7213 = vpop.f32.mrb[0].mxu0
        %v7214 = vpop.f32.mrb[0].mxu0
        %7215 = vdwg.mxu0
        %v7218 = vrot.slane %v7211, 7
        %v7219 = vsel %vm1148, %v7218, %v7018
        %7221 = vst [vmem:[%s392 + $0x6] sm:$0x3] %v7219
        %7254 = vset.pattern.permute.xlu0 0
        %7255 = vperm.xlu0 %7254, %v6782
        %v7256 = vpop.permute.xlu0 %7255
        %7257 = vset.pattern.permute.xlu0 0
        %7258 = vperm.xlu0 %7257, %v6783
        %v7259 = vpop.permute.xlu0 %7258
        %7260 = vset.pattern.permute.xlu0 0
        %7261 = vperm.xlu0 %7260, %v6784
        %v7262 = vpop.permute.xlu0 %7261
        %7263 = vset.pattern.permute.xlu0 0
        %7264 = vperm.xlu0 %7263, %v6785
        %v7265 = vpop.permute.xlu0 %7264
        %7266 = vset.pattern.permute.xlu0 0
        %7267 = vperm.xlu0 %7266, %v6786
        %v7268 = vpop.permute.xlu0 %7267
        %7269 = vset.pattern.permute.xlu0 0
        %7270 = vperm.xlu0 %7269, %v6787
        %v7271 = vpop.permute.xlu0 %7270
        %7272 = vset.pattern.permute.xlu0 0
        %7273 = vperm.xlu0 %7272, %v6788
        %v7274 = vpop.permute.xlu0 %7273
        %7275 = vset.pattern.permute.xlu0 0
        %7276 = vperm.xlu0 %7275, %v6789
        %v7277 = vpop.permute.xlu0 %7276
        %7278 = vset.pattern.permute.xlu0 0
        %7279 = vperm.xlu0 %7278, %v6790
        %v7280 = vpop.permute.xlu0 %7279
        %7281 = vset.pattern.permute.xlu0 0
        %7282 = vperm.xlu0 %7281, %v6791
        %v7283 = vpop.permute.xlu0 %7282
        %7284 = vset.pattern.permute.xlu0 0
        %7285 = vperm.xlu0 %7284, %v6792
        %v7286 = vpop.permute.xlu0 %7285
        %7287 = vset.pattern.permute.xlu0 0
        %7288 = vperm.xlu0 %7287, %v6793
        %v7289 = vpop.permute.xlu0 %7288
        %7290 = vset.pattern.permute.xlu0 0
        %7291 = vperm.xlu0 %7290, %v6794
        %v7292 = vpop.permute.xlu0 %7291
        %7293 = vset.pattern.permute.xlu0 0
        %7294 = vperm.xlu0 %7293, %v6795
        %v7295 = vpop.permute.xlu0 %7294
        %7296 = vset.pattern.permute.xlu0 0
        %7297 = vperm.xlu0 %7296, %v6796
        %v7298 = vpop.permute.xlu0 %7297
        %7299 = vset.pattern.permute.xlu0 0
        %7300 = vperm.xlu0 %7299, %v6797
        %v7301 = vpop.permute.xlu0 %7300
        %7302 = vset.pattern.permute.xlu0 0
        %7303 = vperm.xlu0 %7302, %v6798
        %v7304 = vpop.permute.xlu0 %7303
        %7305 = vset.pattern.permute.xlu0 0
        %7306 = vperm.xlu0 %7305, %v6799
        %v7307 = vpop.permute.xlu0 %7306
        %7308 = vset.pattern.permute.xlu0 0
        %7309 = vperm.xlu0 %7308, %v6800
        %v7310 = vpop.permute.xlu0 %7309
        %7311 = vset.pattern.permute.xlu0 0
        %7312 = vperm.xlu0 %7311, %v6801
        %v7313 = vpop.permute.xlu0 %7312
        %7314 = vset.pattern.permute.xlu0 0
        %7315 = vperm.xlu0 %7314, %v6802
        %v7316 = vpop.permute.xlu0 %7315
        %7317 = vset.pattern.permute.xlu0 0
        %7318 = vperm.xlu0 %7317, %v6803
        %v7319 = vpop.permute.xlu0 %7318
        %7320 = vset.pattern.permute.xlu0 0
        %7321 = vperm.xlu0 %7320, %v6804
        %v7322 = vpop.permute.xlu0 %7321
        %7323 = vset.pattern.permute.xlu0 0
        %7324 = vperm.xlu0 %7323, %v6805
        %v7325 = vpop.permute.xlu0 %7324
        %7326 = vset.pattern.permute.xlu0 0
        %7327 = vperm.xlu0 %7326, %v6806
        %v7328 = vpop.permute.xlu0 %7327
        %7329 = vset.pattern.permute.xlu0 0
        %7330 = vperm.xlu0 %7329, %v6807
        %v7331 = vpop.permute.xlu0 %7330
        %7332 = vset.pattern.permute.xlu0 0
        %7333 = vperm.xlu0 %7332, %v6808
        %v7334 = vpop.permute.xlu0 %7333
        %7335 = vset.pattern.permute.xlu0 0
        %7336 = vperm.xlu0 %7335, %v6809
        %v7337 = vpop.permute.xlu0 %7336
        %7338 = vset.pattern.permute.xlu0 0
        %7339 = vperm.xlu0 %7338, %v6810
        %v7340 = vpop.permute.xlu0 %7339
        %7341 = vset.pattern.permute.xlu0 0
        %7342 = vperm.xlu0 %7341, %v6811
        %v7343 = vpop.permute.xlu0 %7342
        %7344 = vset.pattern.permute.xlu0 0
        %7345 = vperm.xlu0 %7344, %v6812
        %v7346 = vpop.permute.xlu0 %7345
        %7347 = vset.pattern.permute.xlu0 0
        %7348 = vperm.xlu0 %7347, %v6813
        %v7349 = vpop.permute.xlu0 %7348
        %v7350 = vlaneseq
        %v7351 = vshrl.u32 %v7350, 7
        %v7352 = vsub.s32 %v959, %v7351
        %v7353 = vrot.slane %v7256, %v7352
        %v7354 = vlaneseq
        %v7355 = vshrl.u32 %v7354, 7
        %v7356 = vsub.s32 %v964, %v7355
        %v7357 = vrot.slane %v7259, %v7356
        %v7358 = vsel %vm969, %v7357, %v7353
        %v7359 = vlaneseq
        %v7360 = vshrl.u32 %v7359, 7
        %v7361 = vsub.s32 %v971, %v7360
        %v7362 = vrot.slane %v7262, %v7361
        %v7363 = vsel %vm976, %v7362, %v7358
        %v7364 = vlaneseq
        %v7365 = vshrl.u32 %v7364, 7
        %v7366 = vsub.s32 %v978, %v7365
        %v7367 = vrot.slane %v7265, %v7366
        %v7368 = vsel %vm983, %v7367, %v7363
        %v7369 = vlaneseq
        %v7370 = vshrl.u32 %v7369, 7
        %v7371 = vsub.s32 %v985, %v7370
        %v7372 = vrot.slane %v7268, %v7371
        %v7373 = vsel %vm990, %v7372, %v7368
        %v7374 = vlaneseq
        %v7375 = vshrl.u32 %v7374, 7
        %v7376 = vsub.s32 %v992, %v7375
        %v7377 = vrot.slane %v7271, %v7376
        %v7378 = vsel %vm997, %v7377, %v7373
        %v7379 = vlaneseq
        %v7380 = vshrl.u32 %v7379, 7
        %v7381 = vsub.s32 %v999, %v7380
        %v7382 = vrot.slane %v7274, %v7381
        %v7383 = vsel %vm1004, %v7382, %v7378
        %v7384 = vlaneseq
        %v7385 = vshrl.u32 %v7384, 7
        %v7386 = vsub.s32 %v1006, %v7385
        %v7387 = vrot.slane %v7277, %v7386
        %v7388 = vsel %vm1011, %v7387, %v7383
        %v7389 = vlaneseq
        %v7390 = vshrl.u32 %v7389, 7
        %v7391 = vsub.s32 %v1013, %v7390
        %v7392 = vrot.slane %v7280, %v7391
        %v7393 = vsel %vm1018, %v7392, %v7388
        %v7394 = vlaneseq
        %v7395 = vshrl.u32 %v7394, 7
        %v7396 = vsub.s32 %v1020, %v7395
        %v7397 = vrot.slane %v7283, %v7396
        %v7398 = vsel %vm1025, %v7397, %v7393
        %v7399 = vlaneseq
        %v7400 = vshrl.u32 %v7399, 7
        %v7401 = vsub.s32 %v1027, %v7400
        %v7402 = vrot.slane %v7286, %v7401
        %v7403 = vsel %vm1032, %v7402, %v7398
        %v7404 = vlaneseq
        %v7405 = vshrl.u32 %v7404, 7
        %v7406 = vsub.s32 %v1034, %v7405
        %v7407 = vrot.slane %v7289, %v7406
        %v7408 = vsel %vm1039, %v7407, %v7403
        %v7409 = vlaneseq
        %v7410 = vshrl.u32 %v7409, 7
        %v7411 = vsub.s32 %v1041, %v7410
        %v7412 = vrot.slane %v7292, %v7411
        %v7413 = vsel %vm1046, %v7412, %v7408
        %v7414 = vlaneseq
        %v7415 = vshrl.u32 %v7414, 7
        %v7416 = vsub.s32 %v1048, %v7415
        %v7417 = vrot.slane %v7295, %v7416
        %v7418 = vsel %vm1053, %v7417, %v7413
        %v7419 = vlaneseq
        %v7420 = vshrl.u32 %v7419, 7
        %v7421 = vsub.s32 %v1055, %v7420
        %v7422 = vrot.slane %v7298, %v7421
        %v7423 = vsel %vm1060, %v7422, %v7418
        %v7424 = vlaneseq
        %v7425 = vshrl.u32 %v7424, 7
        %v7426 = vsub.s32 %v1062, %v7425
        %v7427 = vrot.slane %v7301, %v7426
        %v7428 = vsel %vm1067, %v7427, %v7423
        %v7429 = vlaneseq
        %v7430 = vshrl.u32 %v7429, 7
        %v7431 = vsub.s32 %v959, %v7430
        %v7432 = vrot.slane %v7304, %v7431
        %v7433 = vlaneseq
        %v7434 = vshrl.u32 %v7433, 7
        %v7435 = vsub.s32 %v964, %v7434
        %v7436 = vrot.slane %v7307, %v7435
        %v7437 = vsel %vm969, %v7436, %v7432
        %v7438 = vlaneseq
        %v7439 = vshrl.u32 %v7438, 7
        %v7440 = vsub.s32 %v971, %v7439
        %v7441 = vrot.slane %v7310, %v7440
        %v7442 = vsel %vm976, %v7441, %v7437
        %v7443 = vlaneseq
        %v7444 = vshrl.u32 %v7443, 7
        %v7445 = vsub.s32 %v978, %v7444
        %v7446 = vrot.slane %v7313, %v7445
        %v7447 = vsel %vm983, %v7446, %v7442
        %v7448 = vlaneseq
        %v7449 = vshrl.u32 %v7448, 7
        %v7450 = vsub.s32 %v985, %v7449
        %v7451 = vrot.slane %v7316, %v7450
        %v7452 = vsel %vm990, %v7451, %v7447
        %v7453 = vlaneseq
        %v7454 = vshrl.u32 %v7453, 7
        %v7455 = vsub.s32 %v992, %v7454
        %v7456 = vrot.slane %v7319, %v7455
        %v7457 = vsel %vm997, %v7456, %v7452
        %v7458 = vlaneseq
        %v7459 = vshrl.u32 %v7458, 7
        %v7460 = vsub.s32 %v999, %v7459
        %v7461 = vrot.slane %v7322, %v7460
        %v7462 = vsel %vm1004, %v7461, %v7457
        %v7463 = vlaneseq
        %v7464 = vshrl.u32 %v7463, 7
        %v7465 = vsub.s32 %v1006, %v7464
        %v7466 = vrot.slane %v7325, %v7465
        %v7467 = vsel %vm1011, %v7466, %v7462
        %v7468 = vlaneseq
        %v7469 = vshrl.u32 %v7468, 7
        %v7470 = vsub.s32 %v1013, %v7469
        %v7471 = vrot.slane %v7328, %v7470
        %v7472 = vsel %vm1018, %v7471, %v7467
        %v7473 = vlaneseq
        %v7474 = vshrl.u32 %v7473, 7
        %v7475 = vsub.s32 %v1020, %v7474
        %v7476 = vrot.slane %v7331, %v7475
        %v7477 = vsel %vm1025, %v7476, %v7472
        %v7478 = vlaneseq
        %v7479 = vshrl.u32 %v7478, 7
        %v7480 = vsub.s32 %v1027, %v7479
        %v7481 = vrot.slane %v7334, %v7480
        %v7482 = vsel %vm1032, %v7481, %v7477
        %v7483 = vlaneseq
        %v7484 = vshrl.u32 %v7483, 7
        %v7485 = vsub.s32 %v1034, %v7484
        %v7486 = vrot.slane %v7337, %v7485
        %v7487 = vsel %vm1039, %v7486, %v7482
        %v7488 = vlaneseq
        %v7489 = vshrl.u32 %v7488, 7
        %v7490 = vsub.s32 %v1041, %v7489
        %v7491 = vrot.slane %v7340, %v7490
        %v7492 = vsel %vm1046, %v7491, %v7487
        %v7493 = vlaneseq
        %v7494 = vshrl.u32 %v7493, 7
        %v7495 = vsub.s32 %v1048, %v7494
        %v7496 = vrot.slane %v7343, %v7495
        %v7497 = vsel %vm1053, %v7496, %v7492
        %v7498 = vlaneseq
        %v7499 = vshrl.u32 %v7498, 7
        %v7500 = vsub.s32 %v1055, %v7499
        %v7501 = vrot.slane %v7346, %v7500
        %v7502 = vsel %vm1060, %v7501, %v7497
        %v7503 = vlaneseq
        %v7504 = vshrl.u32 %v7503, 7
        %v7505 = vsub.s32 %v1062, %v7504
        %v7506 = vrot.slane %v7349, %v7505
        %v7507 = vsel %vm1067, %v7506, %v7502
        %v7508 = vsel %vm1148, %v7507, %v7428
        %7510 = vst [vmem:[%s399 + $0x6] sm:$0x3] %v7508
        %s7511 = sand.u32 %s177, 1
        %s7512 = scalar_lea.sflag [#allocation4], %s7511
        %s7513 = sand.u32 %s177, 1
        %s7514 = smul.addr %s7513, 8
        %s7515 = scalar_lea.vmem [#allocation13], %s7514
        %s7516 = sand.u32 %s203, 1
        %s7517 = scalar_lea.sflag [#allocation15], %s7516
        %s7518 = sand.u32 %s203, 1
        %s7519 = smul.addr %s7518, 8
        %s7520 = scalar_lea.vmem [#allocation14], %s7519
        // Predicated region
        $region69: #{tpu_custom_call.1} parent=43 // pred_check
          %p7521 = pneg %p187
        $region70: #{tpu_custom_call.1} parent=43 // pred_check_branch
          %7523 = sbr.rel (%p7521) target = $region72
        $region71: #{tpu_custom_call.1} parent=43 // pred_region
          %s7525 = ssub.s32 128, 128
          %7526 = vsyncadd %s7512, %s7525
          %s7527 = smul.addr %s33, 128
          %s7528 = scalar_lea.hbm %s6, %s7527
          %s7530 = sshll.u32 %s7515, 4
          %s7531 = int_to_ptr.vmem [resolvable:$true] %s7530
          %7533 = dma.vmem_to_hbm [thread:$0]  %s7531, 128, %s7528, %s7512
        $region72: #{tpu_custom_call.1} parent=43 // pred_fallthru
          _
        // Predicated region
        $region73: #{tpu_custom_call.1} parent=43 // pred_check
          %p7534 = pneg %p213
        $region74: #{tpu_custom_call.1} parent=43 // pred_check_branch
          %7536 = sbr.rel (%p7534) target = $region76
        $region75: #{tpu_custom_call.1} parent=43 // pred_region
          %s7538 = ssub.s32 128, 128
          %7539 = vsyncadd %s7517, %s7538
          %s7540 = smul.addr %s33, 128
          %s7541 = scalar_lea.hbm %s7, %s7540
          %s7543 = sshll.u32 %s7520, 4
          %s7544 = int_to_ptr.vmem [resolvable:$true] %s7543
          %7546 = dma.vmem_to_hbm [thread:$0]  %s7544, 128, %s7541, %s7517
        $region76: #{tpu_custom_call.1} parent=43 // pred_fallthru
          _
      $region44: #{tpu_custom_call.1} parent=5 // pred_fallthru
        _
      %p7547 = scmp.le.s32.totalorder 2, %s28
      // Predicated region
      $region77: #{tpu_custom_call.1} parent=5 // pred_check
        %p7548 = pneg %p7547
      $region78: #{tpu_custom_call.1} parent=5 // pred_check_branch
        %7550 = sbr.rel (%p7548) target = $region80
      $region79: #{tpu_custom_call.1} parent=5 // pred_region
        %s7551 = ssub.s32 %s28, 2
        // Predicated region
        $region81: #{tpu_custom_call.1} parent=79 // pred_check
          %p7552 = pneg %p193
        $region82: #{tpu_custom_call.1} parent=79 // pred_check_branch
          %7554 = sbr.rel (%p7552) target = $region84
        $region83: #{tpu_custom_call.1} parent=79 // pred_region
          %s7555 = sand.u32 %s178, 1
          %s7556 = scalar_lea.sflag [#allocation4], %s7555
          %s7557 = sand.u32 %s178, 1
          %s7558 = smul.addr %s7557, 8
          %s7559 = scalar_lea.vmem [#allocation13], %s7558
          %7560 = dma.done %s7556, 128
        $region84: #{tpu_custom_call.1} parent=79 // pred_fallthru
          _
        // Predicated region
        $region85: #{tpu_custom_call.1} parent=79 // pred_check
          %p7561 = pneg %p219
        $region86: #{tpu_custom_call.1} parent=79 // pred_check_branch
          %7563 = sbr.rel (%p7561) target = $region88
        $region87: #{tpu_custom_call.1} parent=79 // pred_region
          %s7564 = sand.u32 %s204, 1
          %s7565 = scalar_lea.sflag [#allocation15], %s7564
          %s7566 = sand.u32 %s204, 1
          %s7567 = smul.addr %s7566, 8
          %s7568 = scalar_lea.vmem [#allocation14], %s7567
          %7569 = dma.done %s7565, 128
        $region88: #{tpu_custom_call.1} parent=79 // pred_fallthru
          _
      $region80: #{tpu_custom_call.1} parent=5 // pred_fallthru
        _
    $region6: #{tpu_custom_call.1} parent=1 // loop_footer
      %s32 = sadd.s32 1, %s28
    $region7: #{tpu_custom_call.1} parent=1 // loop_footer_branch
      %27 = sbr.rel target = $region3
    $region8: #{tpu_custom_call.1} parent=1 // loop_exit
      _
    %7570 = vsyncpa [#allocation3], 1
    %s7571 = scalar_lea.sflag [#allocation3], 1
    %7572 = vsyncpa %s7571, 1
    %7573 = vsyncpa [#allocation6], 1
    %s7574 = scalar_lea.sflag [#allocation6], 1
    %7575 = vsyncpa %s7574, 1
    %7576 = vsyncpa [#allocation9], 1
    %7577 = vsyncpa [#allocation12], 1
    %7578 = vsyncpa [#allocation4], 1
    %s7579 = scalar_lea.sflag [#allocation4], 1
    %7580 = vsyncpa %s7579, 1
    %7581 = vsyncpa [#allocation15], 1
    %s7582 = scalar_lea.sflag [#allocation15], 1
    %7583 = vsyncpa %s7582, 1

</llo_original>
